<compile_context>
chip_gen: v7x
topology: tpu7x:2x2x1
jax: 0.10.0
libtpu: 0.0.40
codegen_flags: <defaults>
</compile_context>

<pallas_src>
import functools

import jax
import jax.numpy as jnp
import numpy as np
from jax.experimental import pallas as pl
from jax.experimental.pallas import tpu as pltpu


def get_padding(kernel_size, dilation=1):
    return int((kernel_size * dilation - dilation) / 2)


def _round_up(x, m):
    return ((x + m - 1) // m) * m


# ----------------------------------------------------------------------------
# Pallas kernel 1: canonical tiled matmul, K-innermost reduction, f32 VMEM
# accumulator, fused bias + leaky-relu epilogue.  Used for the stride-3 conv
# layers (im2col patches @ weights).
# ----------------------------------------------------------------------------
def _matmul_kernel(a_ref, b_ref, bias_ref, o_ref, acc_ref, *, slope):
    k = pl.program_id(2)

    @pl.when(k == 0)
    def _init():
        acc_ref[...] = jnp.zeros_like(acc_ref)

    acc_ref[...] += jnp.dot(a_ref[...], b_ref[...],
                            preferred_element_type=jnp.float32)

    @pl.when(k == pl.num_programs(2) - 1)
    def _epilogue():
        y = acc_ref[...] + bias_ref[...]           # f32 epilogue (v5e-safe)
        if slope is not None:                      # static python branch
            y = jnp.where(y >= 0.0, y, slope * y)
        o_ref[...] = y.astype(o_ref.dtype)


def matmul_bias_act(a, w, bias, slope=None, out_dtype=jnp.bfloat16):
    """a: (M, K) bf16, w: (K, N) bf16, bias: (1, N) f32 -> (M, N) out_dtype."""
    M, K = a.shape
    K2, N = w.shape
    assert K == K2 and bias.shape == (1, N)

    # Tile selection: MXU-friendly, VMEM-bounded (fits 64 MiB-VMEM v7x easily).
    tm = min(256, _round_up(M, 16))               # 16: bf16 sublane packing
    tn = min(256, _round_up(N, 128))
    kr = _round_up(K, 128)
    tk = kr if kr <= 1024 else 512                # single K step when it fits
    m_p, n_p, k_p = _round_up(M, tm), _round_up(N, tn), _round_up(kr, tk)

    a_p = a if (m_p, k_p) == (M, K) else jnp.pad(a, ((0, m_p - M), (0, k_p - K)))
    w_p = w if (k_p, n_p) == (K, N) else jnp.pad(w, ((0, k_p - K), (0, n_p - N)))
    b_p = bias if n_p == N else jnp.pad(bias, ((0, 0), (0, n_p - N)))

    grid = (m_p // tm, n_p // tn, k_p // tk)      # reduction axis innermost
    kernel = functools.partial(_matmul_kernel, slope=slope)
    out = pl.pallas_call(
        kernel,
        out_shape=jax.ShapeDtypeStruct((m_p, n_p), out_dtype),
        grid=grid,
        in_specs=[
            pl.BlockSpec((tm, tk), lambda i, j, k: (i, k)),
            pl.BlockSpec((tk, tn), lambda i, j, k: (k, j)),
            pl.BlockSpec((1, tn), lambda i, j, k: (0, j)),   # bias tiled by j
        ],
        out_specs=pl.BlockSpec((tm, tn), lambda i, j, k: (i, j)),
        scratch_shapes=[pltpu.VMEM((tm, tn), jnp.float32)],
        compiler_params=pltpu.CompilerParams(
            dimension_semantics=("parallel", "parallel", "arbitrary"),
            vmem_limit_bytes=32 * 1024 * 1024),
        cost_estimate=pl.CostEstimate(
            flops=2 * m_p * n_p * k_p,
            transcendentals=0,
            bytes_accessed=2 * (m_p * k_p + k_p * n_p + m_p * n_p) + 4 * n_p),
    )(a_p, w_p, b_p)
    if (m_p, n_p) != (M, N):
        out = out[:M, :N]
    return out


# ----------------------------------------------------------------------------
# Pallas kernel 2: fused stride-1 (Kh,1) conv -- no im2col at all.
# Grid = (groups, Cout tiles, Cin tiles); Cin is the innermost reduction axis.
# ----------------------------------------------------------------------------
def _conv_s1_kernel(x_ref, w_ref, bias_ref, o_ref, acc_ref, xpad_ref, *,
                    kh, pad, hin, hout, slope):
    ci = pl.program_id(2)

    @pl.when(ci == 0)
    def _init():
        acc_ref[...] = jnp.zeros_like(acc_ref)

    # Stage the current Cin slice into an H-zero-padded VMEM buffer
    # (VMEM-only traffic; removes HBM-side padding / patch materialization).
    xpad_ref[...] = jnp.zeros_like(xpad_ref)
    xpad_ref[pl.ds(pad, hin), :] = x_ref[0]

    acc = acc_ref[...]
    for k in range(kh):                            # static, unrolled taps
        xk = xpad_ref[pl.ds(k, hout), :]           # (hout, tci), contiguous
        acc += jnp.dot(xk, w_ref[k], preferred_element_type=jnp.float32)
    acc_ref[...] = acc

    @pl.when(ci == pl.num_programs(2) - 1)
    def _epilogue():
        y = acc_ref[...] + bias_ref[...]
        if slope is not None:
            y = jnp.where(y >= 0.0, y, slope * y)
        o_ref[0] = y.astype(o_ref.dtype)


def conv_h_fused_s1(x, w, b, pad, slope, out_dtype=jnp.bfloat16):
    """Stride-1 conv with (Kh,1) kernel in the grouped channel-last layout.

    x: (G, Hin, Cin), w: (Cout, Cin, Kh, 1) torch layout, b: (Cout,).
    Returns (G, Hout, Cout).
    """
    G, Hin, Cin = x.shape
    Cout, Cin2, Kh, Kw = w.shape
    assert Cin == Cin2 and Kw == 1
    Hout = Hin + 2 * pad - Kh + 1
    tci = min(512, Cin)
    tco = min(256, Cout)
    assert Cin % tci == 0 and Cout % tco == 0

    wm = jnp.transpose(w[:, :, :, 0], (2, 1, 0)).astype(jnp.bfloat16)  # (Kh,Cin,Cout)
    bias = b.reshape(1, Cout).astype(jnp.float32)
    kernel = functools.partial(_conv_s1_kernel, kh=Kh, pad=pad,
                               hin=Hin, hout=Hout, slope=slope)
    return pl.pallas_call(
        kernel,
        out_shape=jax.ShapeDtypeStruct((G, Hout, Cout), out_dtype),
        grid=(G, Cout // tco, Cin // tci),          # Cin innermost (reduction)
        in_specs=[
            pl.BlockSpec((1, Hin, tci), lambda g, co, ci: (g, 0, ci)),
            pl.BlockSpec((Kh, tci, tco), lambda g, co, ci: (0, ci, co)),
            pl.BlockSpec((1, tco), lambda g, co, ci: (0, co)),
        ],
        out_specs=pl.BlockSpec((1, Hout, tco), lambda g, co, ci: (g, 0, co)),
        scratch_shapes=[pltpu.VMEM((Hout, tco), jnp.float32),
                        pltpu.VMEM((Hin + 2 * pad, tci), jnp.bfloat16)],
        compiler_params=pltpu.CompilerParams(
            dimension_semantics=("parallel", "parallel", "arbitrary"),
            vmem_limit_bytes=32 * 1024 * 1024),
        cost_estimate=pl.CostEstimate(
            flops=2 * G * Hout * Cin * Cout * Kh,
            transcendentals=0,
            bytes_accessed=2 * (G * Hin * Cin + Kh * Cin * Cout
                                + G * Hout * Cout)),
    )(x.astype(jnp.bfloat16), wm, bias)


# ----------------------------------------------------------------------------
# Glue: channel-last conv helpers (no NCHW transposes anywhere)
# ----------------------------------------------------------------------------
def _patches_h(x, kh, stride, pad, dtype):
    """im2col along H only.  x: (G, H, C) -> (G*Hout, kh*C), Hout.
    K ordering is (tap, channel), matching weights reshaped to (Kh*Cin, Cout);
    built with plain strided slices (no gather, no transpose)."""
    G, H, C = x.shape
    xp = jnp.pad(x, ((0, 0), (pad, pad), (0, 0)))
    hout = (H + 2 * pad - kh) // stride + 1
    taps = [xp[:, k:k + (hout - 1) * stride + 1:stride, :] for k in range(kh)]
    p = jnp.stack(taps, axis=2)                     # (G, Hout, Kh, C)
    return p.reshape(G * hout, kh * C).astype(dtype), hout


def _wmat(w):
    """(Cout, Cin, Kh, 1) torch layout -> (Kh*Cin, Cout)."""
    cout, cin, kh, _ = w.shape
    return jnp.transpose(w[:, :, :, 0], (2, 1, 0)).reshape(kh * cin, cout)


def conv_h_xla(x, w, b, stride, pad, slope):
    """Tiny first conv (K=Cin*Kh=10, N=32): plain XLA in f32/HIGHEST."""
    cout = w.shape[0]
    p, hout = _patches_h(x, w.shape[2], stride, pad, jnp.float32)
    y = jnp.dot(p, _wmat(w).astype(jnp.float32),
                precision=jax.lax.Precision.HIGHEST) + b
    y = jnp.where(y >= 0.0, y, slope * y)
    return y.reshape(x.shape[0], hout, cout)


def conv_h_pallas_matmul(x, w, b, stride, pad, slope):
    """Stride-3 conv layers: bf16 im2col patches + tiled Pallas matmul."""
    cout = w.shape[0]
    p, hout = _patches_h(x, w.shape[2], stride, pad, jnp.bfloat16)
    wm = _wmat(w).astype(jnp.bfloat16)
    bias = b.reshape(1, cout).astype(jnp.float32)
    y = matmul_bias_act(p, wm, bias, slope)
    return y.reshape(x.shape[0], hout, cout)


def conv_post_xla(y, w, b):
    """Cout=1 conv (Kh=3, stride 1, pad 1) as a VPU-style lane reduction."""
    G, H, C = y.shape
    wp = w[0, :, :, 0].T.astype(jnp.float32)        # (3, C)
    z = jnp.einsum("ghc,kc->kgh", y.astype(jnp.float32), wp,
                   precision=jax.lax.Precision.HIGHEST)   # (3, G, H)
    zm1 = jnp.pad(z[0], ((0, 0), (1, 0)))[:, :H]    # holds z0[h-1] (0 at h=0)
    zp1 = jnp.pad(z[2], ((0, 0), (0, 1)))[:, 1:]    # holds z2[h+1] (0 at end)
    return z[1] + zm1 + zp1 + b[0]                  # (G, H)


# ----------------------------------------------------------------------------
# CCDiscriminatorP forward
# ----------------------------------------------------------------------------
def cc_discriminator_p_forward(params, x, labels, *, period, audio_input_dim,
                               lrelu_slope=0.1):
    # Label conditioning: tiny GEMMs -> plain XLA (per perf review).
    e = jnp.take(params["emb1_w"], labels, axis=0)              # (B, n_cls*20)
    emb = jnp.dot(e, params["lin_w"].T,
                  precision=jax.lax.Precision.HIGHEST) + params["lin_b"]
    emb = emb.reshape(-1, 1, audio_input_dim)                    # (B, 1, T)

    x = jnp.concatenate([x, emb], axis=1)                        # (B, 2, T)
    b, c, t = x.shape
    if t % period != 0:
        n_pad = period - t % period
        x = jnp.pad(x, ((0, 0), (0, 0), (0, n_pad)), mode="reflect")
        t = t + n_pad
    h = t // period
    # (B, 2, H, W) -> grouped channel-last layout (B*W, H, C); W is pointwise
    # for every conv, so it folds into the batch/group dimension.
    xg = x.reshape(b, c, h, period).transpose(0, 3, 2, 1).reshape(b * period, h, c)

    pad5 = get_padding(5, 1)
    fmap = []

    # conv 0: 2 -> 32, stride 3 (tiny GEMM -> XLA)
    w0, b0 = params["convs"][0]
    y = conv_h_xla(xg, w0, b0, stride=3, pad=pad5, slope=lrelu_slope)
    fmap.append(y.reshape(b, period, y.shape[1], y.shape[2]))

    # convs 1..3: stride 3 -> bf16 im2col + tiled Pallas matmul
    for i in (1, 2, 3):
        wi, bi = params["convs"][i]
        y = conv_h_pallas_matmul(y, wi, bi, stride=3, pad=pad5,
                                 slope=lrelu_slope)
        fmap.append(y.reshape(b, period, y.shape[1], y.shape[2]))

    # conv 4: 1024 -> 1024, stride 1 -> fused Pallas conv (no im2col)
    w4, b4 = params["convs"][4]
    y = conv_h_fused_s1(y, w4, b4, pad=pad5, slope=lrelu_slope)
    fmap.append(y.reshape(b, period, y.shape[1], y.shape[2]))

    # conv_post: Cout=1 -> VPU reduction in XLA (off the MXU, lane-dense)
    wp, bp = params["conv_post"]
    out = conv_post_xla(y, wp, bp)                               # (B*W, H)
    hh = out.shape[1]
    fmap.append(out.reshape(b, period, hh, 1))

    # flatten exactly like torch.flatten((B,1,H,W), 1): h-major, then w
    x_flat = out.reshape(b, period, hh).transpose(0, 2, 1).reshape(b, -1)
    return x_flat, fmap


# ----------------------------------------------------------------------------
# Deterministic parameter init (shapes match the PyTorch __init__)
# ----------------------------------------------------------------------------
def init_params(key, n_classes, audio_input_dim, kernel_size=5):
    keys = jax.random.split(key, 16)
    emb_dim = n_classes * 20
    params = {
        "emb1_w": jax.random.normal(keys[0], (n_classes, emb_dim), jnp.float32),
        "lin_w": jax.random.normal(keys[1], (audio_input_dim, emb_dim),
                                   jnp.float32) / np.sqrt(emb_dim),
        "lin_b": jnp.zeros((audio_input_dim,), jnp.float32),
    }
    chans = [(2, 32), (32, 128), (128, 512), (512, 1024), (1024, 1024)]
    convs = []
    for i, (cin, cout) in enumerate(chans):
        w = jax.random.normal(keys[2 + i], (cout, cin, kernel_size, 1),
                              jnp.float32) / np.sqrt(cin * kernel_size)
        convs.append((w, jnp.zeros((cout,), jnp.float32)))
    params["convs"] = convs
    wp = jax.random.normal(keys[10], (1, 1024, 3, 1), jnp.float32) / np.sqrt(1024 * 3)
    params["conv_post"] = (wp, jnp.zeros((1,), jnp.float32))
    return params


# ----------------------------------------------------------------------------
# Pure-JAX reference (sanity check, f32 / HIGHEST precision, NCHW)
# ----------------------------------------------------------------------------
def reference_forward(params, x, labels, *, period, audio_input_dim, slope=0.1):
    e = params["emb1_w"][labels]
    emb = (e @ params["lin_w"].T + params["lin_b"]).reshape(-1, 1, audio_input_dim)
    x = jnp.concatenate([x, emb], axis=1)
    b, c, t = x.shape
    if t % period != 0:
        n_pad = period - t % period
        x = jnp.pad(x, ((0, 0), (0, 0), (0, n_pad)), mode="reflect")
        t = t + n_pad
    x = x.reshape(b, c, t // period, period)
    cfgs = [(3, 2)] * 4 + [(1, 2)]
    dn = ("NCHW", "OIHW", "NCHW")
    for i, (s, p) in enumerate(cfgs):
        w, bias = params["convs"][i]
        x = jax.lax.conv_general_dilated(x, w, (s, 1), ((p, p), (0, 0)),
                                         dimension_numbers=dn,
                                         precision=jax.lax.Precision.HIGHEST)
        x = x + bias.reshape(1, -1, 1, 1)
        x = jnp.where(x >= 0, x, slope * x)
    wp, bp = params["conv_post"]
    x = jax.lax.conv_general_dilated(x, wp, (1, 1), ((1, 1), (0, 0)),
                                     dimension_numbers=dn,
                                     precision=jax.lax.Precision.HIGHEST)
    x = x + bp.reshape(1, -1, 1, 1)
    return x.reshape(b, -1)


if __name__ == "__main__":
    B = 2
    N_CLASSES = 4
    AUDIO_INPUT_DIM = 60          # == T of the input audio slice
    PERIOD = 2
    LRELU = 0.1

    key = jax.random.PRNGKey(0)
    k_params, k_x, k_lab = jax.random.split(key, 3)

    params = init_params(k_params, N_CLASSES, AUDIO_INPUT_DIM)
    x = jax.random.normal(k_x, (B, 1, AUDIO_INPUT_DIM), jnp.float32)
    labels = jax.random.randint(k_lab, (B,), 0, N_CLASSES)

    fwd = jax.jit(functools.partial(cc_discriminator_p_forward,
                                    period=PERIOD,
                                    audio_input_dim=AUDIO_INPUT_DIM,
                                    lrelu_slope=LRELU))
    out, fmap = fwd(params, x, labels)
    out = jax.block_until_ready(out)
    fmap = jax.block_until_ready(fmap)

    # sanity check against a pure-JAX f32/HIGHEST reference (loose tolerance:
    # Pallas path runs bf16 MXU inputs with f32 accumulation).
    ref = reference_forward(params, x, labels, period=PERIOD,
                            audio_input_dim=AUDIO_INPUT_DIM, slope=LRELU)
    np.testing.assert_allclose(np.asarray(out, dtype=np.float32),
                               np.asarray(ref, dtype=np.float32),
                               rtol=1e-1, atol=1e-1)
    assert len(fmap) == 6
    assert out.shape == ref.shape            # (B, Hout * period)

    print("KERNEL_OK")
</pallas_src>

<mosaic_0001>
module attributes {stable_mosaic.version = 11 : i64} {
  func.func @_matmul_kernel(%arg0: i32, %arg1: i32, %arg2: i32, %arg3: memref<16x256xbf16, #tpu.memory_space<vmem>>, %arg4: memref<256x128xbf16, #tpu.memory_space<vmem>>, %arg5: memref<1x128xf32, #tpu.memory_space<vmem>>, %arg6: memref<16x128xbf16, #tpu.memory_space<vmem>>, %arg7: memref<16x128xf32, #tpu.memory_space<vmem>>) attributes {dimension_semantics = [#tpu.dimension_semantics<parallel>, #tpu.dimension_semantics<parallel>, #tpu.dimension_semantics<arbitrary>], iteration_bounds = array<i64: 1, 1, 1>, scalar_prefetch = 0 : i64, scratch_operands = 1 : i64, tpu.core_type = #tpu.core_type<tc>, window_params = [{transform_indices = @transform_0, window_bounds = array<i64: 16, 256>}, {transform_indices = @transform_1, window_bounds = array<i64: 256, 128>}, {transform_indices = @transform_2, window_bounds = array<i64: 1, 128>}, {transform_indices = @transform_3, window_bounds = array<i64: 16, 128>}]} {
    %c0_i32 = arith.constant 0 : i32
    %0 = arith.cmpi eq, %arg2, %c0_i32 : i32
    %1 = arith.extui %0 : i1 to i32
    %c0_i32_0 = arith.constant 0 : i32
    %2 = arith.cmpi ne, %1, %c0_i32_0 : i32
    scf.if %2 {
      %cst_10 = arith.constant 0.000000e+00 : f32
      %12 = vector.broadcast %cst_10 : f32 to vector<16x128xf32>
      %c0_11 = arith.constant 0 : index
      %c0_12 = arith.constant 0 : index
      %13 = vector.load %arg7[%c0_11, %c0_12] : memref<16x128xf32, #tpu.memory_space<vmem>>, vector<16x128xf32>
      tpu.vector_store %arg7[%c0_11, %c0_12], %12 {strides = array<i32>} : memref<16x128xf32, #tpu.memory_space<vmem>>, vector<16x128xf32>,
    } else {
    }
    %c0 = arith.constant 0 : index
    %c0_1 = arith.constant 0 : index
    %3 = vector.load %arg7[%c0, %c0_1] : memref<16x128xf32, #tpu.memory_space<vmem>>, vector<16x128xf32>
    %c0_2 = arith.constant 0 : index
    %c0_3 = arith.constant 0 : index
    %4 = vector.load %arg3[%c0_2, %c0_3] : memref<16x256xbf16, #tpu.memory_space<vmem>>, vector<16x256xbf16>
    %c0_4 = arith.constant 0 : index
    %c0_5 = arith.constant 0 : index
    %5 = vector.load %arg4[%c0_4, %c0_5] : memref<256x128xbf16, #tpu.memory_space<vmem>>, vector<256x128xbf16>
    %cst = arith.constant dense<0.000000e+00> : vector<16x128xf32>
    %6 = tpu.matmul %4, %5, %cst {dimension_numbers = #tpu.dot_dimension_numbers<[1], [0], [0], [1], [0, 0, 1, 1], [], []>} : vector<16x256xbf16>, vector<256x128xbf16>, vector<16x128xf32> -> vector<16x128xf32>
    %7 = arith.addf %3, %6 : vector<16x128xf32>
    %c0_6 = arith.constant 0 : index
    %c0_7 = arith.constant 0 : index
    %8 = vector.load %arg7[%c0_6, %c0_7] : memref<16x128xf32, #tpu.memory_space<vmem>>, vector<16x128xf32>
    tpu.vector_store %arg7[%c0_6, %c0_7], %7 {strides = array<i32>} : memref<16x128xf32, #tpu.memory_space<vmem>>, vector<16x128xf32>,
    %c0_i32_8 = arith.constant 0 : i32
    %9 = arith.cmpi eq, %arg2, %c0_i32_8 : i32
    %10 = arith.extui %9 : i1 to i32
    %c0_i32_9 = arith.constant 0 : i32
    %11 = arith.cmpi ne, %10, %c0_i32_9 : i32
    scf.if %11 {
      %c0_10 = arith.constant 0 : index
      %c0_11 = arith.constant 0 : index
      %12 = vector.load %arg7[%c0_10, %c0_11] : memref<16x128xf32, #tpu.memory_space<vmem>>, vector<16x128xf32>
      %c0_12 = arith.constant 0 : index
      %c0_13 = arith.constant 0 : index
      %13 = vector.load %arg5[%c0_12, %c0_13] : memref<1x128xf32, #tpu.memory_space<vmem>>, vector<1x128xf32>
      %14 = vector.broadcast %13 : vector<1x128xf32> to vector<16x128xf32>
      %15 = arith.addf %12, %14 : vector<16x128xf32>
      %cst_14 = arith.constant 0.000000e+00 : f32
      %16 = vector.broadcast %cst_14 : f32 to vector<16x128xf32>
      %17 = arith.cmpf oge, %15, %16 : vector<16x128xf32>
      %cst_15 = arith.constant 1.000000e-01 : f32
      %18 = vector.broadcast %cst_15 : f32 to vector<16x128xf32>
      %19 = arith.mulf %18, %15 : vector<16x128xf32>
      %20 = arith.select %17, %15, %19 : vector<16x128xi1>, vector<16x128xf32>
      %21 = arith.truncf %20 : vector<16x128xf32> to vector<16x128xbf16>
      %c0_16 = arith.constant 0 : index
      %c0_17 = arith.constant 0 : index
      %22 = vector.load %arg6[%c0_16, %c0_17] : memref<16x128xbf16, #tpu.memory_space<vmem>>, vector<16x128xbf16>
      tpu.vector_store %arg6[%c0_16, %c0_17], %21 {strides = array<i32>} : memref<16x128xbf16, #tpu.memory_space<vmem>>, vector<16x128xbf16>,
    } else {
    }
    return
  }
  func.func @transform_0(%arg0: i32, %arg1: i32, %arg2: i32) -> (i32, i32) {
    %c0_i32 = arith.constant 0 : i32
    return %arg0, %arg2 : i32, i32
  }
  func.func @transform_1(%arg0: i32, %arg1: i32, %arg2: i32) -> (i32, i32) {
    %c0_i32 = arith.constant 0 : i32
    return %arg2, %arg1 : i32, i32
  }
  func.func @transform_2(%arg0: i32, %arg1: i32, %arg2: i32) -> (i32, i32) {
    %c0_i32 = arith.constant 0 : i32
    %c0_i32_0 = arith.constant 0 : i32
    return %c0_i32, %arg1 : i32, i32
  }
  func.func @transform_3(%arg0: i32, %arg1: i32, %arg2: i32) -> (i32, i32) {
    %c0_i32 = arith.constant 0 : i32
    return %arg0, %arg1 : i32, i32
  }
}

module attributes {stable_mosaic.version = 11 : i64} {
  func.func @_matmul_kernel(%arg0: i32, %arg1: i32, %arg2: i32, %arg3: memref<16x640xbf16, #tpu.memory_space<vmem>>, %arg4: memref<640x256xbf16, #tpu.memory_space<vmem>>, %arg5: memref<1x256xf32, #tpu.memory_space<vmem>>, %arg6: memref<16x256xbf16, #tpu.memory_space<vmem>>, %arg7: memref<16x256xf32, #tpu.memory_space<vmem>>) attributes {dimension_semantics = [#tpu.dimension_semantics<parallel>, #tpu.dimension_semantics<parallel>, #tpu.dimension_semantics<arbitrary>], iteration_bounds = array<i64: 1, 2, 1>, scalar_prefetch = 0 : i64, scratch_operands = 1 : i64, tpu.core_type = #tpu.core_type<tc>, window_params = [{transform_indices = @transform_0, window_bounds = array<i64: 16, 640>}, {transform_indices = @transform_1, window_bounds = array<i64: 640, 256>}, {transform_indices = @transform_2, window_bounds = array<i64: 1, 256>}, {transform_indices = @transform_3, window_bounds = array<i64: 16, 256>}]} {
    %c0_i32 = arith.constant 0 : i32
    %0 = arith.cmpi eq, %arg2, %c0_i32 : i32
    %1 = arith.extui %0 : i1 to i32
    %c0_i32_0 = arith.constant 0 : i32
    %2 = arith.cmpi ne, %1, %c0_i32_0 : i32
    scf.if %2 {
      %cst_10 = arith.constant 0.000000e+00 : f32
      %12 = vector.broadcast %cst_10 : f32 to vector<16x256xf32>
      %c0_11 = arith.constant 0 : index
      %c0_12 = arith.constant 0 : index
      %13 = vector.load %arg7[%c0_11, %c0_12] : memref<16x256xf32, #tpu.memory_space<vmem>>, vector<16x256xf32>
      tpu.vector_store %arg7[%c0_11, %c0_12], %12 {strides = array<i32>} : memref<16x256xf32, #tpu.memory_space<vmem>>, vector<16x256xf32>,
    } else {
    }
    %c0 = arith.constant 0 : index
    %c0_1 = arith.constant 0 : index
    %3 = vector.load %arg7[%c0, %c0_1] : memref<16x256xf32, #tpu.memory_space<vmem>>, vector<16x256xf32>
    %c0_2 = arith.constant 0 : index
    %c0_3 = arith.constant 0 : index
    %4 = vector.load %arg3[%c0_2, %c0_3] : memref<16x640xbf16, #tpu.memory_space<vmem>>, vector<16x640xbf16>
    %c0_4 = arith.constant 0 : index
    %c0_5 = arith.constant 0 : index
    %5 = vector.load %arg4[%c0_4, %c0_5] : memref<640x256xbf16, #tpu.memory_space<vmem>>, vector<640x256xbf16>
    %cst = arith.constant dense<0.000000e+00> : vector<16x256xf32>
    %6 = tpu.matmul %4, %5, %cst {dimension_numbers = #tpu.dot_dimension_numbers<[1], [0], [0], [1], [0, 0, 1, 1], [], []>} : vector<16x640xbf16>, vector<640x256xbf16>, vector<16x256xf32> -> vector<16x256xf32>
    %7 = arith.addf %3, %6 : vector<16x256xf32>
    %c0_6 = arith.constant 0 : index
    %c0_7 = arith.constant 0 : index
    %8 = vector.load %arg7[%c0_6, %c0_7] : memref<16x256xf32, #tpu.memory_space<vmem>>, vector<16x256xf32>
    tpu.vector_store %arg7[%c0_6, %c0_7], %7 {strides = array<i32>} : memref<16x256xf32, #tpu.memory_space<vmem>>, vector<16x256xf32>,
    %c0_i32_8 = arith.constant 0 : i32
    %9 = arith.cmpi eq, %arg2, %c0_i32_8 : i32
    %10 = arith.extui %9 : i1 to i32
    %c0_i32_9 = arith.constant 0 : i32
    %11 = arith.cmpi ne, %10, %c0_i32_9 : i32
    scf.if %11 {
      %c0_10 = arith.constant 0 : index
      %c0_11 = arith.constant 0 : index
      %12 = vector.load %arg7[%c0_10, %c0_11] : memref<16x256xf32, #tpu.memory_space<vmem>>, vector<16x256xf32>
      %c0_12 = arith.constant 0 : index
      %c0_13 = arith.constant 0 : index
      %13 = vector.load %arg5[%c0_12, %c0_13] : memref<1x256xf32, #tpu.memory_space<vmem>>, vector<1x256xf32>
      %14 = vector.broadcast %13 : vector<1x256xf32> to vector<16x256xf32>
      %15 = arith.addf %12, %14 : vector<16x256xf32>
      %cst_14 = arith.constant 0.000000e+00 : f32
      %16 = vector.broadcast %cst_14 : f32 to vector<16x256xf32>
      %17 = arith.cmpf oge, %15, %16 : vector<16x256xf32>
      %cst_15 = arith.constant 1.000000e-01 : f32
      %18 = vector.broadcast %cst_15 : f32 to vector<16x256xf32>
      %19 = arith.mulf %18, %15 : vector<16x256xf32>
      %20 = arith.select %17, %15, %19 : vector<16x256xi1>, vector<16x256xf32>
      %21 = arith.truncf %20 : vector<16x256xf32> to vector<16x256xbf16>
      %c0_16 = arith.constant 0 : index
      %c0_17 = arith.constant 0 : index
      %22 = vector.load %arg6[%c0_16, %c0_17] : memref<16x256xbf16, #tpu.memory_space<vmem>>, vector<16x256xbf16>
      tpu.vector_store %arg6[%c0_16, %c0_17], %21 {strides = array<i32>} : memref<16x256xbf16, #tpu.memory_space<vmem>>, vector<16x256xbf16>,
    } else {
    }
    return
  }
  func.func @transform_0(%arg0: i32, %arg1: i32, %arg2: i32) -> (i32, i32) {
    %c0_i32 = arith.constant 0 : i32
    return %arg0, %arg2 : i32, i32
  }
  func.func @transform_1(%arg0: i32, %arg1: i32, %arg2: i32) -> (i32, i32) {
    %c0_i32 = arith.constant 0 : i32
    return %arg2, %arg1 : i32, i32
  }
  func.func @transform_2(%arg0: i32, %arg1: i32, %arg2: i32) -> (i32, i32) {
    %c0_i32 = arith.constant 0 : i32
    %c0_i32_0 = arith.constant 0 : i32
    return %c0_i32, %arg1 : i32, i32
  }
  func.func @transform_3(%arg0: i32, %arg1: i32, %arg2: i32) -> (i32, i32) {
    %c0_i32 = arith.constant 0 : i32
    return %arg0, %arg1 : i32, i32
  }
}

module attributes {stable_mosaic.version = 11 : i64} {
  func.func @_matmul_kernel(%arg0: i32, %arg1: i32, %arg2: i32, %arg3: memref<16x512xbf16, #tpu.memory_space<vmem>>, %arg4: memref<512x256xbf16, #tpu.memory_space<vmem>>, %arg5: memref<1x256xf32, #tpu.memory_space<vmem>>, %arg6: memref<16x256xbf16, #tpu.memory_space<vmem>>, %arg7: memref<16x256xf32, #tpu.memory_space<vmem>>) attributes {dimension_semantics = [#tpu.dimension_semantics<parallel>, #tpu.dimension_semantics<parallel>, #tpu.dimension_semantics<arbitrary>], iteration_bounds = array<i64: 1, 4, 5>, scalar_prefetch = 0 : i64, scratch_operands = 1 : i64, tpu.core_type = #tpu.core_type<tc>, window_params = [{transform_indices = @transform_0, window_bounds = array<i64: 16, 512>}, {transform_indices = @transform_1, window_bounds = array<i64: 512, 256>}, {transform_indices = @transform_2, window_bounds = array<i64: 1, 256>}, {transform_indices = @transform_3, window_bounds = array<i64: 16, 256>}]} {
    %c0_i32 = arith.constant 0 : i32
    %0 = arith.cmpi eq, %arg2, %c0_i32 : i32
    %1 = arith.extui %0 : i1 to i32
    %c0_i32_0 = arith.constant 0 : i32
    %2 = arith.cmpi ne, %1, %c0_i32_0 : i32
    scf.if %2 {
      %cst_9 = arith.constant 0.000000e+00 : f32
      %12 = vector.broadcast %cst_9 : f32 to vector<16x256xf32>
      %c0_10 = arith.constant 0 : index
      %c0_11 = arith.constant 0 : index
      %13 = vector.load %arg7[%c0_10, %c0_11] : memref<16x256xf32, #tpu.memory_space<vmem>>, vector<16x256xf32>
      tpu.vector_store %arg7[%c0_10, %c0_11], %12 {strides = array<i32>} : memref<16x256xf32, #tpu.memory_space<vmem>>, vector<16x256xf32>,
    } else {
    }
    %c0 = arith.constant 0 : index
    %c0_1 = arith.constant 0 : index
    %3 = vector.load %arg7[%c0, %c0_1] : memref<16x256xf32, #tpu.memory_space<vmem>>, vector<16x256xf32>
    %c0_2 = arith.constant 0 : index
    %c0_3 = arith.constant 0 : index
    %4 = vector.load %arg3[%c0_2, %c0_3] : memref<16x512xbf16, #tpu.memory_space<vmem>>, vector<16x512xbf16>
    %c0_4 = arith.constant 0 : index
    %c0_5 = arith.constant 0 : index
    %5 = vector.load %arg4[%c0_4, %c0_5] : memref<512x256xbf16, #tpu.memory_space<vmem>>, vector<512x256xbf16>
    %cst = arith.constant dense<0.000000e+00> : vector<16x256xf32>
    %6 = tpu.matmul %4, %5, %cst {dimension_numbers = #tpu.dot_dimension_numbers<[1], [0], [0], [1], [0, 0, 1, 1], [], []>} : vector<16x512xbf16>, vector<512x256xbf16>, vector<16x256xf32> -> vector<16x256xf32>
    %7 = arith.addf %3, %6 : vector<16x256xf32>
    %c0_6 = arith.constant 0 : index
    %c0_7 = arith.constant 0 : index
    %8 = vector.load %arg7[%c0_6, %c0_7] : memref<16x256xf32, #tpu.memory_space<vmem>>, vector<16x256xf32>
    tpu.vector_store %arg7[%c0_6, %c0_7], %7 {strides = array<i32>} : memref<16x256xf32, #tpu.memory_space<vmem>>, vector<16x256xf32>,
    %c4_i32 = arith.constant 4 : i32
    %9 = arith.cmpi eq, %arg2, %c4_i32 : i32
    %10 = arith.extui %9 : i1 to i32
    %c0_i32_8 = arith.constant 0 : i32
    %11 = arith.cmpi ne, %10, %c0_i32_8 : i32
    scf.if %11 {
      %c0_9 = arith.constant 0 : index
      %c0_10 = arith.constant 0 : index
      %12 = vector.load %arg7[%c0_9, %c0_10] : memref<16x256xf32, #tpu.memory_space<vmem>>, vector<16x256xf32>
      %c0_11 = arith.constant 0 : index
      %c0_12 = arith.constant 0 : index
      %13 = vector.load %arg5[%c0_11, %c0_12] : memref<1x256xf32, #tpu.memory_space<vmem>>, vector<1x256xf32>
      %14 = vector.broadcast %13 : vector<1x256xf32> to vector<16x256xf32>
      %15 = arith.addf %12, %14 : vector<16x256xf32>
      %cst_13 = arith.constant 0.000000e+00 : f32
      %16 = vector.broadcast %cst_13 : f32 to vector<16x256xf32>
      %17 = arith.cmpf oge, %15, %16 : vector<16x256xf32>
      %cst_14 = arith.constant 1.000000e-01 : f32
      %18 = vector.broadcast %cst_14 : f32 to vector<16x256xf32>
      %19 = arith.mulf %18, %15 : vector<16x256xf32>
      %20 = arith.select %17, %15, %19 : vector<16x256xi1>, vector<16x256xf32>
      %21 = arith.truncf %20 : vector<16x256xf32> to vector<16x256xbf16>
      %c0_15 = arith.constant 0 : index
      %c0_16 = arith.constant 0 : index
      %22 = vector.load %arg6[%c0_15, %c0_16] : memref<16x256xbf16, #tpu.memory_space<vmem>>, vector<16x256xbf16>
      tpu.vector_store %arg6[%c0_15, %c0_16], %21 {strides = array<i32>} : memref<16x256xbf16, #tpu.memory_space<vmem>>, vector<16x256xbf16>,
    } else {
    }
    return
  }
  func.func @transform_0(%arg0: i32, %arg1: i32, %arg2: i32) -> (i32, i32) {
    %c0_i32 = arith.constant 0 : i32
    return %arg0, %arg2 : i32, i32
  }
  func.func @transform_1(%arg0: i32, %arg1: i32, %arg2: i32) -> (i32, i32) {
    %c0_i32 = arith.constant 0 : i32
    return %arg2, %arg1 : i32, i32
  }
  func.func @transform_2(%arg0: i32, %arg1: i32, %arg2: i32) -> (i32, i32) {
    %c0_i32 = arith.constant 0 : i32
    %c0_i32_0 = arith.constant 0 : i32
    return %c0_i32, %arg1 : i32, i32
  }
  func.func @transform_3(%arg0: i32, %arg1: i32, %arg2: i32) -> (i32, i32) {
    %c0_i32 = arith.constant 0 : i32
    return %arg0, %arg1 : i32, i32
  }
}

module attributes {stable_mosaic.version = 11 : i64} {
  func.func @_conv_s1_kernel(%arg0: i32, %arg1: i32, %arg2: i32, %arg3: memref<1x1x512xbf16, #tpu.memory_space<vmem>>, %arg4: memref<5x512x256xbf16, #tpu.memory_space<vmem>>, %arg5: memref<1x256xf32, #tpu.memory_space<vmem>>, %arg6: memref<1x1x256xbf16, #tpu.memory_space<vmem>>, %arg7: memref<1x256xf32, #tpu.memory_space<vmem>>, %arg8: memref<5x512xbf16, #tpu.memory_space<vmem>>) attributes {dimension_semantics = [#tpu.dimension_semantics<parallel>, #tpu.dimension_semantics<parallel>, #tpu.dimension_semantics<arbitrary>], iteration_bounds = array<i64: 4, 4, 2>, scalar_prefetch = 0 : i64, scratch_operands = 2 : i64, tpu.core_type = #tpu.core_type<tc>, window_params = [{transform_indices = @transform_0, window_bounds = array<i64: 1, 1, 512>}, {transform_indices = @transform_1, window_bounds = array<i64: 5, 512, 256>}, {transform_indices = @transform_2, window_bounds = array<i64: 1, 256>}, {transform_indices = @transform_3, window_bounds = array<i64: 1, 1, 256>}]} {
    %c0_i32 = arith.constant 0 : i32
    %0 = arith.cmpi eq, %arg2, %c0_i32 : i32
    %1 = arith.extui %0 : i1 to i32
    %c0_i32_0 = arith.constant 0 : i32
    %2 = arith.cmpi ne, %1, %c0_i32_0 : i32
    scf.if %2 {
      %cst_38 = arith.constant 0.000000e+00 : f32
      %38 = vector.broadcast %cst_38 : f32 to vector<1x256xf32>
      %c0_39 = arith.constant 0 : index
      %c0_40 = arith.constant 0 : index
      %39 = vector.load %arg7[%c0_39, %c0_40] : memref<1x256xf32, #tpu.memory_space<vmem>>, vector<1x256xf32>
      tpu.vector_store %arg7[%c0_39, %c0_40], %38 {strides = array<i32>} : memref<1x256xf32, #tpu.memory_space<vmem>>, vector<1x256xf32>,
    } else {
    }
    %cst = arith.constant 0.000000e+00 : bf16
    %3 = vector.broadcast %cst : bf16 to vector<5x512xbf16>
    %c0 = arith.constant 0 : index
    %c0_1 = arith.constant 0 : index
    %4 = vector.load %arg8[%c0, %c0_1] : memref<5x512xbf16, #tpu.memory_space<vmem>>, vector<5x512xbf16>
    tpu.vector_store %arg8[%c0, %c0_1], %3 {strides = array<i32>} : memref<5x512xbf16, #tpu.memory_space<vmem>>, vector<5x512xbf16>,
    %c0_2 = arith.constant 0 : index
    %c0_3 = arith.constant 0 : index
    %c0_4 = arith.constant 0 : index
    %5 = vector.load %arg3[%c0_2, %c0_3, %c0_4] : memref<1x1x512xbf16, #tpu.memory_space<vmem>>, vector<1x1x512xbf16>
    %6 = vector.shape_cast %5 : vector<1x1x512xbf16> to vector<1x512xbf16>
    %c2 = arith.constant 2 : index
    %c0_5 = arith.constant 0 : index
    %7 = vector.load %arg8[%c2, %c0_5] : memref<5x512xbf16, #tpu.memory_space<vmem>>, vector<1x512xbf16>
    tpu.vector_store %arg8[%c2, %c0_5], %6 {strides = array<i32>} : memref<5x512xbf16, #tpu.memory_space<vmem>>, vector<1x512xbf16>,
    %c0_6 = arith.constant 0 : index
    %c0_7 = arith.constant 0 : index
    %8 = vector.load %arg7[%c0_6, %c0_7] : memref<1x256xf32, #tpu.memory_space<vmem>>, vector<1x256xf32>
    %c0_8 = arith.constant 0 : index
    %c0_9 = arith.constant 0 : index
    %9 = vector.load %arg8[%c0_8, %c0_9] : memref<5x512xbf16, #tpu.memory_space<vmem>>, vector<1x512xbf16>
    %c0_10 = arith.constant 0 : index
    %c0_11 = arith.constant 0 : index
    %c0_12 = arith.constant 0 : index
    %10 = vector.load %arg4[%c0_10, %c0_11, %c0_12] : memref<5x512x256xbf16, #tpu.memory_space<vmem>>, vector<1x512x256xbf16>
    %11 = vector.shape_cast %10 : vector<1x512x256xbf16> to vector<512x256xbf16>
    %cst_13 = arith.constant dense<0.000000e+00> : vector<1x256xf32>
    %12 = tpu.matmul %9, %11, %cst_13 {dimension_numbers = #tpu.dot_dimension_numbers<[1], [0], [0], [1], [0, 0, 1, 1], [], []>} : vector<1x512xbf16>, vector<512x256xbf16>, vector<1x256xf32> -> vector<1x256xf32>
    %13 = arith.addf %8, %12 : vector<1x256xf32>
    %c1 = arith.constant 1 : index
    %c0_14 = arith.constant 0 : index
    %14 = vector.load %arg8[%c1, %c0_14] : memref<5x512xbf16, #tpu.memory_space<vmem>>, vector<1x512xbf16>
    %c1_15 = arith.constant 1 : index
    %c0_16 = arith.constant 0 : index
    %c0_17 = arith.constant 0 : index
    %15 = vector.load %arg4[%c1_15, %c0_16, %c0_17] : memref<5x512x256xbf16, #tpu.memory_space<vmem>>, vector<1x512x256xbf16>
    %16 = vector.shape_cast %15 : vector<1x512x256xbf16> to vector<512x256xbf16>
    %cst_18 = arith.constant dense<0.000000e+00> : vector<1x256xf32>
    %17 = tpu.matmul %14, %16, %cst_18 {dimension_numbers = #tpu.dot_dimension_numbers<[1], [0], [0], [1], [0, 0, 1, 1], [], []>} : vector<1x512xbf16>, vector<512x256xbf16>, vector<1x256xf32> -> vector<1x256xf32>
    %18 = arith.addf %13, %17 : vector<1x256xf32>
    %c2_19 = arith.constant 2 : index
    %c0_20 = arith.constant 0 : index
    %19 = vector.load %arg8[%c2_19, %c0_20] : memref<5x512xbf16, #tpu.memory_space<vmem>>, vector<1x512xbf16>
    %c2_21 = arith.constant 2 : index
    %c0_22 = arith.constant 0 : index
    %c0_23 = arith.constant 0 : index
    %20 = vector.load %arg4[%c2_21, %c0_22, %c0_23] : memref<5x512x256xbf16, #tpu.memory_space<vmem>>, vector<1x512x256xbf16>
    %21 = vector.shape_cast %20 : vector<1x512x256xbf16> to vector<512x256xbf16>
    %cst_24 = arith.constant dense<0.000000e+00> : vector<1x256xf32>
    %22 = tpu.matmul %19, %21, %cst_24 {dimension_numbers = #tpu.dot_dimension_numbers<[1], [0], [0], [1], [0, 0, 1, 1], [], []>} : vector<1x512xbf16>, vector<512x256xbf16>, vector<1x256xf32> -> vector<1x256xf32>
    %23 = arith.addf %18, %22 : vector<1x256xf32>
    %c3 = arith.constant 3 : index
    %c0_25 = arith.constant 0 : index
    %24 = vector.load %arg8[%c3, %c0_25] : memref<5x512xbf16, #tpu.memory_space<vmem>>, vector<1x512xbf16>
    %c3_26 = arith.constant 3 : index
    %c0_27 = arith.constant 0 : index
    %c0_28 = arith.constant 0 : index
    %25 = vector.load %arg4[%c3_26, %c0_27, %c0_28] : memref<5x512x256xbf16, #tpu.memory_space<vmem>>, vector<1x512x256xbf16>
    %26 = vector.shape_cast %25 : vector<1x512x256xbf16> to vector<512x256xbf16>
    %cst_29 = arith.constant dense<0.000000e+00> : vector<1x256xf32>
    %27 = tpu.matmul %24, %26, %cst_29 {dimension_numbers = #tpu.dot_dimension_numbers<[1], [0], [0], [1], [0, 0, 1, 1], [], []>} : vector<1x512xbf16>, vector<512x256xbf16>, vector<1x256xf32> -> vector<1x256xf32>
    %28 = arith.addf %23, %27 : vector<1x256xf32>
    %c4 = arith.constant 4 : index
    %c0_30 = arith.constant 0 : index
    %29 = vector.load %arg8[%c4, %c0_30] : memref<5x512xbf16, #tpu.memory_space<vmem>>, vector<1x512xbf16>
    %c4_31 = arith.constant 4 : index
    %c0_32 = arith.constant 0 : index
    %c0_33 = arith.constant 0 : index
    %30 = vector.load %arg4[%c4_31, %c0_32, %c0_33] : memref<5x512x256xbf16, #tpu.memory_space<vmem>>, vector<1x512x256xbf16>
    %31 = vector.shape_cast %30 : vector<1x512x256xbf16> to vector<512x256xbf16>
    %cst_34 = arith.constant dense<0.000000e+00> : vector<1x256xf32>
    %32 = tpu.matmul %29, %31, %cst_34 {dimension_numbers = #tpu.dot_dimension_numbers<[1], [0], [0], [1], [0, 0, 1, 1], [], []>} : vector<1x512xbf16>, vector<512x256xbf16>, vector<1x256xf32> -> vector<1x256xf32>
    %33 = arith.addf %28, %32 : vector<1x256xf32>
    %c0_35 = arith.constant 0 : index
    %c0_36 = arith.constant 0 : index
    %34 = vector.load %arg7[%c0_35, %c0_36] : memref<1x256xf32, #tpu.memory_space<vmem>>, vector<1x256xf32>
    tpu.vector_store %arg7[%c0_35, %c0_36], %33 {strides = array<i32>} : memref<1x256xf32, #tpu.memory_space<vmem>>, vector<1x256xf32>,
    %c1_i32 = arith.constant 1 : i32
    %35 = arith.cmpi eq, %arg2, %c1_i32 : i32
    %36 = arith.extui %35 : i1 to i32
    %c0_i32_37 = arith.constant 0 : i32
    %37 = arith.cmpi ne, %36, %c0_i32_37 : i32
    scf.if %37 {
      %c0_38 = arith.constant 0 : index
      %c0_39 = arith.constant 0 : index
      %38 = vector.load %arg7[%c0_38, %c0_39] : memref<1x256xf32, #tpu.memory_space<vmem>>, vector<1x256xf32>
      %c0_40 = arith.constant 0 : index
      %c0_41 = arith.constant 0 : index
      %39 = vector.load %arg5[%c0_40, %c0_41] : memref<1x256xf32, #tpu.memory_space<vmem>>, vector<1x256xf32>
      %40 = arith.addf %38, %39 : vector<1x256xf32>
      %cst_42 = arith.constant 0.000000e+00 : f32
      %41 = vector.broadcast %cst_42 : f32 to vector<1x256xf32>
      %42 = arith.cmpf oge, %40, %41 : vector<1x256xf32>
      %cst_43 = arith.constant 1.000000e-01 : f32
      %43 = vector.broadcast %cst_43 : f32 to vector<1x256xf32>
      %44 = arith.mulf %43, %40 : vector<1x256xf32>
      %45 = arith.select %42, %40, %44 : vector<1x256xi1>, vector<1x256xf32>
      %46 = arith.truncf %45 : vector<1x256xf32> to vector<1x256xbf16>
      %c0_44 = arith.constant 0 : index
      %c0_45 = arith.constant 0 : index
      %c0_46 = arith.constant 0 : index
      %47 = vector.load %arg6[%c0_44, %c0_45, %c0_46] : memref<1x1x256xbf16, #tpu.memory_space<vmem>>, vector<1x1x256xbf16>
      %48 = vector.shape_cast %47 : vector<1x1x256xbf16> to vector<1x256xbf16>
      %49 = vector.shape_cast %46 : vector<1x256xbf16> to vector<1x1x256xbf16>
      tpu.vector_store %arg6[%c0_44, %c0_45, %c0_46], %49 {strides = array<i32>} : memref<1x1x256xbf16, #tpu.memory_space<vmem>>, vector<1x1x256xbf16>,
    } else {
    }
    return
  }
  func.func @transform_0(%arg0: i32, %arg1: i32, %arg2: i32) -> (i32, i32, i32) {
    %c0_i32 = arith.constant 0 : i32
    %c0_i32_0 = arith.constant 0 : i32
    return %arg0, %c0_i32, %arg2 : i32, i32, i32
  }
  func.func @transform_1(%arg0: i32, %arg1: i32, %arg2: i32) -> (i32, i32, i32) {
    %c0_i32 = arith.constant 0 : i32
    %c0_i32_0 = arith.constant 0 : i32
    return %c0_i32, %arg2, %arg1 : i32, i32, i32
  }
  func.func @transform_2(%arg0: i32, %arg1: i32, %arg2: i32) -> (i32, i32) {
    %c0_i32 = arith.constant 0 : i32
    %c0_i32_0 = arith.constant 0 : i32
    return %c0_i32, %arg1 : i32, i32
  }
  func.func @transform_3(%arg0: i32, %arg1: i32, %arg2: i32) -> (i32, i32, i32) {
    %c0_i32 = arith.constant 0 : i32
    %c0_i32_0 = arith.constant 0 : i32
    return %arg0, %c0_i32, %arg1 : i32, i32, i32
  }
}

</mosaic_0001>

<llo_original>
// kernel: cc_discriminator_p_forward.4
$region0: #{cc_discriminator_p_forward.4}
  #allocation0 [shape = 'u32[]', space=smem, size = 0x4, offset = 0x4, fixed_abs, tag = 'smem constant byte address 0x4 - core index']
  #allocation1 [shape = 'u32[144,128]{1,0:T(1,128)}', space=vmem, size = 0x12000, scoped, tag = 'internal scratch']
  #allocation2 [shape = 'f32[16,128]{1,0:T(8,128)}', space=vmem, size = 0x2000, scoped, tag = 'scratch operand']
  %s0 = inlined_call_operand.vmem [shape: bf16[16,256], index: 0, kind: input, shape index: {}]
  %s1 = inlined_call_operand.vmem [shape: bf16[256,128], index: 1, kind: input, shape index: {}]
  %s2 = inlined_call_operand.hbm [shape: f32[1,128], index: 2, kind: input, shape index: {}]
  %s3 = inlined_call_operand.vmem [shape: bf16[16,128], index: 3, kind: output, shape index: {}]
  %s4 = sld [smem:[#allocation0]]
  $region34: #{cc_discriminator_p_forward.4} parent=0
    _
  %s6 = ssub.s32 1, %s4
  %s7 = scalar_select 0, %s6, %s4
  $region1: #{cc_discriminator_p_forward.4} parent=0
    #allocation3 [shape = 'u8[512]{0}', space=vmem, size = 0x400, scoped, tag = 'input window, operand 2, single buffered']
    #allocation4 [shape = 's32[1]{0}', space=sflag, size = 0x4, scoped, tag = 'scoped memory for cc_discriminator_p_forward.4']
    %8 = vsyncpa [#allocation4], 0
    // Predicated region
    $region2: #{cc_discriminator_p_forward.4} parent=1 // pred_check
      _
    $region3: #{cc_discriminator_p_forward.4} parent=1 // pred_check_branch
      %10 = sbr.rel (0) target = $region5
    $region4: #{cc_discriminator_p_forward.4} parent=1 // pred_region
      _
    $region5: #{cc_discriminator_p_forward.4} parent=1 // pred_fallthru
      _
    // Predicated region
    $region6: #{cc_discriminator_p_forward.4} parent=1 // pred_check
      _
    $region7: #{cc_discriminator_p_forward.4} parent=1 // pred_check_branch
      %12 = sbr.rel (0) target = $region9
    $region8: #{cc_discriminator_p_forward.4} parent=1 // pred_region
      _
    $region9: #{cc_discriminator_p_forward.4} parent=1 // pred_fallthru
      _
    // Predicated region
    $region10: #{cc_discriminator_p_forward.4} parent=1 // pred_check
      _
    $region11: #{cc_discriminator_p_forward.4} parent=1 // pred_check_branch
      %14 = sbr.rel (0) target = $region13
    $region12: #{cc_discriminator_p_forward.4} parent=1 // pred_region
      %s16 = ssub.s32 16, 16
      %17 = vsyncadd [#allocation4], %s16
      %s19 = sshll.u32 [#allocation3], 4
      %s20 = int_to_ptr.vmem [resolvable:$true] %s19
      %22 = dma.hbm_to_vmem [thread:$0]  %s2, 16, %s20, [#allocation4]
    $region13: #{cc_discriminator_p_forward.4} parent=1 // pred_fallthru
      _
    // Predicated region
    $region14: #{cc_discriminator_p_forward.4} parent=1 // pred_check
      _
    $region15: #{cc_discriminator_p_forward.4} parent=1 // pred_check_branch
      %24 = sbr.rel (0) target = $region17
    $region16: #{cc_discriminator_p_forward.4} parent=1 // pred_region
      %25 = dma.done [#allocation4], 16
    $region17: #{cc_discriminator_p_forward.4} parent=1 // pred_fallthru
      _
    %p27 = scmp.eq.s32.totalorder 0, 0
    // Predicated region
    $region18: #{cc_discriminator_p_forward.4} parent=1 // pred_check
      %p28 = pneg %p27
    $region19: #{cc_discriminator_p_forward.4} parent=1 // pred_check_branch
      %30 = sbr.rel (%p28) target = $region21
    $region20: #{cc_discriminator_p_forward.4} parent=1 // pred_region
      %31 = vst [vmem:[#allocation2] sm:$0xff] 0.0
      %32 = vst [vmem:[#allocation2 + $0x8] sm:$0xff] 0.0
    $region21: #{cc_discriminator_p_forward.4} parent=1 // pred_fallthru
      _
    %v33 = vld [vmem:[#allocation2] sm:$0xff]
    %v34 = vld [vmem:[#allocation2 + $0x8] sm:$0xff]
    %v35 = vld [vmem:[%s0] sm:$0xff]
    %v36 = vld [vmem:[%s0 + $0x8] sm:$0xff]
    %v37 = vld [vmem:[%s1] sm:$0xf]
    %v38 = vld [vmem:[%s1 + $0x4] sm:$0xf]
    %v39 = vld [vmem:[%s1 + $0x8] sm:$0xf]
    %v40 = vld [vmem:[%s1 + $0xc] sm:$0xf]
    %v41 = vld [vmem:[%s1 + $0x10] sm:$0xf]
    %v42 = vld [vmem:[%s1 + $0x14] sm:$0xf]
    %v43 = vld [vmem:[%s1 + $0x18] sm:$0xf]
    %v44 = vld [vmem:[%s1 + $0x1c] sm:$0xf]
    %v45 = vld [vmem:[%s1 + $0x20] sm:$0xf]
    %v46 = vld [vmem:[%s1 + $0x24] sm:$0xf]
    %v47 = vld [vmem:[%s1 + $0x28] sm:$0xf]
    %v48 = vld [vmem:[%s1 + $0x2c] sm:$0xf]
    %v49 = vld [vmem:[%s1 + $0x30] sm:$0xf]
    %v50 = vld [vmem:[%s1 + $0x34] sm:$0xf]
    %v51 = vld [vmem:[%s1 + $0x38] sm:$0xf]
    %v52 = vld [vmem:[%s1 + $0x3c] sm:$0xf]
    %v53 = vld [vmem:[%s1 + $0x40] sm:$0xf]
    %v54 = vld [vmem:[%s1 + $0x44] sm:$0xf]
    %v55 = vld [vmem:[%s1 + $0x48] sm:$0xf]
    %v56 = vld [vmem:[%s1 + $0x4c] sm:$0xf]
    %v57 = vld [vmem:[%s1 + $0x50] sm:$0xf]
    %v58 = vld [vmem:[%s1 + $0x54] sm:$0xf]
    %v59 = vld [vmem:[%s1 + $0x58] sm:$0xf]
    %v60 = vld [vmem:[%s1 + $0x5c] sm:$0xf]
    %v61 = vld [vmem:[%s1 + $0x60] sm:$0xf]
    %v62 = vld [vmem:[%s1 + $0x64] sm:$0xf]
    %v63 = vld [vmem:[%s1 + $0x68] sm:$0xf]
    %v64 = vld [vmem:[%s1 + $0x6c] sm:$0xf]
    %v65 = vld [vmem:[%s1 + $0x70] sm:$0xf]
    %v66 = vld [vmem:[%s1 + $0x74] sm:$0xf]
    %v67 = vld [vmem:[%s1 + $0x78] sm:$0xf]
    %v68 = vld [vmem:[%s1 + $0x7c] sm:$0xf]
    %v71 = vunpack.c.l.b16 %v35
    %v72 = vunpack.c.h.b16 %v35
    %v73 = vunpack.c.l.b16 %v36
    %v74 = vunpack.c.h.b16 %v36
    %v75 = vpack.c.b16 %v73, %v71
    %v76 = vpack.c.b16 %v74, %v72
    %v111 = vunpack.c.l.b16 %v37
    %v112 = vunpack.c.l.b16 %v38
    %v113 = vunpack.c.l.b16 %v39
    %v114 = vunpack.c.l.b16 %v40
    %v115 = vunpack.c.l.b16 %v41
    %v116 = vunpack.c.l.b16 %v42
    %v117 = vunpack.c.l.b16 %v43
    %v118 = vunpack.c.l.b16 %v44
    %v119 = vunpack.c.l.b16 %v45
    %v120 = vunpack.c.l.b16 %v46
    %v121 = vunpack.c.l.b16 %v47
    %v122 = vunpack.c.l.b16 %v48
    %v123 = vunpack.c.l.b16 %v49
    %v124 = vunpack.c.l.b16 %v50
    %v125 = vunpack.c.l.b16 %v51
    %v126 = vunpack.c.l.b16 %v52
    %v127 = vunpack.c.l.b16 %v53
    %v128 = vunpack.c.l.b16 %v54
    %v129 = vunpack.c.l.b16 %v55
    %v130 = vunpack.c.l.b16 %v56
    %v131 = vunpack.c.l.b16 %v57
    %v132 = vunpack.c.l.b16 %v58
    %v133 = vunpack.c.l.b16 %v59
    %v134 = vunpack.c.l.b16 %v60
    %v135 = vunpack.c.l.b16 %v61
    %v136 = vunpack.c.l.b16 %v62
    %v137 = vunpack.c.l.b16 %v63
    %v138 = vunpack.c.l.b16 %v64
    %v139 = vunpack.c.l.b16 %v65
    %v140 = vunpack.c.l.b16 %v66
    %v141 = vunpack.c.l.b16 %v67
    %v142 = vunpack.c.l.b16 %v68
    %v143 = vpack.c.b16 %v112, %v111
    %v144 = vpack.c.b16 %v114, %v113
    %v145 = vpack.c.b16 %v116, %v115
    %v146 = vpack.c.b16 %v118, %v117
    %v147 = vpack.c.b16 %v120, %v119
    %v148 = vpack.c.b16 %v122, %v121
    %v149 = vpack.c.b16 %v124, %v123
    %v150 = vpack.c.b16 %v126, %v125
    %v151 = vpack.c.b16 %v128, %v127
    %v152 = vpack.c.b16 %v130, %v129
    %v153 = vpack.c.b16 %v132, %v131
    %v154 = vpack.c.b16 %v134, %v133
    %v155 = vpack.c.b16 %v136, %v135
    %v156 = vpack.c.b16 %v138, %v137
    %v157 = vpack.c.b16 %v140, %v139
    %v158 = vpack.c.b16 %v142, %v141
    %175 = vmatprep.subr.bf16.mxu0 0
    %176 = vmatpush1.bf16.msra.mxu0 %v143
    %177 = vmatprep.subr.bf16.mxu0 0
    %178 = vmatpush1.bf16.msra.mxu0 %v144
    %179 = vmatprep.subr.bf16.mxu0 0
    %180 = vmatpush1.bf16.msra.mxu0 %v145
    %181 = vmatprep.subr.bf16.mxu0 0
    %182 = vmatpush1.bf16.msra.mxu0 %v146
    %183 = vmatprep.subr.bf16.mxu0 0
    %184 = vmatpush1.bf16.msra.mxu0 %v147
    %185 = vmatprep.subr.bf16.mxu0 0
    %186 = vmatpush1.bf16.msra.mxu0 %v148
    %187 = vmatprep.subr.bf16.mxu0 0
    %188 = vmatpush1.bf16.msra.mxu0 %v149
    %189 = vmatprep.subr.bf16.mxu0 0
    %190 = vmatpush1.bf16.msra.mxu0 %v150
    %191 = vmatprep.subr.bf16.mxu0 0
    %192 = vmatpush1.bf16.msra.mxu0 %v151
    %193 = vmatprep.subr.bf16.mxu0 0
    %194 = vmatpush1.bf16.msra.mxu0 %v152
    %195 = vmatprep.subr.bf16.mxu0 0
    %196 = vmatpush1.bf16.msra.mxu0 %v153
    %197 = vmatprep.subr.bf16.mxu0 0
    %198 = vmatpush1.bf16.msra.mxu0 %v154
    %199 = vmatprep.subr.bf16.mxu0 0
    %200 = vmatpush1.bf16.msra.mxu0 %v155
    %201 = vmatprep.subr.bf16.mxu0 0
    %202 = vmatpush1.bf16.msra.mxu0 %v156
    %203 = vmatprep.subr.bf16.mxu0 0
    %204 = vmatpush1.bf16.msra.mxu0 %v157
    %205 = vmatprep.subr.bf16.mxu0 0
    %206 = vmatpush1.bf16.msra.mxu0 %v158
    %207 = vmatprep.mubr.bf16.mxu0 %v76
    %208 = vmatmul.mubr.bf16.gmra.mrb[0].mxu0 %v75
    %v209 = vpop.f32.mrb[0].mxu0
    %v210 = vadd.f32 0.0, %v209
    %v211 = vpop.f32.mrb[0].mxu0
    %v212 = vpop.f32.mrb[0].mxu0
    %v213 = vadd.f32 0.0, %v212
    %v214 = vpop.f32.mrb[0].mxu0
    %215 = vdwg.mxu0
    %v216 = vadd.f32 %v33, %v210
    %v217 = vadd.f32 %v34, %v213
    %218 = vst [vmem:[#allocation2] sm:$0xff] %v216
    %219 = vst [vmem:[#allocation2 + $0x8] sm:$0xff] %v217
    // Predicated region
    $region22: #{cc_discriminator_p_forward.4} parent=1 // pred_check
      %p220 = pneg %p27
    $region23: #{cc_discriminator_p_forward.4} parent=1 // pred_check_branch
      %222 = sbr.rel (%p220) target = $region25
    $region24: #{cc_discriminator_p_forward.4} parent=1 // pred_region
      %v223 = vld [vmem:[#allocation2] sm:$0xff]
      %v224 = vld [vmem:[#allocation2 + $0x8] sm:$0xff]
      %v225 = vld [vmem:[#allocation3] sm:$0x1]
      %v227 = vlaneseq
      %v228 = vshrl.u32 %v227, 7
      %v229 = vsub.s32 0, %v228
      %v230 = vrot.slane %v225, %v229
      %v232 = vadd.f32 %v223, %v230
      %v233 = vadd.f32 %v224, %v230
      %vm234 = vcmp.ge.f32.partialorder %v232, 0.0
      %vm235 = vcmp.ge.f32.partialorder %v233, 0.0
      %v236 = vmul.f32 %v232, 0.1
      %v237 = vmul.f32 %v233, 0.1
      %v238 = vsel %vm234, %v232, %v236
      %v239 = vsel %vm235, %v233, %v237
      %v240 = vpack.c.bf16 %v239, %v238
      %v242 = vunpack.c.l.b16 %v240
      %v243 = vunpack.c.h.b16 %v240
      %v244 = vpack.c.b16 %v242, %v242
      %v245 = vpack.c.b16 %v243, %v243
      %248 = vst [vmem:[%s3] sm:$0xf] %v244
      %249 = vst [vmem:[%s3 + $0x4] sm:$0xf] %v245
    $region25: #{cc_discriminator_p_forward.4} parent=1 // pred_fallthru
      _
    // Predicated region
    $region26: #{cc_discriminator_p_forward.4} parent=1 // pred_check
      _
    $region27: #{cc_discriminator_p_forward.4} parent=1 // pred_check_branch
      %251 = sbr.rel (0) target = $region29
    $region28: #{cc_discriminator_p_forward.4} parent=1 // pred_region
      _
    $region29: #{cc_discriminator_p_forward.4} parent=1 // pred_fallthru
      _
    // Predicated region
    $region30: #{cc_discriminator_p_forward.4} parent=1 // pred_check
      _
    $region31: #{cc_discriminator_p_forward.4} parent=1 // pred_check_branch
      %253 = sbr.rel (0) target = $region33
    $region32: #{cc_discriminator_p_forward.4} parent=1 // pred_region
      _
    $region33: #{cc_discriminator_p_forward.4} parent=1 // pred_fallthru
      _
    %254 = vsyncpa [#allocation4], 1

// kernel: cc_discriminator_p_forward.5
$region0: #{cc_discriminator_p_forward.5}
  #allocation0 [shape = 'u32[]', space=smem, size = 0x4, offset = 0x4, fixed_abs, tag = 'smem constant byte address 0x4 - core index']
  #allocation1 [shape = 'u32[144,128]{1,0:T(1,128)}', space=vmem, size = 0x12000, scoped, tag = 'internal scratch']
  #allocation2 [shape = 'f32[16,256]{1,0:T(8,128)}', space=vmem, size = 0x4000, scoped, tag = 'scratch operand']
  %s0 = inlined_call_operand.vmem [shape: bf16[16,640], index: 0, kind: input, shape index: {}]
  %s1 = inlined_call_operand.vmem [shape: bf16[640,512], index: 1, kind: input, shape index: {}]
  %s2 = inlined_call_operand.hbm [shape: f32[1,512], index: 2, kind: input, shape index: {}]
  %s3 = inlined_call_operand.vmem [shape: bf16[16,512], index: 3, kind: output, shape index: {}]
  %s4 = sld [smem:[#allocation0]]
  $region129: #{cc_discriminator_p_forward.5} parent=0
    _
  %s6 = ssub.s32 1, %s4
  %s7 = scalar_select 0, %s6, %s4
  $region1: #{cc_discriminator_p_forward.5} parent=0
    #allocation3 [shape = 'u8[655360]{0}', space=vmem, size = 0xa0000, scoped, tag = 'input window, operand 1']
    #allocation4 [shape = 'u8[2048]{0}', space=vmem, size = 0x800, scoped, tag = 'input window, operand 2']
    #allocation5 [shape = 's32[2]{0}', space=sflag, size = 0x8, scoped, tag = 'scoped memory for cc_discriminator_p_forward.5']
    #allocation6 [shape = 'u8[16384]{0}', space=vmem, size = 0x4000, scoped, tag = 'output window, operand 0']
    %8 = vsyncpa [#allocation5], 0
    %s9 = scalar_lea.sflag [#allocation5], 1
    %10 = vsyncpa %s9, 0
    loop: start=0, step=1, limit=4
    $region2: #{cc_discriminator_p_forward.5} parent=1 // loop_pre_header
      _
    $region3: #{cc_discriminator_p_forward.5} parent=1 // loop_header
      %s12 = sphi 0, %s16
      %p13 = scmp.ge.s32.totalorder %s12, 4
      %s19 = sphi 0, %s38
      %s20 = sphi 0, %s34
      %s21 = sphi 0, %s30
      %s22 = sphi 0, %s19
      %s23 = sphi 0, %s20
      %s24 = sphi 0, %s21
      %s25 = sphi 0, %s22
      %s26 = sphi 0, %s23
      %s27 = sphi 0, %s24
      %s43 = sphi 0, %s45
      %s46 = sphi 0, %s43
      %s47 = sphi 0, %s46
      %s63 = sphi 0, %s47
      %s71 = sphi 0, %s73
      %s74 = sphi 0, %s71
      %s75 = sphi 0, %s74
      %s91 = sphi 0, %s75
      %s97 = sphi 0, %s99
      %s100 = sphi 0, %s97
      %s101 = sphi 0, %s100
      %s117 = sphi 0, %s101
      %s125 = sphi 0, %s127
      %s128 = sphi 0, %s125
      %s129 = sphi 0, %s128
      %s145 = sphi 0, %s129
    $region4: #{cc_discriminator_p_forward.5} parent=1 // loop_header_branch
      %15 = sbr.rel (%p13) target = $region8
    $region5: #{cc_discriminator_p_forward.5} parent=1 // loop_body
      %s17 = ssub.s32 %s12, 1
      %s18 = ssub.s32 %s12, 2
      %s28 = sadd.s32 1, %s21
      %p29 = scmp.ge.s32.totalorder %s28, 1
      %s30 = scalar_select %p29, 0, %s28
      %s31 = sadd.s32 1, %s20
      %s32 = scalar_select %p29, %s31, %s20
      %p33 = scmp.ge.s32.totalorder %s32, 2
      %s34 = scalar_select %p33, 0, %s32
      %s35 = sadd.s32 1, %s19
      %s36 = scalar_select %p33, %s35, %s19
      %p37 = scmp.ge.s32.totalorder %s36, 1
      %s38 = scalar_select %p37, 0, %s36
      %s39 = ssub.s32 %s19, %s38
      %s40 = ssub.s32 %s21, %s30
      %s41 = sor.u32 %s39, %s40
      %p42 = scmp.eq.s32.totalorder %s41, 0
      %s44 = sadd.s32 %s43, 1
      %s45 = scalar_select %p42, %s43, %s44
      %p48 = pneg %p42
      %p49 = scmp.eq.s32.totalorder %s12, 1
      %p50 = por %p48, %p49
      %p51 = scmp.ne.s32.totalorder %s43, %s46
      %p52 = scmp.eq.s32.totalorder %s12, 0
      %p53 = por %p51, %p52
      %p54 = scmp.ne.s32.totalorder %s43, %s46
      %p55 = scmp.eq.s32.totalorder %s17, 1
      %p56 = por %p54, %p55
      %p57 = scmp.ne.s32.totalorder %s46, %s47
      %p58 = scmp.eq.s32.totalorder %s17, 0
      %p59 = por %p57, %p58
      %p60 = scmp.ne.s32.totalorder %s46, %s47
      %p61 = scmp.eq.s32.totalorder %s18, 1
      %p62 = por %p60, %p61
      %p64 = scmp.ne.s32.totalorder %s47, %s63
      %p65 = scmp.eq.s32.totalorder %s18, 0
      %p66 = por %p64, %p65
      %s67 = ssub.s32 %s21, %s30
      %s68 = ssub.s32 %s20, %s34
      %s69 = sor.u32 %s67, %s68
      %p70 = scmp.eq.s32.totalorder %s69, 0
      %s72 = sadd.s32 %s71, 1
      %s73 = scalar_select %p70, %s71, %s72
      %p76 = pneg %p70
      %p77 = scmp.eq.s32.totalorder %s12, 1
      %p78 = por %p76, %p77
      %p79 = scmp.ne.s32.totalorder %s71, %s74
      %p80 = scmp.eq.s32.totalorder %s12, 0
      %p81 = por %p79, %p80
      %p82 = scmp.ne.s32.totalorder %s71, %s74
      %p83 = scmp.eq.s32.totalorder %s17, 1
      %p84 = por %p82, %p83
      %p85 = scmp.ne.s32.totalorder %s74, %s75
      %p86 = scmp.eq.s32.totalorder %s17, 0
      %p87 = por %p85, %p86
      %p88 = scmp.ne.s32.totalorder %s74, %s75
      %p89 = scmp.eq.s32.totalorder %s18, 1
      %p90 = por %p88, %p89
      %p92 = scmp.ne.s32.totalorder %s75, %s91
      %p93 = scmp.eq.s32.totalorder %s18, 0
      %p94 = por %p92, %p93
      %s95 = ssub.s32 %s20, %s34
      %p96 = scmp.eq.s32.totalorder %s95, 0
      %s98 = sadd.s32 %s97, 1
      %s99 = scalar_select %p96, %s97, %s98
      %p102 = pneg %p96
      %p103 = scmp.eq.s32.totalorder %s12, 1
      %p104 = por %p102, %p103
      %p105 = scmp.ne.s32.totalorder %s97, %s100
      %p106 = scmp.eq.s32.totalorder %s12, 0
      %p107 = por %p105, %p106
      %p108 = scmp.ne.s32.totalorder %s97, %s100
      %p109 = scmp.eq.s32.totalorder %s17, 1
      %p110 = por %p108, %p109
      %p111 = scmp.ne.s32.totalorder %s100, %s101
      %p112 = scmp.eq.s32.totalorder %s17, 0
      %p113 = por %p111, %p112
      %p114 = scmp.ne.s32.totalorder %s100, %s101
      %p115 = scmp.eq.s32.totalorder %s18, 1
      %p116 = por %p114, %p115
      %p118 = scmp.ne.s32.totalorder %s101, %s117
      %p119 = scmp.eq.s32.totalorder %s18, 0
      %p120 = por %p118, %p119
      %s121 = ssub.s32 %s19, %s38
      %s122 = ssub.s32 %s20, %s34
      %s123 = sor.u32 %s121, %s122
      %p124 = scmp.eq.s32.totalorder %s123, 0
      %s126 = sadd.s32 %s125, 1
      %s127 = scalar_select %p124, %s125, %s126
      %p130 = pneg %p124
      %p131 = scmp.eq.s32.totalorder %s12, 1
      %p132 = por %p130, %p131
      %p133 = scmp.ne.s32.totalorder %s125, %s128
      %p134 = scmp.eq.s32.totalorder %s12, 0
      %p135 = por %p133, %p134
      %p136 = scmp.ne.s32.totalorder %s125, %s128
      %p137 = scmp.eq.s32.totalorder %s17, 1
      %p138 = por %p136, %p137
      %p139 = scmp.ne.s32.totalorder %s128, %s129
      %p140 = scmp.eq.s32.totalorder %s17, 0
      %p141 = por %p139, %p140
      %p142 = scmp.ne.s32.totalorder %s128, %s129
      %p143 = scmp.eq.s32.totalorder %s18, 1
      %p144 = por %p142, %p143
      %p146 = scmp.ne.s32.totalorder %s129, %s145
      %p147 = scmp.eq.s32.totalorder %s18, 0
      %p148 = por %p146, %p147
      %p149 = scmp.le.s32.totalorder 1, %s12
      %p150 = scmp.lt.s32.totalorder %s12, 3
      %p151 = pnand %p149, %p150
      %p152 = pneg %p151
      // Predicated region
      $region9: #{cc_discriminator_p_forward.5} parent=5 // pred_check
        _
      $region10: #{cc_discriminator_p_forward.5} parent=5 // pred_check_branch
        %154 = sbr.rel (%p151) target = $region12
      $region11: #{cc_discriminator_p_forward.5} parent=5 // pred_region
        %s155 = ssub.s32 %s12, 1
        // Predicated region
        $region13: #{cc_discriminator_p_forward.5} parent=11 // pred_check
          %p156 = pneg %p59
        $region14: #{cc_discriminator_p_forward.5} parent=11 // pred_check_branch
          %158 = sbr.rel (%p156) target = $region16
        $region15: #{cc_discriminator_p_forward.5} parent=11 // pred_region
          %s159 = smul.u32 2, %s22
          %s160 = smul.u32 5, %s24
          %p161 = scmp.lt.s32.totalorder %s159, 1
          %s162 = scalar_select %p161, %s159, 1
          %p163 = scmp.lt.s32.totalorder %s160, 4
          %s164 = scalar_select %p163, %s160, 4
          %s165 = smul.addr %s162, 5
          %s166 = sadd.s32 %s164, %s165
          %s167 = smul.addr %s166, 4
          %s168 = scalar_lea.vmem %s0, %s167
          %s169 = smul.u32 2, %s22
          %s170 = smul.u32 5, %s24
        $region16: #{cc_discriminator_p_forward.5} parent=11 // pred_fallthru
          _
      $region12: #{cc_discriminator_p_forward.5} parent=5 // pred_fallthru
        _
      %p171 = scmp.lt.s32.totalorder %s12, 2
      // Predicated region
      $region17: #{cc_discriminator_p_forward.5} parent=5 // pred_check
        %p172 = pneg %p171
      $region18: #{cc_discriminator_p_forward.5} parent=5 // pred_check_branch
        %174 = sbr.rel (%p172) target = $region20
      $region19: #{cc_discriminator_p_forward.5} parent=5 // pred_region
        // Predicated region
        $region21: #{cc_discriminator_p_forward.5} parent=19 // pred_check
          %p175 = pneg %p81
        $region22: #{cc_discriminator_p_forward.5} parent=19 // pred_check_branch
          %177 = sbr.rel (%p175) target = $region24
        $region23: #{cc_discriminator_p_forward.5} parent=19 // pred_region
          %s178 = sand.u32 %s71, 1
          %s179 = sand.u32 %s71, 1
          %s180 = smul.addr %s179, 640
          %s181 = scalar_lea.vmem [#allocation3], %s180
          %s182 = smul.u32 80, %s21
          %s183 = smul.u32 2, %s20
          %s184 = smul.addr %s182, 4
          %s185 = sadd.s32 %s183, %s184
          %s186 = smul.addr %s185, 4
          %s187 = scalar_lea.vmem %s1, %s186
          // Predicated region
          $region25: #{cc_discriminator_p_forward.5} parent=23 // pred_check
            _
          $region26: #{cc_discriminator_p_forward.5} parent=23 // pred_check_branch
            %189 = sbr.rel (0) target = $region28
          $region27: #{cc_discriminator_p_forward.5} parent=23 // pred_region
            // Predicated region
            $region29: #{cc_discriminator_p_forward.5} parent=27 // pred_check
              _
            $region30: #{cc_discriminator_p_forward.5} parent=27 // pred_check_branch
              %191 = sbr.rel (0) target = $region32
            $region31: #{cc_discriminator_p_forward.5} parent=27 // pred_region
              // Predicated region
              $region44: #{cc_discriminator_p_forward.5} parent=31 // pred_check
                _
              $region45: #{cc_discriminator_p_forward.5} parent=31 // pred_check_branch
                %364 = sbr.rel (0) target = $region47
              $region46: #{cc_discriminator_p_forward.5} parent=31 // pred_region
                loop: start=0, step=1, limit=1
                $region48: #{cc_discriminator_p_forward.5} parent=46 // loop_pre_header
                  _
                $region49: #{cc_discriminator_p_forward.5} parent=46 // loop_header
                  %s366 = sphi 0, %s370
                  %p367 = scmp.ge.s32.totalorder %s366, 1
                  %s371 = sphi %s187, %s187
                  %s372 = sphi %s181, %s181
                $region50: #{cc_discriminator_p_forward.5} parent=46 // loop_header_branch
                  %369 = sbr.rel (%p367) target = $region54
                $region51: #{cc_discriminator_p_forward.5} parent=46 // loop_body
                  %v373 = vld [vmem:[%s371] sm:$0xff]
                  %374 = vst [vmem:[%s372] sm:$0xff] %v373
                  %v375 = vld [vmem:[%s371 + $0x10] sm:$0xff]
                  %376 = vst [vmem:[%s372 + $0x8] sm:$0xff] %v375
                  %v377 = vld [vmem:[%s371 + $0x20] sm:$0xff]
                  %378 = vst [vmem:[%s372 + $0x10] sm:$0xff] %v377
                  %v379 = vld [vmem:[%s371 + $0x30] sm:$0xff]
                  %380 = vst [vmem:[%s372 + $0x18] sm:$0xff] %v379
                  %v381 = vld [vmem:[%s371 + $0x40] sm:$0xff]
                  %382 = vst [vmem:[%s372 + $0x20] sm:$0xff] %v381
                  %v383 = vld [vmem:[%s371 + $0x50] sm:$0xff]
                  %384 = vst [vmem:[%s372 + $0x28] sm:$0xff] %v383
                  %v385 = vld [vmem:[%s371 + $0x60] sm:$0xff]
                  %386 = vst [vmem:[%s372 + $0x30] sm:$0xff] %v385
                  %v387 = vld [vmem:[%s371 + $0x70] sm:$0xff]
                  %388 = vst [vmem:[%s372 + $0x38] sm:$0xff] %v387
                  %v389 = vld [vmem:[%s371 + $0x80] sm:$0xff]
                  %390 = vst [vmem:[%s372 + $0x40] sm:$0xff] %v389
                  %v391 = vld [vmem:[%s371 + $0x90] sm:$0xff]
                  %392 = vst [vmem:[%s372 + $0x48] sm:$0xff] %v391
                  %v393 = vld [vmem:[%s371 + $0xa0] sm:$0xff]
                  %394 = vst [vmem:[%s372 + $0x50] sm:$0xff] %v393
                  %v395 = vld [vmem:[%s371 + $0xb0] sm:$0xff]
                  %396 = vst [vmem:[%s372 + $0x58] sm:$0xff] %v395
                  %v397 = vld [vmem:[%s371 + $0xc0] sm:$0xff]
                  %398 = vst [vmem:[%s372 + $0x60] sm:$0xff] %v397
                  %v399 = vld [vmem:[%s371 + $0xd0] sm:$0xff]
                  %400 = vst [vmem:[%s372 + $0x68] sm:$0xff] %v399
                  %v401 = vld [vmem:[%s371 + $0xe0] sm:$0xff]
                  %402 = vst [vmem:[%s372 + $0x70] sm:$0xff] %v401
                  %v403 = vld [vmem:[%s371 + $0xf0] sm:$0xff]
                  %404 = vst [vmem:[%s372 + $0x78] sm:$0xff] %v403
                  %v405 = vld [vmem:[%s371 + $0x100] sm:$0xff]
                  %406 = vst [vmem:[%s372 + $0x80] sm:$0xff] %v405
                  %v407 = vld [vmem:[%s371 + $0x110] sm:$0xff]
                  %408 = vst [vmem:[%s372 + $0x88] sm:$0xff] %v407
                  %v409 = vld [vmem:[%s371 + $0x120] sm:$0xff]
                  %410 = vst [vmem:[%s372 + $0x90] sm:$0xff] %v409
                  %v411 = vld [vmem:[%s371 + $0x130] sm:$0xff]
                  %412 = vst [vmem:[%s372 + $0x98] sm:$0xff] %v411
                  %v413 = vld [vmem:[%s371 + $0x140] sm:$0xff]
                  %414 = vst [vmem:[%s372 + $0xa0] sm:$0xff] %v413
                  %v415 = vld [vmem:[%s371 + $0x150] sm:$0xff]
                  %416 = vst [vmem:[%s372 + $0xa8] sm:$0xff] %v415
                  %v417 = vld [vmem:[%s371 + $0x160] sm:$0xff]
                  %418 = vst [vmem:[%s372 + $0xb0] sm:$0xff] %v417
                  %v419 = vld [vmem:[%s371 + $0x170] sm:$0xff]
                  %420 = vst [vmem:[%s372 + $0xb8] sm:$0xff] %v419
                  %v421 = vld [vmem:[%s371 + $0x180] sm:$0xff]
                  %422 = vst [vmem:[%s372 + $0xc0] sm:$0xff] %v421
                  %v423 = vld [vmem:[%s371 + $0x190] sm:$0xff]
                  %424 = vst [vmem:[%s372 + $0xc8] sm:$0xff] %v423
                  %v425 = vld [vmem:[%s371 + $0x1a0] sm:$0xff]
                  %426 = vst [vmem:[%s372 + $0xd0] sm:$0xff] %v425
                  %v427 = vld [vmem:[%s371 + $0x1b0] sm:$0xff]
                  %428 = vst [vmem:[%s372 + $0xd8] sm:$0xff] %v427
                  %v429 = vld [vmem:[%s371 + $0x1c0] sm:$0xff]
                  %430 = vst [vmem:[%s372 + $0xe0] sm:$0xff] %v429
                  %v431 = vld [vmem:[%s371 + $0x1d0] sm:$0xff]
                  %432 = vst [vmem:[%s372 + $0xe8] sm:$0xff] %v431
                  %v433 = vld [vmem:[%s371 + $0x1e0] sm:$0xff]
                  %434 = vst [vmem:[%s372 + $0xf0] sm:$0xff] %v433
                  %v435 = vld [vmem:[%s371 + $0x1f0] sm:$0xff]
                  %436 = vst [vmem:[%s372 + $0xf8] sm:$0xff] %v435
                  %v437 = vld [vmem:[%s371 + $0x200] sm:$0xff]
                  %438 = vst [vmem:[%s372 + $0x100] sm:$0xff] %v437
                  %v439 = vld [vmem:[%s371 + $0x210] sm:$0xff]
                  %440 = vst [vmem:[%s372 + $0x108] sm:$0xff] %v439
                  %v441 = vld [vmem:[%s371 + $0x220] sm:$0xff]
                  %442 = vst [vmem:[%s372 + $0x110] sm:$0xff] %v441
                  %v443 = vld [vmem:[%s371 + $0x230] sm:$0xff]
                  %444 = vst [vmem:[%s372 + $0x118] sm:$0xff] %v443
                  %v445 = vld [vmem:[%s371 + $0x240] sm:$0xff]
                  %446 = vst [vmem:[%s372 + $0x120] sm:$0xff] %v445
                  %v447 = vld [vmem:[%s371 + $0x250] sm:$0xff]
                  %448 = vst [vmem:[%s372 + $0x128] sm:$0xff] %v447
                  %v449 = vld [vmem:[%s371 + $0x260] sm:$0xff]
                  %450 = vst [vmem:[%s372 + $0x130] sm:$0xff] %v449
                  %v451 = vld [vmem:[%s371 + $0x270] sm:$0xff]
                  %452 = vst [vmem:[%s372 + $0x138] sm:$0xff] %v451
                  %v453 = vld [vmem:[%s371 + $0x280] sm:$0xff]
                  %454 = vst [vmem:[%s372 + $0x140] sm:$0xff] %v453
                  %v455 = vld [vmem:[%s371 + $0x290] sm:$0xff]
                  %456 = vst [vmem:[%s372 + $0x148] sm:$0xff] %v455
                  %v457 = vld [vmem:[%s371 + $0x2a0] sm:$0xff]
                  %458 = vst [vmem:[%s372 + $0x150] sm:$0xff] %v457
                  %v459 = vld [vmem:[%s371 + $0x2b0] sm:$0xff]
                  %460 = vst [vmem:[%s372 + $0x158] sm:$0xff] %v459
                  %v461 = vld [vmem:[%s371 + $0x2c0] sm:$0xff]
                  %462 = vst [vmem:[%s372 + $0x160] sm:$0xff] %v461
                  %v463 = vld [vmem:[%s371 + $0x2d0] sm:$0xff]
                  %464 = vst [vmem:[%s372 + $0x168] sm:$0xff] %v463
                  %v465 = vld [vmem:[%s371 + $0x2e0] sm:$0xff]
                  %466 = vst [vmem:[%s372 + $0x170] sm:$0xff] %v465
                  %v467 = vld [vmem:[%s371 + $0x2f0] sm:$0xff]
                  %468 = vst [vmem:[%s372 + $0x178] sm:$0xff] %v467
                  %v469 = vld [vmem:[%s371 + $0x300] sm:$0xff]
                  %470 = vst [vmem:[%s372 + $0x180] sm:$0xff] %v469
                  %v471 = vld [vmem:[%s371 + $0x310] sm:$0xff]
                  %472 = vst [vmem:[%s372 + $0x188] sm:$0xff] %v471
                  %v473 = vld [vmem:[%s371 + $0x320] sm:$0xff]
                  %474 = vst [vmem:[%s372 + $0x190] sm:$0xff] %v473
                  %v475 = vld [vmem:[%s371 + $0x330] sm:$0xff]
                  %476 = vst [vmem:[%s372 + $0x198] sm:$0xff] %v475
                  %v477 = vld [vmem:[%s371 + $0x340] sm:$0xff]
                  %478 = vst [vmem:[%s372 + $0x1a0] sm:$0xff] %v477
                  %v479 = vld [vmem:[%s371 + $0x350] sm:$0xff]
                  %480 = vst [vmem:[%s372 + $0x1a8] sm:$0xff] %v479
                  %v481 = vld [vmem:[%s371 + $0x360] sm:$0xff]
                  %482 = vst [vmem:[%s372 + $0x1b0] sm:$0xff] %v481
                  %v483 = vld [vmem:[%s371 + $0x370] sm:$0xff]
                  %484 = vst [vmem:[%s372 + $0x1b8] sm:$0xff] %v483
                  %v485 = vld [vmem:[%s371 + $0x380] sm:$0xff]
                  %486 = vst [vmem:[%s372 + $0x1c0] sm:$0xff] %v485
                  %v487 = vld [vmem:[%s371 + $0x390] sm:$0xff]
                  %488 = vst [vmem:[%s372 + $0x1c8] sm:$0xff] %v487
                  %v489 = vld [vmem:[%s371 + $0x3a0] sm:$0xff]
                  %490 = vst [vmem:[%s372 + $0x1d0] sm:$0xff] %v489
                  %v491 = vld [vmem:[%s371 + $0x3b0] sm:$0xff]
                  %492 = vst [vmem:[%s372 + $0x1d8] sm:$0xff] %v491
                  %v493 = vld [vmem:[%s371 + $0x3c0] sm:$0xff]
                  %494 = vst [vmem:[%s372 + $0x1e0] sm:$0xff] %v493
                  %v495 = vld [vmem:[%s371 + $0x3d0] sm:$0xff]
                  %496 = vst [vmem:[%s372 + $0x1e8] sm:$0xff] %v495
                  %v497 = vld [vmem:[%s371 + $0x3e0] sm:$0xff]
                  %498 = vst [vmem:[%s372 + $0x1f0] sm:$0xff] %v497
                  %v499 = vld [vmem:[%s371 + $0x3f0] sm:$0xff]
                  %500 = vst [vmem:[%s372 + $0x1f8] sm:$0xff] %v499
                  %v501 = vld [vmem:[%s371 + $0x400] sm:$0xff]
                  %502 = vst [vmem:[%s372 + $0x200] sm:$0xff] %v501
                  %v503 = vld [vmem:[%s371 + $0x410] sm:$0xff]
                  %504 = vst [vmem:[%s372 + $0x208] sm:$0xff] %v503
                  %v505 = vld [vmem:[%s371 + $0x420] sm:$0xff]
                  %506 = vst [vmem:[%s372 + $0x210] sm:$0xff] %v505
                  %v507 = vld [vmem:[%s371 + $0x430] sm:$0xff]
                  %508 = vst [vmem:[%s372 + $0x218] sm:$0xff] %v507
                  %v509 = vld [vmem:[%s371 + $0x440] sm:$0xff]
                  %510 = vst [vmem:[%s372 + $0x220] sm:$0xff] %v509
                  %v511 = vld [vmem:[%s371 + $0x450] sm:$0xff]
                  %512 = vst [vmem:[%s372 + $0x228] sm:$0xff] %v511
                  %v513 = vld [vmem:[%s371 + $0x460] sm:$0xff]
                  %514 = vst [vmem:[%s372 + $0x230] sm:$0xff] %v513
                  %v515 = vld [vmem:[%s371 + $0x470] sm:$0xff]
                  %516 = vst [vmem:[%s372 + $0x238] sm:$0xff] %v515
                  %v517 = vld [vmem:[%s371 + $0x480] sm:$0xff]
                  %518 = vst [vmem:[%s372 + $0x240] sm:$0xff] %v517
                  %v519 = vld [vmem:[%s371 + $0x490] sm:$0xff]
                  %520 = vst [vmem:[%s372 + $0x248] sm:$0xff] %v519
                  %v521 = vld [vmem:[%s371 + $0x4a0] sm:$0xff]
                  %522 = vst [vmem:[%s372 + $0x250] sm:$0xff] %v521
                  %v523 = vld [vmem:[%s371 + $0x4b0] sm:$0xff]
                  %524 = vst [vmem:[%s372 + $0x258] sm:$0xff] %v523
                  %v525 = vld [vmem:[%s371 + $0x4c0] sm:$0xff]
                  %526 = vst [vmem:[%s372 + $0x260] sm:$0xff] %v525
                  %v527 = vld [vmem:[%s371 + $0x4d0] sm:$0xff]
                  %528 = vst [vmem:[%s372 + $0x268] sm:$0xff] %v527
                  %v529 = vld [vmem:[%s371 + $0x4e0] sm:$0xff]
                  %530 = vst [vmem:[%s372 + $0x270] sm:$0xff] %v529
                  %v531 = vld [vmem:[%s371 + $0x4f0] sm:$0xff]
                  %532 = vst [vmem:[%s372 + $0x278] sm:$0xff] %v531
                $region52: #{cc_discriminator_p_forward.5} parent=46 // loop_footer
                  %s370 = sadd.s32 1, %s366
                $region53: #{cc_discriminator_p_forward.5} parent=46 // loop_footer_branch
                  %365 = sbr.rel target = $region49
                $region54: #{cc_discriminator_p_forward.5} parent=46 // loop_exit
                  _
              $region47: #{cc_discriminator_p_forward.5} parent=31 // pred_fallthru
                _
              // Predicated region
              $region55: #{cc_discriminator_p_forward.5} parent=31 // pred_check
                _
              $region56: #{cc_discriminator_p_forward.5} parent=31 // pred_check_branch
                %534 = sbr.rel target = $region58
              $region57: #{cc_discriminator_p_forward.5} parent=31 // pred_region
                _
              $region58: #{cc_discriminator_p_forward.5} parent=31 // pred_fallthru
                _
            $region32: #{cc_discriminator_p_forward.5} parent=27 // pred_fallthru
              _
            // Predicated region
            $region33: #{cc_discriminator_p_forward.5} parent=27 // pred_check
              _
            $region34: #{cc_discriminator_p_forward.5} parent=27 // pred_check_branch
              %193 = sbr.rel target = $region36
            $region35: #{cc_discriminator_p_forward.5} parent=27 // pred_region
              loop: start=0, step=1, limit=1
              $region37: #{cc_discriminator_p_forward.5} parent=35 // loop_pre_header
                _
              $region38: #{cc_discriminator_p_forward.5} parent=35 // loop_header
                %s196 = sphi 0, %s200
                %p197 = scmp.ge.s32.totalorder %s196, 1
                %s201 = sphi %s187, %s187
                %s202 = sphi %s181, %s181
              $region39: #{cc_discriminator_p_forward.5} parent=35 // loop_header_branch
                %199 = sbr.rel (%p197) target = $region43
              $region40: #{cc_discriminator_p_forward.5} parent=35 // loop_body
                %v203 = vld [vmem:[%s201] sm:$0xff]
                %204 = vst [vmem:[%s202] sm:$0xff] %v203
                %v205 = vld [vmem:[%s201 + $0x10] sm:$0xff]
                %206 = vst [vmem:[%s202 + $0x8] sm:$0xff] %v205
                %v207 = vld [vmem:[%s201 + $0x20] sm:$0xff]
                %208 = vst [vmem:[%s202 + $0x10] sm:$0xff] %v207
                %v209 = vld [vmem:[%s201 + $0x30] sm:$0xff]
                %210 = vst [vmem:[%s202 + $0x18] sm:$0xff] %v209
                %v211 = vld [vmem:[%s201 + $0x40] sm:$0xff]
                %212 = vst [vmem:[%s202 + $0x20] sm:$0xff] %v211
                %v213 = vld [vmem:[%s201 + $0x50] sm:$0xff]
                %214 = vst [vmem:[%s202 + $0x28] sm:$0xff] %v213
                %v215 = vld [vmem:[%s201 + $0x60] sm:$0xff]
                %216 = vst [vmem:[%s202 + $0x30] sm:$0xff] %v215
                %v217 = vld [vmem:[%s201 + $0x70] sm:$0xff]
                %218 = vst [vmem:[%s202 + $0x38] sm:$0xff] %v217
                %v219 = vld [vmem:[%s201 + $0x80] sm:$0xff]
                %220 = vst [vmem:[%s202 + $0x40] sm:$0xff] %v219
                %v221 = vld [vmem:[%s201 + $0x90] sm:$0xff]
                %222 = vst [vmem:[%s202 + $0x48] sm:$0xff] %v221
                %v223 = vld [vmem:[%s201 + $0xa0] sm:$0xff]
                %224 = vst [vmem:[%s202 + $0x50] sm:$0xff] %v223
                %v225 = vld [vmem:[%s201 + $0xb0] sm:$0xff]
                %226 = vst [vmem:[%s202 + $0x58] sm:$0xff] %v225
                %v227 = vld [vmem:[%s201 + $0xc0] sm:$0xff]
                %228 = vst [vmem:[%s202 + $0x60] sm:$0xff] %v227
                %v229 = vld [vmem:[%s201 + $0xd0] sm:$0xff]
                %230 = vst [vmem:[%s202 + $0x68] sm:$0xff] %v229
                %v231 = vld [vmem:[%s201 + $0xe0] sm:$0xff]
                %232 = vst [vmem:[%s202 + $0x70] sm:$0xff] %v231
                %v233 = vld [vmem:[%s201 + $0xf0] sm:$0xff]
                %234 = vst [vmem:[%s202 + $0x78] sm:$0xff] %v233
                %v235 = vld [vmem:[%s201 + $0x100] sm:$0xff]
                %236 = vst [vmem:[%s202 + $0x80] sm:$0xff] %v235
                %v237 = vld [vmem:[%s201 + $0x110] sm:$0xff]
                %238 = vst [vmem:[%s202 + $0x88] sm:$0xff] %v237
                %v239 = vld [vmem:[%s201 + $0x120] sm:$0xff]
                %240 = vst [vmem:[%s202 + $0x90] sm:$0xff] %v239
                %v241 = vld [vmem:[%s201 + $0x130] sm:$0xff]
                %242 = vst [vmem:[%s202 + $0x98] sm:$0xff] %v241
                %v243 = vld [vmem:[%s201 + $0x140] sm:$0xff]
                %244 = vst [vmem:[%s202 + $0xa0] sm:$0xff] %v243
                %v245 = vld [vmem:[%s201 + $0x150] sm:$0xff]
                %246 = vst [vmem:[%s202 + $0xa8] sm:$0xff] %v245
                %v247 = vld [vmem:[%s201 + $0x160] sm:$0xff]
                %248 = vst [vmem:[%s202 + $0xb0] sm:$0xff] %v247
                %v249 = vld [vmem:[%s201 + $0x170] sm:$0xff]
                %250 = vst [vmem:[%s202 + $0xb8] sm:$0xff] %v249
                %v251 = vld [vmem:[%s201 + $0x180] sm:$0xff]
                %252 = vst [vmem:[%s202 + $0xc0] sm:$0xff] %v251
                %v253 = vld [vmem:[%s201 + $0x190] sm:$0xff]
                %254 = vst [vmem:[%s202 + $0xc8] sm:$0xff] %v253
                %v255 = vld [vmem:[%s201 + $0x1a0] sm:$0xff]
                %256 = vst [vmem:[%s202 + $0xd0] sm:$0xff] %v255
                %v257 = vld [vmem:[%s201 + $0x1b0] sm:$0xff]
                %258 = vst [vmem:[%s202 + $0xd8] sm:$0xff] %v257
                %v259 = vld [vmem:[%s201 + $0x1c0] sm:$0xff]
                %260 = vst [vmem:[%s202 + $0xe0] sm:$0xff] %v259
                %v261 = vld [vmem:[%s201 + $0x1d0] sm:$0xff]
                %262 = vst [vmem:[%s202 + $0xe8] sm:$0xff] %v261
                %v263 = vld [vmem:[%s201 + $0x1e0] sm:$0xff]
                %264 = vst [vmem:[%s202 + $0xf0] sm:$0xff] %v263
                %v265 = vld [vmem:[%s201 + $0x1f0] sm:$0xff]
                %266 = vst [vmem:[%s202 + $0xf8] sm:$0xff] %v265
                %v267 = vld [vmem:[%s201 + $0x200] sm:$0xff]
                %268 = vst [vmem:[%s202 + $0x100] sm:$0xff] %v267
                %v269 = vld [vmem:[%s201 + $0x210] sm:$0xff]
                %270 = vst [vmem:[%s202 + $0x108] sm:$0xff] %v269
                %v271 = vld [vmem:[%s201 + $0x220] sm:$0xff]
                %272 = vst [vmem:[%s202 + $0x110] sm:$0xff] %v271
                %v273 = vld [vmem:[%s201 + $0x230] sm:$0xff]
                %274 = vst [vmem:[%s202 + $0x118] sm:$0xff] %v273
                %v275 = vld [vmem:[%s201 + $0x240] sm:$0xff]
                %276 = vst [vmem:[%s202 + $0x120] sm:$0xff] %v275
                %v277 = vld [vmem:[%s201 + $0x250] sm:$0xff]
                %278 = vst [vmem:[%s202 + $0x128] sm:$0xff] %v277
                %v279 = vld [vmem:[%s201 + $0x260] sm:$0xff]
                %280 = vst [vmem:[%s202 + $0x130] sm:$0xff] %v279
                %v281 = vld [vmem:[%s201 + $0x270] sm:$0xff]
                %282 = vst [vmem:[%s202 + $0x138] sm:$0xff] %v281
                %v283 = vld [vmem:[%s201 + $0x280] sm:$0xff]
                %284 = vst [vmem:[%s202 + $0x140] sm:$0xff] %v283
                %v285 = vld [vmem:[%s201 + $0x290] sm:$0xff]
                %286 = vst [vmem:[%s202 + $0x148] sm:$0xff] %v285
                %v287 = vld [vmem:[%s201 + $0x2a0] sm:$0xff]
                %288 = vst [vmem:[%s202 + $0x150] sm:$0xff] %v287
                %v289 = vld [vmem:[%s201 + $0x2b0] sm:$0xff]
                %290 = vst [vmem:[%s202 + $0x158] sm:$0xff] %v289
                %v291 = vld [vmem:[%s201 + $0x2c0] sm:$0xff]
                %292 = vst [vmem:[%s202 + $0x160] sm:$0xff] %v291
                %v293 = vld [vmem:[%s201 + $0x2d0] sm:$0xff]
                %294 = vst [vmem:[%s202 + $0x168] sm:$0xff] %v293
                %v295 = vld [vmem:[%s201 + $0x2e0] sm:$0xff]
                %296 = vst [vmem:[%s202 + $0x170] sm:$0xff] %v295
                %v297 = vld [vmem:[%s201 + $0x2f0] sm:$0xff]
                %298 = vst [vmem:[%s202 + $0x178] sm:$0xff] %v297
                %v299 = vld [vmem:[%s201 + $0x300] sm:$0xff]
                %300 = vst [vmem:[%s202 + $0x180] sm:$0xff] %v299
                %v301 = vld [vmem:[%s201 + $0x310] sm:$0xff]
                %302 = vst [vmem:[%s202 + $0x188] sm:$0xff] %v301
                %v303 = vld [vmem:[%s201 + $0x320] sm:$0xff]
                %304 = vst [vmem:[%s202 + $0x190] sm:$0xff] %v303
                %v305 = vld [vmem:[%s201 + $0x330] sm:$0xff]
                %306 = vst [vmem:[%s202 + $0x198] sm:$0xff] %v305
                %v307 = vld [vmem:[%s201 + $0x340] sm:$0xff]
                %308 = vst [vmem:[%s202 + $0x1a0] sm:$0xff] %v307
                %v309 = vld [vmem:[%s201 + $0x350] sm:$0xff]
                %310 = vst [vmem:[%s202 + $0x1a8] sm:$0xff] %v309
                %v311 = vld [vmem:[%s201 + $0x360] sm:$0xff]
                %312 = vst [vmem:[%s202 + $0x1b0] sm:$0xff] %v311
                %v313 = vld [vmem:[%s201 + $0x370] sm:$0xff]
                %314 = vst [vmem:[%s202 + $0x1b8] sm:$0xff] %v313
                %v315 = vld [vmem:[%s201 + $0x380] sm:$0xff]
                %316 = vst [vmem:[%s202 + $0x1c0] sm:$0xff] %v315
                %v317 = vld [vmem:[%s201 + $0x390] sm:$0xff]
                %318 = vst [vmem:[%s202 + $0x1c8] sm:$0xff] %v317
                %v319 = vld [vmem:[%s201 + $0x3a0] sm:$0xff]
                %320 = vst [vmem:[%s202 + $0x1d0] sm:$0xff] %v319
                %v321 = vld [vmem:[%s201 + $0x3b0] sm:$0xff]
                %322 = vst [vmem:[%s202 + $0x1d8] sm:$0xff] %v321
                %v323 = vld [vmem:[%s201 + $0x3c0] sm:$0xff]
                %324 = vst [vmem:[%s202 + $0x1e0] sm:$0xff] %v323
                %v325 = vld [vmem:[%s201 + $0x3d0] sm:$0xff]
                %326 = vst [vmem:[%s202 + $0x1e8] sm:$0xff] %v325
                %v327 = vld [vmem:[%s201 + $0x3e0] sm:$0xff]
                %328 = vst [vmem:[%s202 + $0x1f0] sm:$0xff] %v327
                %v329 = vld [vmem:[%s201 + $0x3f0] sm:$0xff]
                %330 = vst [vmem:[%s202 + $0x1f8] sm:$0xff] %v329
                %v331 = vld [vmem:[%s201 + $0x400] sm:$0xff]
                %332 = vst [vmem:[%s202 + $0x200] sm:$0xff] %v331
                %v333 = vld [vmem:[%s201 + $0x410] sm:$0xff]
                %334 = vst [vmem:[%s202 + $0x208] sm:$0xff] %v333
                %v335 = vld [vmem:[%s201 + $0x420] sm:$0xff]
                %336 = vst [vmem:[%s202 + $0x210] sm:$0xff] %v335
                %v337 = vld [vmem:[%s201 + $0x430] sm:$0xff]
                %338 = vst [vmem:[%s202 + $0x218] sm:$0xff] %v337
                %v339 = vld [vmem:[%s201 + $0x440] sm:$0xff]
                %340 = vst [vmem:[%s202 + $0x220] sm:$0xff] %v339
                %v341 = vld [vmem:[%s201 + $0x450] sm:$0xff]
                %342 = vst [vmem:[%s202 + $0x228] sm:$0xff] %v341
                %v343 = vld [vmem:[%s201 + $0x460] sm:$0xff]
                %344 = vst [vmem:[%s202 + $0x230] sm:$0xff] %v343
                %v345 = vld [vmem:[%s201 + $0x470] sm:$0xff]
                %346 = vst [vmem:[%s202 + $0x238] sm:$0xff] %v345
                %v347 = vld [vmem:[%s201 + $0x480] sm:$0xff]
                %348 = vst [vmem:[%s202 + $0x240] sm:$0xff] %v347
                %v349 = vld [vmem:[%s201 + $0x490] sm:$0xff]
                %350 = vst [vmem:[%s202 + $0x248] sm:$0xff] %v349
                %v351 = vld [vmem:[%s201 + $0x4a0] sm:$0xff]
                %352 = vst [vmem:[%s202 + $0x250] sm:$0xff] %v351
                %v353 = vld [vmem:[%s201 + $0x4b0] sm:$0xff]
                %354 = vst [vmem:[%s202 + $0x258] sm:$0xff] %v353
                %v355 = vld [vmem:[%s201 + $0x4c0] sm:$0xff]
                %356 = vst [vmem:[%s202 + $0x260] sm:$0xff] %v355
                %v357 = vld [vmem:[%s201 + $0x4d0] sm:$0xff]
                %358 = vst [vmem:[%s202 + $0x268] sm:$0xff] %v357
                %v359 = vld [vmem:[%s201 + $0x4e0] sm:$0xff]
                %360 = vst [vmem:[%s202 + $0x270] sm:$0xff] %v359
                %v361 = vld [vmem:[%s201 + $0x4f0] sm:$0xff]
                %362 = vst [vmem:[%s202 + $0x278] sm:$0xff] %v361
              $region41: #{cc_discriminator_p_forward.5} parent=35 // loop_footer
                %s200 = sadd.s32 1, %s196
              $region42: #{cc_discriminator_p_forward.5} parent=35 // loop_footer_branch
                %195 = sbr.rel target = $region38
              $region43: #{cc_discriminator_p_forward.5} parent=35 // loop_exit
                _
            $region36: #{cc_discriminator_p_forward.5} parent=27 // pred_fallthru
              _
          $region28: #{cc_discriminator_p_forward.5} parent=23 // pred_fallthru
            _
          %535 = vnop
        $region24: #{cc_discriminator_p_forward.5} parent=19 // pred_fallthru
          _
        // Predicated region
        $region59: #{cc_discriminator_p_forward.5} parent=19 // pred_check
          %p536 = pneg %p107
        $region60: #{cc_discriminator_p_forward.5} parent=19 // pred_check_branch
          %538 = sbr.rel (%p536) target = $region62
        $region61: #{cc_discriminator_p_forward.5} parent=19 // pred_region
          %s539 = sand.u32 %s97, 1
          %s540 = scalar_lea.sflag [#allocation5], %s539
          %s541 = sand.u32 %s97, 1
          %s542 = smul.addr %s541, 2
          %s543 = scalar_lea.vmem [#allocation4], %s542
          %s544 = smul.u32 2, %s20
          %s546 = ssub.s32 32, 32
          %547 = vsyncadd %s540, %s546
          %s548 = smul.addr %s544, 16
          %s549 = scalar_lea.hbm %s2, %s548
          %s551 = sshll.u32 %s543, 4
          %s552 = int_to_ptr.vmem [resolvable:$true] %s551
          %554 = dma.hbm_to_vmem [thread:$0]  %s549, 32, %s552, %s540
        $region62: #{cc_discriminator_p_forward.5} parent=19 // pred_fallthru
          _
      $region20: #{cc_discriminator_p_forward.5} parent=5 // pred_fallthru
        _
      %p555 = scmp.le.s32.totalorder 1, %s12
      %p556 = scmp.lt.s32.totalorder %s12, 3
      %p557 = pnand %p555, %p556
      %p558 = pneg %p557
      // Predicated region
      $region63: #{cc_discriminator_p_forward.5} parent=5 // pred_check
        _
      $region64: #{cc_discriminator_p_forward.5} parent=5 // pred_check_branch
        %560 = sbr.rel (%p557) target = $region66
      $region65: #{cc_discriminator_p_forward.5} parent=5 // pred_region
        %s561 = ssub.s32 %s12, 1
        %s562 = sand.u32 %s74, 1
        %s563 = sand.u32 %s74, 1
        %s564 = smul.addr %s563, 640
        %s565 = scalar_lea.vmem [#allocation3], %s564
        // Predicated region
        $region67: #{cc_discriminator_p_forward.5} parent=65 // pred_check
          %p566 = pneg %p87
        $region68: #{cc_discriminator_p_forward.5} parent=65 // pred_check_branch
          %568 = sbr.rel (%p566) target = $region70
        $region69: #{cc_discriminator_p_forward.5} parent=65 // pred_region
          _
        $region70: #{cc_discriminator_p_forward.5} parent=65 // pred_fallthru
          _
        %s569 = sand.u32 %s100, 1
        %s570 = scalar_lea.sflag [#allocation5], %s569
        %s571 = sand.u32 %s100, 1
        %s572 = smul.addr %s571, 2
        %s573 = scalar_lea.vmem [#allocation4], %s572
        // Predicated region
        $region71: #{cc_discriminator_p_forward.5} parent=65 // pred_check
          %p574 = pneg %p113
        $region72: #{cc_discriminator_p_forward.5} parent=65 // pred_check_branch
          %576 = sbr.rel (%p574) target = $region74
        $region73: #{cc_discriminator_p_forward.5} parent=65 // pred_region
          %577 = dma.done %s570, 32
        $region74: #{cc_discriminator_p_forward.5} parent=65 // pred_fallthru
          _
        %s578 = smul.u32 2, %s22
        %s579 = smul.u32 5, %s24
        %p580 = scmp.lt.s32.totalorder %s578, 1
        %s581 = scalar_select %p580, %s578, 1
        %p582 = scmp.lt.s32.totalorder %s579, 4
        %s583 = scalar_select %p582, %s579, 4
        %s584 = smul.addr %s581, 5
        %s585 = sadd.s32 %s583, %s584
        %s586 = smul.addr %s585, 4
        %s587 = scalar_lea.vmem %s0, %s586
        %p588 = pneg %p59
        %p589 = pneg %p56
        %s590 = sand.u32 %s74, 1
        %s591 = sand.u32 %s74, 1
        %s592 = smul.addr %s591, 640
        %s593 = scalar_lea.vmem [#allocation3], %s592
        %p594 = pneg %p87
        %p595 = pneg %p84
        %s596 = sand.u32 %s100, 1
        %s597 = scalar_lea.sflag [#allocation5], %s596
        %s598 = sand.u32 %s100, 1
        %s599 = smul.addr %s598, 2
        %s600 = scalar_lea.vmem [#allocation4], %s599
        %p601 = pneg %p113
        %p602 = pneg %p110
        %p603 = pneg %p141
        %p604 = pneg %p138
        %s605 = sand.u32 %s128, 1
        %s606 = sand.u32 %s128, 1
        %s607 = smul.addr %s606, 16
        %s608 = scalar_lea.vmem [#allocation6], %s607
        %s609 = smul.u32 2, %s22
        %s610 = smul.u32 5, %s24
        %p611 = scmp.lt.s32.totalorder %s609, 1
        %s612 = scalar_select %p611, %s609, 1
        %p613 = scmp.lt.s32.totalorder %s610, 4
        %s614 = scalar_select %p613, %s610, 4
        %s615 = smul.addr %s612, 5
        %s616 = sadd.s32 %s614, %s615
        %s617 = smul.addr %s616, 4
        %s618 = scalar_lea.vmem %s0, %s617
        %s619 = smul.u32 2, %s22
        %s620 = smul.u32 5, %s24
        %s621 = smul.u32 80, %s24
        %s622 = smul.u32 2, %s23
        %s623 = smul.u32 2, %s23
        %s624 = smul.u32 2, %s22
        %s625 = smul.u32 2, %s23
        %p627 = scmp.eq.s32.totalorder %s24, 0
        // Predicated region
        $region75: #{cc_discriminator_p_forward.5} parent=65 // pred_check
          %p628 = pneg %p627
        $region76: #{cc_discriminator_p_forward.5} parent=65 // pred_check_branch
          %630 = sbr.rel (%p628) target = $region78
        $region77: #{cc_discriminator_p_forward.5} parent=65 // pred_region
          %631 = vst [vmem:[#allocation2] sm:$0xff] 0.0
          %632 = vst [vmem:[#allocation2 + $0x8] sm:$0xff] 0.0
          %633 = vst [vmem:[#allocation2 + $0x10] sm:$0xff] 0.0
          %634 = vst [vmem:[#allocation2 + $0x18] sm:$0xff] 0.0
        $region78: #{cc_discriminator_p_forward.5} parent=65 // pred_fallthru
          _
        %v635 = vld [vmem:[#allocation2] sm:$0xff]
        %v636 = vld [vmem:[#allocation2 + $0x8] sm:$0xff]
        %v637 = vld [vmem:[#allocation2 + $0x10] sm:$0xff]
        %v638 = vld [vmem:[#allocation2 + $0x18] sm:$0xff]
        %v639 = vld [vmem:[%s618] sm:$0xff]
        %v640 = vld [vmem:[%s618 + $0x8] sm:$0xff]
        %v641 = vld [vmem:[%s618 + $0x10] sm:$0xf]
        %v642 = vld [vmem:[%s618 + $0x14] sm:$0xff]
        %v643 = vld [vmem:[%s618 + $0x1c] sm:$0xff]
        %v644 = vld [vmem:[%s618 + $0x24] sm:$0xf]
        %v645 = vld [vmem:[%s565] sm:$0xff]
        %v646 = vld [vmem:[%s565 + $0x8] sm:$0xff]
        %v647 = vld [vmem:[%s565 + $0x10] sm:$0xff]
        %v648 = vld [vmem:[%s565 + $0x18] sm:$0xff]
        %v649 = vld [vmem:[%s565 + $0x20] sm:$0xff]
        %v650 = vld [vmem:[%s565 + $0x28] sm:$0xff]
        %v651 = vld [vmem:[%s565 + $0x30] sm:$0xff]
        %v652 = vld [vmem:[%s565 + $0x38] sm:$0xff]
        %v653 = vld [vmem:[%s565 + $0x40] sm:$0xff]
        %v654 = vld [vmem:[%s565 + $0x48] sm:$0xff]
        %v655 = vld [vmem:[%s565 + $0x50] sm:$0xff]
        %v656 = vld [vmem:[%s565 + $0x58] sm:$0xff]
        %v657 = vld [vmem:[%s565 + $0x60] sm:$0xff]
        %v658 = vld [vmem:[%s565 + $0x68] sm:$0xff]
        %v659 = vld [vmem:[%s565 + $0x70] sm:$0xff]
        %v660 = vld [vmem:[%s565 + $0x78] sm:$0xff]
        %v661 = vld [vmem:[%s565 + $0x80] sm:$0xff]
        %v662 = vld [vmem:[%s565 + $0x88] sm:$0xff]
        %v663 = vld [vmem:[%s565 + $0x90] sm:$0xff]
        %v664 = vld [vmem:[%s565 + $0x98] sm:$0xff]
        %v665 = vld [vmem:[%s565 + $0xa0] sm:$0xff]
        %v666 = vld [vmem:[%s565 + $0xa8] sm:$0xff]
        %v667 = vld [vmem:[%s565 + $0xb0] sm:$0xff]
        %v668 = vld [vmem:[%s565 + $0xb8] sm:$0xff]
        %v669 = vld [vmem:[%s565 + $0xc0] sm:$0xff]
        %v670 = vld [vmem:[%s565 + $0xc8] sm:$0xff]
        %v671 = vld [vmem:[%s565 + $0xd0] sm:$0xff]
        %v672 = vld [vmem:[%s565 + $0xd8] sm:$0xff]
        %v673 = vld [vmem:[%s565 + $0xe0] sm:$0xff]
        %v674 = vld [vmem:[%s565 + $0xe8] sm:$0xff]
        %v675 = vld [vmem:[%s565 + $0xf0] sm:$0xff]
        %v676 = vld [vmem:[%s565 + $0xf8] sm:$0xff]
        %v677 = vld [vmem:[%s565 + $0x100] sm:$0xff]
        %v678 = vld [vmem:[%s565 + $0x108] sm:$0xff]
        %v679 = vld [vmem:[%s565 + $0x110] sm:$0xff]
        %v680 = vld [vmem:[%s565 + $0x118] sm:$0xff]
        %v681 = vld [vmem:[%s565 + $0x120] sm:$0xff]
        %v682 = vld [vmem:[%s565 + $0x128] sm:$0xff]
        %v683 = vld [vmem:[%s565 + $0x130] sm:$0xff]
        %v684 = vld [vmem:[%s565 + $0x138] sm:$0xff]
        %v685 = vld [vmem:[%s565 + $0x140] sm:$0xff]
        %v686 = vld [vmem:[%s565 + $0x148] sm:$0xff]
        %v687 = vld [vmem:[%s565 + $0x150] sm:$0xff]
        %v688 = vld [vmem:[%s565 + $0x158] sm:$0xff]
        %v689 = vld [vmem:[%s565 + $0x160] sm:$0xff]
        %v690 = vld [vmem:[%s565 + $0x168] sm:$0xff]
        %v691 = vld [vmem:[%s565 + $0x170] sm:$0xff]
        %v692 = vld [vmem:[%s565 + $0x178] sm:$0xff]
        %v693 = vld [vmem:[%s565 + $0x180] sm:$0xff]
        %v694 = vld [vmem:[%s565 + $0x188] sm:$0xff]
        %v695 = vld [vmem:[%s565 + $0x190] sm:$0xff]
        %v696 = vld [vmem:[%s565 + $0x198] sm:$0xff]
        %v697 = vld [vmem:[%s565 + $0x1a0] sm:$0xff]
        %v698 = vld [vmem:[%s565 + $0x1a8] sm:$0xff]
        %v699 = vld [vmem:[%s565 + $0x1b0] sm:$0xff]
        %v700 = vld [vmem:[%s565 + $0x1b8] sm:$0xff]
        %v701 = vld [vmem:[%s565 + $0x1c0] sm:$0xff]
        %v702 = vld [vmem:[%s565 + $0x1c8] sm:$0xff]
        %v703 = vld [vmem:[%s565 + $0x1d0] sm:$0xff]
        %v704 = vld [vmem:[%s565 + $0x1d8] sm:$0xff]
        %v705 = vld [vmem:[%s565 + $0x1e0] sm:$0xff]
        %v706 = vld [vmem:[%s565 + $0x1e8] sm:$0xff]
        %v707 = vld [vmem:[%s565 + $0x1f0] sm:$0xff]
        %v708 = vld [vmem:[%s565 + $0x1f8] sm:$0xff]
        %v709 = vld [vmem:[%s565 + $0x200] sm:$0xff]
        %v710 = vld [vmem:[%s565 + $0x208] sm:$0xff]
        %v711 = vld [vmem:[%s565 + $0x210] sm:$0xff]
        %v712 = vld [vmem:[%s565 + $0x218] sm:$0xff]
        %v713 = vld [vmem:[%s565 + $0x220] sm:$0xff]
        %v714 = vld [vmem:[%s565 + $0x228] sm:$0xff]
        %v715 = vld [vmem:[%s565 + $0x230] sm:$0xff]
        %v716 = vld [vmem:[%s565 + $0x238] sm:$0xff]
        %v717 = vld [vmem:[%s565 + $0x240] sm:$0xff]
        %v718 = vld [vmem:[%s565 + $0x248] sm:$0xff]
        %v719 = vld [vmem:[%s565 + $0x250] sm:$0xff]
        %v720 = vld [vmem:[%s565 + $0x258] sm:$0xff]
        %v721 = vld [vmem:[%s565 + $0x260] sm:$0xff]
        %v722 = vld [vmem:[%s565 + $0x268] sm:$0xff]
        %v723 = vld [vmem:[%s565 + $0x270] sm:$0xff]
        %v724 = vld [vmem:[%s565 + $0x278] sm:$0xff]
        %v731 = vunpack.c.l.b16 %v639
        %v732 = vunpack.c.h.b16 %v639
        %v733 = vunpack.c.l.b16 %v640
        %v734 = vunpack.c.h.b16 %v640
        %v735 = vunpack.c.l.b16 %v641
        %v736 = vunpack.c.l.b16 %v642
        %v737 = vunpack.c.h.b16 %v642
        %v738 = vunpack.c.l.b16 %v643
        %v739 = vunpack.c.h.b16 %v643
        %v740 = vunpack.c.l.b16 %v644
        %v741 = vpack.c.b16 %v736, %v731
        %v742 = vpack.c.b16 %v737, %v732
        %v743 = vpack.c.b16 %v738, %v733
        %v744 = vpack.c.b16 %v739, %v734
        %v745 = vpack.c.b16 %v740, %v735
        %v831 = vunpack.c.l.b16 %v645
        %v832 = vunpack.c.h.b16 %v645
        %v833 = vunpack.c.l.b16 %v646
        %v834 = vunpack.c.h.b16 %v646
        %v835 = vunpack.c.l.b16 %v647
        %v836 = vunpack.c.h.b16 %v647
        %v837 = vunpack.c.l.b16 %v648
        %v838 = vunpack.c.h.b16 %v648
        %v839 = vunpack.c.l.b16 %v649
        %v840 = vunpack.c.h.b16 %v649
        %v841 = vunpack.c.l.b16 %v650
        %v842 = vunpack.c.h.b16 %v650
        %v843 = vunpack.c.l.b16 %v651
        %v844 = vunpack.c.h.b16 %v651
        %v845 = vunpack.c.l.b16 %v652
        %v846 = vunpack.c.h.b16 %v652
        %v847 = vunpack.c.l.b16 %v653
        %v848 = vunpack.c.h.b16 %v653
        %v849 = vunpack.c.l.b16 %v654
        %v850 = vunpack.c.h.b16 %v654
        %v851 = vunpack.c.l.b16 %v655
        %v852 = vunpack.c.h.b16 %v655
        %v853 = vunpack.c.l.b16 %v656
        %v854 = vunpack.c.h.b16 %v656
        %v855 = vunpack.c.l.b16 %v657
        %v856 = vunpack.c.h.b16 %v657
        %v857 = vunpack.c.l.b16 %v658
        %v858 = vunpack.c.h.b16 %v658
        %v859 = vunpack.c.l.b16 %v659
        %v860 = vunpack.c.h.b16 %v659
        %v861 = vunpack.c.l.b16 %v660
        %v862 = vunpack.c.h.b16 %v660
        %v863 = vunpack.c.l.b16 %v661
        %v864 = vunpack.c.h.b16 %v661
        %v865 = vunpack.c.l.b16 %v662
        %v866 = vunpack.c.h.b16 %v662
        %v867 = vunpack.c.l.b16 %v663
        %v868 = vunpack.c.h.b16 %v663
        %v869 = vunpack.c.l.b16 %v664
        %v870 = vunpack.c.h.b16 %v664
        %v871 = vunpack.c.l.b16 %v665
        %v872 = vunpack.c.h.b16 %v665
        %v873 = vunpack.c.l.b16 %v666
        %v874 = vunpack.c.h.b16 %v666
        %v875 = vunpack.c.l.b16 %v667
        %v876 = vunpack.c.h.b16 %v667
        %v877 = vunpack.c.l.b16 %v668
        %v878 = vunpack.c.h.b16 %v668
        %v879 = vunpack.c.l.b16 %v669
        %v880 = vunpack.c.h.b16 %v669
        %v881 = vunpack.c.l.b16 %v670
        %v882 = vunpack.c.h.b16 %v670
        %v883 = vunpack.c.l.b16 %v671
        %v884 = vunpack.c.h.b16 %v671
        %v885 = vunpack.c.l.b16 %v672
        %v886 = vunpack.c.h.b16 %v672
        %v887 = vunpack.c.l.b16 %v673
        %v888 = vunpack.c.h.b16 %v673
        %v889 = vunpack.c.l.b16 %v674
        %v890 = vunpack.c.h.b16 %v674
        %v891 = vunpack.c.l.b16 %v675
        %v892 = vunpack.c.h.b16 %v675
        %v893 = vunpack.c.l.b16 %v676
        %v894 = vunpack.c.h.b16 %v676
        %v895 = vunpack.c.l.b16 %v677
        %v896 = vunpack.c.h.b16 %v677
        %v897 = vunpack.c.l.b16 %v678
        %v898 = vunpack.c.h.b16 %v678
        %v899 = vunpack.c.l.b16 %v679
        %v900 = vunpack.c.h.b16 %v679
        %v901 = vunpack.c.l.b16 %v680
        %v902 = vunpack.c.h.b16 %v680
        %v903 = vunpack.c.l.b16 %v681
        %v904 = vunpack.c.h.b16 %v681
        %v905 = vunpack.c.l.b16 %v682
        %v906 = vunpack.c.h.b16 %v682
        %v907 = vunpack.c.l.b16 %v683
        %v908 = vunpack.c.h.b16 %v683
        %v909 = vunpack.c.l.b16 %v684
        %v910 = vunpack.c.h.b16 %v684
        %v911 = vunpack.c.l.b16 %v685
        %v912 = vunpack.c.h.b16 %v685
        %v913 = vunpack.c.l.b16 %v686
        %v914 = vunpack.c.h.b16 %v686
        %v915 = vunpack.c.l.b16 %v687
        %v916 = vunpack.c.h.b16 %v687
        %v917 = vunpack.c.l.b16 %v688
        %v918 = vunpack.c.h.b16 %v688
        %v919 = vunpack.c.l.b16 %v689
        %v920 = vunpack.c.h.b16 %v689
        %v921 = vunpack.c.l.b16 %v690
        %v922 = vunpack.c.h.b16 %v690
        %v923 = vunpack.c.l.b16 %v691
        %v924 = vunpack.c.h.b16 %v691
        %v925 = vunpack.c.l.b16 %v692
        %v926 = vunpack.c.h.b16 %v692
        %v927 = vunpack.c.l.b16 %v693
        %v928 = vunpack.c.h.b16 %v693
        %v929 = vunpack.c.l.b16 %v694
        %v930 = vunpack.c.h.b16 %v694
        %v931 = vunpack.c.l.b16 %v695
        %v932 = vunpack.c.h.b16 %v695
        %v933 = vunpack.c.l.b16 %v696
        %v934 = vunpack.c.h.b16 %v696
        %v935 = vunpack.c.l.b16 %v697
        %v936 = vunpack.c.h.b16 %v697
        %v937 = vunpack.c.l.b16 %v698
        %v938 = vunpack.c.h.b16 %v698
        %v939 = vunpack.c.l.b16 %v699
        %v940 = vunpack.c.h.b16 %v699
        %v941 = vunpack.c.l.b16 %v700
        %v942 = vunpack.c.h.b16 %v700
        %v943 = vunpack.c.l.b16 %v701
        %v944 = vunpack.c.h.b16 %v701
        %v945 = vunpack.c.l.b16 %v702
        %v946 = vunpack.c.h.b16 %v702
        %v947 = vunpack.c.l.b16 %v703
        %v948 = vunpack.c.h.b16 %v703
        %v949 = vunpack.c.l.b16 %v704
        %v950 = vunpack.c.h.b16 %v704
        %v951 = vunpack.c.l.b16 %v705
        %v952 = vunpack.c.h.b16 %v705
        %v953 = vunpack.c.l.b16 %v706
        %v954 = vunpack.c.h.b16 %v706
        %v955 = vunpack.c.l.b16 %v707
        %v956 = vunpack.c.h.b16 %v707
        %v957 = vunpack.c.l.b16 %v708
        %v958 = vunpack.c.h.b16 %v708
        %v959 = vunpack.c.l.b16 %v709
        %v960 = vunpack.c.h.b16 %v709
        %v961 = vunpack.c.l.b16 %v710
        %v962 = vunpack.c.h.b16 %v710
        %v963 = vunpack.c.l.b16 %v711
        %v964 = vunpack.c.h.b16 %v711
        %v965 = vunpack.c.l.b16 %v712
        %v966 = vunpack.c.h.b16 %v712
        %v967 = vunpack.c.l.b16 %v713
        %v968 = vunpack.c.h.b16 %v713
        %v969 = vunpack.c.l.b16 %v714
        %v970 = vunpack.c.h.b16 %v714
        %v971 = vunpack.c.l.b16 %v715
        %v972 = vunpack.c.h.b16 %v715
        %v973 = vunpack.c.l.b16 %v716
        %v974 = vunpack.c.h.b16 %v716
        %v975 = vunpack.c.l.b16 %v717
        %v976 = vunpack.c.h.b16 %v717
        %v977 = vunpack.c.l.b16 %v718
        %v978 = vunpack.c.h.b16 %v718
        %v979 = vunpack.c.l.b16 %v719
        %v980 = vunpack.c.h.b16 %v719
        %v981 = vunpack.c.l.b16 %v720
        %v982 = vunpack.c.h.b16 %v720
        %v983 = vunpack.c.l.b16 %v721
        %v984 = vunpack.c.h.b16 %v721
        %v985 = vunpack.c.l.b16 %v722
        %v986 = vunpack.c.h.b16 %v722
        %v987 = vunpack.c.l.b16 %v723
        %v988 = vunpack.c.h.b16 %v723
        %v989 = vunpack.c.l.b16 %v724
        %v990 = vunpack.c.h.b16 %v724
        %v991 = vpack.c.b16 %v833, %v831
        %v992 = vpack.c.b16 %v834, %v832
        %v993 = vpack.c.b16 %v837, %v835
        %v994 = vpack.c.b16 %v838, %v836
        %v995 = vpack.c.b16 %v841, %v839
        %v996 = vpack.c.b16 %v842, %v840
        %v997 = vpack.c.b16 %v845, %v843
        %v998 = vpack.c.b16 %v846, %v844
        %v999 = vpack.c.b16 %v849, %v847
        %v1000 = vpack.c.b16 %v850, %v848
        %v1001 = vpack.c.b16 %v853, %v851
        %v1002 = vpack.c.b16 %v854, %v852
        %v1003 = vpack.c.b16 %v857, %v855
        %v1004 = vpack.c.b16 %v858, %v856
        %v1005 = vpack.c.b16 %v861, %v859
        %v1006 = vpack.c.b16 %v862, %v860
        %v1007 = vpack.c.b16 %v865, %v863
        %v1008 = vpack.c.b16 %v866, %v864
        %v1009 = vpack.c.b16 %v869, %v867
        %v1010 = vpack.c.b16 %v870, %v868
        %v1011 = vpack.c.b16 %v873, %v871
        %v1012 = vpack.c.b16 %v874, %v872
        %v1013 = vpack.c.b16 %v877, %v875
        %v1014 = vpack.c.b16 %v878, %v876
        %v1015 = vpack.c.b16 %v881, %v879
        %v1016 = vpack.c.b16 %v882, %v880
        %v1017 = vpack.c.b16 %v885, %v883
        %v1018 = vpack.c.b16 %v886, %v884
        %v1019 = vpack.c.b16 %v889, %v887
        %v1020 = vpack.c.b16 %v890, %v888
        %v1021 = vpack.c.b16 %v893, %v891
        %v1022 = vpack.c.b16 %v894, %v892
        %v1023 = vpack.c.b16 %v897, %v895
        %v1024 = vpack.c.b16 %v898, %v896
        %v1025 = vpack.c.b16 %v901, %v899
        %v1026 = vpack.c.b16 %v902, %v900
        %v1027 = vpack.c.b16 %v905, %v903
        %v1028 = vpack.c.b16 %v906, %v904
        %v1029 = vpack.c.b16 %v909, %v907
        %v1030 = vpack.c.b16 %v910, %v908
        %v1031 = vpack.c.b16 %v913, %v911
        %v1032 = vpack.c.b16 %v914, %v912
        %v1033 = vpack.c.b16 %v917, %v915
        %v1034 = vpack.c.b16 %v918, %v916
        %v1035 = vpack.c.b16 %v921, %v919
        %v1036 = vpack.c.b16 %v922, %v920
        %v1037 = vpack.c.b16 %v925, %v923
        %v1038 = vpack.c.b16 %v926, %v924
        %v1039 = vpack.c.b16 %v929, %v927
        %v1040 = vpack.c.b16 %v930, %v928
        %v1041 = vpack.c.b16 %v933, %v931
        %v1042 = vpack.c.b16 %v934, %v932
        %v1043 = vpack.c.b16 %v937, %v935
        %v1044 = vpack.c.b16 %v938, %v936
        %v1045 = vpack.c.b16 %v941, %v939
        %v1046 = vpack.c.b16 %v942, %v940
        %v1047 = vpack.c.b16 %v945, %v943
        %v1048 = vpack.c.b16 %v946, %v944
        %v1049 = vpack.c.b16 %v949, %v947
        %v1050 = vpack.c.b16 %v950, %v948
        %v1051 = vpack.c.b16 %v953, %v951
        %v1052 = vpack.c.b16 %v954, %v952
        %v1053 = vpack.c.b16 %v957, %v955
        %v1054 = vpack.c.b16 %v958, %v956
        %v1055 = vpack.c.b16 %v961, %v959
        %v1056 = vpack.c.b16 %v962, %v960
        %v1057 = vpack.c.b16 %v965, %v963
        %v1058 = vpack.c.b16 %v966, %v964
        %v1059 = vpack.c.b16 %v969, %v967
        %v1060 = vpack.c.b16 %v970, %v968
        %v1061 = vpack.c.b16 %v973, %v971
        %v1062 = vpack.c.b16 %v974, %v972
        %v1063 = vpack.c.b16 %v977, %v975
        %v1064 = vpack.c.b16 %v978, %v976
        %v1065 = vpack.c.b16 %v981, %v979
        %v1066 = vpack.c.b16 %v982, %v980
        %v1067 = vpack.c.b16 %v985, %v983
        %v1068 = vpack.c.b16 %v986, %v984
        %v1069 = vpack.c.b16 %v989, %v987
        %v1070 = vpack.c.b16 %v990, %v988
        %1151 = vmatprep.subr.bf16.mxu0 %v992
        %1152 = vmatpush1.bf16.msra.mxu0 %v991
        %1153 = vmatprep.subr.bf16.mxu0 %v994
        %1154 = vmatpush1.bf16.msra.mxu0 %v993
        %1155 = vmatprep.subr.bf16.mxu0 %v996
        %1156 = vmatpush1.bf16.msra.mxu0 %v995
        %1157 = vmatprep.subr.bf16.mxu0 %v998
        %1158 = vmatpush1.bf16.msra.mxu0 %v997
        %1159 = vmatprep.subr.bf16.mxu0 %v1000
        %1160 = vmatpush1.bf16.msra.mxu0 %v999
        %1161 = vmatprep.subr.bf16.mxu0 %v1002
        %1162 = vmatpush1.bf16.msra.mxu0 %v1001
        %1163 = vmatprep.subr.bf16.mxu0 %v1004
        %1164 = vmatpush1.bf16.msra.mxu0 %v1003
        %1165 = vmatprep.subr.bf16.mxu0 %v1006
        %1166 = vmatpush1.bf16.msra.mxu0 %v1005
        %1167 = vmatprep.subr.bf16.mxu0 %v1008
        %1168 = vmatpush1.bf16.msra.mxu0 %v1007
        %1169 = vmatprep.subr.bf16.mxu0 %v1010
        %1170 = vmatpush1.bf16.msra.mxu0 %v1009
        %1171 = vmatprep.subr.bf16.mxu0 %v1012
        %1172 = vmatpush1.bf16.msra.mxu0 %v1011
        %1173 = vmatprep.subr.bf16.mxu0 %v1014
        %1174 = vmatpush1.bf16.msra.mxu0 %v1013
        %1175 = vmatprep.subr.bf16.mxu0 %v1016
        %1176 = vmatpush1.bf16.msra.mxu0 %v1015
        %1177 = vmatprep.subr.bf16.mxu0 %v1018
        %1178 = vmatpush1.bf16.msra.mxu0 %v1017
        %1179 = vmatprep.subr.bf16.mxu0 %v1020
        %1180 = vmatpush1.bf16.msra.mxu0 %v1019
        %1181 = vmatprep.subr.bf16.mxu0 %v1022
        %1182 = vmatpush1.bf16.msra.mxu0 %v1021
        %1183 = vmatprep.mubr.bf16.mxu0 %v742
        %1184 = vmatmul.mubr.bf16.gmra.mrb[0].mxu0 %v741
        %v1185 = vpop.f32.mrb[0].mxu0
        %v1186 = vadd.f32 0.0, %v1185
        %v1187 = vpop.f32.mrb[0].mxu0
        %v1188 = vadd.f32 0.0, %v1187
        %v1189 = vpop.f32.mrb[0].mxu0
        %v1190 = vadd.f32 0.0, %v1189
        %v1191 = vpop.f32.mrb[0].mxu0
        %v1192 = vadd.f32 0.0, %v1191
        %1193 = vdwg.mxu0
        %1194 = vmatprep.subr.bf16.mxu0 %v1024
        %1195 = vmatpush1.bf16.msra.mxu0 %v1023
        %1196 = vmatprep.subr.bf16.mxu0 %v1026
        %1197 = vmatpush1.bf16.msra.mxu0 %v1025
        %1198 = vmatprep.subr.bf16.mxu0 %v1028
        %1199 = vmatpush1.bf16.msra.mxu0 %v1027
        %1200 = vmatprep.subr.bf16.mxu0 %v1030
        %1201 = vmatpush1.bf16.msra.mxu0 %v1029
        %1202 = vmatprep.subr.bf16.mxu0 %v1032
        %1203 = vmatpush1.bf16.msra.mxu0 %v1031
        %1204 = vmatprep.subr.bf16.mxu0 %v1034
        %1205 = vmatpush1.bf16.msra.mxu0 %v1033
        %1206 = vmatprep.subr.bf16.mxu0 %v1036
        %1207 = vmatpush1.bf16.msra.mxu0 %v1035
        %1208 = vmatprep.subr.bf16.mxu0 %v1038
        %1209 = vmatpush1.bf16.msra.mxu0 %v1037
        %1210 = vmatprep.subr.bf16.mxu0 %v1040
        %1211 = vmatpush1.bf16.msra.mxu0 %v1039
        %1212 = vmatprep.subr.bf16.mxu0 %v1042
        %1213 = vmatpush1.bf16.msra.mxu0 %v1041
        %1214 = vmatprep.subr.bf16.mxu0 %v1044
        %1215 = vmatpush1.bf16.msra.mxu0 %v1043
        %1216 = vmatprep.subr.bf16.mxu0 %v1046
        %1217 = vmatpush1.bf16.msra.mxu0 %v1045
        %1218 = vmatprep.subr.bf16.mxu0 %v1048
        %1219 = vmatpush1.bf16.msra.mxu0 %v1047
        %1220 = vmatprep.subr.bf16.mxu0 %v1050
        %1221 = vmatpush1.bf16.msra.mxu0 %v1049
        %1222 = vmatprep.subr.bf16.mxu0 %v1052
        %1223 = vmatpush1.bf16.msra.mxu0 %v1051
        %1224 = vmatprep.subr.bf16.mxu0 %v1054
        %1225 = vmatpush1.bf16.msra.mxu0 %v1053
        %1226 = vmatprep.mubr.bf16.mxu0 %v744
        %1227 = vmatmul.mubr.bf16.gmra.mrb[0].mxu0 %v743
        %v1228 = vpop.f32.mrb[0].mxu0
        %v1229 = vadd.f32 %v1186, %v1228
        %v1230 = vpop.f32.mrb[0].mxu0
        %v1231 = vadd.f32 %v1188, %v1230
        %v1232 = vpop.f32.mrb[0].mxu0
        %v1233 = vadd.f32 %v1190, %v1232
        %v1234 = vpop.f32.mrb[0].mxu0
        %v1235 = vadd.f32 %v1192, %v1234
        %1236 = vdwg.mxu0
        %1237 = vmatprep.subr.bf16.mxu0 %v1056
        %1238 = vmatpush1.bf16.msra.mxu0 %v1055
        %1239 = vmatprep.subr.bf16.mxu0 %v1058
        %1240 = vmatpush1.bf16.msra.mxu0 %v1057
        %1241 = vmatprep.subr.bf16.mxu0 %v1060
        %1242 = vmatpush1.bf16.msra.mxu0 %v1059
        %1243 = vmatprep.subr.bf16.mxu0 %v1062
        %1244 = vmatpush1.bf16.msra.mxu0 %v1061
        %1245 = vmatprep.subr.bf16.mxu0 %v1064
        %1246 = vmatpush1.bf16.msra.mxu0 %v1063
        %1247 = vmatprep.subr.bf16.mxu0 %v1066
        %1248 = vmatpush1.bf16.msra.mxu0 %v1065
        %1249 = vmatprep.subr.bf16.mxu0 %v1068
        %1250 = vmatpush1.bf16.msra.mxu0 %v1067
        %1251 = vmatprep.subr.bf16.mxu0 %v1070
        %1252 = vmatpush1.bf16.msra.mxu0 %v1069
        %1253 = vmatprep.subr.bf16.mxu0 0
        %1254 = vmatpush1.bf16.msra.mxu0 0
        %1255 = vmatprep.subr.bf16.mxu0 0
        %1256 = vmatpush1.bf16.msra.mxu0 0
        %1257 = vmatprep.subr.bf16.mxu0 0
        %1258 = vmatpush1.bf16.msra.mxu0 0
        %1259 = vmatprep.subr.bf16.mxu0 0
        %1260 = vmatpush1.bf16.msra.mxu0 0
        %1261 = vmatprep.subr.bf16.mxu0 0
        %1262 = vmatpush1.bf16.msra.mxu0 0
        %1263 = vmatprep.subr.bf16.mxu0 0
        %1264 = vmatpush1.bf16.msra.mxu0 0
        %1265 = vmatprep.subr.bf16.mxu0 0
        %1266 = vmatpush1.bf16.msra.mxu0 0
        %1267 = vmatprep.subr.bf16.mxu0 0
        %1268 = vmatpush1.bf16.msra.mxu0 0
        %1269 = vmatprep.mubr.bf16.mxu0 0
        %1270 = vmatmul.mubr.bf16.gmra.mrb[0].mxu0 %v745
        %v1271 = vpop.f32.mrb[0].mxu0
        %v1272 = vadd.f32 %v1229, %v1271
        %v1273 = vpop.f32.mrb[0].mxu0
        %v1274 = vadd.f32 %v1231, %v1273
        %v1275 = vpop.f32.mrb[0].mxu0
        %v1276 = vadd.f32 %v1233, %v1275
        %v1277 = vpop.f32.mrb[0].mxu0
        %v1278 = vadd.f32 %v1235, %v1277
        %1279 = vdwg.mxu0
        %v1280 = vadd.f32 %v635, %v1272
        %v1281 = vadd.f32 %v636, %v1274
        %v1282 = vadd.f32 %v637, %v1276
        %v1283 = vadd.f32 %v638, %v1278
        %1284 = vst [vmem:[#allocation2] sm:$0xff] %v1280
        %1285 = vst [vmem:[#allocation2 + $0x8] sm:$0xff] %v1281
        %1286 = vst [vmem:[#allocation2 + $0x10] sm:$0xff] %v1282
        %1287 = vst [vmem:[#allocation2 + $0x18] sm:$0xff] %v1283
        // Predicated region
        $region79: #{cc_discriminator_p_forward.5} parent=65 // pred_check
          %p1288 = pneg %p627
        $region80: #{cc_discriminator_p_forward.5} parent=65 // pred_check_branch
          %1290 = sbr.rel (%p1288) target = $region82
        $region81: #{cc_discriminator_p_forward.5} parent=65 // pred_region
          %v1291 = vld [vmem:[#allocation2] sm:$0xff]
          %v1292 = vld [vmem:[#allocation2 + $0x8] sm:$0xff]
          %v1293 = vld [vmem:[#allocation2 + $0x10] sm:$0xff]
          %v1294 = vld [vmem:[#allocation2 + $0x18] sm:$0xff]
          %v1295 = vld [vmem:[%s573] sm:$0x3]
          %v1297 = vlaneseq
          %v1298 = vshrl.u32 %v1297, 7
          %v1299 = vsub.s32 0, %v1298
          %v1300 = vrot.slane %v1295, %v1299
          %v1301 = vlaneseq
          %v1302 = vshrl.u32 %v1301, 7
          %v1303 = vsub.s32 1, %v1302
          %v1304 = vrot.slane %v1295, %v1303
          %v1307 = vadd.f32 %v1291, %v1300
          %v1308 = vadd.f32 %v1292, %v1304
          %v1309 = vadd.f32 %v1293, %v1300
          %v1310 = vadd.f32 %v1294, %v1304
          %vm1311 = vcmp.ge.f32.partialorder %v1307, 0.0
          %vm1312 = vcmp.ge.f32.partialorder %v1308, 0.0
          %vm1313 = vcmp.ge.f32.partialorder %v1309, 0.0
          %vm1314 = vcmp.ge.f32.partialorder %v1310, 0.0
          %v1315 = vmul.f32 %v1307, 0.1
          %v1316 = vmul.f32 %v1308, 0.1
          %v1317 = vmul.f32 %v1309, 0.1
          %v1318 = vmul.f32 %v1310, 0.1
          %v1319 = vsel %vm1311, %v1307, %v1315
          %v1320 = vsel %vm1312, %v1308, %v1316
          %v1321 = vsel %vm1313, %v1309, %v1317
          %v1322 = vsel %vm1314, %v1310, %v1318
          %v1323 = vpack.c.bf16 %v1321, %v1319
          %v1324 = vpack.c.bf16 %v1322, %v1320
          %v1327 = vunpack.c.l.b16 %v1323
          %v1328 = vunpack.c.l.b16 %v1324
          %v1329 = vunpack.c.h.b16 %v1323
          %v1330 = vunpack.c.h.b16 %v1324
          %v1331 = vpack.c.b16 %v1328, %v1327
          %v1332 = vpack.c.b16 %v1330, %v1329
          %1335 = vst [vmem:[%s608] sm:$0xff] %v1331
          %1336 = vst [vmem:[%s608 + $0x8] sm:$0xff] %v1332
        $region82: #{cc_discriminator_p_forward.5} parent=65 // pred_fallthru
          _
        %s1337 = sand.u32 %s128, 1
        %s1338 = sand.u32 %s128, 1
        %s1339 = smul.addr %s1338, 16
        %s1340 = scalar_lea.vmem [#allocation6], %s1339
        // Predicated region
        $region83: #{cc_discriminator_p_forward.5} parent=65 // pred_check
          %p1341 = pneg %p138
        $region84: #{cc_discriminator_p_forward.5} parent=65 // pred_check_branch
          %1343 = sbr.rel (%p1341) target = $region86
        $region85: #{cc_discriminator_p_forward.5} parent=65 // pred_region
          %s1344 = smul.u32 2, %s22
          %s1345 = smul.u32 2, %s23
          %s1346 = smul.addr %s1344, 4
          %s1347 = sadd.s32 %s1345, %s1346
          %s1348 = smul.addr %s1347, 4
          %s1349 = scalar_lea.vmem %s3, %s1348
          // Predicated region
          $region87: #{cc_discriminator_p_forward.5} parent=85 // pred_check
            _
          $region88: #{cc_discriminator_p_forward.5} parent=85 // pred_check_branch
            %1351 = sbr.rel (0) target = $region90
          $region89: #{cc_discriminator_p_forward.5} parent=85 // pred_region
            // Predicated region
            $region91: #{cc_discriminator_p_forward.5} parent=89 // pred_check
              _
            $region92: #{cc_discriminator_p_forward.5} parent=89 // pred_check_branch
              %1353 = sbr.rel (0) target = $region94
            $region93: #{cc_discriminator_p_forward.5} parent=89 // pred_region
              // Predicated region
              $region106: #{cc_discriminator_p_forward.5} parent=93 // pred_check
                _
              $region107: #{cc_discriminator_p_forward.5} parent=93 // pred_check_branch
                %1370 = sbr.rel (0) target = $region109
              $region108: #{cc_discriminator_p_forward.5} parent=93 // pred_region
                loop: start=0, step=1, limit=1
                $region110: #{cc_discriminator_p_forward.5} parent=108 // loop_pre_header
                  _
                $region111: #{cc_discriminator_p_forward.5} parent=108 // loop_header
                  %s1372 = sphi 0, %s1376
                  %p1373 = scmp.ge.s32.totalorder %s1372, 1
                  %s1377 = sphi %s1340, %s1340
                  %s1378 = sphi %s1349, %s1349
                $region112: #{cc_discriminator_p_forward.5} parent=108 // loop_header_branch
                  %1375 = sbr.rel (%p1373) target = $region116
                $region113: #{cc_discriminator_p_forward.5} parent=108 // loop_body
                  %v1379 = vld [vmem:[%s1377] sm:$0xff]
                  %1380 = vst [vmem:[%s1378] sm:$0xff] %v1379
                  %v1381 = vld [vmem:[%s1377 + $0x8] sm:$0xff]
                  %1382 = vst [vmem:[%s1378 + $0x10] sm:$0xff] %v1381
                $region114: #{cc_discriminator_p_forward.5} parent=108 // loop_footer
                  %s1376 = sadd.s32 1, %s1372
                $region115: #{cc_discriminator_p_forward.5} parent=108 // loop_footer_branch
                  %1371 = sbr.rel target = $region111
                $region116: #{cc_discriminator_p_forward.5} parent=108 // loop_exit
                  _
              $region109: #{cc_discriminator_p_forward.5} parent=93 // pred_fallthru
                _
              // Predicated region
              $region117: #{cc_discriminator_p_forward.5} parent=93 // pred_check
                _
              $region118: #{cc_discriminator_p_forward.5} parent=93 // pred_check_branch
                %1384 = sbr.rel target = $region120
              $region119: #{cc_discriminator_p_forward.5} parent=93 // pred_region
                _
              $region120: #{cc_discriminator_p_forward.5} parent=93 // pred_fallthru
                _
            $region94: #{cc_discriminator_p_forward.5} parent=89 // pred_fallthru
              _
            // Predicated region
            $region95: #{cc_discriminator_p_forward.5} parent=89 // pred_check
              _
            $region96: #{cc_discriminator_p_forward.5} parent=89 // pred_check_branch
              %1355 = sbr.rel target = $region98
            $region97: #{cc_discriminator_p_forward.5} parent=89 // pred_region
              loop: start=0, step=1, limit=1
              $region99: #{cc_discriminator_p_forward.5} parent=97 // loop_pre_header
                _
              $region100: #{cc_discriminator_p_forward.5} parent=97 // loop_header
                %s1358 = sphi 0, %s1362
                %p1359 = scmp.ge.s32.totalorder %s1358, 1
                %s1363 = sphi %s1340, %s1340
                %s1364 = sphi %s1349, %s1349
              $region101: #{cc_discriminator_p_forward.5} parent=97 // loop_header_branch
                %1361 = sbr.rel (%p1359) target = $region105
              $region102: #{cc_discriminator_p_forward.5} parent=97 // loop_body
                %v1365 = vld [vmem:[%s1363] sm:$0xff]
                %1366 = vst [vmem:[%s1364] sm:$0xff] %v1365
                %v1367 = vld [vmem:[%s1363 + $0x8] sm:$0xff]
                %1368 = vst [vmem:[%s1364 + $0x10] sm:$0xff] %v1367
              $region103: #{cc_discriminator_p_forward.5} parent=97 // loop_footer
                %s1362 = sadd.s32 1, %s1358
              $region104: #{cc_discriminator_p_forward.5} parent=97 // loop_footer_branch
                %1357 = sbr.rel target = $region100
              $region105: #{cc_discriminator_p_forward.5} parent=97 // loop_exit
                _
            $region98: #{cc_discriminator_p_forward.5} parent=89 // pred_fallthru
              _
          $region90: #{cc_discriminator_p_forward.5} parent=85 // pred_fallthru
            _
          %1385 = vnop
        $region86: #{cc_discriminator_p_forward.5} parent=65 // pred_fallthru
          _
      $region66: #{cc_discriminator_p_forward.5} parent=5 // pred_fallthru
        _
      %p1386 = scmp.le.s32.totalorder 2, %s12
      // Predicated region
      $region121: #{cc_discriminator_p_forward.5} parent=5 // pred_check
        %p1387 = pneg %p1386
      $region122: #{cc_discriminator_p_forward.5} parent=5 // pred_check_branch
        %1389 = sbr.rel (%p1387) target = $region124
      $region123: #{cc_discriminator_p_forward.5} parent=5 // pred_region
        %s1390 = ssub.s32 %s12, 2
        // Predicated region
        $region125: #{cc_discriminator_p_forward.5} parent=123 // pred_check
          %p1391 = pneg %p144
        $region126: #{cc_discriminator_p_forward.5} parent=123 // pred_check_branch
          %1393 = sbr.rel (%p1391) target = $region128
        $region127: #{cc_discriminator_p_forward.5} parent=123 // pred_region
          %s1394 = sand.u32 %s129, 1
          %s1395 = sand.u32 %s129, 1
          %s1396 = smul.addr %s1395, 16
          %s1397 = scalar_lea.vmem [#allocation6], %s1396
        $region128: #{cc_discriminator_p_forward.5} parent=123 // pred_fallthru
          _
      $region124: #{cc_discriminator_p_forward.5} parent=5 // pred_fallthru
        _
    $region6: #{cc_discriminator_p_forward.5} parent=1 // loop_footer
      %s16 = sadd.s32 1, %s12
    $region7: #{cc_discriminator_p_forward.5} parent=1 // loop_footer_branch
      %11 = sbr.rel target = $region3
    $region8: #{cc_discriminator_p_forward.5} parent=1 // loop_exit
      _
    %1398 = vsyncpa [#allocation5], 1
    %s1399 = scalar_lea.sflag [#allocation5], 1
    %1400 = vsyncpa %s1399, 1

// kernel: cc_discriminator_p_forward.6
$region0: #{cc_discriminator_p_forward.6}
  #allocation0 [shape = 'u32[]', space=smem, size = 0x4, offset = 0x4, fixed_abs, tag = 'smem constant byte address 0x4 - core index']
  #allocation1 [shape = 'u32[144,128]{1,0:T(1,128)}', space=vmem, size = 0x12000, scoped, tag = 'internal scratch']
  #allocation2 [shape = 'f32[16,256]{1,0:T(8,128)}', space=vmem, size = 0x4000, scoped, tag = 'scratch operand']
  %s0 = inlined_call_operand.vmem [shape: bf16[16,2560], index: 0, kind: input, shape index: {}]
  %s1 = inlined_call_operand.vmem [shape: bf16[2560,1024], index: 1, kind: input, shape index: {}]
  %s2 = inlined_call_operand.vmem [shape: f32[1,1024], index: 2, kind: input, shape index: {}]
  %s3 = inlined_call_operand.vmem [shape: bf16[16,1024], index: 3, kind: output, shape index: {}]
  %s4 = sld [smem:[#allocation0]]
  $region148: #{cc_discriminator_p_forward.6} parent=0
    _
  %s6 = ssub.s32 1, %s4
  %s7 = scalar_select 0, %s6, %s4
  $region1: #{cc_discriminator_p_forward.6} parent=0
    #allocation3 [shape = 'u8[32768]{0}', space=vmem, size = 0x8000, scoped, tag = 'input window, operand 0']
    #allocation4 [shape = 'u8[524288]{0}', space=vmem, size = 0x80000, scoped, tag = 'input window, operand 1']
    #allocation5 [shape = 'u8[16384]{0}', space=vmem, size = 0x4000, scoped, tag = 'output window, operand 0']
    loop: start=0, step=1, limit=22
    $region2: #{cc_discriminator_p_forward.6} parent=1 // loop_pre_header
      _
    $region3: #{cc_discriminator_p_forward.6} parent=1 // loop_header
      %s9 = sphi 0, %s13
      %p10 = scmp.ge.s32.totalorder %s9, 22
      %s16 = sphi 0, %s35
      %s17 = sphi 0, %s31
      %s18 = sphi 0, %s27
      %s19 = sphi 0, %s16
      %s20 = sphi 0, %s17
      %s21 = sphi 0, %s18
      %s22 = sphi 0, %s19
      %s23 = sphi 0, %s20
      %s24 = sphi 0, %s21
      %s40 = sphi 0, %s42
      %s43 = sphi 0, %s40
      %s44 = sphi 0, %s43
      %s60 = sphi 0, %s44
      %s68 = sphi 0, %s70
      %s71 = sphi 0, %s68
      %s72 = sphi 0, %s71
      %s88 = sphi 0, %s72
      %s94 = sphi 0, %s96
      %s97 = sphi 0, %s94
      %s98 = sphi 0, %s97
      %s114 = sphi 0, %s98
      %s122 = sphi 0, %s124
      %s125 = sphi 0, %s122
      %s126 = sphi 0, %s125
      %s142 = sphi 0, %s126
    $region4: #{cc_discriminator_p_forward.6} parent=1 // loop_header_branch
      %12 = sbr.rel (%p10) target = $region8
    $region5: #{cc_discriminator_p_forward.6} parent=1 // loop_body
      %s14 = ssub.s32 %s9, 1
      %s15 = ssub.s32 %s9, 2
      %s25 = sadd.s32 1, %s18
      %p26 = scmp.ge.s32.totalorder %s25, 5
      %s27 = scalar_select %p26, 0, %s25
      %s28 = sadd.s32 1, %s17
      %s29 = scalar_select %p26, %s28, %s17
      %p30 = scmp.ge.s32.totalorder %s29, 4
      %s31 = scalar_select %p30, 0, %s29
      %s32 = sadd.s32 1, %s16
      %s33 = scalar_select %p30, %s32, %s16
      %p34 = scmp.ge.s32.totalorder %s33, 1
      %s35 = scalar_select %p34, 0, %s33
      %s36 = ssub.s32 %s16, %s35
      %s37 = ssub.s32 %s18, %s27
      %s38 = sor.u32 %s36, %s37
      %p39 = scmp.eq.s32.totalorder %s38, 0
      %s41 = sadd.s32 %s40, 1
      %s42 = scalar_select %p39, %s40, %s41
      %p45 = pneg %p39
      %p46 = scmp.eq.s32.totalorder %s9, 19
      %p47 = por %p45, %p46
      %p48 = scmp.ne.s32.totalorder %s40, %s43
      %p49 = scmp.eq.s32.totalorder %s9, 0
      %p50 = por %p48, %p49
      %p51 = scmp.ne.s32.totalorder %s40, %s43
      %p52 = scmp.eq.s32.totalorder %s14, 19
      %p53 = por %p51, %p52
      %p54 = scmp.ne.s32.totalorder %s43, %s44
      %p55 = scmp.eq.s32.totalorder %s14, 0
      %p56 = por %p54, %p55
      %p57 = scmp.ne.s32.totalorder %s43, %s44
      %p58 = scmp.eq.s32.totalorder %s15, 19
      %p59 = por %p57, %p58
      %p61 = scmp.ne.s32.totalorder %s44, %s60
      %p62 = scmp.eq.s32.totalorder %s15, 0
      %p63 = por %p61, %p62
      %s64 = ssub.s32 %s18, %s27
      %s65 = ssub.s32 %s17, %s31
      %s66 = sor.u32 %s64, %s65
      %p67 = scmp.eq.s32.totalorder %s66, 0
      %s69 = sadd.s32 %s68, 1
      %s70 = scalar_select %p67, %s68, %s69
      %p73 = pneg %p67
      %p74 = scmp.eq.s32.totalorder %s9, 19
      %p75 = por %p73, %p74
      %p76 = scmp.ne.s32.totalorder %s68, %s71
      %p77 = scmp.eq.s32.totalorder %s9, 0
      %p78 = por %p76, %p77
      %p79 = scmp.ne.s32.totalorder %s68, %s71
      %p80 = scmp.eq.s32.totalorder %s14, 19
      %p81 = por %p79, %p80
      %p82 = scmp.ne.s32.totalorder %s71, %s72
      %p83 = scmp.eq.s32.totalorder %s14, 0
      %p84 = por %p82, %p83
      %p85 = scmp.ne.s32.totalorder %s71, %s72
      %p86 = scmp.eq.s32.totalorder %s15, 19
      %p87 = por %p85, %p86
      %p89 = scmp.ne.s32.totalorder %s72, %s88
      %p90 = scmp.eq.s32.totalorder %s15, 0
      %p91 = por %p89, %p90
      %s92 = ssub.s32 %s17, %s31
      %p93 = scmp.eq.s32.totalorder %s92, 0
      %s95 = sadd.s32 %s94, 1
      %s96 = scalar_select %p93, %s94, %s95
      %p99 = pneg %p93
      %p100 = scmp.eq.s32.totalorder %s9, 19
      %p101 = por %p99, %p100
      %p102 = scmp.ne.s32.totalorder %s94, %s97
      %p103 = scmp.eq.s32.totalorder %s9, 0
      %p104 = por %p102, %p103
      %p105 = scmp.ne.s32.totalorder %s94, %s97
      %p106 = scmp.eq.s32.totalorder %s14, 19
      %p107 = por %p105, %p106
      %p108 = scmp.ne.s32.totalorder %s97, %s98
      %p109 = scmp.eq.s32.totalorder %s14, 0
      %p110 = por %p108, %p109
      %p111 = scmp.ne.s32.totalorder %s97, %s98
      %p112 = scmp.eq.s32.totalorder %s15, 19
      %p113 = por %p111, %p112
      %p115 = scmp.ne.s32.totalorder %s98, %s114
      %p116 = scmp.eq.s32.totalorder %s15, 0
      %p117 = por %p115, %p116
      %s118 = ssub.s32 %s16, %s35
      %s119 = ssub.s32 %s17, %s31
      %s120 = sor.u32 %s118, %s119
      %p121 = scmp.eq.s32.totalorder %s120, 0
      %s123 = sadd.s32 %s122, 1
      %s124 = scalar_select %p121, %s122, %s123
      %p127 = pneg %p121
      %p128 = scmp.eq.s32.totalorder %s9, 19
      %p129 = por %p127, %p128
      %p130 = scmp.ne.s32.totalorder %s122, %s125
      %p131 = scmp.eq.s32.totalorder %s9, 0
      %p132 = por %p130, %p131
      %p133 = scmp.ne.s32.totalorder %s122, %s125
      %p134 = scmp.eq.s32.totalorder %s14, 19
      %p135 = por %p133, %p134
      %p136 = scmp.ne.s32.totalorder %s125, %s126
      %p137 = scmp.eq.s32.totalorder %s14, 0
      %p138 = por %p136, %p137
      %p139 = scmp.ne.s32.totalorder %s125, %s126
      %p140 = scmp.eq.s32.totalorder %s15, 19
      %p141 = por %p139, %p140
      %p143 = scmp.ne.s32.totalorder %s126, %s142
      %p144 = scmp.eq.s32.totalorder %s15, 0
      %p145 = por %p143, %p144
      %p146 = scmp.le.s32.totalorder 1, %s9
      %p147 = scmp.lt.s32.totalorder %s9, 21
      %p148 = pnand %p146, %p147
      %p149 = pneg %p148
      // Predicated region
      $region9: #{cc_discriminator_p_forward.6} parent=5 // pred_check
        _
      $region10: #{cc_discriminator_p_forward.6} parent=5 // pred_check_branch
        %151 = sbr.rel (%p148) target = $region12
      $region11: #{cc_discriminator_p_forward.6} parent=5 // pred_region
        %s152 = ssub.s32 %s9, 1
      $region12: #{cc_discriminator_p_forward.6} parent=5 // pred_fallthru
        _
      %p153 = scmp.lt.s32.totalorder %s9, 20
      // Predicated region
      $region13: #{cc_discriminator_p_forward.6} parent=5 // pred_check
        %p154 = pneg %p153
      $region14: #{cc_discriminator_p_forward.6} parent=5 // pred_check_branch
        %156 = sbr.rel (%p154) target = $region16
      $region15: #{cc_discriminator_p_forward.6} parent=5 // pred_region
        // Predicated region
        $region17: #{cc_discriminator_p_forward.6} parent=15 // pred_check
          %p157 = pneg %p50
        $region18: #{cc_discriminator_p_forward.6} parent=15 // pred_check_branch
          %159 = sbr.rel (%p157) target = $region20
        $region19: #{cc_discriminator_p_forward.6} parent=15 // pred_region
          %s160 = sand.u32 %s40, 1
          %s161 = sand.u32 %s40, 1
          %s162 = smul.addr %s161, 32
          %s163 = scalar_lea.vmem [#allocation3], %s162
          %s164 = smul.u32 2, %s16
          %s165 = smul.u32 4, %s18
          %s166 = smul.addr %s164, 20
          %s167 = sadd.s32 %s165, %s166
          %s168 = smul.addr %s167, 4
          %s169 = scalar_lea.vmem %s0, %s168
          // Predicated region
          $region21: #{cc_discriminator_p_forward.6} parent=19 // pred_check
            _
          $region22: #{cc_discriminator_p_forward.6} parent=19 // pred_check_branch
            %171 = sbr.rel (0) target = $region24
          $region23: #{cc_discriminator_p_forward.6} parent=19 // pred_region
            // Predicated region
            $region25: #{cc_discriminator_p_forward.6} parent=23 // pred_check
              _
            $region26: #{cc_discriminator_p_forward.6} parent=23 // pred_check_branch
              %173 = sbr.rel (0) target = $region28
            $region27: #{cc_discriminator_p_forward.6} parent=23 // pred_region
              loop: start=0, step=1, limit=1
              $region29: #{cc_discriminator_p_forward.6} parent=27 // loop_pre_header
                _
              $region30: #{cc_discriminator_p_forward.6} parent=27 // loop_header
                %s175 = sphi 0, %s179
                %p176 = scmp.ge.s32.totalorder %s175, 1
                %s180 = sphi %s169, %s169
                %s181 = sphi %s163, %s163
              $region31: #{cc_discriminator_p_forward.6} parent=27 // loop_header_branch
                %178 = sbr.rel (%p176) target = $region35
              $region32: #{cc_discriminator_p_forward.6} parent=27 // loop_body
                %v182 = vld [vmem:[%s180] sm:$0xff]
                %183 = vst [vmem:[%s181] sm:$0xff] %v182
                %v184 = vld [vmem:[%s180 + $0x8] sm:$0xff]
                %185 = vst [vmem:[%s181 + $0x8] sm:$0xff] %v184
                %v186 = vld [vmem:[%s180 + $0x50] sm:$0xff]
                %187 = vst [vmem:[%s181 + $0x10] sm:$0xff] %v186
                %v188 = vld [vmem:[%s180 + $0x58] sm:$0xff]
                %189 = vst [vmem:[%s181 + $0x18] sm:$0xff] %v188
              $region33: #{cc_discriminator_p_forward.6} parent=27 // loop_footer
                %s179 = sadd.s32 1, %s175
              $region34: #{cc_discriminator_p_forward.6} parent=27 // loop_footer_branch
                %174 = sbr.rel target = $region30
              $region35: #{cc_discriminator_p_forward.6} parent=27 // loop_exit
                _
            $region28: #{cc_discriminator_p_forward.6} parent=23 // pred_fallthru
              _
            // Predicated region
            $region36: #{cc_discriminator_p_forward.6} parent=23 // pred_check
              _
            $region37: #{cc_discriminator_p_forward.6} parent=23 // pred_check_branch
              %191 = sbr.rel target = $region39
            $region38: #{cc_discriminator_p_forward.6} parent=23 // pred_region
              _
            $region39: #{cc_discriminator_p_forward.6} parent=23 // pred_fallthru
              _
          $region24: #{cc_discriminator_p_forward.6} parent=19 // pred_fallthru
            _
          %192 = vnop
        $region20: #{cc_discriminator_p_forward.6} parent=15 // pred_fallthru
          _
        // Predicated region
        $region40: #{cc_discriminator_p_forward.6} parent=15 // pred_check
          %p193 = pneg %p78
        $region41: #{cc_discriminator_p_forward.6} parent=15 // pred_check_branch
          %195 = sbr.rel (%p193) target = $region43
        $region42: #{cc_discriminator_p_forward.6} parent=15 // pred_region
          %s196 = sand.u32 %s68, 1
          %s197 = sand.u32 %s68, 1
          %s198 = smul.addr %s197, 512
          %s199 = scalar_lea.vmem [#allocation4], %s198
          %s200 = smul.u32 64, %s18
          %s201 = smul.u32 2, %s17
          %s202 = smul.addr %s200, 8
          %s203 = sadd.s32 %s201, %s202
          %s204 = smul.addr %s203, 4
          %s205 = scalar_lea.vmem %s1, %s204
          // Predicated region
          $region44: #{cc_discriminator_p_forward.6} parent=42 // pred_check
            _
          $region45: #{cc_discriminator_p_forward.6} parent=42 // pred_check_branch
            %207 = sbr.rel (0) target = $region47
          $region46: #{cc_discriminator_p_forward.6} parent=42 // pred_region
            // Predicated region
            $region48: #{cc_discriminator_p_forward.6} parent=46 // pred_check
              _
            $region49: #{cc_discriminator_p_forward.6} parent=46 // pred_check_branch
              %209 = sbr.rel (0) target = $region51
            $region50: #{cc_discriminator_p_forward.6} parent=46 // pred_region
              // Predicated region
              $region63: #{cc_discriminator_p_forward.6} parent=50 // pred_check
                _
              $region64: #{cc_discriminator_p_forward.6} parent=50 // pred_check_branch
                %350 = sbr.rel (0) target = $region66
              $region65: #{cc_discriminator_p_forward.6} parent=50 // pred_region
                loop: start=0, step=1, limit=1
                $region67: #{cc_discriminator_p_forward.6} parent=65 // loop_pre_header
                  _
                $region68: #{cc_discriminator_p_forward.6} parent=65 // loop_header
                  %s352 = sphi 0, %s356
                  %p353 = scmp.ge.s32.totalorder %s352, 1
                  %s357 = sphi %s205, %s205
                  %s358 = sphi %s199, %s199
                $region69: #{cc_discriminator_p_forward.6} parent=65 // loop_header_branch
                  %355 = sbr.rel (%p353) target = $region73
                $region70: #{cc_discriminator_p_forward.6} parent=65 // loop_body
                  %v359 = vld [vmem:[%s357] sm:$0xff]
                  %360 = vst [vmem:[%s358] sm:$0xff] %v359
                  %v361 = vld [vmem:[%s357 + $0x20] sm:$0xff]
                  %362 = vst [vmem:[%s358 + $0x8] sm:$0xff] %v361
                  %v363 = vld [vmem:[%s357 + $0x40] sm:$0xff]
                  %364 = vst [vmem:[%s358 + $0x10] sm:$0xff] %v363
                  %v365 = vld [vmem:[%s357 + $0x60] sm:$0xff]
                  %366 = vst [vmem:[%s358 + $0x18] sm:$0xff] %v365
                  %v367 = vld [vmem:[%s357 + $0x80] sm:$0xff]
                  %368 = vst [vmem:[%s358 + $0x20] sm:$0xff] %v367
                  %v369 = vld [vmem:[%s357 + $0xa0] sm:$0xff]
                  %370 = vst [vmem:[%s358 + $0x28] sm:$0xff] %v369
                  %v371 = vld [vmem:[%s357 + $0xc0] sm:$0xff]
                  %372 = vst [vmem:[%s358 + $0x30] sm:$0xff] %v371
                  %v373 = vld [vmem:[%s357 + $0xe0] sm:$0xff]
                  %374 = vst [vmem:[%s358 + $0x38] sm:$0xff] %v373
                  %v375 = vld [vmem:[%s357 + $0x100] sm:$0xff]
                  %376 = vst [vmem:[%s358 + $0x40] sm:$0xff] %v375
                  %v377 = vld [vmem:[%s357 + $0x120] sm:$0xff]
                  %378 = vst [vmem:[%s358 + $0x48] sm:$0xff] %v377
                  %v379 = vld [vmem:[%s357 + $0x140] sm:$0xff]
                  %380 = vst [vmem:[%s358 + $0x50] sm:$0xff] %v379
                  %v381 = vld [vmem:[%s357 + $0x160] sm:$0xff]
                  %382 = vst [vmem:[%s358 + $0x58] sm:$0xff] %v381
                  %v383 = vld [vmem:[%s357 + $0x180] sm:$0xff]
                  %384 = vst [vmem:[%s358 + $0x60] sm:$0xff] %v383
                  %v385 = vld [vmem:[%s357 + $0x1a0] sm:$0xff]
                  %386 = vst [vmem:[%s358 + $0x68] sm:$0xff] %v385
                  %v387 = vld [vmem:[%s357 + $0x1c0] sm:$0xff]
                  %388 = vst [vmem:[%s358 + $0x70] sm:$0xff] %v387
                  %v389 = vld [vmem:[%s357 + $0x1e0] sm:$0xff]
                  %390 = vst [vmem:[%s358 + $0x78] sm:$0xff] %v389
                  %v391 = vld [vmem:[%s357 + $0x200] sm:$0xff]
                  %392 = vst [vmem:[%s358 + $0x80] sm:$0xff] %v391
                  %v393 = vld [vmem:[%s357 + $0x220] sm:$0xff]
                  %394 = vst [vmem:[%s358 + $0x88] sm:$0xff] %v393
                  %v395 = vld [vmem:[%s357 + $0x240] sm:$0xff]
                  %396 = vst [vmem:[%s358 + $0x90] sm:$0xff] %v395
                  %v397 = vld [vmem:[%s357 + $0x260] sm:$0xff]
                  %398 = vst [vmem:[%s358 + $0x98] sm:$0xff] %v397
                  %v399 = vld [vmem:[%s357 + $0x280] sm:$0xff]
                  %400 = vst [vmem:[%s358 + $0xa0] sm:$0xff] %v399
                  %v401 = vld [vmem:[%s357 + $0x2a0] sm:$0xff]
                  %402 = vst [vmem:[%s358 + $0xa8] sm:$0xff] %v401
                  %v403 = vld [vmem:[%s357 + $0x2c0] sm:$0xff]
                  %404 = vst [vmem:[%s358 + $0xb0] sm:$0xff] %v403
                  %v405 = vld [vmem:[%s357 + $0x2e0] sm:$0xff]
                  %406 = vst [vmem:[%s358 + $0xb8] sm:$0xff] %v405
                  %v407 = vld [vmem:[%s357 + $0x300] sm:$0xff]
                  %408 = vst [vmem:[%s358 + $0xc0] sm:$0xff] %v407
                  %v409 = vld [vmem:[%s357 + $0x320] sm:$0xff]
                  %410 = vst [vmem:[%s358 + $0xc8] sm:$0xff] %v409
                  %v411 = vld [vmem:[%s357 + $0x340] sm:$0xff]
                  %412 = vst [vmem:[%s358 + $0xd0] sm:$0xff] %v411
                  %v413 = vld [vmem:[%s357 + $0x360] sm:$0xff]
                  %414 = vst [vmem:[%s358 + $0xd8] sm:$0xff] %v413
                  %v415 = vld [vmem:[%s357 + $0x380] sm:$0xff]
                  %416 = vst [vmem:[%s358 + $0xe0] sm:$0xff] %v415
                  %v417 = vld [vmem:[%s357 + $0x3a0] sm:$0xff]
                  %418 = vst [vmem:[%s358 + $0xe8] sm:$0xff] %v417
                  %v419 = vld [vmem:[%s357 + $0x3c0] sm:$0xff]
                  %420 = vst [vmem:[%s358 + $0xf0] sm:$0xff] %v419
                  %v421 = vld [vmem:[%s357 + $0x3e0] sm:$0xff]
                  %422 = vst [vmem:[%s358 + $0xf8] sm:$0xff] %v421
                  %v423 = vld [vmem:[%s357 + $0x400] sm:$0xff]
                  %424 = vst [vmem:[%s358 + $0x100] sm:$0xff] %v423
                  %v425 = vld [vmem:[%s357 + $0x420] sm:$0xff]
                  %426 = vst [vmem:[%s358 + $0x108] sm:$0xff] %v425
                  %v427 = vld [vmem:[%s357 + $0x440] sm:$0xff]
                  %428 = vst [vmem:[%s358 + $0x110] sm:$0xff] %v427
                  %v429 = vld [vmem:[%s357 + $0x460] sm:$0xff]
                  %430 = vst [vmem:[%s358 + $0x118] sm:$0xff] %v429
                  %v431 = vld [vmem:[%s357 + $0x480] sm:$0xff]
                  %432 = vst [vmem:[%s358 + $0x120] sm:$0xff] %v431
                  %v433 = vld [vmem:[%s357 + $0x4a0] sm:$0xff]
                  %434 = vst [vmem:[%s358 + $0x128] sm:$0xff] %v433
                  %v435 = vld [vmem:[%s357 + $0x4c0] sm:$0xff]
                  %436 = vst [vmem:[%s358 + $0x130] sm:$0xff] %v435
                  %v437 = vld [vmem:[%s357 + $0x4e0] sm:$0xff]
                  %438 = vst [vmem:[%s358 + $0x138] sm:$0xff] %v437
                  %v439 = vld [vmem:[%s357 + $0x500] sm:$0xff]
                  %440 = vst [vmem:[%s358 + $0x140] sm:$0xff] %v439
                  %v441 = vld [vmem:[%s357 + $0x520] sm:$0xff]
                  %442 = vst [vmem:[%s358 + $0x148] sm:$0xff] %v441
                  %v443 = vld [vmem:[%s357 + $0x540] sm:$0xff]
                  %444 = vst [vmem:[%s358 + $0x150] sm:$0xff] %v443
                  %v445 = vld [vmem:[%s357 + $0x560] sm:$0xff]
                  %446 = vst [vmem:[%s358 + $0x158] sm:$0xff] %v445
                  %v447 = vld [vmem:[%s357 + $0x580] sm:$0xff]
                  %448 = vst [vmem:[%s358 + $0x160] sm:$0xff] %v447
                  %v449 = vld [vmem:[%s357 + $0x5a0] sm:$0xff]
                  %450 = vst [vmem:[%s358 + $0x168] sm:$0xff] %v449
                  %v451 = vld [vmem:[%s357 + $0x5c0] sm:$0xff]
                  %452 = vst [vmem:[%s358 + $0x170] sm:$0xff] %v451
                  %v453 = vld [vmem:[%s357 + $0x5e0] sm:$0xff]
                  %454 = vst [vmem:[%s358 + $0x178] sm:$0xff] %v453
                  %v455 = vld [vmem:[%s357 + $0x600] sm:$0xff]
                  %456 = vst [vmem:[%s358 + $0x180] sm:$0xff] %v455
                  %v457 = vld [vmem:[%s357 + $0x620] sm:$0xff]
                  %458 = vst [vmem:[%s358 + $0x188] sm:$0xff] %v457
                  %v459 = vld [vmem:[%s357 + $0x640] sm:$0xff]
                  %460 = vst [vmem:[%s358 + $0x190] sm:$0xff] %v459
                  %v461 = vld [vmem:[%s357 + $0x660] sm:$0xff]
                  %462 = vst [vmem:[%s358 + $0x198] sm:$0xff] %v461
                  %v463 = vld [vmem:[%s357 + $0x680] sm:$0xff]
                  %464 = vst [vmem:[%s358 + $0x1a0] sm:$0xff] %v463
                  %v465 = vld [vmem:[%s357 + $0x6a0] sm:$0xff]
                  %466 = vst [vmem:[%s358 + $0x1a8] sm:$0xff] %v465
                  %v467 = vld [vmem:[%s357 + $0x6c0] sm:$0xff]
                  %468 = vst [vmem:[%s358 + $0x1b0] sm:$0xff] %v467
                  %v469 = vld [vmem:[%s357 + $0x6e0] sm:$0xff]
                  %470 = vst [vmem:[%s358 + $0x1b8] sm:$0xff] %v469
                  %v471 = vld [vmem:[%s357 + $0x700] sm:$0xff]
                  %472 = vst [vmem:[%s358 + $0x1c0] sm:$0xff] %v471
                  %v473 = vld [vmem:[%s357 + $0x720] sm:$0xff]
                  %474 = vst [vmem:[%s358 + $0x1c8] sm:$0xff] %v473
                  %v475 = vld [vmem:[%s357 + $0x740] sm:$0xff]
                  %476 = vst [vmem:[%s358 + $0x1d0] sm:$0xff] %v475
                  %v477 = vld [vmem:[%s357 + $0x760] sm:$0xff]
                  %478 = vst [vmem:[%s358 + $0x1d8] sm:$0xff] %v477
                  %v479 = vld [vmem:[%s357 + $0x780] sm:$0xff]
                  %480 = vst [vmem:[%s358 + $0x1e0] sm:$0xff] %v479
                  %v481 = vld [vmem:[%s357 + $0x7a0] sm:$0xff]
                  %482 = vst [vmem:[%s358 + $0x1e8] sm:$0xff] %v481
                  %v483 = vld [vmem:[%s357 + $0x7c0] sm:$0xff]
                  %484 = vst [vmem:[%s358 + $0x1f0] sm:$0xff] %v483
                  %v485 = vld [vmem:[%s357 + $0x7e0] sm:$0xff]
                  %486 = vst [vmem:[%s358 + $0x1f8] sm:$0xff] %v485
                $region71: #{cc_discriminator_p_forward.6} parent=65 // loop_footer
                  %s356 = sadd.s32 1, %s352
                $region72: #{cc_discriminator_p_forward.6} parent=65 // loop_footer_branch
                  %351 = sbr.rel target = $region68
                $region73: #{cc_discriminator_p_forward.6} parent=65 // loop_exit
                  _
              $region66: #{cc_discriminator_p_forward.6} parent=50 // pred_fallthru
                _
              // Predicated region
              $region74: #{cc_discriminator_p_forward.6} parent=50 // pred_check
                _
              $region75: #{cc_discriminator_p_forward.6} parent=50 // pred_check_branch
                %488 = sbr.rel target = $region77
              $region76: #{cc_discriminator_p_forward.6} parent=50 // pred_region
                _
              $region77: #{cc_discriminator_p_forward.6} parent=50 // pred_fallthru
                _
            $region51: #{cc_discriminator_p_forward.6} parent=46 // pred_fallthru
              _
            // Predicated region
            $region52: #{cc_discriminator_p_forward.6} parent=46 // pred_check
              _
            $region53: #{cc_discriminator_p_forward.6} parent=46 // pred_check_branch
              %211 = sbr.rel target = $region55
            $region54: #{cc_discriminator_p_forward.6} parent=46 // pred_region
              loop: start=0, step=1, limit=1
              $region56: #{cc_discriminator_p_forward.6} parent=54 // loop_pre_header
                _
              $region57: #{cc_discriminator_p_forward.6} parent=54 // loop_header
                %s214 = sphi 0, %s218
                %p215 = scmp.ge.s32.totalorder %s214, 1
                %s219 = sphi %s205, %s205
                %s220 = sphi %s199, %s199
              $region58: #{cc_discriminator_p_forward.6} parent=54 // loop_header_branch
                %217 = sbr.rel (%p215) target = $region62
              $region59: #{cc_discriminator_p_forward.6} parent=54 // loop_body
                %v221 = vld [vmem:[%s219] sm:$0xff]
                %222 = vst [vmem:[%s220] sm:$0xff] %v221
                %v223 = vld [vmem:[%s219 + $0x20] sm:$0xff]
                %224 = vst [vmem:[%s220 + $0x8] sm:$0xff] %v223
                %v225 = vld [vmem:[%s219 + $0x40] sm:$0xff]
                %226 = vst [vmem:[%s220 + $0x10] sm:$0xff] %v225
                %v227 = vld [vmem:[%s219 + $0x60] sm:$0xff]
                %228 = vst [vmem:[%s220 + $0x18] sm:$0xff] %v227
                %v229 = vld [vmem:[%s219 + $0x80] sm:$0xff]
                %230 = vst [vmem:[%s220 + $0x20] sm:$0xff] %v229
                %v231 = vld [vmem:[%s219 + $0xa0] sm:$0xff]
                %232 = vst [vmem:[%s220 + $0x28] sm:$0xff] %v231
                %v233 = vld [vmem:[%s219 + $0xc0] sm:$0xff]
                %234 = vst [vmem:[%s220 + $0x30] sm:$0xff] %v233
                %v235 = vld [vmem:[%s219 + $0xe0] sm:$0xff]
                %236 = vst [vmem:[%s220 + $0x38] sm:$0xff] %v235
                %v237 = vld [vmem:[%s219 + $0x100] sm:$0xff]
                %238 = vst [vmem:[%s220 + $0x40] sm:$0xff] %v237
                %v239 = vld [vmem:[%s219 + $0x120] sm:$0xff]
                %240 = vst [vmem:[%s220 + $0x48] sm:$0xff] %v239
                %v241 = vld [vmem:[%s219 + $0x140] sm:$0xff]
                %242 = vst [vmem:[%s220 + $0x50] sm:$0xff] %v241
                %v243 = vld [vmem:[%s219 + $0x160] sm:$0xff]
                %244 = vst [vmem:[%s220 + $0x58] sm:$0xff] %v243
                %v245 = vld [vmem:[%s219 + $0x180] sm:$0xff]
                %246 = vst [vmem:[%s220 + $0x60] sm:$0xff] %v245
                %v247 = vld [vmem:[%s219 + $0x1a0] sm:$0xff]
                %248 = vst [vmem:[%s220 + $0x68] sm:$0xff] %v247
                %v249 = vld [vmem:[%s219 + $0x1c0] sm:$0xff]
                %250 = vst [vmem:[%s220 + $0x70] sm:$0xff] %v249
                %v251 = vld [vmem:[%s219 + $0x1e0] sm:$0xff]
                %252 = vst [vmem:[%s220 + $0x78] sm:$0xff] %v251
                %v253 = vld [vmem:[%s219 + $0x200] sm:$0xff]
                %254 = vst [vmem:[%s220 + $0x80] sm:$0xff] %v253
                %v255 = vld [vmem:[%s219 + $0x220] sm:$0xff]
                %256 = vst [vmem:[%s220 + $0x88] sm:$0xff] %v255
                %v257 = vld [vmem:[%s219 + $0x240] sm:$0xff]
                %258 = vst [vmem:[%s220 + $0x90] sm:$0xff] %v257
                %v259 = vld [vmem:[%s219 + $0x260] sm:$0xff]
                %260 = vst [vmem:[%s220 + $0x98] sm:$0xff] %v259
                %v261 = vld [vmem:[%s219 + $0x280] sm:$0xff]
                %262 = vst [vmem:[%s220 + $0xa0] sm:$0xff] %v261
                %v263 = vld [vmem:[%s219 + $0x2a0] sm:$0xff]
                %264 = vst [vmem:[%s220 + $0xa8] sm:$0xff] %v263
                %v265 = vld [vmem:[%s219 + $0x2c0] sm:$0xff]
                %266 = vst [vmem:[%s220 + $0xb0] sm:$0xff] %v265
                %v267 = vld [vmem:[%s219 + $0x2e0] sm:$0xff]
                %268 = vst [vmem:[%s220 + $0xb8] sm:$0xff] %v267
                %v269 = vld [vmem:[%s219 + $0x300] sm:$0xff]
                %270 = vst [vmem:[%s220 + $0xc0] sm:$0xff] %v269
                %v271 = vld [vmem:[%s219 + $0x320] sm:$0xff]
                %272 = vst [vmem:[%s220 + $0xc8] sm:$0xff] %v271
                %v273 = vld [vmem:[%s219 + $0x340] sm:$0xff]
                %274 = vst [vmem:[%s220 + $0xd0] sm:$0xff] %v273
                %v275 = vld [vmem:[%s219 + $0x360] sm:$0xff]
                %276 = vst [vmem:[%s220 + $0xd8] sm:$0xff] %v275
                %v277 = vld [vmem:[%s219 + $0x380] sm:$0xff]
                %278 = vst [vmem:[%s220 + $0xe0] sm:$0xff] %v277
                %v279 = vld [vmem:[%s219 + $0x3a0] sm:$0xff]
                %280 = vst [vmem:[%s220 + $0xe8] sm:$0xff] %v279
                %v281 = vld [vmem:[%s219 + $0x3c0] sm:$0xff]
                %282 = vst [vmem:[%s220 + $0xf0] sm:$0xff] %v281
                %v283 = vld [vmem:[%s219 + $0x3e0] sm:$0xff]
                %284 = vst [vmem:[%s220 + $0xf8] sm:$0xff] %v283
                %v285 = vld [vmem:[%s219 + $0x400] sm:$0xff]
                %286 = vst [vmem:[%s220 + $0x100] sm:$0xff] %v285
                %v287 = vld [vmem:[%s219 + $0x420] sm:$0xff]
                %288 = vst [vmem:[%s220 + $0x108] sm:$0xff] %v287
                %v289 = vld [vmem:[%s219 + $0x440] sm:$0xff]
                %290 = vst [vmem:[%s220 + $0x110] sm:$0xff] %v289
                %v291 = vld [vmem:[%s219 + $0x460] sm:$0xff]
                %292 = vst [vmem:[%s220 + $0x118] sm:$0xff] %v291
                %v293 = vld [vmem:[%s219 + $0x480] sm:$0xff]
                %294 = vst [vmem:[%s220 + $0x120] sm:$0xff] %v293
                %v295 = vld [vmem:[%s219 + $0x4a0] sm:$0xff]
                %296 = vst [vmem:[%s220 + $0x128] sm:$0xff] %v295
                %v297 = vld [vmem:[%s219 + $0x4c0] sm:$0xff]
                %298 = vst [vmem:[%s220 + $0x130] sm:$0xff] %v297
                %v299 = vld [vmem:[%s219 + $0x4e0] sm:$0xff]
                %300 = vst [vmem:[%s220 + $0x138] sm:$0xff] %v299
                %v301 = vld [vmem:[%s219 + $0x500] sm:$0xff]
                %302 = vst [vmem:[%s220 + $0x140] sm:$0xff] %v301
                %v303 = vld [vmem:[%s219 + $0x520] sm:$0xff]
                %304 = vst [vmem:[%s220 + $0x148] sm:$0xff] %v303
                %v305 = vld [vmem:[%s219 + $0x540] sm:$0xff]
                %306 = vst [vmem:[%s220 + $0x150] sm:$0xff] %v305
                %v307 = vld [vmem:[%s219 + $0x560] sm:$0xff]
                %308 = vst [vmem:[%s220 + $0x158] sm:$0xff] %v307
                %v309 = vld [vmem:[%s219 + $0x580] sm:$0xff]
                %310 = vst [vmem:[%s220 + $0x160] sm:$0xff] %v309
                %v311 = vld [vmem:[%s219 + $0x5a0] sm:$0xff]
                %312 = vst [vmem:[%s220 + $0x168] sm:$0xff] %v311
                %v313 = vld [vmem:[%s219 + $0x5c0] sm:$0xff]
                %314 = vst [vmem:[%s220 + $0x170] sm:$0xff] %v313
                %v315 = vld [vmem:[%s219 + $0x5e0] sm:$0xff]
                %316 = vst [vmem:[%s220 + $0x178] sm:$0xff] %v315
                %v317 = vld [vmem:[%s219 + $0x600] sm:$0xff]
                %318 = vst [vmem:[%s220 + $0x180] sm:$0xff] %v317
                %v319 = vld [vmem:[%s219 + $0x620] sm:$0xff]
                %320 = vst [vmem:[%s220 + $0x188] sm:$0xff] %v319
                %v321 = vld [vmem:[%s219 + $0x640] sm:$0xff]
                %322 = vst [vmem:[%s220 + $0x190] sm:$0xff] %v321
                %v323 = vld [vmem:[%s219 + $0x660] sm:$0xff]
                %324 = vst [vmem:[%s220 + $0x198] sm:$0xff] %v323
                %v325 = vld [vmem:[%s219 + $0x680] sm:$0xff]
                %326 = vst [vmem:[%s220 + $0x1a0] sm:$0xff] %v325
                %v327 = vld [vmem:[%s219 + $0x6a0] sm:$0xff]
                %328 = vst [vmem:[%s220 + $0x1a8] sm:$0xff] %v327
                %v329 = vld [vmem:[%s219 + $0x6c0] sm:$0xff]
                %330 = vst [vmem:[%s220 + $0x1b0] sm:$0xff] %v329
                %v331 = vld [vmem:[%s219 + $0x6e0] sm:$0xff]
                %332 = vst [vmem:[%s220 + $0x1b8] sm:$0xff] %v331
                %v333 = vld [vmem:[%s219 + $0x700] sm:$0xff]
                %334 = vst [vmem:[%s220 + $0x1c0] sm:$0xff] %v333
                %v335 = vld [vmem:[%s219 + $0x720] sm:$0xff]
                %336 = vst [vmem:[%s220 + $0x1c8] sm:$0xff] %v335
                %v337 = vld [vmem:[%s219 + $0x740] sm:$0xff]
                %338 = vst [vmem:[%s220 + $0x1d0] sm:$0xff] %v337
                %v339 = vld [vmem:[%s219 + $0x760] sm:$0xff]
                %340 = vst [vmem:[%s220 + $0x1d8] sm:$0xff] %v339
                %v341 = vld [vmem:[%s219 + $0x780] sm:$0xff]
                %342 = vst [vmem:[%s220 + $0x1e0] sm:$0xff] %v341
                %v343 = vld [vmem:[%s219 + $0x7a0] sm:$0xff]
                %344 = vst [vmem:[%s220 + $0x1e8] sm:$0xff] %v343
                %v345 = vld [vmem:[%s219 + $0x7c0] sm:$0xff]
                %346 = vst [vmem:[%s220 + $0x1f0] sm:$0xff] %v345
                %v347 = vld [vmem:[%s219 + $0x7e0] sm:$0xff]
                %348 = vst [vmem:[%s220 + $0x1f8] sm:$0xff] %v347
              $region60: #{cc_discriminator_p_forward.6} parent=54 // loop_footer
                %s218 = sadd.s32 1, %s214
              $region61: #{cc_discriminator_p_forward.6} parent=54 // loop_footer_branch
                %213 = sbr.rel target = $region57
              $region62: #{cc_discriminator_p_forward.6} parent=54 // loop_exit
                _
            $region55: #{cc_discriminator_p_forward.6} parent=46 // pred_fallthru
              _
          $region47: #{cc_discriminator_p_forward.6} parent=42 // pred_fallthru
            _
          %489 = vnop
        $region43: #{cc_discriminator_p_forward.6} parent=15 // pred_fallthru
          _
        // Predicated region
        $region78: #{cc_discriminator_p_forward.6} parent=15 // pred_check
          %p490 = pneg %p104
        $region79: #{cc_discriminator_p_forward.6} parent=15 // pred_check_branch
          %492 = sbr.rel (%p490) target = $region81
        $region80: #{cc_discriminator_p_forward.6} parent=15 // pred_region
          %s493 = smul.u32 2, %s17
          %p494 = scmp.lt.s32.totalorder %s493, 7
          %s495 = scalar_select %p494, %s493, 7
          %s496 = scalar_lea.vmem %s2, %s495
          %s497 = smul.u32 2, %s17
        $region81: #{cc_discriminator_p_forward.6} parent=15 // pred_fallthru
          _
      $region16: #{cc_discriminator_p_forward.6} parent=5 // pred_fallthru
        _
      %p498 = scmp.le.s32.totalorder 1, %s9
      %p499 = scmp.lt.s32.totalorder %s9, 21
      %p500 = pnand %p498, %p499
      %p501 = pneg %p500
      // Predicated region
      $region82: #{cc_discriminator_p_forward.6} parent=5 // pred_check
        _
      $region83: #{cc_discriminator_p_forward.6} parent=5 // pred_check_branch
        %503 = sbr.rel (%p500) target = $region85
      $region84: #{cc_discriminator_p_forward.6} parent=5 // pred_region
        %s504 = ssub.s32 %s9, 1
        %s505 = sand.u32 %s43, 1
        %s506 = sand.u32 %s43, 1
        %s507 = smul.addr %s506, 32
        %s508 = scalar_lea.vmem [#allocation3], %s507
        // Predicated region
        $region86: #{cc_discriminator_p_forward.6} parent=84 // pred_check
          %p509 = pneg %p56
        $region87: #{cc_discriminator_p_forward.6} parent=84 // pred_check_branch
          %511 = sbr.rel (%p509) target = $region89
        $region88: #{cc_discriminator_p_forward.6} parent=84 // pred_region
          _
        $region89: #{cc_discriminator_p_forward.6} parent=84 // pred_fallthru
          _
        %s512 = sand.u32 %s71, 1
        %s513 = sand.u32 %s71, 1
        %s514 = smul.addr %s513, 512
        %s515 = scalar_lea.vmem [#allocation4], %s514
        // Predicated region
        $region90: #{cc_discriminator_p_forward.6} parent=84 // pred_check
          %p516 = pneg %p84
        $region91: #{cc_discriminator_p_forward.6} parent=84 // pred_check_branch
          %518 = sbr.rel (%p516) target = $region93
        $region92: #{cc_discriminator_p_forward.6} parent=84 // pred_region
          _
        $region93: #{cc_discriminator_p_forward.6} parent=84 // pred_fallthru
          _
        %s519 = sand.u32 %s43, 1
        %s520 = sand.u32 %s43, 1
        %s521 = smul.addr %s520, 32
        %s522 = scalar_lea.vmem [#allocation3], %s521
        %p523 = pneg %p56
        %p524 = pneg %p53
        %s525 = sand.u32 %s71, 1
        %s526 = sand.u32 %s71, 1
        %s527 = smul.addr %s526, 512
        %s528 = scalar_lea.vmem [#allocation4], %s527
        %p529 = pneg %p84
        %p530 = pneg %p81
        %s531 = smul.u32 2, %s20
        %p532 = scmp.lt.s32.totalorder %s531, 7
        %s533 = scalar_select %p532, %s531, 7
        %s534 = scalar_lea.vmem %s2, %s533
        %p535 = pneg %p110
        %p536 = pneg %p107
        %p537 = pneg %p138
        %p538 = pneg %p135
        %s539 = sand.u32 %s125, 1
        %s540 = sand.u32 %s125, 1
        %s541 = smul.addr %s540, 16
        %s542 = scalar_lea.vmem [#allocation5], %s541
        %s543 = smul.u32 2, %s19
        %s544 = smul.u32 4, %s21
        %s545 = smul.u32 64, %s21
        %s546 = smul.u32 2, %s20
        %s547 = smul.u32 2, %s20
        %p548 = scmp.lt.s32.totalorder %s547, 7
        %s549 = scalar_select %p548, %s547, 7
        %s550 = scalar_lea.vmem %s2, %s549
        %s551 = smul.u32 2, %s20
        %s552 = smul.u32 2, %s19
        %s553 = smul.u32 2, %s20
        %p554 = scmp.eq.s32.totalorder %s21, 0
        // Predicated region
        $region94: #{cc_discriminator_p_forward.6} parent=84 // pred_check
          %p555 = pneg %p554
        $region95: #{cc_discriminator_p_forward.6} parent=84 // pred_check_branch
          %557 = sbr.rel (%p555) target = $region97
        $region96: #{cc_discriminator_p_forward.6} parent=84 // pred_region
          %558 = vst [vmem:[#allocation2] sm:$0xff] 0.0
          %559 = vst [vmem:[#allocation2 + $0x8] sm:$0xff] 0.0
          %560 = vst [vmem:[#allocation2 + $0x10] sm:$0xff] 0.0
          %561 = vst [vmem:[#allocation2 + $0x18] sm:$0xff] 0.0
        $region97: #{cc_discriminator_p_forward.6} parent=84 // pred_fallthru
          _
        %v562 = vld [vmem:[#allocation2] sm:$0xff]
        %v563 = vld [vmem:[#allocation2 + $0x8] sm:$0xff]
        %v564 = vld [vmem:[#allocation2 + $0x10] sm:$0xff]
        %v565 = vld [vmem:[#allocation2 + $0x18] sm:$0xff]
        %v566 = vld [vmem:[%s508] sm:$0xff]
        %v567 = vld [vmem:[%s508 + $0x8] sm:$0xff]
        %v568 = vld [vmem:[%s508 + $0x10] sm:$0xff]
        %v569 = vld [vmem:[%s508 + $0x18] sm:$0xff]
        %v570 = vld [vmem:[%s515] sm:$0xff]
        %v571 = vld [vmem:[%s515 + $0x8] sm:$0xff]
        %v572 = vld [vmem:[%s515 + $0x10] sm:$0xff]
        %v573 = vld [vmem:[%s515 + $0x18] sm:$0xff]
        %v574 = vld [vmem:[%s515 + $0x20] sm:$0xff]
        %v575 = vld [vmem:[%s515 + $0x28] sm:$0xff]
        %v576 = vld [vmem:[%s515 + $0x30] sm:$0xff]
        %v577 = vld [vmem:[%s515 + $0x38] sm:$0xff]
        %v578 = vld [vmem:[%s515 + $0x40] sm:$0xff]
        %v579 = vld [vmem:[%s515 + $0x48] sm:$0xff]
        %v580 = vld [vmem:[%s515 + $0x50] sm:$0xff]
        %v581 = vld [vmem:[%s515 + $0x58] sm:$0xff]
        %v582 = vld [vmem:[%s515 + $0x60] sm:$0xff]
        %v583 = vld [vmem:[%s515 + $0x68] sm:$0xff]
        %v584 = vld [vmem:[%s515 + $0x70] sm:$0xff]
        %v585 = vld [vmem:[%s515 + $0x78] sm:$0xff]
        %v586 = vld [vmem:[%s515 + $0x80] sm:$0xff]
        %v587 = vld [vmem:[%s515 + $0x88] sm:$0xff]
        %v588 = vld [vmem:[%s515 + $0x90] sm:$0xff]
        %v589 = vld [vmem:[%s515 + $0x98] sm:$0xff]
        %v590 = vld [vmem:[%s515 + $0xa0] sm:$0xff]
        %v591 = vld [vmem:[%s515 + $0xa8] sm:$0xff]
        %v592 = vld [vmem:[%s515 + $0xb0] sm:$0xff]
        %v593 = vld [vmem:[%s515 + $0xb8] sm:$0xff]
        %v594 = vld [vmem:[%s515 + $0xc0] sm:$0xff]
        %v595 = vld [vmem:[%s515 + $0xc8] sm:$0xff]
        %v596 = vld [vmem:[%s515 + $0xd0] sm:$0xff]
        %v597 = vld [vmem:[%s515 + $0xd8] sm:$0xff]
        %v598 = vld [vmem:[%s515 + $0xe0] sm:$0xff]
        %v599 = vld [vmem:[%s515 + $0xe8] sm:$0xff]
        %v600 = vld [vmem:[%s515 + $0xf0] sm:$0xff]
        %v601 = vld [vmem:[%s515 + $0xf8] sm:$0xff]
        %v602 = vld [vmem:[%s515 + $0x100] sm:$0xff]
        %v603 = vld [vmem:[%s515 + $0x108] sm:$0xff]
        %v604 = vld [vmem:[%s515 + $0x110] sm:$0xff]
        %v605 = vld [vmem:[%s515 + $0x118] sm:$0xff]
        %v606 = vld [vmem:[%s515 + $0x120] sm:$0xff]
        %v607 = vld [vmem:[%s515 + $0x128] sm:$0xff]
        %v608 = vld [vmem:[%s515 + $0x130] sm:$0xff]
        %v609 = vld [vmem:[%s515 + $0x138] sm:$0xff]
        %v610 = vld [vmem:[%s515 + $0x140] sm:$0xff]
        %v611 = vld [vmem:[%s515 + $0x148] sm:$0xff]
        %v612 = vld [vmem:[%s515 + $0x150] sm:$0xff]
        %v613 = vld [vmem:[%s515 + $0x158] sm:$0xff]
        %v614 = vld [vmem:[%s515 + $0x160] sm:$0xff]
        %v615 = vld [vmem:[%s515 + $0x168] sm:$0xff]
        %v616 = vld [vmem:[%s515 + $0x170] sm:$0xff]
        %v617 = vld [vmem:[%s515 + $0x178] sm:$0xff]
        %v618 = vld [vmem:[%s515 + $0x180] sm:$0xff]
        %v619 = vld [vmem:[%s515 + $0x188] sm:$0xff]
        %v620 = vld [vmem:[%s515 + $0x190] sm:$0xff]
        %v621 = vld [vmem:[%s515 + $0x198] sm:$0xff]
        %v622 = vld [vmem:[%s515 + $0x1a0] sm:$0xff]
        %v623 = vld [vmem:[%s515 + $0x1a8] sm:$0xff]
        %v624 = vld [vmem:[%s515 + $0x1b0] sm:$0xff]
        %v625 = vld [vmem:[%s515 + $0x1b8] sm:$0xff]
        %v626 = vld [vmem:[%s515 + $0x1c0] sm:$0xff]
        %v627 = vld [vmem:[%s515 + $0x1c8] sm:$0xff]
        %v628 = vld [vmem:[%s515 + $0x1d0] sm:$0xff]
        %v629 = vld [vmem:[%s515 + $0x1d8] sm:$0xff]
        %v630 = vld [vmem:[%s515 + $0x1e0] sm:$0xff]
        %v631 = vld [vmem:[%s515 + $0x1e8] sm:$0xff]
        %v632 = vld [vmem:[%s515 + $0x1f0] sm:$0xff]
        %v633 = vld [vmem:[%s515 + $0x1f8] sm:$0xff]
        %v638 = vunpack.c.l.b16 %v566
        %v639 = vunpack.c.h.b16 %v566
        %v640 = vunpack.c.l.b16 %v567
        %v641 = vunpack.c.h.b16 %v567
        %v642 = vunpack.c.l.b16 %v568
        %v643 = vunpack.c.h.b16 %v568
        %v644 = vunpack.c.l.b16 %v569
        %v645 = vunpack.c.h.b16 %v569
        %v646 = vpack.c.b16 %v642, %v638
        %v647 = vpack.c.b16 %v643, %v639
        %v648 = vpack.c.b16 %v644, %v640
        %v649 = vpack.c.b16 %v645, %v641
        %v718 = vunpack.c.l.b16 %v570
        %v719 = vunpack.c.h.b16 %v570
        %v720 = vunpack.c.l.b16 %v571
        %v721 = vunpack.c.h.b16 %v571
        %v722 = vunpack.c.l.b16 %v572
        %v723 = vunpack.c.h.b16 %v572
        %v724 = vunpack.c.l.b16 %v573
        %v725 = vunpack.c.h.b16 %v573
        %v726 = vunpack.c.l.b16 %v574
        %v727 = vunpack.c.h.b16 %v574
        %v728 = vunpack.c.l.b16 %v575
        %v729 = vunpack.c.h.b16 %v575
        %v730 = vunpack.c.l.b16 %v576
        %v731 = vunpack.c.h.b16 %v576
        %v732 = vunpack.c.l.b16 %v577
        %v733 = vunpack.c.h.b16 %v577
        %v734 = vunpack.c.l.b16 %v578
        %v735 = vunpack.c.h.b16 %v578
        %v736 = vunpack.c.l.b16 %v579
        %v737 = vunpack.c.h.b16 %v579
        %v738 = vunpack.c.l.b16 %v580
        %v739 = vunpack.c.h.b16 %v580
        %v740 = vunpack.c.l.b16 %v581
        %v741 = vunpack.c.h.b16 %v581
        %v742 = vunpack.c.l.b16 %v582
        %v743 = vunpack.c.h.b16 %v582
        %v744 = vunpack.c.l.b16 %v583
        %v745 = vunpack.c.h.b16 %v583
        %v746 = vunpack.c.l.b16 %v584
        %v747 = vunpack.c.h.b16 %v584
        %v748 = vunpack.c.l.b16 %v585
        %v749 = vunpack.c.h.b16 %v585
        %v750 = vunpack.c.l.b16 %v586
        %v751 = vunpack.c.h.b16 %v586
        %v752 = vunpack.c.l.b16 %v587
        %v753 = vunpack.c.h.b16 %v587
        %v754 = vunpack.c.l.b16 %v588
        %v755 = vunpack.c.h.b16 %v588
        %v756 = vunpack.c.l.b16 %v589
        %v757 = vunpack.c.h.b16 %v589
        %v758 = vunpack.c.l.b16 %v590
        %v759 = vunpack.c.h.b16 %v590
        %v760 = vunpack.c.l.b16 %v591
        %v761 = vunpack.c.h.b16 %v591
        %v762 = vunpack.c.l.b16 %v592
        %v763 = vunpack.c.h.b16 %v592
        %v764 = vunpack.c.l.b16 %v593
        %v765 = vunpack.c.h.b16 %v593
        %v766 = vunpack.c.l.b16 %v594
        %v767 = vunpack.c.h.b16 %v594
        %v768 = vunpack.c.l.b16 %v595
        %v769 = vunpack.c.h.b16 %v595
        %v770 = vunpack.c.l.b16 %v596
        %v771 = vunpack.c.h.b16 %v596
        %v772 = vunpack.c.l.b16 %v597
        %v773 = vunpack.c.h.b16 %v597
        %v774 = vunpack.c.l.b16 %v598
        %v775 = vunpack.c.h.b16 %v598
        %v776 = vunpack.c.l.b16 %v599
        %v777 = vunpack.c.h.b16 %v599
        %v778 = vunpack.c.l.b16 %v600
        %v779 = vunpack.c.h.b16 %v600
        %v780 = vunpack.c.l.b16 %v601
        %v781 = vunpack.c.h.b16 %v601
        %v782 = vunpack.c.l.b16 %v602
        %v783 = vunpack.c.h.b16 %v602
        %v784 = vunpack.c.l.b16 %v603
        %v785 = vunpack.c.h.b16 %v603
        %v786 = vunpack.c.l.b16 %v604
        %v787 = vunpack.c.h.b16 %v604
        %v788 = vunpack.c.l.b16 %v605
        %v789 = vunpack.c.h.b16 %v605
        %v790 = vunpack.c.l.b16 %v606
        %v791 = vunpack.c.h.b16 %v606
        %v792 = vunpack.c.l.b16 %v607
        %v793 = vunpack.c.h.b16 %v607
        %v794 = vunpack.c.l.b16 %v608
        %v795 = vunpack.c.h.b16 %v608
        %v796 = vunpack.c.l.b16 %v609
        %v797 = vunpack.c.h.b16 %v609
        %v798 = vunpack.c.l.b16 %v610
        %v799 = vunpack.c.h.b16 %v610
        %v800 = vunpack.c.l.b16 %v611
        %v801 = vunpack.c.h.b16 %v611
        %v802 = vunpack.c.l.b16 %v612
        %v803 = vunpack.c.h.b16 %v612
        %v804 = vunpack.c.l.b16 %v613
        %v805 = vunpack.c.h.b16 %v613
        %v806 = vunpack.c.l.b16 %v614
        %v807 = vunpack.c.h.b16 %v614
        %v808 = vunpack.c.l.b16 %v615
        %v809 = vunpack.c.h.b16 %v615
        %v810 = vunpack.c.l.b16 %v616
        %v811 = vunpack.c.h.b16 %v616
        %v812 = vunpack.c.l.b16 %v617
        %v813 = vunpack.c.h.b16 %v617
        %v814 = vunpack.c.l.b16 %v618
        %v815 = vunpack.c.h.b16 %v618
        %v816 = vunpack.c.l.b16 %v619
        %v817 = vunpack.c.h.b16 %v619
        %v818 = vunpack.c.l.b16 %v620
        %v819 = vunpack.c.h.b16 %v620
        %v820 = vunpack.c.l.b16 %v621
        %v821 = vunpack.c.h.b16 %v621
        %v822 = vunpack.c.l.b16 %v622
        %v823 = vunpack.c.h.b16 %v622
        %v824 = vunpack.c.l.b16 %v623
        %v825 = vunpack.c.h.b16 %v623
        %v826 = vunpack.c.l.b16 %v624
        %v827 = vunpack.c.h.b16 %v624
        %v828 = vunpack.c.l.b16 %v625
        %v829 = vunpack.c.h.b16 %v625
        %v830 = vunpack.c.l.b16 %v626
        %v831 = vunpack.c.h.b16 %v626
        %v832 = vunpack.c.l.b16 %v627
        %v833 = vunpack.c.h.b16 %v627
        %v834 = vunpack.c.l.b16 %v628
        %v835 = vunpack.c.h.b16 %v628
        %v836 = vunpack.c.l.b16 %v629
        %v837 = vunpack.c.h.b16 %v629
        %v838 = vunpack.c.l.b16 %v630
        %v839 = vunpack.c.h.b16 %v630
        %v840 = vunpack.c.l.b16 %v631
        %v841 = vunpack.c.h.b16 %v631
        %v842 = vunpack.c.l.b16 %v632
        %v843 = vunpack.c.h.b16 %v632
        %v844 = vunpack.c.l.b16 %v633
        %v845 = vunpack.c.h.b16 %v633
        %v846 = vpack.c.b16 %v720, %v718
        %v847 = vpack.c.b16 %v721, %v719
        %v848 = vpack.c.b16 %v724, %v722
        %v849 = vpack.c.b16 %v725, %v723
        %v850 = vpack.c.b16 %v728, %v726
        %v851 = vpack.c.b16 %v729, %v727
        %v852 = vpack.c.b16 %v732, %v730
        %v853 = vpack.c.b16 %v733, %v731
        %v854 = vpack.c.b16 %v736, %v734
        %v855 = vpack.c.b16 %v737, %v735
        %v856 = vpack.c.b16 %v740, %v738
        %v857 = vpack.c.b16 %v741, %v739
        %v858 = vpack.c.b16 %v744, %v742
        %v859 = vpack.c.b16 %v745, %v743
        %v860 = vpack.c.b16 %v748, %v746
        %v861 = vpack.c.b16 %v749, %v747
        %v862 = vpack.c.b16 %v752, %v750
        %v863 = vpack.c.b16 %v753, %v751
        %v864 = vpack.c.b16 %v756, %v754
        %v865 = vpack.c.b16 %v757, %v755
        %v866 = vpack.c.b16 %v760, %v758
        %v867 = vpack.c.b16 %v761, %v759
        %v868 = vpack.c.b16 %v764, %v762
        %v869 = vpack.c.b16 %v765, %v763
        %v870 = vpack.c.b16 %v768, %v766
        %v871 = vpack.c.b16 %v769, %v767
        %v872 = vpack.c.b16 %v772, %v770
        %v873 = vpack.c.b16 %v773, %v771
        %v874 = vpack.c.b16 %v776, %v774
        %v875 = vpack.c.b16 %v777, %v775
        %v876 = vpack.c.b16 %v780, %v778
        %v877 = vpack.c.b16 %v781, %v779
        %v878 = vpack.c.b16 %v784, %v782
        %v879 = vpack.c.b16 %v785, %v783
        %v880 = vpack.c.b16 %v788, %v786
        %v881 = vpack.c.b16 %v789, %v787
        %v882 = vpack.c.b16 %v792, %v790
        %v883 = vpack.c.b16 %v793, %v791
        %v884 = vpack.c.b16 %v796, %v794
        %v885 = vpack.c.b16 %v797, %v795
        %v886 = vpack.c.b16 %v800, %v798
        %v887 = vpack.c.b16 %v801, %v799
        %v888 = vpack.c.b16 %v804, %v802
        %v889 = vpack.c.b16 %v805, %v803
        %v890 = vpack.c.b16 %v808, %v806
        %v891 = vpack.c.b16 %v809, %v807
        %v892 = vpack.c.b16 %v812, %v810
        %v893 = vpack.c.b16 %v813, %v811
        %v894 = vpack.c.b16 %v816, %v814
        %v895 = vpack.c.b16 %v817, %v815
        %v896 = vpack.c.b16 %v820, %v818
        %v897 = vpack.c.b16 %v821, %v819
        %v898 = vpack.c.b16 %v824, %v822
        %v899 = vpack.c.b16 %v825, %v823
        %v900 = vpack.c.b16 %v828, %v826
        %v901 = vpack.c.b16 %v829, %v827
        %v902 = vpack.c.b16 %v832, %v830
        %v903 = vpack.c.b16 %v833, %v831
        %v904 = vpack.c.b16 %v836, %v834
        %v905 = vpack.c.b16 %v837, %v835
        %v906 = vpack.c.b16 %v840, %v838
        %v907 = vpack.c.b16 %v841, %v839
        %v908 = vpack.c.b16 %v844, %v842
        %v909 = vpack.c.b16 %v845, %v843
        %974 = vmatprep.subr.bf16.mxu0 %v847
        %975 = vmatpush1.bf16.msra.mxu0 %v846
        %976 = vmatprep.subr.bf16.mxu0 %v849
        %977 = vmatpush1.bf16.msra.mxu0 %v848
        %978 = vmatprep.subr.bf16.mxu0 %v851
        %979 = vmatpush1.bf16.msra.mxu0 %v850
        %980 = vmatprep.subr.bf16.mxu0 %v853
        %981 = vmatpush1.bf16.msra.mxu0 %v852
        %982 = vmatprep.subr.bf16.mxu0 %v855
        %983 = vmatpush1.bf16.msra.mxu0 %v854
        %984 = vmatprep.subr.bf16.mxu0 %v857
        %985 = vmatpush1.bf16.msra.mxu0 %v856
        %986 = vmatprep.subr.bf16.mxu0 %v859
        %987 = vmatpush1.bf16.msra.mxu0 %v858
        %988 = vmatprep.subr.bf16.mxu0 %v861
        %989 = vmatpush1.bf16.msra.mxu0 %v860
        %990 = vmatprep.subr.bf16.mxu0 %v863
        %991 = vmatpush1.bf16.msra.mxu0 %v862
        %992 = vmatprep.subr.bf16.mxu0 %v865
        %993 = vmatpush1.bf16.msra.mxu0 %v864
        %994 = vmatprep.subr.bf16.mxu0 %v867
        %995 = vmatpush1.bf16.msra.mxu0 %v866
        %996 = vmatprep.subr.bf16.mxu0 %v869
        %997 = vmatpush1.bf16.msra.mxu0 %v868
        %998 = vmatprep.subr.bf16.mxu0 %v871
        %999 = vmatpush1.bf16.msra.mxu0 %v870
        %1000 = vmatprep.subr.bf16.mxu0 %v873
        %1001 = vmatpush1.bf16.msra.mxu0 %v872
        %1002 = vmatprep.subr.bf16.mxu0 %v875
        %1003 = vmatpush1.bf16.msra.mxu0 %v874
        %1004 = vmatprep.subr.bf16.mxu0 %v877
        %1005 = vmatpush1.bf16.msra.mxu0 %v876
        %1006 = vmatprep.mubr.bf16.mxu0 %v647
        %1007 = vmatmul.mubr.bf16.gmra.mrb[0].mxu0 %v646
        %v1008 = vpop.f32.mrb[0].mxu0
        %v1009 = vadd.f32 0.0, %v1008
        %v1010 = vpop.f32.mrb[0].mxu0
        %v1011 = vadd.f32 0.0, %v1010
        %v1012 = vpop.f32.mrb[0].mxu0
        %v1013 = vadd.f32 0.0, %v1012
        %v1014 = vpop.f32.mrb[0].mxu0
        %v1015 = vadd.f32 0.0, %v1014
        %1016 = vdwg.mxu0
        %1017 = vmatprep.subr.bf16.mxu0 %v879
        %1018 = vmatpush1.bf16.msra.mxu0 %v878
        %1019 = vmatprep.subr.bf16.mxu0 %v881
        %1020 = vmatpush1.bf16.msra.mxu0 %v880
        %1021 = vmatprep.subr.bf16.mxu0 %v883
        %1022 = vmatpush1.bf16.msra.mxu0 %v882
        %1023 = vmatprep.subr.bf16.mxu0 %v885
        %1024 = vmatpush1.bf16.msra.mxu0 %v884
        %1025 = vmatprep.subr.bf16.mxu0 %v887
        %1026 = vmatpush1.bf16.msra.mxu0 %v886
        %1027 = vmatprep.subr.bf16.mxu0 %v889
        %1028 = vmatpush1.bf16.msra.mxu0 %v888
        %1029 = vmatprep.subr.bf16.mxu0 %v891
        %1030 = vmatpush1.bf16.msra.mxu0 %v890
        %1031 = vmatprep.subr.bf16.mxu0 %v893
        %1032 = vmatpush1.bf16.msra.mxu0 %v892
        %1033 = vmatprep.subr.bf16.mxu0 %v895
        %1034 = vmatpush1.bf16.msra.mxu0 %v894
        %1035 = vmatprep.subr.bf16.mxu0 %v897
        %1036 = vmatpush1.bf16.msra.mxu0 %v896
        %1037 = vmatprep.subr.bf16.mxu0 %v899
        %1038 = vmatpush1.bf16.msra.mxu0 %v898
        %1039 = vmatprep.subr.bf16.mxu0 %v901
        %1040 = vmatpush1.bf16.msra.mxu0 %v900
        %1041 = vmatprep.subr.bf16.mxu0 %v903
        %1042 = vmatpush1.bf16.msra.mxu0 %v902
        %1043 = vmatprep.subr.bf16.mxu0 %v905
        %1044 = vmatpush1.bf16.msra.mxu0 %v904
        %1045 = vmatprep.subr.bf16.mxu0 %v907
        %1046 = vmatpush1.bf16.msra.mxu0 %v906
        %1047 = vmatprep.subr.bf16.mxu0 %v909
        %1048 = vmatpush1.bf16.msra.mxu0 %v908
        %1049 = vmatprep.mubr.bf16.mxu0 %v649
        %1050 = vmatmul.mubr.bf16.gmra.mrb[0].mxu0 %v648
        %v1051 = vpop.f32.mrb[0].mxu0
        %v1052 = vadd.f32 %v1009, %v1051
        %v1053 = vpop.f32.mrb[0].mxu0
        %v1054 = vadd.f32 %v1011, %v1053
        %v1055 = vpop.f32.mrb[0].mxu0
        %v1056 = vadd.f32 %v1013, %v1055
        %v1057 = vpop.f32.mrb[0].mxu0
        %v1058 = vadd.f32 %v1015, %v1057
        %1059 = vdwg.mxu0
        %v1060 = vadd.f32 %v562, %v1052
        %v1061 = vadd.f32 %v563, %v1054
        %v1062 = vadd.f32 %v564, %v1056
        %v1063 = vadd.f32 %v565, %v1058
        %1064 = vst [vmem:[#allocation2] sm:$0xff] %v1060
        %1065 = vst [vmem:[#allocation2 + $0x8] sm:$0xff] %v1061
        %1066 = vst [vmem:[#allocation2 + $0x10] sm:$0xff] %v1062
        %1067 = vst [vmem:[#allocation2 + $0x18] sm:$0xff] %v1063
        %p1068 = scmp.eq.s32.totalorder %s21, 4
        // Predicated region
        $region98: #{cc_discriminator_p_forward.6} parent=84 // pred_check
          %p1069 = pneg %p1068
        $region99: #{cc_discriminator_p_forward.6} parent=84 // pred_check_branch
          %1071 = sbr.rel (%p1069) target = $region101
        $region100: #{cc_discriminator_p_forward.6} parent=84 // pred_region
          %v1072 = vld [vmem:[#allocation2] sm:$0xff]
          %v1073 = vld [vmem:[#allocation2 + $0x8] sm:$0xff]
          %v1074 = vld [vmem:[#allocation2 + $0x10] sm:$0xff]
          %v1075 = vld [vmem:[#allocation2 + $0x18] sm:$0xff]
          %v1076 = vld [vmem:[%s550] sm:$0x3]
          %v1078 = vlaneseq
          %v1079 = vshrl.u32 %v1078, 7
          %v1080 = vsub.s32 0, %v1079
          %v1081 = vrot.slane %v1076, %v1080
          %v1082 = vlaneseq
          %v1083 = vshrl.u32 %v1082, 7
          %v1084 = vsub.s32 1, %v1083
          %v1085 = vrot.slane %v1076, %v1084
          %v1088 = vadd.f32 %v1072, %v1081
          %v1089 = vadd.f32 %v1073, %v1085
          %v1090 = vadd.f32 %v1074, %v1081
          %v1091 = vadd.f32 %v1075, %v1085
          %vm1092 = vcmp.ge.f32.partialorder %v1088, 0.0
          %vm1093 = vcmp.ge.f32.partialorder %v1089, 0.0
          %vm1094 = vcmp.ge.f32.partialorder %v1090, 0.0
          %vm1095 = vcmp.ge.f32.partialorder %v1091, 0.0
          %v1096 = vmul.f32 %v1088, 0.1
          %v1097 = vmul.f32 %v1089, 0.1
          %v1098 = vmul.f32 %v1090, 0.1
          %v1099 = vmul.f32 %v1091, 0.1
          %v1100 = vsel %vm1092, %v1088, %v1096
          %v1101 = vsel %vm1093, %v1089, %v1097
          %v1102 = vsel %vm1094, %v1090, %v1098
          %v1103 = vsel %vm1095, %v1091, %v1099
          %v1104 = vpack.c.bf16 %v1102, %v1100
          %v1105 = vpack.c.bf16 %v1103, %v1101
          %v1108 = vunpack.c.l.b16 %v1104
          %v1109 = vunpack.c.l.b16 %v1105
          %v1110 = vunpack.c.h.b16 %v1104
          %v1111 = vunpack.c.h.b16 %v1105
          %v1112 = vpack.c.b16 %v1109, %v1108
          %v1113 = vpack.c.b16 %v1111, %v1110
          %1116 = vst [vmem:[%s542] sm:$0xff] %v1112
          %1117 = vst [vmem:[%s542 + $0x8] sm:$0xff] %v1113
        $region101: #{cc_discriminator_p_forward.6} parent=84 // pred_fallthru
          _
        %s1118 = sand.u32 %s125, 1
        %s1119 = sand.u32 %s125, 1
        %s1120 = smul.addr %s1119, 16
        %s1121 = scalar_lea.vmem [#allocation5], %s1120
        // Predicated region
        $region102: #{cc_discriminator_p_forward.6} parent=84 // pred_check
          %p1122 = pneg %p135
        $region103: #{cc_discriminator_p_forward.6} parent=84 // pred_check_branch
          %1124 = sbr.rel (%p1122) target = $region105
        $region104: #{cc_discriminator_p_forward.6} parent=84 // pred_region
          %s1125 = smul.u32 2, %s19
          %s1126 = smul.u32 2, %s20
          %s1127 = smul.addr %s1125, 8
          %s1128 = sadd.s32 %s1126, %s1127
          %s1129 = smul.addr %s1128, 4
          %s1130 = scalar_lea.vmem %s3, %s1129
          // Predicated region
          $region106: #{cc_discriminator_p_forward.6} parent=104 // pred_check
            _
          $region107: #{cc_discriminator_p_forward.6} parent=104 // pred_check_branch
            %1132 = sbr.rel (0) target = $region109
          $region108: #{cc_discriminator_p_forward.6} parent=104 // pred_region
            // Predicated region
            $region110: #{cc_discriminator_p_forward.6} parent=108 // pred_check
              _
            $region111: #{cc_discriminator_p_forward.6} parent=108 // pred_check_branch
              %1134 = sbr.rel (0) target = $region113
            $region112: #{cc_discriminator_p_forward.6} parent=108 // pred_region
              // Predicated region
              $region125: #{cc_discriminator_p_forward.6} parent=112 // pred_check
                _
              $region126: #{cc_discriminator_p_forward.6} parent=112 // pred_check_branch
                %1151 = sbr.rel (0) target = $region128
              $region127: #{cc_discriminator_p_forward.6} parent=112 // pred_region
                loop: start=0, step=1, limit=1
                $region129: #{cc_discriminator_p_forward.6} parent=127 // loop_pre_header
                  _
                $region130: #{cc_discriminator_p_forward.6} parent=127 // loop_header
                  %s1153 = sphi 0, %s1157
                  %p1154 = scmp.ge.s32.totalorder %s1153, 1
                  %s1158 = sphi %s1121, %s1121
                  %s1159 = sphi %s1130, %s1130
                $region131: #{cc_discriminator_p_forward.6} parent=127 // loop_header_branch
                  %1156 = sbr.rel (%p1154) target = $region135
                $region132: #{cc_discriminator_p_forward.6} parent=127 // loop_body
                  %v1160 = vld [vmem:[%s1158] sm:$0xff]
                  %1161 = vst [vmem:[%s1159] sm:$0xff] %v1160
                  %v1162 = vld [vmem:[%s1158 + $0x8] sm:$0xff]
                  %1163 = vst [vmem:[%s1159 + $0x20] sm:$0xff] %v1162
                $region133: #{cc_discriminator_p_forward.6} parent=127 // loop_footer
                  %s1157 = sadd.s32 1, %s1153
                $region134: #{cc_discriminator_p_forward.6} parent=127 // loop_footer_branch
                  %1152 = sbr.rel target = $region130
                $region135: #{cc_discriminator_p_forward.6} parent=127 // loop_exit
                  _
              $region128: #{cc_discriminator_p_forward.6} parent=112 // pred_fallthru
                _
              // Predicated region
              $region136: #{cc_discriminator_p_forward.6} parent=112 // pred_check
                _
              $region137: #{cc_discriminator_p_forward.6} parent=112 // pred_check_branch
                %1165 = sbr.rel target = $region139
              $region138: #{cc_discriminator_p_forward.6} parent=112 // pred_region
                _
              $region139: #{cc_discriminator_p_forward.6} parent=112 // pred_fallthru
                _
            $region113: #{cc_discriminator_p_forward.6} parent=108 // pred_fallthru
              _
            // Predicated region
            $region114: #{cc_discriminator_p_forward.6} parent=108 // pred_check
              _
            $region115: #{cc_discriminator_p_forward.6} parent=108 // pred_check_branch
              %1136 = sbr.rel target = $region117
            $region116: #{cc_discriminator_p_forward.6} parent=108 // pred_region
              loop: start=0, step=1, limit=1
              $region118: #{cc_discriminator_p_forward.6} parent=116 // loop_pre_header
                _
              $region119: #{cc_discriminator_p_forward.6} parent=116 // loop_header
                %s1139 = sphi 0, %s1143
                %p1140 = scmp.ge.s32.totalorder %s1139, 1
                %s1144 = sphi %s1121, %s1121
                %s1145 = sphi %s1130, %s1130
              $region120: #{cc_discriminator_p_forward.6} parent=116 // loop_header_branch
                %1142 = sbr.rel (%p1140) target = $region124
              $region121: #{cc_discriminator_p_forward.6} parent=116 // loop_body
                %v1146 = vld [vmem:[%s1144] sm:$0xff]
                %1147 = vst [vmem:[%s1145] sm:$0xff] %v1146
                %v1148 = vld [vmem:[%s1144 + $0x8] sm:$0xff]
                %1149 = vst [vmem:[%s1145 + $0x20] sm:$0xff] %v1148
              $region122: #{cc_discriminator_p_forward.6} parent=116 // loop_footer
                %s1143 = sadd.s32 1, %s1139
              $region123: #{cc_discriminator_p_forward.6} parent=116 // loop_footer_branch
                %1138 = sbr.rel target = $region119
              $region124: #{cc_discriminator_p_forward.6} parent=116 // loop_exit
                _
            $region117: #{cc_discriminator_p_forward.6} parent=108 // pred_fallthru
              _
          $region109: #{cc_discriminator_p_forward.6} parent=104 // pred_fallthru
            _
          %1166 = vnop
        $region105: #{cc_discriminator_p_forward.6} parent=84 // pred_fallthru
          _
      $region85: #{cc_discriminator_p_forward.6} parent=5 // pred_fallthru
        _
      %p1167 = scmp.le.s32.totalorder 2, %s9
      // Predicated region
      $region140: #{cc_discriminator_p_forward.6} parent=5 // pred_check
        %p1168 = pneg %p1167
      $region141: #{cc_discriminator_p_forward.6} parent=5 // pred_check_branch
        %1170 = sbr.rel (%p1168) target = $region143
      $region142: #{cc_discriminator_p_forward.6} parent=5 // pred_region
        %s1171 = ssub.s32 %s9, 2
        // Predicated region
        $region144: #{cc_discriminator_p_forward.6} parent=142 // pred_check
          %p1172 = pneg %p141
        $region145: #{cc_discriminator_p_forward.6} parent=142 // pred_check_branch
          %1174 = sbr.rel (%p1172) target = $region147
        $region146: #{cc_discriminator_p_forward.6} parent=142 // pred_region
          %s1175 = sand.u32 %s126, 1
          %s1176 = sand.u32 %s126, 1
          %s1177 = smul.addr %s1176, 16
          %s1178 = scalar_lea.vmem [#allocation5], %s1177
        $region147: #{cc_discriminator_p_forward.6} parent=142 // pred_fallthru
          _
      $region143: #{cc_discriminator_p_forward.6} parent=5 // pred_fallthru
        _
    $region6: #{cc_discriminator_p_forward.6} parent=1 // loop_footer
      %s13 = sadd.s32 1, %s9
    $region7: #{cc_discriminator_p_forward.6} parent=1 // loop_footer_branch
      %8 = sbr.rel target = $region3
    $region8: #{cc_discriminator_p_forward.6} parent=1 // loop_exit
      _

// kernel: cc_discriminator_p_forward.7
$region0: #{cc_discriminator_p_forward.7}
  #allocation0 [shape = 'u32[]', space=smem, size = 0x4, offset = 0x4, fixed_abs, tag = 'smem constant byte address 0x4 - core index']
  #allocation1 [shape = 'u32[144,128]{1,0:T(1,128)}', space=vmem, size = 0x12000, scoped, tag = 'internal scratch']
  #allocation2 [shape = 'f32[1,256]{1,0:T(1,128)}', space=vmem, size = 0x400, scoped, tag = 'scratch operand']
  #allocation3 [shape = 'bf16[5,512]{1,0:T(8,128)(2,1)}', space=vmem, size = 0x2000, scoped, tag = 'scratch operand']
  %s0 = inlined_call_operand.vmem [shape: bf16[4,1,1024], index: 0, kind: input, shape index: {}]
  %s1 = inlined_call_operand.vmem [shape: bf16[5,1024,1024], index: 1, kind: input, shape index: {}]
  %s2 = inlined_call_operand.vmem [shape: f32[1,1024], index: 2, kind: input, shape index: {}]
  %s3 = inlined_call_operand.vmem [shape: bf16[4,1,1024], index: 3, kind: output, shape index: {}]
  %s4 = sld [smem:[#allocation0]]
  $region91: #{cc_discriminator_p_forward.7} parent=0
    _
  %s6 = ssub.s32 1, %s4
  %s7 = scalar_select 0, %s6, %s4
  $region1: #{cc_discriminator_p_forward.7} parent=0
    #allocation4 [shape = 'u8[2621440]{0}', space=vmem, size = 0x280000, scoped, tag = 'input window, operand 1']
    loop: start=0, step=1, limit=34
    $region2: #{cc_discriminator_p_forward.7} parent=1 // loop_pre_header
      _
    $region3: #{cc_discriminator_p_forward.7} parent=1 // loop_header
      %s9 = sphi 0, %s13
      %p10 = scmp.ge.s32.totalorder %s9, 34
      %s16 = sphi 0, %s35
      %s17 = sphi 0, %s31
      %s18 = sphi 0, %s27
      %s19 = sphi 0, %s16
      %s20 = sphi 0, %s17
      %s21 = sphi 0, %s18
      %s22 = sphi 0, %s19
      %s23 = sphi 0, %s20
      %s24 = sphi 0, %s21
      %s40 = sphi 0, %s42
      %s43 = sphi 0, %s40
      %s44 = sphi 0, %s43
      %s60 = sphi 0, %s44
      %s68 = sphi 0, %s70
      %s71 = sphi 0, %s68
      %s72 = sphi 0, %s71
      %s88 = sphi 0, %s72
      %s94 = sphi 0, %s96
      %s97 = sphi 0, %s94
      %s98 = sphi 0, %s97
      %s114 = sphi 0, %s98
      %s122 = sphi 0, %s124
      %s125 = sphi 0, %s122
      %s126 = sphi 0, %s125
      %s142 = sphi 0, %s126
    $region4: #{cc_discriminator_p_forward.7} parent=1 // loop_header_branch
      %12 = sbr.rel (%p10) target = $region8
    $region5: #{cc_discriminator_p_forward.7} parent=1 // loop_body
      %s14 = ssub.s32 %s9, 1
      %s15 = ssub.s32 %s9, 2
      %s25 = sadd.s32 1, %s18
      %p26 = scmp.ge.s32.totalorder %s25, 2
      %s27 = scalar_select %p26, 0, %s25
      %s28 = sadd.s32 1, %s17
      %s29 = scalar_select %p26, %s28, %s17
      %p30 = scmp.ge.s32.totalorder %s29, 4
      %s31 = scalar_select %p30, 0, %s29
      %s32 = sadd.s32 1, %s16
      %s33 = scalar_select %p30, %s32, %s16
      %p34 = scmp.ge.s32.totalorder %s33, 4
      %s35 = scalar_select %p34, 0, %s33
      %s36 = ssub.s32 %s16, %s35
      %s37 = ssub.s32 %s18, %s27
      %s38 = sor.u32 %s36, %s37
      %p39 = scmp.eq.s32.totalorder %s38, 0
      %s41 = sadd.s32 %s40, 1
      %s42 = scalar_select %p39, %s40, %s41
      %p45 = pneg %p39
      %p46 = scmp.eq.s32.totalorder %s9, 31
      %p47 = por %p45, %p46
      %p48 = scmp.ne.s32.totalorder %s40, %s43
      %p49 = scmp.eq.s32.totalorder %s9, 0
      %p50 = por %p48, %p49
      %p51 = scmp.ne.s32.totalorder %s40, %s43
      %p52 = scmp.eq.s32.totalorder %s14, 31
      %p53 = por %p51, %p52
      %p54 = scmp.ne.s32.totalorder %s43, %s44
      %p55 = scmp.eq.s32.totalorder %s14, 0
      %p56 = por %p54, %p55
      %p57 = scmp.ne.s32.totalorder %s43, %s44
      %p58 = scmp.eq.s32.totalorder %s15, 31
      %p59 = por %p57, %p58
      %p61 = scmp.ne.s32.totalorder %s44, %s60
      %p62 = scmp.eq.s32.totalorder %s15, 0
      %p63 = por %p61, %p62
      %s64 = ssub.s32 %s18, %s27
      %s65 = ssub.s32 %s17, %s31
      %s66 = sor.u32 %s64, %s65
      %p67 = scmp.eq.s32.totalorder %s66, 0
      %s69 = sadd.s32 %s68, 1
      %s70 = scalar_select %p67, %s68, %s69
      %p73 = pneg %p67
      %p74 = scmp.eq.s32.totalorder %s9, 31
      %p75 = por %p73, %p74
      %p76 = scmp.ne.s32.totalorder %s68, %s71
      %p77 = scmp.eq.s32.totalorder %s9, 0
      %p78 = por %p76, %p77
      %p79 = scmp.ne.s32.totalorder %s68, %s71
      %p80 = scmp.eq.s32.totalorder %s14, 31
      %p81 = por %p79, %p80
      %p82 = scmp.ne.s32.totalorder %s71, %s72
      %p83 = scmp.eq.s32.totalorder %s14, 0
      %p84 = por %p82, %p83
      %p85 = scmp.ne.s32.totalorder %s71, %s72
      %p86 = scmp.eq.s32.totalorder %s15, 31
      %p87 = por %p85, %p86
      %p89 = scmp.ne.s32.totalorder %s72, %s88
      %p90 = scmp.eq.s32.totalorder %s15, 0
      %p91 = por %p89, %p90
      %s92 = ssub.s32 %s17, %s31
      %p93 = scmp.eq.s32.totalorder %s92, 0
      %s95 = sadd.s32 %s94, 1
      %s96 = scalar_select %p93, %s94, %s95
      %p99 = pneg %p93
      %p100 = scmp.eq.s32.totalorder %s9, 31
      %p101 = por %p99, %p100
      %p102 = scmp.ne.s32.totalorder %s94, %s97
      %p103 = scmp.eq.s32.totalorder %s9, 0
      %p104 = por %p102, %p103
      %p105 = scmp.ne.s32.totalorder %s94, %s97
      %p106 = scmp.eq.s32.totalorder %s14, 31
      %p107 = por %p105, %p106
      %p108 = scmp.ne.s32.totalorder %s97, %s98
      %p109 = scmp.eq.s32.totalorder %s14, 0
      %p110 = por %p108, %p109
      %p111 = scmp.ne.s32.totalorder %s97, %s98
      %p112 = scmp.eq.s32.totalorder %s15, 31
      %p113 = por %p111, %p112
      %p115 = scmp.ne.s32.totalorder %s98, %s114
      %p116 = scmp.eq.s32.totalorder %s15, 0
      %p117 = por %p115, %p116
      %s118 = ssub.s32 %s16, %s35
      %s119 = ssub.s32 %s17, %s31
      %s120 = sor.u32 %s118, %s119
      %p121 = scmp.eq.s32.totalorder %s120, 0
      %s123 = sadd.s32 %s122, 1
      %s124 = scalar_select %p121, %s122, %s123
      %p127 = pneg %p121
      %p128 = scmp.eq.s32.totalorder %s9, 31
      %p129 = por %p127, %p128
      %p130 = scmp.ne.s32.totalorder %s122, %s125
      %p131 = scmp.eq.s32.totalorder %s9, 0
      %p132 = por %p130, %p131
      %p133 = scmp.ne.s32.totalorder %s122, %s125
      %p134 = scmp.eq.s32.totalorder %s14, 31
      %p135 = por %p133, %p134
      %p136 = scmp.ne.s32.totalorder %s125, %s126
      %p137 = scmp.eq.s32.totalorder %s14, 0
      %p138 = por %p136, %p137
      %p139 = scmp.ne.s32.totalorder %s125, %s126
      %p140 = scmp.eq.s32.totalorder %s15, 31
      %p141 = por %p139, %p140
      %p143 = scmp.ne.s32.totalorder %s126, %s142
      %p144 = scmp.eq.s32.totalorder %s15, 0
      %p145 = por %p143, %p144
      %p146 = scmp.le.s32.totalorder 1, %s9
      %p147 = scmp.lt.s32.totalorder %s9, 33
      %p148 = pnand %p146, %p147
      %p149 = pneg %p148
      // Predicated region
      $region9: #{cc_discriminator_p_forward.7} parent=5 // pred_check
        _
      $region10: #{cc_discriminator_p_forward.7} parent=5 // pred_check_branch
        %151 = sbr.rel (%p148) target = $region12
      $region11: #{cc_discriminator_p_forward.7} parent=5 // pred_region
        %s152 = ssub.s32 %s9, 1
      $region12: #{cc_discriminator_p_forward.7} parent=5 // pred_fallthru
        _
      %p153 = scmp.lt.s32.totalorder %s9, 32
      // Predicated region
      $region13: #{cc_discriminator_p_forward.7} parent=5 // pred_check
        %p154 = pneg %p153
      $region14: #{cc_discriminator_p_forward.7} parent=5 // pred_check_branch
        %156 = sbr.rel (%p154) target = $region16
      $region15: #{cc_discriminator_p_forward.7} parent=5 // pred_region
        // Predicated region
        $region17: #{cc_discriminator_p_forward.7} parent=15 // pred_check
          %p157 = pneg %p50
        $region18: #{cc_discriminator_p_forward.7} parent=15 // pred_check_branch
          %159 = sbr.rel (%p157) target = $region20
        $region19: #{cc_discriminator_p_forward.7} parent=15 // pred_region
          %s160 = smul.u32 4, %s18
          %p161 = scmp.lt.s32.totalorder %s16, 3
          %s162 = scalar_select %p161, %s16, 3
          %p163 = scmp.lt.s32.totalorder %s160, 7
          %s164 = scalar_select %p163, %s160, 7
          %s165 = smul.addr %s162, 8
          %s166 = sadd.s32 %s164, %s165
          %s167 = scalar_lea.vmem %s0, %s166
          %s168 = smul.u32 4, %s18
        $region20: #{cc_discriminator_p_forward.7} parent=15 // pred_fallthru
          _
        // Predicated region
        $region21: #{cc_discriminator_p_forward.7} parent=15 // pred_check
          %p169 = pneg %p78
        $region22: #{cc_discriminator_p_forward.7} parent=15 // pred_check_branch
          %171 = sbr.rel (%p169) target = $region24
        $region23: #{cc_discriminator_p_forward.7} parent=15 // pred_region
          %s172 = sand.u32 %s68, 1
          %s173 = sand.u32 %s68, 1
          %s174 = smul.addr %s173, 2560
          %s175 = scalar_lea.vmem [#allocation4], %s174
          %s176 = smul.u32 64, %s18
          %s177 = smul.u32 2, %s17
          %s178 = smul.addr %s176, 8
          %s179 = sadd.s32 %s177, %s178
          %s180 = smul.addr %s179, 4
          %s181 = scalar_lea.vmem %s1, %s180
          // Predicated region
          $region25: #{cc_discriminator_p_forward.7} parent=23 // pred_check
            _
          $region26: #{cc_discriminator_p_forward.7} parent=23 // pred_check_branch
            %183 = sbr.rel (0) target = $region28
          $region27: #{cc_discriminator_p_forward.7} parent=23 // pred_region
            // Predicated region
            $region29: #{cc_discriminator_p_forward.7} parent=27 // pred_check
              _
            $region30: #{cc_discriminator_p_forward.7} parent=27 // pred_check_branch
              %185 = sbr.rel (0) target = $region32
            $region31: #{cc_discriminator_p_forward.7} parent=27 // pred_region
              // Predicated region
              $region44: #{cc_discriminator_p_forward.7} parent=31 // pred_check
                _
              $region45: #{cc_discriminator_p_forward.7} parent=31 // pred_check_branch
                %838 = sbr.rel (0) target = $region47
              $region46: #{cc_discriminator_p_forward.7} parent=31 // pred_region
                loop: start=0, step=1, limit=1
                $region48: #{cc_discriminator_p_forward.7} parent=46 // loop_pre_header
                  _
                $region49: #{cc_discriminator_p_forward.7} parent=46 // loop_header
                  %s840 = sphi 0, %s844
                  %p841 = scmp.ge.s32.totalorder %s840, 1
                  %s845 = sphi %s181, %s181
                  %s846 = sphi %s175, %s175
                $region50: #{cc_discriminator_p_forward.7} parent=46 // loop_header_branch
                  %843 = sbr.rel (%p841) target = $region54
                $region51: #{cc_discriminator_p_forward.7} parent=46 // loop_body
                  %v847 = vld [vmem:[%s845] sm:$0xff]
                  %848 = vst [vmem:[%s846] sm:$0xff] %v847
                  %v849 = vld [vmem:[%s845 + $0x20] sm:$0xff]
                  %850 = vst [vmem:[%s846 + $0x8] sm:$0xff] %v849
                  %v851 = vld [vmem:[%s845 + $0x40] sm:$0xff]
                  %852 = vst [vmem:[%s846 + $0x10] sm:$0xff] %v851
                  %v853 = vld [vmem:[%s845 + $0x60] sm:$0xff]
                  %854 = vst [vmem:[%s846 + $0x18] sm:$0xff] %v853
                  %v855 = vld [vmem:[%s845 + $0x80] sm:$0xff]
                  %856 = vst [vmem:[%s846 + $0x20] sm:$0xff] %v855
                  %v857 = vld [vmem:[%s845 + $0xa0] sm:$0xff]
                  %858 = vst [vmem:[%s846 + $0x28] sm:$0xff] %v857
                  %v859 = vld [vmem:[%s845 + $0xc0] sm:$0xff]
                  %860 = vst [vmem:[%s846 + $0x30] sm:$0xff] %v859
                  %v861 = vld [vmem:[%s845 + $0xe0] sm:$0xff]
                  %862 = vst [vmem:[%s846 + $0x38] sm:$0xff] %v861
                  %v863 = vld [vmem:[%s845 + $0x100] sm:$0xff]
                  %864 = vst [vmem:[%s846 + $0x40] sm:$0xff] %v863
                  %v865 = vld [vmem:[%s845 + $0x120] sm:$0xff]
                  %866 = vst [vmem:[%s846 + $0x48] sm:$0xff] %v865
                  %v867 = vld [vmem:[%s845 + $0x140] sm:$0xff]
                  %868 = vst [vmem:[%s846 + $0x50] sm:$0xff] %v867
                  %v869 = vld [vmem:[%s845 + $0x160] sm:$0xff]
                  %870 = vst [vmem:[%s846 + $0x58] sm:$0xff] %v869
                  %v871 = vld [vmem:[%s845 + $0x180] sm:$0xff]
                  %872 = vst [vmem:[%s846 + $0x60] sm:$0xff] %v871
                  %v873 = vld [vmem:[%s845 + $0x1a0] sm:$0xff]
                  %874 = vst [vmem:[%s846 + $0x68] sm:$0xff] %v873
                  %v875 = vld [vmem:[%s845 + $0x1c0] sm:$0xff]
                  %876 = vst [vmem:[%s846 + $0x70] sm:$0xff] %v875
                  %v877 = vld [vmem:[%s845 + $0x1e0] sm:$0xff]
                  %878 = vst [vmem:[%s846 + $0x78] sm:$0xff] %v877
                  %v879 = vld [vmem:[%s845 + $0x200] sm:$0xff]
                  %880 = vst [vmem:[%s846 + $0x80] sm:$0xff] %v879
                  %v881 = vld [vmem:[%s845 + $0x220] sm:$0xff]
                  %882 = vst [vmem:[%s846 + $0x88] sm:$0xff] %v881
                  %v883 = vld [vmem:[%s845 + $0x240] sm:$0xff]
                  %884 = vst [vmem:[%s846 + $0x90] sm:$0xff] %v883
                  %v885 = vld [vmem:[%s845 + $0x260] sm:$0xff]
                  %886 = vst [vmem:[%s846 + $0x98] sm:$0xff] %v885
                  %v887 = vld [vmem:[%s845 + $0x280] sm:$0xff]
                  %888 = vst [vmem:[%s846 + $0xa0] sm:$0xff] %v887
                  %v889 = vld [vmem:[%s845 + $0x2a0] sm:$0xff]
                  %890 = vst [vmem:[%s846 + $0xa8] sm:$0xff] %v889
                  %v891 = vld [vmem:[%s845 + $0x2c0] sm:$0xff]
                  %892 = vst [vmem:[%s846 + $0xb0] sm:$0xff] %v891
                  %v893 = vld [vmem:[%s845 + $0x2e0] sm:$0xff]
                  %894 = vst [vmem:[%s846 + $0xb8] sm:$0xff] %v893
                  %v895 = vld [vmem:[%s845 + $0x300] sm:$0xff]
                  %896 = vst [vmem:[%s846 + $0xc0] sm:$0xff] %v895
                  %v897 = vld [vmem:[%s845 + $0x320] sm:$0xff]
                  %898 = vst [vmem:[%s846 + $0xc8] sm:$0xff] %v897
                  %v899 = vld [vmem:[%s845 + $0x340] sm:$0xff]
                  %900 = vst [vmem:[%s846 + $0xd0] sm:$0xff] %v899
                  %v901 = vld [vmem:[%s845 + $0x360] sm:$0xff]
                  %902 = vst [vmem:[%s846 + $0xd8] sm:$0xff] %v901
                  %v903 = vld [vmem:[%s845 + $0x380] sm:$0xff]
                  %904 = vst [vmem:[%s846 + $0xe0] sm:$0xff] %v903
                  %v905 = vld [vmem:[%s845 + $0x3a0] sm:$0xff]
                  %906 = vst [vmem:[%s846 + $0xe8] sm:$0xff] %v905
                  %v907 = vld [vmem:[%s845 + $0x3c0] sm:$0xff]
                  %908 = vst [vmem:[%s846 + $0xf0] sm:$0xff] %v907
                  %v909 = vld [vmem:[%s845 + $0x3e0] sm:$0xff]
                  %910 = vst [vmem:[%s846 + $0xf8] sm:$0xff] %v909
                  %v911 = vld [vmem:[%s845 + $0x400] sm:$0xff]
                  %912 = vst [vmem:[%s846 + $0x100] sm:$0xff] %v911
                  %v913 = vld [vmem:[%s845 + $0x420] sm:$0xff]
                  %914 = vst [vmem:[%s846 + $0x108] sm:$0xff] %v913
                  %v915 = vld [vmem:[%s845 + $0x440] sm:$0xff]
                  %916 = vst [vmem:[%s846 + $0x110] sm:$0xff] %v915
                  %v917 = vld [vmem:[%s845 + $0x460] sm:$0xff]
                  %918 = vst [vmem:[%s846 + $0x118] sm:$0xff] %v917
                  %v919 = vld [vmem:[%s845 + $0x480] sm:$0xff]
                  %920 = vst [vmem:[%s846 + $0x120] sm:$0xff] %v919
                  %v921 = vld [vmem:[%s845 + $0x4a0] sm:$0xff]
                  %922 = vst [vmem:[%s846 + $0x128] sm:$0xff] %v921
                  %v923 = vld [vmem:[%s845 + $0x4c0] sm:$0xff]
                  %924 = vst [vmem:[%s846 + $0x130] sm:$0xff] %v923
                  %v925 = vld [vmem:[%s845 + $0x4e0] sm:$0xff]
                  %926 = vst [vmem:[%s846 + $0x138] sm:$0xff] %v925
                  %v927 = vld [vmem:[%s845 + $0x500] sm:$0xff]
                  %928 = vst [vmem:[%s846 + $0x140] sm:$0xff] %v927
                  %v929 = vld [vmem:[%s845 + $0x520] sm:$0xff]
                  %930 = vst [vmem:[%s846 + $0x148] sm:$0xff] %v929
                  %v931 = vld [vmem:[%s845 + $0x540] sm:$0xff]
                  %932 = vst [vmem:[%s846 + $0x150] sm:$0xff] %v931
                  %v933 = vld [vmem:[%s845 + $0x560] sm:$0xff]
                  %934 = vst [vmem:[%s846 + $0x158] sm:$0xff] %v933
                  %v935 = vld [vmem:[%s845 + $0x580] sm:$0xff]
                  %936 = vst [vmem:[%s846 + $0x160] sm:$0xff] %v935
                  %v937 = vld [vmem:[%s845 + $0x5a0] sm:$0xff]
                  %938 = vst [vmem:[%s846 + $0x168] sm:$0xff] %v937
                  %v939 = vld [vmem:[%s845 + $0x5c0] sm:$0xff]
                  %940 = vst [vmem:[%s846 + $0x170] sm:$0xff] %v939
                  %v941 = vld [vmem:[%s845 + $0x5e0] sm:$0xff]
                  %942 = vst [vmem:[%s846 + $0x178] sm:$0xff] %v941
                  %v943 = vld [vmem:[%s845 + $0x600] sm:$0xff]
                  %944 = vst [vmem:[%s846 + $0x180] sm:$0xff] %v943
                  %v945 = vld [vmem:[%s845 + $0x620] sm:$0xff]
                  %946 = vst [vmem:[%s846 + $0x188] sm:$0xff] %v945
                  %v947 = vld [vmem:[%s845 + $0x640] sm:$0xff]
                  %948 = vst [vmem:[%s846 + $0x190] sm:$0xff] %v947
                  %v949 = vld [vmem:[%s845 + $0x660] sm:$0xff]
                  %950 = vst [vmem:[%s846 + $0x198] sm:$0xff] %v949
                  %v951 = vld [vmem:[%s845 + $0x680] sm:$0xff]
                  %952 = vst [vmem:[%s846 + $0x1a0] sm:$0xff] %v951
                  %v953 = vld [vmem:[%s845 + $0x6a0] sm:$0xff]
                  %954 = vst [vmem:[%s846 + $0x1a8] sm:$0xff] %v953
                  %v955 = vld [vmem:[%s845 + $0x6c0] sm:$0xff]
                  %956 = vst [vmem:[%s846 + $0x1b0] sm:$0xff] %v955
                  %v957 = vld [vmem:[%s845 + $0x6e0] sm:$0xff]
                  %958 = vst [vmem:[%s846 + $0x1b8] sm:$0xff] %v957
                  %v959 = vld [vmem:[%s845 + $0x700] sm:$0xff]
                  %960 = vst [vmem:[%s846 + $0x1c0] sm:$0xff] %v959
                  %v961 = vld [vmem:[%s845 + $0x720] sm:$0xff]
                  %962 = vst [vmem:[%s846 + $0x1c8] sm:$0xff] %v961
                  %v963 = vld [vmem:[%s845 + $0x740] sm:$0xff]
                  %964 = vst [vmem:[%s846 + $0x1d0] sm:$0xff] %v963
                  %v965 = vld [vmem:[%s845 + $0x760] sm:$0xff]
                  %966 = vst [vmem:[%s846 + $0x1d8] sm:$0xff] %v965
                  %v967 = vld [vmem:[%s845 + $0x780] sm:$0xff]
                  %968 = vst [vmem:[%s846 + $0x1e0] sm:$0xff] %v967
                  %v969 = vld [vmem:[%s845 + $0x7a0] sm:$0xff]
                  %970 = vst [vmem:[%s846 + $0x1e8] sm:$0xff] %v969
                  %v971 = vld [vmem:[%s845 + $0x7c0] sm:$0xff]
                  %972 = vst [vmem:[%s846 + $0x1f0] sm:$0xff] %v971
                  %v973 = vld [vmem:[%s845 + $0x7e0] sm:$0xff]
                  %974 = vst [vmem:[%s846 + $0x1f8] sm:$0xff] %v973
                  %v975 = vld [vmem:[%s845 + $0x1000] sm:$0xff]
                  %976 = vst [vmem:[%s846 + $0x200] sm:$0xff] %v975
                  %v977 = vld [vmem:[%s845 + $0x1020] sm:$0xff]
                  %978 = vst [vmem:[%s846 + $0x208] sm:$0xff] %v977
                  %v979 = vld [vmem:[%s845 + $0x1040] sm:$0xff]
                  %980 = vst [vmem:[%s846 + $0x210] sm:$0xff] %v979
                  %v981 = vld [vmem:[%s845 + $0x1060] sm:$0xff]
                  %982 = vst [vmem:[%s846 + $0x218] sm:$0xff] %v981
                  %v983 = vld [vmem:[%s845 + $0x1080] sm:$0xff]
                  %984 = vst [vmem:[%s846 + $0x220] sm:$0xff] %v983
                  %v985 = vld [vmem:[%s845 + $0x10a0] sm:$0xff]
                  %986 = vst [vmem:[%s846 + $0x228] sm:$0xff] %v985
                  %v987 = vld [vmem:[%s845 + $0x10c0] sm:$0xff]
                  %988 = vst [vmem:[%s846 + $0x230] sm:$0xff] %v987
                  %v989 = vld [vmem:[%s845 + $0x10e0] sm:$0xff]
                  %990 = vst [vmem:[%s846 + $0x238] sm:$0xff] %v989
                  %v991 = vld [vmem:[%s845 + $0x1100] sm:$0xff]
                  %992 = vst [vmem:[%s846 + $0x240] sm:$0xff] %v991
                  %v993 = vld [vmem:[%s845 + $0x1120] sm:$0xff]
                  %994 = vst [vmem:[%s846 + $0x248] sm:$0xff] %v993
                  %v995 = vld [vmem:[%s845 + $0x1140] sm:$0xff]
                  %996 = vst [vmem:[%s846 + $0x250] sm:$0xff] %v995
                  %v997 = vld [vmem:[%s845 + $0x1160] sm:$0xff]
                  %998 = vst [vmem:[%s846 + $0x258] sm:$0xff] %v997
                  %v999 = vld [vmem:[%s845 + $0x1180] sm:$0xff]
                  %1000 = vst [vmem:[%s846 + $0x260] sm:$0xff] %v999
                  %v1001 = vld [vmem:[%s845 + $0x11a0] sm:$0xff]
                  %1002 = vst [vmem:[%s846 + $0x268] sm:$0xff] %v1001
                  %v1003 = vld [vmem:[%s845 + $0x11c0] sm:$0xff]
                  %1004 = vst [vmem:[%s846 + $0x270] sm:$0xff] %v1003
                  %v1005 = vld [vmem:[%s845 + $0x11e0] sm:$0xff]
                  %1006 = vst [vmem:[%s846 + $0x278] sm:$0xff] %v1005
                  %v1007 = vld [vmem:[%s845 + $0x1200] sm:$0xff]
                  %1008 = vst [vmem:[%s846 + $0x280] sm:$0xff] %v1007
                  %v1009 = vld [vmem:[%s845 + $0x1220] sm:$0xff]
                  %1010 = vst [vmem:[%s846 + $0x288] sm:$0xff] %v1009
                  %v1011 = vld [vmem:[%s845 + $0x1240] sm:$0xff]
                  %1012 = vst [vmem:[%s846 + $0x290] sm:$0xff] %v1011
                  %v1013 = vld [vmem:[%s845 + $0x1260] sm:$0xff]
                  %1014 = vst [vmem:[%s846 + $0x298] sm:$0xff] %v1013
                  %v1015 = vld [vmem:[%s845 + $0x1280] sm:$0xff]
                  %1016 = vst [vmem:[%s846 + $0x2a0] sm:$0xff] %v1015
                  %v1017 = vld [vmem:[%s845 + $0x12a0] sm:$0xff]
                  %1018 = vst [vmem:[%s846 + $0x2a8] sm:$0xff] %v1017
                  %v1019 = vld [vmem:[%s845 + $0x12c0] sm:$0xff]
                  %1020 = vst [vmem:[%s846 + $0x2b0] sm:$0xff] %v1019
                  %v1021 = vld [vmem:[%s845 + $0x12e0] sm:$0xff]
                  %1022 = vst [vmem:[%s846 + $0x2b8] sm:$0xff] %v1021
                  %v1023 = vld [vmem:[%s845 + $0x1300] sm:$0xff]
                  %1024 = vst [vmem:[%s846 + $0x2c0] sm:$0xff] %v1023
                  %v1025 = vld [vmem:[%s845 + $0x1320] sm:$0xff]
                  %1026 = vst [vmem:[%s846 + $0x2c8] sm:$0xff] %v1025
                  %v1027 = vld [vmem:[%s845 + $0x1340] sm:$0xff]
                  %1028 = vst [vmem:[%s846 + $0x2d0] sm:$0xff] %v1027
                  %v1029 = vld [vmem:[%s845 + $0x1360] sm:$0xff]
                  %1030 = vst [vmem:[%s846 + $0x2d8] sm:$0xff] %v1029
                  %v1031 = vld [vmem:[%s845 + $0x1380] sm:$0xff]
                  %1032 = vst [vmem:[%s846 + $0x2e0] sm:$0xff] %v1031
                  %v1033 = vld [vmem:[%s845 + $0x13a0] sm:$0xff]
                  %1034 = vst [vmem:[%s846 + $0x2e8] sm:$0xff] %v1033
                  %v1035 = vld [vmem:[%s845 + $0x13c0] sm:$0xff]
                  %1036 = vst [vmem:[%s846 + $0x2f0] sm:$0xff] %v1035
                  %v1037 = vld [vmem:[%s845 + $0x13e0] sm:$0xff]
                  %1038 = vst [vmem:[%s846 + $0x2f8] sm:$0xff] %v1037
                  %v1039 = vld [vmem:[%s845 + $0x1400] sm:$0xff]
                  %1040 = vst [vmem:[%s846 + $0x300] sm:$0xff] %v1039
                  %v1041 = vld [vmem:[%s845 + $0x1420] sm:$0xff]
                  %1042 = vst [vmem:[%s846 + $0x308] sm:$0xff] %v1041
                  %v1043 = vld [vmem:[%s845 + $0x1440] sm:$0xff]
                  %1044 = vst [vmem:[%s846 + $0x310] sm:$0xff] %v1043
                  %v1045 = vld [vmem:[%s845 + $0x1460] sm:$0xff]
                  %1046 = vst [vmem:[%s846 + $0x318] sm:$0xff] %v1045
                  %v1047 = vld [vmem:[%s845 + $0x1480] sm:$0xff]
                  %1048 = vst [vmem:[%s846 + $0x320] sm:$0xff] %v1047
                  %v1049 = vld [vmem:[%s845 + $0x14a0] sm:$0xff]
                  %1050 = vst [vmem:[%s846 + $0x328] sm:$0xff] %v1049
                  %v1051 = vld [vmem:[%s845 + $0x14c0] sm:$0xff]
                  %1052 = vst [vmem:[%s846 + $0x330] sm:$0xff] %v1051
                  %v1053 = vld [vmem:[%s845 + $0x14e0] sm:$0xff]
                  %1054 = vst [vmem:[%s846 + $0x338] sm:$0xff] %v1053
                  %v1055 = vld [vmem:[%s845 + $0x1500] sm:$0xff]
                  %1056 = vst [vmem:[%s846 + $0x340] sm:$0xff] %v1055
                  %v1057 = vld [vmem:[%s845 + $0x1520] sm:$0xff]
                  %1058 = vst [vmem:[%s846 + $0x348] sm:$0xff] %v1057
                  %v1059 = vld [vmem:[%s845 + $0x1540] sm:$0xff]
                  %1060 = vst [vmem:[%s846 + $0x350] sm:$0xff] %v1059
                  %v1061 = vld [vmem:[%s845 + $0x1560] sm:$0xff]
                  %1062 = vst [vmem:[%s846 + $0x358] sm:$0xff] %v1061
                  %v1063 = vld [vmem:[%s845 + $0x1580] sm:$0xff]
                  %1064 = vst [vmem:[%s846 + $0x360] sm:$0xff] %v1063
                  %v1065 = vld [vmem:[%s845 + $0x15a0] sm:$0xff]
                  %1066 = vst [vmem:[%s846 + $0x368] sm:$0xff] %v1065
                  %v1067 = vld [vmem:[%s845 + $0x15c0] sm:$0xff]
                  %1068 = vst [vmem:[%s846 + $0x370] sm:$0xff] %v1067
                  %v1069 = vld [vmem:[%s845 + $0x15e0] sm:$0xff]
                  %1070 = vst [vmem:[%s846 + $0x378] sm:$0xff] %v1069
                  %v1071 = vld [vmem:[%s845 + $0x1600] sm:$0xff]
                  %1072 = vst [vmem:[%s846 + $0x380] sm:$0xff] %v1071
                  %v1073 = vld [vmem:[%s845 + $0x1620] sm:$0xff]
                  %1074 = vst [vmem:[%s846 + $0x388] sm:$0xff] %v1073
                  %v1075 = vld [vmem:[%s845 + $0x1640] sm:$0xff]
                  %1076 = vst [vmem:[%s846 + $0x390] sm:$0xff] %v1075
                  %v1077 = vld [vmem:[%s845 + $0x1660] sm:$0xff]
                  %1078 = vst [vmem:[%s846 + $0x398] sm:$0xff] %v1077
                  %v1079 = vld [vmem:[%s845 + $0x1680] sm:$0xff]
                  %1080 = vst [vmem:[%s846 + $0x3a0] sm:$0xff] %v1079
                  %v1081 = vld [vmem:[%s845 + $0x16a0] sm:$0xff]
                  %1082 = vst [vmem:[%s846 + $0x3a8] sm:$0xff] %v1081
                  %v1083 = vld [vmem:[%s845 + $0x16c0] sm:$0xff]
                  %1084 = vst [vmem:[%s846 + $0x3b0] sm:$0xff] %v1083
                  %v1085 = vld [vmem:[%s845 + $0x16e0] sm:$0xff]
                  %1086 = vst [vmem:[%s846 + $0x3b8] sm:$0xff] %v1085
                  %v1087 = vld [vmem:[%s845 + $0x1700] sm:$0xff]
                  %1088 = vst [vmem:[%s846 + $0x3c0] sm:$0xff] %v1087
                  %v1089 = vld [vmem:[%s845 + $0x1720] sm:$0xff]
                  %1090 = vst [vmem:[%s846 + $0x3c8] sm:$0xff] %v1089
                  %v1091 = vld [vmem:[%s845 + $0x1740] sm:$0xff]
                  %1092 = vst [vmem:[%s846 + $0x3d0] sm:$0xff] %v1091
                  %v1093 = vld [vmem:[%s845 + $0x1760] sm:$0xff]
                  %1094 = vst [vmem:[%s846 + $0x3d8] sm:$0xff] %v1093
                  %v1095 = vld [vmem:[%s845 + $0x1780] sm:$0xff]
                  %1096 = vst [vmem:[%s846 + $0x3e0] sm:$0xff] %v1095
                  %v1097 = vld [vmem:[%s845 + $0x17a0] sm:$0xff]
                  %1098 = vst [vmem:[%s846 + $0x3e8] sm:$0xff] %v1097
                  %v1099 = vld [vmem:[%s845 + $0x17c0] sm:$0xff]
                  %1100 = vst [vmem:[%s846 + $0x3f0] sm:$0xff] %v1099
                  %v1101 = vld [vmem:[%s845 + $0x17e0] sm:$0xff]
                  %1102 = vst [vmem:[%s846 + $0x3f8] sm:$0xff] %v1101
                  %v1103 = vld [vmem:[%s845 + $0x2000] sm:$0xff]
                  %1104 = vst [vmem:[%s846 + $0x400] sm:$0xff] %v1103
                  %v1105 = vld [vmem:[%s845 + $0x2020] sm:$0xff]
                  %1106 = vst [vmem:[%s846 + $0x408] sm:$0xff] %v1105
                  %v1107 = vld [vmem:[%s845 + $0x2040] sm:$0xff]
                  %1108 = vst [vmem:[%s846 + $0x410] sm:$0xff] %v1107
                  %v1109 = vld [vmem:[%s845 + $0x2060] sm:$0xff]
                  %1110 = vst [vmem:[%s846 + $0x418] sm:$0xff] %v1109
                  %v1111 = vld [vmem:[%s845 + $0x2080] sm:$0xff]
                  %1112 = vst [vmem:[%s846 + $0x420] sm:$0xff] %v1111
                  %v1113 = vld [vmem:[%s845 + $0x20a0] sm:$0xff]
                  %1114 = vst [vmem:[%s846 + $0x428] sm:$0xff] %v1113
                  %v1115 = vld [vmem:[%s845 + $0x20c0] sm:$0xff]
                  %1116 = vst [vmem:[%s846 + $0x430] sm:$0xff] %v1115
                  %v1117 = vld [vmem:[%s845 + $0x20e0] sm:$0xff]
                  %1118 = vst [vmem:[%s846 + $0x438] sm:$0xff] %v1117
                  %v1119 = vld [vmem:[%s845 + $0x2100] sm:$0xff]
                  %1120 = vst [vmem:[%s846 + $0x440] sm:$0xff] %v1119
                  %v1121 = vld [vmem:[%s845 + $0x2120] sm:$0xff]
                  %1122 = vst [vmem:[%s846 + $0x448] sm:$0xff] %v1121
                  %v1123 = vld [vmem:[%s845 + $0x2140] sm:$0xff]
                  %1124 = vst [vmem:[%s846 + $0x450] sm:$0xff] %v1123
                  %v1125 = vld [vmem:[%s845 + $0x2160] sm:$0xff]
                  %1126 = vst [vmem:[%s846 + $0x458] sm:$0xff] %v1125
                  %v1127 = vld [vmem:[%s845 + $0x2180] sm:$0xff]
                  %1128 = vst [vmem:[%s846 + $0x460] sm:$0xff] %v1127
                  %v1129 = vld [vmem:[%s845 + $0x21a0] sm:$0xff]
                  %1130 = vst [vmem:[%s846 + $0x468] sm:$0xff] %v1129
                  %v1131 = vld [vmem:[%s845 + $0x21c0] sm:$0xff]
                  %1132 = vst [vmem:[%s846 + $0x470] sm:$0xff] %v1131
                  %v1133 = vld [vmem:[%s845 + $0x21e0] sm:$0xff]
                  %1134 = vst [vmem:[%s846 + $0x478] sm:$0xff] %v1133
                  %v1135 = vld [vmem:[%s845 + $0x2200] sm:$0xff]
                  %1136 = vst [vmem:[%s846 + $0x480] sm:$0xff] %v1135
                  %v1137 = vld [vmem:[%s845 + $0x2220] sm:$0xff]
                  %1138 = vst [vmem:[%s846 + $0x488] sm:$0xff] %v1137
                  %v1139 = vld [vmem:[%s845 + $0x2240] sm:$0xff]
                  %1140 = vst [vmem:[%s846 + $0x490] sm:$0xff] %v1139
                  %v1141 = vld [vmem:[%s845 + $0x2260] sm:$0xff]
                  %1142 = vst [vmem:[%s846 + $0x498] sm:$0xff] %v1141
                  %v1143 = vld [vmem:[%s845 + $0x2280] sm:$0xff]
                  %1144 = vst [vmem:[%s846 + $0x4a0] sm:$0xff] %v1143
                  %v1145 = vld [vmem:[%s845 + $0x22a0] sm:$0xff]
                  %1146 = vst [vmem:[%s846 + $0x4a8] sm:$0xff] %v1145
                  %v1147 = vld [vmem:[%s845 + $0x22c0] sm:$0xff]
                  %1148 = vst [vmem:[%s846 + $0x4b0] sm:$0xff] %v1147
                  %v1149 = vld [vmem:[%s845 + $0x22e0] sm:$0xff]
                  %1150 = vst [vmem:[%s846 + $0x4b8] sm:$0xff] %v1149
                  %v1151 = vld [vmem:[%s845 + $0x2300] sm:$0xff]
                  %1152 = vst [vmem:[%s846 + $0x4c0] sm:$0xff] %v1151
                  %v1153 = vld [vmem:[%s845 + $0x2320] sm:$0xff]
                  %1154 = vst [vmem:[%s846 + $0x4c8] sm:$0xff] %v1153
                  %v1155 = vld [vmem:[%s845 + $0x2340] sm:$0xff]
                  %1156 = vst [vmem:[%s846 + $0x4d0] sm:$0xff] %v1155
                  %v1157 = vld [vmem:[%s845 + $0x2360] sm:$0xff]
                  %1158 = vst [vmem:[%s846 + $0x4d8] sm:$0xff] %v1157
                  %v1159 = vld [vmem:[%s845 + $0x2380] sm:$0xff]
                  %1160 = vst [vmem:[%s846 + $0x4e0] sm:$0xff] %v1159
                  %v1161 = vld [vmem:[%s845 + $0x23a0] sm:$0xff]
                  %1162 = vst [vmem:[%s846 + $0x4e8] sm:$0xff] %v1161
                  %v1163 = vld [vmem:[%s845 + $0x23c0] sm:$0xff]
                  %1164 = vst [vmem:[%s846 + $0x4f0] sm:$0xff] %v1163
                  %v1165 = vld [vmem:[%s845 + $0x23e0] sm:$0xff]
                  %1166 = vst [vmem:[%s846 + $0x4f8] sm:$0xff] %v1165
                  %v1167 = vld [vmem:[%s845 + $0x2400] sm:$0xff]
                  %1168 = vst [vmem:[%s846 + $0x500] sm:$0xff] %v1167
                  %v1169 = vld [vmem:[%s845 + $0x2420] sm:$0xff]
                  %1170 = vst [vmem:[%s846 + $0x508] sm:$0xff] %v1169
                  %v1171 = vld [vmem:[%s845 + $0x2440] sm:$0xff]
                  %1172 = vst [vmem:[%s846 + $0x510] sm:$0xff] %v1171
                  %v1173 = vld [vmem:[%s845 + $0x2460] sm:$0xff]
                  %1174 = vst [vmem:[%s846 + $0x518] sm:$0xff] %v1173
                  %v1175 = vld [vmem:[%s845 + $0x2480] sm:$0xff]
                  %1176 = vst [vmem:[%s846 + $0x520] sm:$0xff] %v1175
                  %v1177 = vld [vmem:[%s845 + $0x24a0] sm:$0xff]
                  %1178 = vst [vmem:[%s846 + $0x528] sm:$0xff] %v1177
                  %v1179 = vld [vmem:[%s845 + $0x24c0] sm:$0xff]
                  %1180 = vst [vmem:[%s846 + $0x530] sm:$0xff] %v1179
                  %v1181 = vld [vmem:[%s845 + $0x24e0] sm:$0xff]
                  %1182 = vst [vmem:[%s846 + $0x538] sm:$0xff] %v1181
                  %v1183 = vld [vmem:[%s845 + $0x2500] sm:$0xff]
                  %1184 = vst [vmem:[%s846 + $0x540] sm:$0xff] %v1183
                  %v1185 = vld [vmem:[%s845 + $0x2520] sm:$0xff]
                  %1186 = vst [vmem:[%s846 + $0x548] sm:$0xff] %v1185
                  %v1187 = vld [vmem:[%s845 + $0x2540] sm:$0xff]
                  %1188 = vst [vmem:[%s846 + $0x550] sm:$0xff] %v1187
                  %v1189 = vld [vmem:[%s845 + $0x2560] sm:$0xff]
                  %1190 = vst [vmem:[%s846 + $0x558] sm:$0xff] %v1189
                  %v1191 = vld [vmem:[%s845 + $0x2580] sm:$0xff]
                  %1192 = vst [vmem:[%s846 + $0x560] sm:$0xff] %v1191
                  %v1193 = vld [vmem:[%s845 + $0x25a0] sm:$0xff]
                  %1194 = vst [vmem:[%s846 + $0x568] sm:$0xff] %v1193
                  %v1195 = vld [vmem:[%s845 + $0x25c0] sm:$0xff]
                  %1196 = vst [vmem:[%s846 + $0x570] sm:$0xff] %v1195
                  %v1197 = vld [vmem:[%s845 + $0x25e0] sm:$0xff]
                  %1198 = vst [vmem:[%s846 + $0x578] sm:$0xff] %v1197
                  %v1199 = vld [vmem:[%s845 + $0x2600] sm:$0xff]
                  %1200 = vst [vmem:[%s846 + $0x580] sm:$0xff] %v1199
                  %v1201 = vld [vmem:[%s845 + $0x2620] sm:$0xff]
                  %1202 = vst [vmem:[%s846 + $0x588] sm:$0xff] %v1201
                  %v1203 = vld [vmem:[%s845 + $0x2640] sm:$0xff]
                  %1204 = vst [vmem:[%s846 + $0x590] sm:$0xff] %v1203
                  %v1205 = vld [vmem:[%s845 + $0x2660] sm:$0xff]
                  %1206 = vst [vmem:[%s846 + $0x598] sm:$0xff] %v1205
                  %v1207 = vld [vmem:[%s845 + $0x2680] sm:$0xff]
                  %1208 = vst [vmem:[%s846 + $0x5a0] sm:$0xff] %v1207
                  %v1209 = vld [vmem:[%s845 + $0x26a0] sm:$0xff]
                  %1210 = vst [vmem:[%s846 + $0x5a8] sm:$0xff] %v1209
                  %v1211 = vld [vmem:[%s845 + $0x26c0] sm:$0xff]
                  %1212 = vst [vmem:[%s846 + $0x5b0] sm:$0xff] %v1211
                  %v1213 = vld [vmem:[%s845 + $0x26e0] sm:$0xff]
                  %1214 = vst [vmem:[%s846 + $0x5b8] sm:$0xff] %v1213
                  %v1215 = vld [vmem:[%s845 + $0x2700] sm:$0xff]
                  %1216 = vst [vmem:[%s846 + $0x5c0] sm:$0xff] %v1215
                  %v1217 = vld [vmem:[%s845 + $0x2720] sm:$0xff]
                  %1218 = vst [vmem:[%s846 + $0x5c8] sm:$0xff] %v1217
                  %v1219 = vld [vmem:[%s845 + $0x2740] sm:$0xff]
                  %1220 = vst [vmem:[%s846 + $0x5d0] sm:$0xff] %v1219
                  %v1221 = vld [vmem:[%s845 + $0x2760] sm:$0xff]
                  %1222 = vst [vmem:[%s846 + $0x5d8] sm:$0xff] %v1221
                  %v1223 = vld [vmem:[%s845 + $0x2780] sm:$0xff]
                  %1224 = vst [vmem:[%s846 + $0x5e0] sm:$0xff] %v1223
                  %v1225 = vld [vmem:[%s845 + $0x27a0] sm:$0xff]
                  %1226 = vst [vmem:[%s846 + $0x5e8] sm:$0xff] %v1225
                  %v1227 = vld [vmem:[%s845 + $0x27c0] sm:$0xff]
                  %1228 = vst [vmem:[%s846 + $0x5f0] sm:$0xff] %v1227
                  %v1229 = vld [vmem:[%s845 + $0x27e0] sm:$0xff]
                  %1230 = vst [vmem:[%s846 + $0x5f8] sm:$0xff] %v1229
                  %v1231 = vld [vmem:[%s845 + $0x3000] sm:$0xff]
                  %1232 = vst [vmem:[%s846 + $0x600] sm:$0xff] %v1231
                  %v1233 = vld [vmem:[%s845 + $0x3020] sm:$0xff]
                  %1234 = vst [vmem:[%s846 + $0x608] sm:$0xff] %v1233
                  %v1235 = vld [vmem:[%s845 + $0x3040] sm:$0xff]
                  %1236 = vst [vmem:[%s846 + $0x610] sm:$0xff] %v1235
                  %v1237 = vld [vmem:[%s845 + $0x3060] sm:$0xff]
                  %1238 = vst [vmem:[%s846 + $0x618] sm:$0xff] %v1237
                  %v1239 = vld [vmem:[%s845 + $0x3080] sm:$0xff]
                  %1240 = vst [vmem:[%s846 + $0x620] sm:$0xff] %v1239
                  %v1241 = vld [vmem:[%s845 + $0x30a0] sm:$0xff]
                  %1242 = vst [vmem:[%s846 + $0x628] sm:$0xff] %v1241
                  %v1243 = vld [vmem:[%s845 + $0x30c0] sm:$0xff]
                  %1244 = vst [vmem:[%s846 + $0x630] sm:$0xff] %v1243
                  %v1245 = vld [vmem:[%s845 + $0x30e0] sm:$0xff]
                  %1246 = vst [vmem:[%s846 + $0x638] sm:$0xff] %v1245
                  %v1247 = vld [vmem:[%s845 + $0x3100] sm:$0xff]
                  %1248 = vst [vmem:[%s846 + $0x640] sm:$0xff] %v1247
                  %v1249 = vld [vmem:[%s845 + $0x3120] sm:$0xff]
                  %1250 = vst [vmem:[%s846 + $0x648] sm:$0xff] %v1249
                  %v1251 = vld [vmem:[%s845 + $0x3140] sm:$0xff]
                  %1252 = vst [vmem:[%s846 + $0x650] sm:$0xff] %v1251
                  %v1253 = vld [vmem:[%s845 + $0x3160] sm:$0xff]
                  %1254 = vst [vmem:[%s846 + $0x658] sm:$0xff] %v1253
                  %v1255 = vld [vmem:[%s845 + $0x3180] sm:$0xff]
                  %1256 = vst [vmem:[%s846 + $0x660] sm:$0xff] %v1255
                  %v1257 = vld [vmem:[%s845 + $0x31a0] sm:$0xff]
                  %1258 = vst [vmem:[%s846 + $0x668] sm:$0xff] %v1257
                  %v1259 = vld [vmem:[%s845 + $0x31c0] sm:$0xff]
                  %1260 = vst [vmem:[%s846 + $0x670] sm:$0xff] %v1259
                  %v1261 = vld [vmem:[%s845 + $0x31e0] sm:$0xff]
                  %1262 = vst [vmem:[%s846 + $0x678] sm:$0xff] %v1261
                  %v1263 = vld [vmem:[%s845 + $0x3200] sm:$0xff]
                  %1264 = vst [vmem:[%s846 + $0x680] sm:$0xff] %v1263
                  %v1265 = vld [vmem:[%s845 + $0x3220] sm:$0xff]
                  %1266 = vst [vmem:[%s846 + $0x688] sm:$0xff] %v1265
                  %v1267 = vld [vmem:[%s845 + $0x3240] sm:$0xff]
                  %1268 = vst [vmem:[%s846 + $0x690] sm:$0xff] %v1267
                  %v1269 = vld [vmem:[%s845 + $0x3260] sm:$0xff]
                  %1270 = vst [vmem:[%s846 + $0x698] sm:$0xff] %v1269
                  %v1271 = vld [vmem:[%s845 + $0x3280] sm:$0xff]
                  %1272 = vst [vmem:[%s846 + $0x6a0] sm:$0xff] %v1271
                  %v1273 = vld [vmem:[%s845 + $0x32a0] sm:$0xff]
                  %1274 = vst [vmem:[%s846 + $0x6a8] sm:$0xff] %v1273
                  %v1275 = vld [vmem:[%s845 + $0x32c0] sm:$0xff]
                  %1276 = vst [vmem:[%s846 + $0x6b0] sm:$0xff] %v1275
                  %v1277 = vld [vmem:[%s845 + $0x32e0] sm:$0xff]
                  %1278 = vst [vmem:[%s846 + $0x6b8] sm:$0xff] %v1277
                  %v1279 = vld [vmem:[%s845 + $0x3300] sm:$0xff]
                  %1280 = vst [vmem:[%s846 + $0x6c0] sm:$0xff] %v1279
                  %v1281 = vld [vmem:[%s845 + $0x3320] sm:$0xff]
                  %1282 = vst [vmem:[%s846 + $0x6c8] sm:$0xff] %v1281
                  %v1283 = vld [vmem:[%s845 + $0x3340] sm:$0xff]
                  %1284 = vst [vmem:[%s846 + $0x6d0] sm:$0xff] %v1283
                  %v1285 = vld [vmem:[%s845 + $0x3360] sm:$0xff]
                  %1286 = vst [vmem:[%s846 + $0x6d8] sm:$0xff] %v1285
                  %v1287 = vld [vmem:[%s845 + $0x3380] sm:$0xff]
                  %1288 = vst [vmem:[%s846 + $0x6e0] sm:$0xff] %v1287
                  %v1289 = vld [vmem:[%s845 + $0x33a0] sm:$0xff]
                  %1290 = vst [vmem:[%s846 + $0x6e8] sm:$0xff] %v1289
                  %v1291 = vld [vmem:[%s845 + $0x33c0] sm:$0xff]
                  %1292 = vst [vmem:[%s846 + $0x6f0] sm:$0xff] %v1291
                  %v1293 = vld [vmem:[%s845 + $0x33e0] sm:$0xff]
                  %1294 = vst [vmem:[%s846 + $0x6f8] sm:$0xff] %v1293
                  %v1295 = vld [vmem:[%s845 + $0x3400] sm:$0xff]
                  %1296 = vst [vmem:[%s846 + $0x700] sm:$0xff] %v1295
                  %v1297 = vld [vmem:[%s845 + $0x3420] sm:$0xff]
                  %1298 = vst [vmem:[%s846 + $0x708] sm:$0xff] %v1297
                  %v1299 = vld [vmem:[%s845 + $0x3440] sm:$0xff]
                  %1300 = vst [vmem:[%s846 + $0x710] sm:$0xff] %v1299
                  %v1301 = vld [vmem:[%s845 + $0x3460] sm:$0xff]
                  %1302 = vst [vmem:[%s846 + $0x718] sm:$0xff] %v1301
                  %v1303 = vld [vmem:[%s845 + $0x3480] sm:$0xff]
                  %1304 = vst [vmem:[%s846 + $0x720] sm:$0xff] %v1303
                  %v1305 = vld [vmem:[%s845 + $0x34a0] sm:$0xff]
                  %1306 = vst [vmem:[%s846 + $0x728] sm:$0xff] %v1305
                  %v1307 = vld [vmem:[%s845 + $0x34c0] sm:$0xff]
                  %1308 = vst [vmem:[%s846 + $0x730] sm:$0xff] %v1307
                  %v1309 = vld [vmem:[%s845 + $0x34e0] sm:$0xff]
                  %1310 = vst [vmem:[%s846 + $0x738] sm:$0xff] %v1309
                  %v1311 = vld [vmem:[%s845 + $0x3500] sm:$0xff]
                  %1312 = vst [vmem:[%s846 + $0x740] sm:$0xff] %v1311
                  %v1313 = vld [vmem:[%s845 + $0x3520] sm:$0xff]
                  %1314 = vst [vmem:[%s846 + $0x748] sm:$0xff] %v1313
                  %v1315 = vld [vmem:[%s845 + $0x3540] sm:$0xff]
                  %1316 = vst [vmem:[%s846 + $0x750] sm:$0xff] %v1315
                  %v1317 = vld [vmem:[%s845 + $0x3560] sm:$0xff]
                  %1318 = vst [vmem:[%s846 + $0x758] sm:$0xff] %v1317
                  %v1319 = vld [vmem:[%s845 + $0x3580] sm:$0xff]
                  %1320 = vst [vmem:[%s846 + $0x760] sm:$0xff] %v1319
                  %v1321 = vld [vmem:[%s845 + $0x35a0] sm:$0xff]
                  %1322 = vst [vmem:[%s846 + $0x768] sm:$0xff] %v1321
                  %v1323 = vld [vmem:[%s845 + $0x35c0] sm:$0xff]
                  %1324 = vst [vmem:[%s846 + $0x770] sm:$0xff] %v1323
                  %v1325 = vld [vmem:[%s845 + $0x35e0] sm:$0xff]
                  %1326 = vst [vmem:[%s846 + $0x778] sm:$0xff] %v1325
                  %v1327 = vld [vmem:[%s845 + $0x3600] sm:$0xff]
                  %1328 = vst [vmem:[%s846 + $0x780] sm:$0xff] %v1327
                  %v1329 = vld [vmem:[%s845 + $0x3620] sm:$0xff]
                  %1330 = vst [vmem:[%s846 + $0x788] sm:$0xff] %v1329
                  %v1331 = vld [vmem:[%s845 + $0x3640] sm:$0xff]
                  %1332 = vst [vmem:[%s846 + $0x790] sm:$0xff] %v1331
                  %v1333 = vld [vmem:[%s845 + $0x3660] sm:$0xff]
                  %1334 = vst [vmem:[%s846 + $0x798] sm:$0xff] %v1333
                  %v1335 = vld [vmem:[%s845 + $0x3680] sm:$0xff]
                  %1336 = vst [vmem:[%s846 + $0x7a0] sm:$0xff] %v1335
                  %v1337 = vld [vmem:[%s845 + $0x36a0] sm:$0xff]
                  %1338 = vst [vmem:[%s846 + $0x7a8] sm:$0xff] %v1337
                  %v1339 = vld [vmem:[%s845 + $0x36c0] sm:$0xff]
                  %1340 = vst [vmem:[%s846 + $0x7b0] sm:$0xff] %v1339
                  %v1341 = vld [vmem:[%s845 + $0x36e0] sm:$0xff]
                  %1342 = vst [vmem:[%s846 + $0x7b8] sm:$0xff] %v1341
                  %v1343 = vld [vmem:[%s845 + $0x3700] sm:$0xff]
                  %1344 = vst [vmem:[%s846 + $0x7c0] sm:$0xff] %v1343
                  %v1345 = vld [vmem:[%s845 + $0x3720] sm:$0xff]
                  %1346 = vst [vmem:[%s846 + $0x7c8] sm:$0xff] %v1345
                  %v1347 = vld [vmem:[%s845 + $0x3740] sm:$0xff]
                  %1348 = vst [vmem:[%s846 + $0x7d0] sm:$0xff] %v1347
                  %v1349 = vld [vmem:[%s845 + $0x3760] sm:$0xff]
                  %1350 = vst [vmem:[%s846 + $0x7d8] sm:$0xff] %v1349
                  %v1351 = vld [vmem:[%s845 + $0x3780] sm:$0xff]
                  %1352 = vst [vmem:[%s846 + $0x7e0] sm:$0xff] %v1351
                  %v1353 = vld [vmem:[%s845 + $0x37a0] sm:$0xff]
                  %1354 = vst [vmem:[%s846 + $0x7e8] sm:$0xff] %v1353
                  %v1355 = vld [vmem:[%s845 + $0x37c0] sm:$0xff]
                  %1356 = vst [vmem:[%s846 + $0x7f0] sm:$0xff] %v1355
                  %v1357 = vld [vmem:[%s845 + $0x37e0] sm:$0xff]
                  %1358 = vst [vmem:[%s846 + $0x7f8] sm:$0xff] %v1357
                  %v1359 = vld [vmem:[%s845 + $0x4000] sm:$0xff]
                  %1360 = vst [vmem:[%s846 + $0x800] sm:$0xff] %v1359
                  %v1361 = vld [vmem:[%s845 + $0x4020] sm:$0xff]
                  %1362 = vst [vmem:[%s846 + $0x808] sm:$0xff] %v1361
                  %v1363 = vld [vmem:[%s845 + $0x4040] sm:$0xff]
                  %1364 = vst [vmem:[%s846 + $0x810] sm:$0xff] %v1363
                  %v1365 = vld [vmem:[%s845 + $0x4060] sm:$0xff]
                  %1366 = vst [vmem:[%s846 + $0x818] sm:$0xff] %v1365
                  %v1367 = vld [vmem:[%s845 + $0x4080] sm:$0xff]
                  %1368 = vst [vmem:[%s846 + $0x820] sm:$0xff] %v1367
                  %v1369 = vld [vmem:[%s845 + $0x40a0] sm:$0xff]
                  %1370 = vst [vmem:[%s846 + $0x828] sm:$0xff] %v1369
                  %v1371 = vld [vmem:[%s845 + $0x40c0] sm:$0xff]
                  %1372 = vst [vmem:[%s846 + $0x830] sm:$0xff] %v1371
                  %v1373 = vld [vmem:[%s845 + $0x40e0] sm:$0xff]
                  %1374 = vst [vmem:[%s846 + $0x838] sm:$0xff] %v1373
                  %v1375 = vld [vmem:[%s845 + $0x4100] sm:$0xff]
                  %1376 = vst [vmem:[%s846 + $0x840] sm:$0xff] %v1375
                  %v1377 = vld [vmem:[%s845 + $0x4120] sm:$0xff]
                  %1378 = vst [vmem:[%s846 + $0x848] sm:$0xff] %v1377
                  %v1379 = vld [vmem:[%s845 + $0x4140] sm:$0xff]
                  %1380 = vst [vmem:[%s846 + $0x850] sm:$0xff] %v1379
                  %v1381 = vld [vmem:[%s845 + $0x4160] sm:$0xff]
                  %1382 = vst [vmem:[%s846 + $0x858] sm:$0xff] %v1381
                  %v1383 = vld [vmem:[%s845 + $0x4180] sm:$0xff]
                  %1384 = vst [vmem:[%s846 + $0x860] sm:$0xff] %v1383
                  %v1385 = vld [vmem:[%s845 + $0x41a0] sm:$0xff]
                  %1386 = vst [vmem:[%s846 + $0x868] sm:$0xff] %v1385
                  %v1387 = vld [vmem:[%s845 + $0x41c0] sm:$0xff]
                  %1388 = vst [vmem:[%s846 + $0x870] sm:$0xff] %v1387
                  %v1389 = vld [vmem:[%s845 + $0x41e0] sm:$0xff]
                  %1390 = vst [vmem:[%s846 + $0x878] sm:$0xff] %v1389
                  %v1391 = vld [vmem:[%s845 + $0x4200] sm:$0xff]
                  %1392 = vst [vmem:[%s846 + $0x880] sm:$0xff] %v1391
                  %v1393 = vld [vmem:[%s845 + $0x4220] sm:$0xff]
                  %1394 = vst [vmem:[%s846 + $0x888] sm:$0xff] %v1393
                  %v1395 = vld [vmem:[%s845 + $0x4240] sm:$0xff]
                  %1396 = vst [vmem:[%s846 + $0x890] sm:$0xff] %v1395
                  %v1397 = vld [vmem:[%s845 + $0x4260] sm:$0xff]
                  %1398 = vst [vmem:[%s846 + $0x898] sm:$0xff] %v1397
                  %v1399 = vld [vmem:[%s845 + $0x4280] sm:$0xff]
                  %1400 = vst [vmem:[%s846 + $0x8a0] sm:$0xff] %v1399
                  %v1401 = vld [vmem:[%s845 + $0x42a0] sm:$0xff]
                  %1402 = vst [vmem:[%s846 + $0x8a8] sm:$0xff] %v1401
                  %v1403 = vld [vmem:[%s845 + $0x42c0] sm:$0xff]
                  %1404 = vst [vmem:[%s846 + $0x8b0] sm:$0xff] %v1403
                  %v1405 = vld [vmem:[%s845 + $0x42e0] sm:$0xff]
                  %1406 = vst [vmem:[%s846 + $0x8b8] sm:$0xff] %v1405
                  %v1407 = vld [vmem:[%s845 + $0x4300] sm:$0xff]
                  %1408 = vst [vmem:[%s846 + $0x8c0] sm:$0xff] %v1407
                  %v1409 = vld [vmem:[%s845 + $0x4320] sm:$0xff]
                  %1410 = vst [vmem:[%s846 + $0x8c8] sm:$0xff] %v1409
                  %v1411 = vld [vmem:[%s845 + $0x4340] sm:$0xff]
                  %1412 = vst [vmem:[%s846 + $0x8d0] sm:$0xff] %v1411
                  %v1413 = vld [vmem:[%s845 + $0x4360] sm:$0xff]
                  %1414 = vst [vmem:[%s846 + $0x8d8] sm:$0xff] %v1413
                  %v1415 = vld [vmem:[%s845 + $0x4380] sm:$0xff]
                  %1416 = vst [vmem:[%s846 + $0x8e0] sm:$0xff] %v1415
                  %v1417 = vld [vmem:[%s845 + $0x43a0] sm:$0xff]
                  %1418 = vst [vmem:[%s846 + $0x8e8] sm:$0xff] %v1417
                  %v1419 = vld [vmem:[%s845 + $0x43c0] sm:$0xff]
                  %1420 = vst [vmem:[%s846 + $0x8f0] sm:$0xff] %v1419
                  %v1421 = vld [vmem:[%s845 + $0x43e0] sm:$0xff]
                  %1422 = vst [vmem:[%s846 + $0x8f8] sm:$0xff] %v1421
                  %v1423 = vld [vmem:[%s845 + $0x4400] sm:$0xff]
                  %1424 = vst [vmem:[%s846 + $0x900] sm:$0xff] %v1423
                  %v1425 = vld [vmem:[%s845 + $0x4420] sm:$0xff]
                  %1426 = vst [vmem:[%s846 + $0x908] sm:$0xff] %v1425
                  %v1427 = vld [vmem:[%s845 + $0x4440] sm:$0xff]
                  %1428 = vst [vmem:[%s846 + $0x910] sm:$0xff] %v1427
                  %v1429 = vld [vmem:[%s845 + $0x4460] sm:$0xff]
                  %1430 = vst [vmem:[%s846 + $0x918] sm:$0xff] %v1429
                  %v1431 = vld [vmem:[%s845 + $0x4480] sm:$0xff]
                  %1432 = vst [vmem:[%s846 + $0x920] sm:$0xff] %v1431
                  %v1433 = vld [vmem:[%s845 + $0x44a0] sm:$0xff]
                  %1434 = vst [vmem:[%s846 + $0x928] sm:$0xff] %v1433
                  %v1435 = vld [vmem:[%s845 + $0x44c0] sm:$0xff]
                  %1436 = vst [vmem:[%s846 + $0x930] sm:$0xff] %v1435
                  %v1437 = vld [vmem:[%s845 + $0x44e0] sm:$0xff]
                  %1438 = vst [vmem:[%s846 + $0x938] sm:$0xff] %v1437
                  %v1439 = vld [vmem:[%s845 + $0x4500] sm:$0xff]
                  %1440 = vst [vmem:[%s846 + $0x940] sm:$0xff] %v1439
                  %v1441 = vld [vmem:[%s845 + $0x4520] sm:$0xff]
                  %1442 = vst [vmem:[%s846 + $0x948] sm:$0xff] %v1441
                  %v1443 = vld [vmem:[%s845 + $0x4540] sm:$0xff]
                  %1444 = vst [vmem:[%s846 + $0x950] sm:$0xff] %v1443
                  %v1445 = vld [vmem:[%s845 + $0x4560] sm:$0xff]
                  %1446 = vst [vmem:[%s846 + $0x958] sm:$0xff] %v1445
                  %v1447 = vld [vmem:[%s845 + $0x4580] sm:$0xff]
                  %1448 = vst [vmem:[%s846 + $0x960] sm:$0xff] %v1447
                  %v1449 = vld [vmem:[%s845 + $0x45a0] sm:$0xff]
                  %1450 = vst [vmem:[%s846 + $0x968] sm:$0xff] %v1449
                  %v1451 = vld [vmem:[%s845 + $0x45c0] sm:$0xff]
                  %1452 = vst [vmem:[%s846 + $0x970] sm:$0xff] %v1451
                  %v1453 = vld [vmem:[%s845 + $0x45e0] sm:$0xff]
                  %1454 = vst [vmem:[%s846 + $0x978] sm:$0xff] %v1453
                  %v1455 = vld [vmem:[%s845 + $0x4600] sm:$0xff]
                  %1456 = vst [vmem:[%s846 + $0x980] sm:$0xff] %v1455
                  %v1457 = vld [vmem:[%s845 + $0x4620] sm:$0xff]
                  %1458 = vst [vmem:[%s846 + $0x988] sm:$0xff] %v1457
                  %v1459 = vld [vmem:[%s845 + $0x4640] sm:$0xff]
                  %1460 = vst [vmem:[%s846 + $0x990] sm:$0xff] %v1459
                  %v1461 = vld [vmem:[%s845 + $0x4660] sm:$0xff]
                  %1462 = vst [vmem:[%s846 + $0x998] sm:$0xff] %v1461
                  %v1463 = vld [vmem:[%s845 + $0x4680] sm:$0xff]
                  %1464 = vst [vmem:[%s846 + $0x9a0] sm:$0xff] %v1463
                  %v1465 = vld [vmem:[%s845 + $0x46a0] sm:$0xff]
                  %1466 = vst [vmem:[%s846 + $0x9a8] sm:$0xff] %v1465
                  %v1467 = vld [vmem:[%s845 + $0x46c0] sm:$0xff]
                  %1468 = vst [vmem:[%s846 + $0x9b0] sm:$0xff] %v1467
                  %v1469 = vld [vmem:[%s845 + $0x46e0] sm:$0xff]
                  %1470 = vst [vmem:[%s846 + $0x9b8] sm:$0xff] %v1469
                  %v1471 = vld [vmem:[%s845 + $0x4700] sm:$0xff]
                  %1472 = vst [vmem:[%s846 + $0x9c0] sm:$0xff] %v1471
                  %v1473 = vld [vmem:[%s845 + $0x4720] sm:$0xff]
                  %1474 = vst [vmem:[%s846 + $0x9c8] sm:$0xff] %v1473
                  %v1475 = vld [vmem:[%s845 + $0x4740] sm:$0xff]
                  %1476 = vst [vmem:[%s846 + $0x9d0] sm:$0xff] %v1475
                  %v1477 = vld [vmem:[%s845 + $0x4760] sm:$0xff]
                  %1478 = vst [vmem:[%s846 + $0x9d8] sm:$0xff] %v1477
                  %v1479 = vld [vmem:[%s845 + $0x4780] sm:$0xff]
                  %1480 = vst [vmem:[%s846 + $0x9e0] sm:$0xff] %v1479
                  %v1481 = vld [vmem:[%s845 + $0x47a0] sm:$0xff]
                  %1482 = vst [vmem:[%s846 + $0x9e8] sm:$0xff] %v1481
                  %v1483 = vld [vmem:[%s845 + $0x47c0] sm:$0xff]
                  %1484 = vst [vmem:[%s846 + $0x9f0] sm:$0xff] %v1483
                  %v1485 = vld [vmem:[%s845 + $0x47e0] sm:$0xff]
                  %1486 = vst [vmem:[%s846 + $0x9f8] sm:$0xff] %v1485
                $region52: #{cc_discriminator_p_forward.7} parent=46 // loop_footer
                  %s844 = sadd.s32 1, %s840
                $region53: #{cc_discriminator_p_forward.7} parent=46 // loop_footer_branch
                  %839 = sbr.rel target = $region49
                $region54: #{cc_discriminator_p_forward.7} parent=46 // loop_exit
                  _
              $region47: #{cc_discriminator_p_forward.7} parent=31 // pred_fallthru
                _
              // Predicated region
              $region55: #{cc_discriminator_p_forward.7} parent=31 // pred_check
                _
              $region56: #{cc_discriminator_p_forward.7} parent=31 // pred_check_branch
                %1488 = sbr.rel target = $region58
              $region57: #{cc_discriminator_p_forward.7} parent=31 // pred_region
                _
              $region58: #{cc_discriminator_p_forward.7} parent=31 // pred_fallthru
                _
            $region32: #{cc_discriminator_p_forward.7} parent=27 // pred_fallthru
              _
            // Predicated region
            $region33: #{cc_discriminator_p_forward.7} parent=27 // pred_check
              _
            $region34: #{cc_discriminator_p_forward.7} parent=27 // pred_check_branch
              %187 = sbr.rel target = $region36
            $region35: #{cc_discriminator_p_forward.7} parent=27 // pred_region
              loop: start=0, step=1, limit=1
              $region37: #{cc_discriminator_p_forward.7} parent=35 // loop_pre_header
                _
              $region38: #{cc_discriminator_p_forward.7} parent=35 // loop_header
                %s190 = sphi 0, %s194
                %p191 = scmp.ge.s32.totalorder %s190, 1
                %s195 = sphi %s181, %s181
                %s196 = sphi %s175, %s175
              $region39: #{cc_discriminator_p_forward.7} parent=35 // loop_header_branch
                %193 = sbr.rel (%p191) target = $region43
              $region40: #{cc_discriminator_p_forward.7} parent=35 // loop_body
                %v197 = vld [vmem:[%s195] sm:$0xff]
                %198 = vst [vmem:[%s196] sm:$0xff] %v197
                %v199 = vld [vmem:[%s195 + $0x20] sm:$0xff]
                %200 = vst [vmem:[%s196 + $0x8] sm:$0xff] %v199
                %v201 = vld [vmem:[%s195 + $0x40] sm:$0xff]
                %202 = vst [vmem:[%s196 + $0x10] sm:$0xff] %v201
                %v203 = vld [vmem:[%s195 + $0x60] sm:$0xff]
                %204 = vst [vmem:[%s196 + $0x18] sm:$0xff] %v203
                %v205 = vld [vmem:[%s195 + $0x80] sm:$0xff]
                %206 = vst [vmem:[%s196 + $0x20] sm:$0xff] %v205
                %v207 = vld [vmem:[%s195 + $0xa0] sm:$0xff]
                %208 = vst [vmem:[%s196 + $0x28] sm:$0xff] %v207
                %v209 = vld [vmem:[%s195 + $0xc0] sm:$0xff]
                %210 = vst [vmem:[%s196 + $0x30] sm:$0xff] %v209
                %v211 = vld [vmem:[%s195 + $0xe0] sm:$0xff]
                %212 = vst [vmem:[%s196 + $0x38] sm:$0xff] %v211
                %v213 = vld [vmem:[%s195 + $0x100] sm:$0xff]
                %214 = vst [vmem:[%s196 + $0x40] sm:$0xff] %v213
                %v215 = vld [vmem:[%s195 + $0x120] sm:$0xff]
                %216 = vst [vmem:[%s196 + $0x48] sm:$0xff] %v215
                %v217 = vld [vmem:[%s195 + $0x140] sm:$0xff]
                %218 = vst [vmem:[%s196 + $0x50] sm:$0xff] %v217
                %v219 = vld [vmem:[%s195 + $0x160] sm:$0xff]
                %220 = vst [vmem:[%s196 + $0x58] sm:$0xff] %v219
                %v221 = vld [vmem:[%s195 + $0x180] sm:$0xff]
                %222 = vst [vmem:[%s196 + $0x60] sm:$0xff] %v221
                %v223 = vld [vmem:[%s195 + $0x1a0] sm:$0xff]
                %224 = vst [vmem:[%s196 + $0x68] sm:$0xff] %v223
                %v225 = vld [vmem:[%s195 + $0x1c0] sm:$0xff]
                %226 = vst [vmem:[%s196 + $0x70] sm:$0xff] %v225
                %v227 = vld [vmem:[%s195 + $0x1e0] sm:$0xff]
                %228 = vst [vmem:[%s196 + $0x78] sm:$0xff] %v227
                %v229 = vld [vmem:[%s195 + $0x200] sm:$0xff]
                %230 = vst [vmem:[%s196 + $0x80] sm:$0xff] %v229
                %v231 = vld [vmem:[%s195 + $0x220] sm:$0xff]
                %232 = vst [vmem:[%s196 + $0x88] sm:$0xff] %v231
                %v233 = vld [vmem:[%s195 + $0x240] sm:$0xff]
                %234 = vst [vmem:[%s196 + $0x90] sm:$0xff] %v233
                %v235 = vld [vmem:[%s195 + $0x260] sm:$0xff]
                %236 = vst [vmem:[%s196 + $0x98] sm:$0xff] %v235
                %v237 = vld [vmem:[%s195 + $0x280] sm:$0xff]
                %238 = vst [vmem:[%s196 + $0xa0] sm:$0xff] %v237
                %v239 = vld [vmem:[%s195 + $0x2a0] sm:$0xff]
                %240 = vst [vmem:[%s196 + $0xa8] sm:$0xff] %v239
                %v241 = vld [vmem:[%s195 + $0x2c0] sm:$0xff]
                %242 = vst [vmem:[%s196 + $0xb0] sm:$0xff] %v241
                %v243 = vld [vmem:[%s195 + $0x2e0] sm:$0xff]
                %244 = vst [vmem:[%s196 + $0xb8] sm:$0xff] %v243
                %v245 = vld [vmem:[%s195 + $0x300] sm:$0xff]
                %246 = vst [vmem:[%s196 + $0xc0] sm:$0xff] %v245
                %v247 = vld [vmem:[%s195 + $0x320] sm:$0xff]
                %248 = vst [vmem:[%s196 + $0xc8] sm:$0xff] %v247
                %v249 = vld [vmem:[%s195 + $0x340] sm:$0xff]
                %250 = vst [vmem:[%s196 + $0xd0] sm:$0xff] %v249
                %v251 = vld [vmem:[%s195 + $0x360] sm:$0xff]
                %252 = vst [vmem:[%s196 + $0xd8] sm:$0xff] %v251
                %v253 = vld [vmem:[%s195 + $0x380] sm:$0xff]
                %254 = vst [vmem:[%s196 + $0xe0] sm:$0xff] %v253
                %v255 = vld [vmem:[%s195 + $0x3a0] sm:$0xff]
                %256 = vst [vmem:[%s196 + $0xe8] sm:$0xff] %v255
                %v257 = vld [vmem:[%s195 + $0x3c0] sm:$0xff]
                %258 = vst [vmem:[%s196 + $0xf0] sm:$0xff] %v257
                %v259 = vld [vmem:[%s195 + $0x3e0] sm:$0xff]
                %260 = vst [vmem:[%s196 + $0xf8] sm:$0xff] %v259
                %v261 = vld [vmem:[%s195 + $0x400] sm:$0xff]
                %262 = vst [vmem:[%s196 + $0x100] sm:$0xff] %v261
                %v263 = vld [vmem:[%s195 + $0x420] sm:$0xff]
                %264 = vst [vmem:[%s196 + $0x108] sm:$0xff] %v263
                %v265 = vld [vmem:[%s195 + $0x440] sm:$0xff]
                %266 = vst [vmem:[%s196 + $0x110] sm:$0xff] %v265
                %v267 = vld [vmem:[%s195 + $0x460] sm:$0xff]
                %268 = vst [vmem:[%s196 + $0x118] sm:$0xff] %v267
                %v269 = vld [vmem:[%s195 + $0x480] sm:$0xff]
                %270 = vst [vmem:[%s196 + $0x120] sm:$0xff] %v269
                %v271 = vld [vmem:[%s195 + $0x4a0] sm:$0xff]
                %272 = vst [vmem:[%s196 + $0x128] sm:$0xff] %v271
                %v273 = vld [vmem:[%s195 + $0x4c0] sm:$0xff]
                %274 = vst [vmem:[%s196 + $0x130] sm:$0xff] %v273
                %v275 = vld [vmem:[%s195 + $0x4e0] sm:$0xff]
                %276 = vst [vmem:[%s196 + $0x138] sm:$0xff] %v275
                %v277 = vld [vmem:[%s195 + $0x500] sm:$0xff]
                %278 = vst [vmem:[%s196 + $0x140] sm:$0xff] %v277
                %v279 = vld [vmem:[%s195 + $0x520] sm:$0xff]
                %280 = vst [vmem:[%s196 + $0x148] sm:$0xff] %v279
                %v281 = vld [vmem:[%s195 + $0x540] sm:$0xff]
                %282 = vst [vmem:[%s196 + $0x150] sm:$0xff] %v281
                %v283 = vld [vmem:[%s195 + $0x560] sm:$0xff]
                %284 = vst [vmem:[%s196 + $0x158] sm:$0xff] %v283
                %v285 = vld [vmem:[%s195 + $0x580] sm:$0xff]
                %286 = vst [vmem:[%s196 + $0x160] sm:$0xff] %v285
                %v287 = vld [vmem:[%s195 + $0x5a0] sm:$0xff]
                %288 = vst [vmem:[%s196 + $0x168] sm:$0xff] %v287
                %v289 = vld [vmem:[%s195 + $0x5c0] sm:$0xff]
                %290 = vst [vmem:[%s196 + $0x170] sm:$0xff] %v289
                %v291 = vld [vmem:[%s195 + $0x5e0] sm:$0xff]
                %292 = vst [vmem:[%s196 + $0x178] sm:$0xff] %v291
                %v293 = vld [vmem:[%s195 + $0x600] sm:$0xff]
                %294 = vst [vmem:[%s196 + $0x180] sm:$0xff] %v293
                %v295 = vld [vmem:[%s195 + $0x620] sm:$0xff]
                %296 = vst [vmem:[%s196 + $0x188] sm:$0xff] %v295
                %v297 = vld [vmem:[%s195 + $0x640] sm:$0xff]
                %298 = vst [vmem:[%s196 + $0x190] sm:$0xff] %v297
                %v299 = vld [vmem:[%s195 + $0x660] sm:$0xff]
                %300 = vst [vmem:[%s196 + $0x198] sm:$0xff] %v299
                %v301 = vld [vmem:[%s195 + $0x680] sm:$0xff]
                %302 = vst [vmem:[%s196 + $0x1a0] sm:$0xff] %v301
                %v303 = vld [vmem:[%s195 + $0x6a0] sm:$0xff]
                %304 = vst [vmem:[%s196 + $0x1a8] sm:$0xff] %v303
                %v305 = vld [vmem:[%s195 + $0x6c0] sm:$0xff]
                %306 = vst [vmem:[%s196 + $0x1b0] sm:$0xff] %v305
                %v307 = vld [vmem:[%s195 + $0x6e0] sm:$0xff]
                %308 = vst [vmem:[%s196 + $0x1b8] sm:$0xff] %v307
                %v309 = vld [vmem:[%s195 + $0x700] sm:$0xff]
                %310 = vst [vmem:[%s196 + $0x1c0] sm:$0xff] %v309
                %v311 = vld [vmem:[%s195 + $0x720] sm:$0xff]
                %312 = vst [vmem:[%s196 + $0x1c8] sm:$0xff] %v311
                %v313 = vld [vmem:[%s195 + $0x740] sm:$0xff]
                %314 = vst [vmem:[%s196 + $0x1d0] sm:$0xff] %v313
                %v315 = vld [vmem:[%s195 + $0x760] sm:$0xff]
                %316 = vst [vmem:[%s196 + $0x1d8] sm:$0xff] %v315
                %v317 = vld [vmem:[%s195 + $0x780] sm:$0xff]
                %318 = vst [vmem:[%s196 + $0x1e0] sm:$0xff] %v317
                %v319 = vld [vmem:[%s195 + $0x7a0] sm:$0xff]
                %320 = vst [vmem:[%s196 + $0x1e8] sm:$0xff] %v319
                %v321 = vld [vmem:[%s195 + $0x7c0] sm:$0xff]
                %322 = vst [vmem:[%s196 + $0x1f0] sm:$0xff] %v321
                %v323 = vld [vmem:[%s195 + $0x7e0] sm:$0xff]
                %324 = vst [vmem:[%s196 + $0x1f8] sm:$0xff] %v323
                %v325 = vld [vmem:[%s195 + $0x1000] sm:$0xff]
                %326 = vst [vmem:[%s196 + $0x200] sm:$0xff] %v325
                %v327 = vld [vmem:[%s195 + $0x1020] sm:$0xff]
                %328 = vst [vmem:[%s196 + $0x208] sm:$0xff] %v327
                %v329 = vld [vmem:[%s195 + $0x1040] sm:$0xff]
                %330 = vst [vmem:[%s196 + $0x210] sm:$0xff] %v329
                %v331 = vld [vmem:[%s195 + $0x1060] sm:$0xff]
                %332 = vst [vmem:[%s196 + $0x218] sm:$0xff] %v331
                %v333 = vld [vmem:[%s195 + $0x1080] sm:$0xff]
                %334 = vst [vmem:[%s196 + $0x220] sm:$0xff] %v333
                %v335 = vld [vmem:[%s195 + $0x10a0] sm:$0xff]
                %336 = vst [vmem:[%s196 + $0x228] sm:$0xff] %v335
                %v337 = vld [vmem:[%s195 + $0x10c0] sm:$0xff]
                %338 = vst [vmem:[%s196 + $0x230] sm:$0xff] %v337
                %v339 = vld [vmem:[%s195 + $0x10e0] sm:$0xff]
                %340 = vst [vmem:[%s196 + $0x238] sm:$0xff] %v339
                %v341 = vld [vmem:[%s195 + $0x1100] sm:$0xff]
                %342 = vst [vmem:[%s196 + $0x240] sm:$0xff] %v341
                %v343 = vld [vmem:[%s195 + $0x1120] sm:$0xff]
                %344 = vst [vmem:[%s196 + $0x248] sm:$0xff] %v343
                %v345 = vld [vmem:[%s195 + $0x1140] sm:$0xff]
                %346 = vst [vmem:[%s196 + $0x250] sm:$0xff] %v345
                %v347 = vld [vmem:[%s195 + $0x1160] sm:$0xff]
                %348 = vst [vmem:[%s196 + $0x258] sm:$0xff] %v347
                %v349 = vld [vmem:[%s195 + $0x1180] sm:$0xff]
                %350 = vst [vmem:[%s196 + $0x260] sm:$0xff] %v349
                %v351 = vld [vmem:[%s195 + $0x11a0] sm:$0xff]
                %352 = vst [vmem:[%s196 + $0x268] sm:$0xff] %v351
                %v353 = vld [vmem:[%s195 + $0x11c0] sm:$0xff]
                %354 = vst [vmem:[%s196 + $0x270] sm:$0xff] %v353
                %v355 = vld [vmem:[%s195 + $0x11e0] sm:$0xff]
                %356 = vst [vmem:[%s196 + $0x278] sm:$0xff] %v355
                %v357 = vld [vmem:[%s195 + $0x1200] sm:$0xff]
                %358 = vst [vmem:[%s196 + $0x280] sm:$0xff] %v357
                %v359 = vld [vmem:[%s195 + $0x1220] sm:$0xff]
                %360 = vst [vmem:[%s196 + $0x288] sm:$0xff] %v359
                %v361 = vld [vmem:[%s195 + $0x1240] sm:$0xff]
                %362 = vst [vmem:[%s196 + $0x290] sm:$0xff] %v361
                %v363 = vld [vmem:[%s195 + $0x1260] sm:$0xff]
                %364 = vst [vmem:[%s196 + $0x298] sm:$0xff] %v363
                %v365 = vld [vmem:[%s195 + $0x1280] sm:$0xff]
                %366 = vst [vmem:[%s196 + $0x2a0] sm:$0xff] %v365
                %v367 = vld [vmem:[%s195 + $0x12a0] sm:$0xff]
                %368 = vst [vmem:[%s196 + $0x2a8] sm:$0xff] %v367
                %v369 = vld [vmem:[%s195 + $0x12c0] sm:$0xff]
                %370 = vst [vmem:[%s196 + $0x2b0] sm:$0xff] %v369
                %v371 = vld [vmem:[%s195 + $0x12e0] sm:$0xff]
                %372 = vst [vmem:[%s196 + $0x2b8] sm:$0xff] %v371
                %v373 = vld [vmem:[%s195 + $0x1300] sm:$0xff]
                %374 = vst [vmem:[%s196 + $0x2c0] sm:$0xff] %v373
                %v375 = vld [vmem:[%s195 + $0x1320] sm:$0xff]
                %376 = vst [vmem:[%s196 + $0x2c8] sm:$0xff] %v375
                %v377 = vld [vmem:[%s195 + $0x1340] sm:$0xff]
                %378 = vst [vmem:[%s196 + $0x2d0] sm:$0xff] %v377
                %v379 = vld [vmem:[%s195 + $0x1360] sm:$0xff]
                %380 = vst [vmem:[%s196 + $0x2d8] sm:$0xff] %v379
                %v381 = vld [vmem:[%s195 + $0x1380] sm:$0xff]
                %382 = vst [vmem:[%s196 + $0x2e0] sm:$0xff] %v381
                %v383 = vld [vmem:[%s195 + $0x13a0] sm:$0xff]
                %384 = vst [vmem:[%s196 + $0x2e8] sm:$0xff] %v383
                %v385 = vld [vmem:[%s195 + $0x13c0] sm:$0xff]
                %386 = vst [vmem:[%s196 + $0x2f0] sm:$0xff] %v385
                %v387 = vld [vmem:[%s195 + $0x13e0] sm:$0xff]
                %388 = vst [vmem:[%s196 + $0x2f8] sm:$0xff] %v387
                %v389 = vld [vmem:[%s195 + $0x1400] sm:$0xff]
                %390 = vst [vmem:[%s196 + $0x300] sm:$0xff] %v389
                %v391 = vld [vmem:[%s195 + $0x1420] sm:$0xff]
                %392 = vst [vmem:[%s196 + $0x308] sm:$0xff] %v391
                %v393 = vld [vmem:[%s195 + $0x1440] sm:$0xff]
                %394 = vst [vmem:[%s196 + $0x310] sm:$0xff] %v393
                %v395 = vld [vmem:[%s195 + $0x1460] sm:$0xff]
                %396 = vst [vmem:[%s196 + $0x318] sm:$0xff] %v395
                %v397 = vld [vmem:[%s195 + $0x1480] sm:$0xff]
                %398 = vst [vmem:[%s196 + $0x320] sm:$0xff] %v397
                %v399 = vld [vmem:[%s195 + $0x14a0] sm:$0xff]
                %400 = vst [vmem:[%s196 + $0x328] sm:$0xff] %v399
                %v401 = vld [vmem:[%s195 + $0x14c0] sm:$0xff]
                %402 = vst [vmem:[%s196 + $0x330] sm:$0xff] %v401
                %v403 = vld [vmem:[%s195 + $0x14e0] sm:$0xff]
                %404 = vst [vmem:[%s196 + $0x338] sm:$0xff] %v403
                %v405 = vld [vmem:[%s195 + $0x1500] sm:$0xff]
                %406 = vst [vmem:[%s196 + $0x340] sm:$0xff] %v405
                %v407 = vld [vmem:[%s195 + $0x1520] sm:$0xff]
                %408 = vst [vmem:[%s196 + $0x348] sm:$0xff] %v407
                %v409 = vld [vmem:[%s195 + $0x1540] sm:$0xff]
                %410 = vst [vmem:[%s196 + $0x350] sm:$0xff] %v409
                %v411 = vld [vmem:[%s195 + $0x1560] sm:$0xff]
                %412 = vst [vmem:[%s196 + $0x358] sm:$0xff] %v411
                %v413 = vld [vmem:[%s195 + $0x1580] sm:$0xff]
                %414 = vst [vmem:[%s196 + $0x360] sm:$0xff] %v413
                %v415 = vld [vmem:[%s195 + $0x15a0] sm:$0xff]
                %416 = vst [vmem:[%s196 + $0x368] sm:$0xff] %v415
                %v417 = vld [vmem:[%s195 + $0x15c0] sm:$0xff]
                %418 = vst [vmem:[%s196 + $0x370] sm:$0xff] %v417
                %v419 = vld [vmem:[%s195 + $0x15e0] sm:$0xff]
                %420 = vst [vmem:[%s196 + $0x378] sm:$0xff] %v419
                %v421 = vld [vmem:[%s195 + $0x1600] sm:$0xff]
                %422 = vst [vmem:[%s196 + $0x380] sm:$0xff] %v421
                %v423 = vld [vmem:[%s195 + $0x1620] sm:$0xff]
                %424 = vst [vmem:[%s196 + $0x388] sm:$0xff] %v423
                %v425 = vld [vmem:[%s195 + $0x1640] sm:$0xff]
                %426 = vst [vmem:[%s196 + $0x390] sm:$0xff] %v425
                %v427 = vld [vmem:[%s195 + $0x1660] sm:$0xff]
                %428 = vst [vmem:[%s196 + $0x398] sm:$0xff] %v427
                %v429 = vld [vmem:[%s195 + $0x1680] sm:$0xff]
                %430 = vst [vmem:[%s196 + $0x3a0] sm:$0xff] %v429
                %v431 = vld [vmem:[%s195 + $0x16a0] sm:$0xff]
                %432 = vst [vmem:[%s196 + $0x3a8] sm:$0xff] %v431
                %v433 = vld [vmem:[%s195 + $0x16c0] sm:$0xff]
                %434 = vst [vmem:[%s196 + $0x3b0] sm:$0xff] %v433
                %v435 = vld [vmem:[%s195 + $0x16e0] sm:$0xff]
                %436 = vst [vmem:[%s196 + $0x3b8] sm:$0xff] %v435
                %v437 = vld [vmem:[%s195 + $0x1700] sm:$0xff]
                %438 = vst [vmem:[%s196 + $0x3c0] sm:$0xff] %v437
                %v439 = vld [vmem:[%s195 + $0x1720] sm:$0xff]
                %440 = vst [vmem:[%s196 + $0x3c8] sm:$0xff] %v439
                %v441 = vld [vmem:[%s195 + $0x1740] sm:$0xff]
                %442 = vst [vmem:[%s196 + $0x3d0] sm:$0xff] %v441
                %v443 = vld [vmem:[%s195 + $0x1760] sm:$0xff]
                %444 = vst [vmem:[%s196 + $0x3d8] sm:$0xff] %v443
                %v445 = vld [vmem:[%s195 + $0x1780] sm:$0xff]
                %446 = vst [vmem:[%s196 + $0x3e0] sm:$0xff] %v445
                %v447 = vld [vmem:[%s195 + $0x17a0] sm:$0xff]
                %448 = vst [vmem:[%s196 + $0x3e8] sm:$0xff] %v447
                %v449 = vld [vmem:[%s195 + $0x17c0] sm:$0xff]
                %450 = vst [vmem:[%s196 + $0x3f0] sm:$0xff] %v449
                %v451 = vld [vmem:[%s195 + $0x17e0] sm:$0xff]
                %452 = vst [vmem:[%s196 + $0x3f8] sm:$0xff] %v451
                %v453 = vld [vmem:[%s195 + $0x2000] sm:$0xff]
                %454 = vst [vmem:[%s196 + $0x400] sm:$0xff] %v453
                %v455 = vld [vmem:[%s195 + $0x2020] sm:$0xff]
                %456 = vst [vmem:[%s196 + $0x408] sm:$0xff] %v455
                %v457 = vld [vmem:[%s195 + $0x2040] sm:$0xff]
                %458 = vst [vmem:[%s196 + $0x410] sm:$0xff] %v457
                %v459 = vld [vmem:[%s195 + $0x2060] sm:$0xff]
                %460 = vst [vmem:[%s196 + $0x418] sm:$0xff] %v459
                %v461 = vld [vmem:[%s195 + $0x2080] sm:$0xff]
                %462 = vst [vmem:[%s196 + $0x420] sm:$0xff] %v461
                %v463 = vld [vmem:[%s195 + $0x20a0] sm:$0xff]
                %464 = vst [vmem:[%s196 + $0x428] sm:$0xff] %v463
                %v465 = vld [vmem:[%s195 + $0x20c0] sm:$0xff]
                %466 = vst [vmem:[%s196 + $0x430] sm:$0xff] %v465
                %v467 = vld [vmem:[%s195 + $0x20e0] sm:$0xff]
                %468 = vst [vmem:[%s196 + $0x438] sm:$0xff] %v467
                %v469 = vld [vmem:[%s195 + $0x2100] sm:$0xff]
                %470 = vst [vmem:[%s196 + $0x440] sm:$0xff] %v469
                %v471 = vld [vmem:[%s195 + $0x2120] sm:$0xff]
                %472 = vst [vmem:[%s196 + $0x448] sm:$0xff] %v471
                %v473 = vld [vmem:[%s195 + $0x2140] sm:$0xff]
                %474 = vst [vmem:[%s196 + $0x450] sm:$0xff] %v473
                %v475 = vld [vmem:[%s195 + $0x2160] sm:$0xff]
                %476 = vst [vmem:[%s196 + $0x458] sm:$0xff] %v475
                %v477 = vld [vmem:[%s195 + $0x2180] sm:$0xff]
                %478 = vst [vmem:[%s196 + $0x460] sm:$0xff] %v477
                %v479 = vld [vmem:[%s195 + $0x21a0] sm:$0xff]
                %480 = vst [vmem:[%s196 + $0x468] sm:$0xff] %v479
                %v481 = vld [vmem:[%s195 + $0x21c0] sm:$0xff]
                %482 = vst [vmem:[%s196 + $0x470] sm:$0xff] %v481
                %v483 = vld [vmem:[%s195 + $0x21e0] sm:$0xff]
                %484 = vst [vmem:[%s196 + $0x478] sm:$0xff] %v483
                %v485 = vld [vmem:[%s195 + $0x2200] sm:$0xff]
                %486 = vst [vmem:[%s196 + $0x480] sm:$0xff] %v485
                %v487 = vld [vmem:[%s195 + $0x2220] sm:$0xff]
                %488 = vst [vmem:[%s196 + $0x488] sm:$0xff] %v487
                %v489 = vld [vmem:[%s195 + $0x2240] sm:$0xff]
                %490 = vst [vmem:[%s196 + $0x490] sm:$0xff] %v489
                %v491 = vld [vmem:[%s195 + $0x2260] sm:$0xff]
                %492 = vst [vmem:[%s196 + $0x498] sm:$0xff] %v491
                %v493 = vld [vmem:[%s195 + $0x2280] sm:$0xff]
                %494 = vst [vmem:[%s196 + $0x4a0] sm:$0xff] %v493
                %v495 = vld [vmem:[%s195 + $0x22a0] sm:$0xff]
                %496 = vst [vmem:[%s196 + $0x4a8] sm:$0xff] %v495
                %v497 = vld [vmem:[%s195 + $0x22c0] sm:$0xff]
                %498 = vst [vmem:[%s196 + $0x4b0] sm:$0xff] %v497
                %v499 = vld [vmem:[%s195 + $0x22e0] sm:$0xff]
                %500 = vst [vmem:[%s196 + $0x4b8] sm:$0xff] %v499
                %v501 = vld [vmem:[%s195 + $0x2300] sm:$0xff]
                %502 = vst [vmem:[%s196 + $0x4c0] sm:$0xff] %v501
                %v503 = vld [vmem:[%s195 + $0x2320] sm:$0xff]
                %504 = vst [vmem:[%s196 + $0x4c8] sm:$0xff] %v503
                %v505 = vld [vmem:[%s195 + $0x2340] sm:$0xff]
                %506 = vst [vmem:[%s196 + $0x4d0] sm:$0xff] %v505
                %v507 = vld [vmem:[%s195 + $0x2360] sm:$0xff]
                %508 = vst [vmem:[%s196 + $0x4d8] sm:$0xff] %v507
                %v509 = vld [vmem:[%s195 + $0x2380] sm:$0xff]
                %510 = vst [vmem:[%s196 + $0x4e0] sm:$0xff] %v509
                %v511 = vld [vmem:[%s195 + $0x23a0] sm:$0xff]
                %512 = vst [vmem:[%s196 + $0x4e8] sm:$0xff] %v511
                %v513 = vld [vmem:[%s195 + $0x23c0] sm:$0xff]
                %514 = vst [vmem:[%s196 + $0x4f0] sm:$0xff] %v513
                %v515 = vld [vmem:[%s195 + $0x23e0] sm:$0xff]
                %516 = vst [vmem:[%s196 + $0x4f8] sm:$0xff] %v515
                %v517 = vld [vmem:[%s195 + $0x2400] sm:$0xff]
                %518 = vst [vmem:[%s196 + $0x500] sm:$0xff] %v517
                %v519 = vld [vmem:[%s195 + $0x2420] sm:$0xff]
                %520 = vst [vmem:[%s196 + $0x508] sm:$0xff] %v519
                %v521 = vld [vmem:[%s195 + $0x2440] sm:$0xff]
                %522 = vst [vmem:[%s196 + $0x510] sm:$0xff] %v521
                %v523 = vld [vmem:[%s195 + $0x2460] sm:$0xff]
                %524 = vst [vmem:[%s196 + $0x518] sm:$0xff] %v523
                %v525 = vld [vmem:[%s195 + $0x2480] sm:$0xff]
                %526 = vst [vmem:[%s196 + $0x520] sm:$0xff] %v525
                %v527 = vld [vmem:[%s195 + $0x24a0] sm:$0xff]
                %528 = vst [vmem:[%s196 + $0x528] sm:$0xff] %v527
                %v529 = vld [vmem:[%s195 + $0x24c0] sm:$0xff]
                %530 = vst [vmem:[%s196 + $0x530] sm:$0xff] %v529
                %v531 = vld [vmem:[%s195 + $0x24e0] sm:$0xff]
                %532 = vst [vmem:[%s196 + $0x538] sm:$0xff] %v531
                %v533 = vld [vmem:[%s195 + $0x2500] sm:$0xff]
                %534 = vst [vmem:[%s196 + $0x540] sm:$0xff] %v533
                %v535 = vld [vmem:[%s195 + $0x2520] sm:$0xff]
                %536 = vst [vmem:[%s196 + $0x548] sm:$0xff] %v535
                %v537 = vld [vmem:[%s195 + $0x2540] sm:$0xff]
                %538 = vst [vmem:[%s196 + $0x550] sm:$0xff] %v537
                %v539 = vld [vmem:[%s195 + $0x2560] sm:$0xff]
                %540 = vst [vmem:[%s196 + $0x558] sm:$0xff] %v539
                %v541 = vld [vmem:[%s195 + $0x2580] sm:$0xff]
                %542 = vst [vmem:[%s196 + $0x560] sm:$0xff] %v541
                %v543 = vld [vmem:[%s195 + $0x25a0] sm:$0xff]
                %544 = vst [vmem:[%s196 + $0x568] sm:$0xff] %v543
                %v545 = vld [vmem:[%s195 + $0x25c0] sm:$0xff]
                %546 = vst [vmem:[%s196 + $0x570] sm:$0xff] %v545
                %v547 = vld [vmem:[%s195 + $0x25e0] sm:$0xff]
                %548 = vst [vmem:[%s196 + $0x578] sm:$0xff] %v547
                %v549 = vld [vmem:[%s195 + $0x2600] sm:$0xff]
                %550 = vst [vmem:[%s196 + $0x580] sm:$0xff] %v549
                %v551 = vld [vmem:[%s195 + $0x2620] sm:$0xff]
                %552 = vst [vmem:[%s196 + $0x588] sm:$0xff] %v551
                %v553 = vld [vmem:[%s195 + $0x2640] sm:$0xff]
                %554 = vst [vmem:[%s196 + $0x590] sm:$0xff] %v553
                %v555 = vld [vmem:[%s195 + $0x2660] sm:$0xff]
                %556 = vst [vmem:[%s196 + $0x598] sm:$0xff] %v555
                %v557 = vld [vmem:[%s195 + $0x2680] sm:$0xff]
                %558 = vst [vmem:[%s196 + $0x5a0] sm:$0xff] %v557
                %v559 = vld [vmem:[%s195 + $0x26a0] sm:$0xff]
                %560 = vst [vmem:[%s196 + $0x5a8] sm:$0xff] %v559
                %v561 = vld [vmem:[%s195 + $0x26c0] sm:$0xff]
                %562 = vst [vmem:[%s196 + $0x5b0] sm:$0xff] %v561
                %v563 = vld [vmem:[%s195 + $0x26e0] sm:$0xff]
                %564 = vst [vmem:[%s196 + $0x5b8] sm:$0xff] %v563
                %v565 = vld [vmem:[%s195 + $0x2700] sm:$0xff]
                %566 = vst [vmem:[%s196 + $0x5c0] sm:$0xff] %v565
                %v567 = vld [vmem:[%s195 + $0x2720] sm:$0xff]
                %568 = vst [vmem:[%s196 + $0x5c8] sm:$0xff] %v567
                %v569 = vld [vmem:[%s195 + $0x2740] sm:$0xff]
                %570 = vst [vmem:[%s196 + $0x5d0] sm:$0xff] %v569
                %v571 = vld [vmem:[%s195 + $0x2760] sm:$0xff]
                %572 = vst [vmem:[%s196 + $0x5d8] sm:$0xff] %v571
                %v573 = vld [vmem:[%s195 + $0x2780] sm:$0xff]
                %574 = vst [vmem:[%s196 + $0x5e0] sm:$0xff] %v573
                %v575 = vld [vmem:[%s195 + $0x27a0] sm:$0xff]
                %576 = vst [vmem:[%s196 + $0x5e8] sm:$0xff] %v575
                %v577 = vld [vmem:[%s195 + $0x27c0] sm:$0xff]
                %578 = vst [vmem:[%s196 + $0x5f0] sm:$0xff] %v577
                %v579 = vld [vmem:[%s195 + $0x27e0] sm:$0xff]
                %580 = vst [vmem:[%s196 + $0x5f8] sm:$0xff] %v579
                %v581 = vld [vmem:[%s195 + $0x3000] sm:$0xff]
                %582 = vst [vmem:[%s196 + $0x600] sm:$0xff] %v581
                %v583 = vld [vmem:[%s195 + $0x3020] sm:$0xff]
                %584 = vst [vmem:[%s196 + $0x608] sm:$0xff] %v583
                %v585 = vld [vmem:[%s195 + $0x3040] sm:$0xff]
                %586 = vst [vmem:[%s196 + $0x610] sm:$0xff] %v585
                %v587 = vld [vmem:[%s195 + $0x3060] sm:$0xff]
                %588 = vst [vmem:[%s196 + $0x618] sm:$0xff] %v587
                %v589 = vld [vmem:[%s195 + $0x3080] sm:$0xff]
                %590 = vst [vmem:[%s196 + $0x620] sm:$0xff] %v589
                %v591 = vld [vmem:[%s195 + $0x30a0] sm:$0xff]
                %592 = vst [vmem:[%s196 + $0x628] sm:$0xff] %v591
                %v593 = vld [vmem:[%s195 + $0x30c0] sm:$0xff]
                %594 = vst [vmem:[%s196 + $0x630] sm:$0xff] %v593
                %v595 = vld [vmem:[%s195 + $0x30e0] sm:$0xff]
                %596 = vst [vmem:[%s196 + $0x638] sm:$0xff] %v595
                %v597 = vld [vmem:[%s195 + $0x3100] sm:$0xff]
                %598 = vst [vmem:[%s196 + $0x640] sm:$0xff] %v597
                %v599 = vld [vmem:[%s195 + $0x3120] sm:$0xff]
                %600 = vst [vmem:[%s196 + $0x648] sm:$0xff] %v599
                %v601 = vld [vmem:[%s195 + $0x3140] sm:$0xff]
                %602 = vst [vmem:[%s196 + $0x650] sm:$0xff] %v601
                %v603 = vld [vmem:[%s195 + $0x3160] sm:$0xff]
                %604 = vst [vmem:[%s196 + $0x658] sm:$0xff] %v603
                %v605 = vld [vmem:[%s195 + $0x3180] sm:$0xff]
                %606 = vst [vmem:[%s196 + $0x660] sm:$0xff] %v605
                %v607 = vld [vmem:[%s195 + $0x31a0] sm:$0xff]
                %608 = vst [vmem:[%s196 + $0x668] sm:$0xff] %v607
                %v609 = vld [vmem:[%s195 + $0x31c0] sm:$0xff]
                %610 = vst [vmem:[%s196 + $0x670] sm:$0xff] %v609
                %v611 = vld [vmem:[%s195 + $0x31e0] sm:$0xff]
                %612 = vst [vmem:[%s196 + $0x678] sm:$0xff] %v611
                %v613 = vld [vmem:[%s195 + $0x3200] sm:$0xff]
                %614 = vst [vmem:[%s196 + $0x680] sm:$0xff] %v613
                %v615 = vld [vmem:[%s195 + $0x3220] sm:$0xff]
                %616 = vst [vmem:[%s196 + $0x688] sm:$0xff] %v615
                %v617 = vld [vmem:[%s195 + $0x3240] sm:$0xff]
                %618 = vst [vmem:[%s196 + $0x690] sm:$0xff] %v617
                %v619 = vld [vmem:[%s195 + $0x3260] sm:$0xff]
                %620 = vst [vmem:[%s196 + $0x698] sm:$0xff] %v619
                %v621 = vld [vmem:[%s195 + $0x3280] sm:$0xff]
                %622 = vst [vmem:[%s196 + $0x6a0] sm:$0xff] %v621
                %v623 = vld [vmem:[%s195 + $0x32a0] sm:$0xff]
                %624 = vst [vmem:[%s196 + $0x6a8] sm:$0xff] %v623
                %v625 = vld [vmem:[%s195 + $0x32c0] sm:$0xff]
                %626 = vst [vmem:[%s196 + $0x6b0] sm:$0xff] %v625
                %v627 = vld [vmem:[%s195 + $0x32e0] sm:$0xff]
                %628 = vst [vmem:[%s196 + $0x6b8] sm:$0xff] %v627
                %v629 = vld [vmem:[%s195 + $0x3300] sm:$0xff]
                %630 = vst [vmem:[%s196 + $0x6c0] sm:$0xff] %v629
                %v631 = vld [vmem:[%s195 + $0x3320] sm:$0xff]
                %632 = vst [vmem:[%s196 + $0x6c8] sm:$0xff] %v631
                %v633 = vld [vmem:[%s195 + $0x3340] sm:$0xff]
                %634 = vst [vmem:[%s196 + $0x6d0] sm:$0xff] %v633
                %v635 = vld [vmem:[%s195 + $0x3360] sm:$0xff]
                %636 = vst [vmem:[%s196 + $0x6d8] sm:$0xff] %v635
                %v637 = vld [vmem:[%s195 + $0x3380] sm:$0xff]
                %638 = vst [vmem:[%s196 + $0x6e0] sm:$0xff] %v637
                %v639 = vld [vmem:[%s195 + $0x33a0] sm:$0xff]
                %640 = vst [vmem:[%s196 + $0x6e8] sm:$0xff] %v639
                %v641 = vld [vmem:[%s195 + $0x33c0] sm:$0xff]
                %642 = vst [vmem:[%s196 + $0x6f0] sm:$0xff] %v641
                %v643 = vld [vmem:[%s195 + $0x33e0] sm:$0xff]
                %644 = vst [vmem:[%s196 + $0x6f8] sm:$0xff] %v643
                %v645 = vld [vmem:[%s195 + $0x3400] sm:$0xff]
                %646 = vst [vmem:[%s196 + $0x700] sm:$0xff] %v645
                %v647 = vld [vmem:[%s195 + $0x3420] sm:$0xff]
                %648 = vst [vmem:[%s196 + $0x708] sm:$0xff] %v647
                %v649 = vld [vmem:[%s195 + $0x3440] sm:$0xff]
                %650 = vst [vmem:[%s196 + $0x710] sm:$0xff] %v649
                %v651 = vld [vmem:[%s195 + $0x3460] sm:$0xff]
                %652 = vst [vmem:[%s196 + $0x718] sm:$0xff] %v651
                %v653 = vld [vmem:[%s195 + $0x3480] sm:$0xff]
                %654 = vst [vmem:[%s196 + $0x720] sm:$0xff] %v653
                %v655 = vld [vmem:[%s195 + $0x34a0] sm:$0xff]
                %656 = vst [vmem:[%s196 + $0x728] sm:$0xff] %v655
                %v657 = vld [vmem:[%s195 + $0x34c0] sm:$0xff]
                %658 = vst [vmem:[%s196 + $0x730] sm:$0xff] %v657
                %v659 = vld [vmem:[%s195 + $0x34e0] sm:$0xff]
                %660 = vst [vmem:[%s196 + $0x738] sm:$0xff] %v659
                %v661 = vld [vmem:[%s195 + $0x3500] sm:$0xff]
                %662 = vst [vmem:[%s196 + $0x740] sm:$0xff] %v661
                %v663 = vld [vmem:[%s195 + $0x3520] sm:$0xff]
                %664 = vst [vmem:[%s196 + $0x748] sm:$0xff] %v663
                %v665 = vld [vmem:[%s195 + $0x3540] sm:$0xff]
                %666 = vst [vmem:[%s196 + $0x750] sm:$0xff] %v665
                %v667 = vld [vmem:[%s195 + $0x3560] sm:$0xff]
                %668 = vst [vmem:[%s196 + $0x758] sm:$0xff] %v667
                %v669 = vld [vmem:[%s195 + $0x3580] sm:$0xff]
                %670 = vst [vmem:[%s196 + $0x760] sm:$0xff] %v669
                %v671 = vld [vmem:[%s195 + $0x35a0] sm:$0xff]
                %672 = vst [vmem:[%s196 + $0x768] sm:$0xff] %v671
                %v673 = vld [vmem:[%s195 + $0x35c0] sm:$0xff]
                %674 = vst [vmem:[%s196 + $0x770] sm:$0xff] %v673
                %v675 = vld [vmem:[%s195 + $0x35e0] sm:$0xff]
                %676 = vst [vmem:[%s196 + $0x778] sm:$0xff] %v675
                %v677 = vld [vmem:[%s195 + $0x3600] sm:$0xff]
                %678 = vst [vmem:[%s196 + $0x780] sm:$0xff] %v677
                %v679 = vld [vmem:[%s195 + $0x3620] sm:$0xff]
                %680 = vst [vmem:[%s196 + $0x788] sm:$0xff] %v679
                %v681 = vld [vmem:[%s195 + $0x3640] sm:$0xff]
                %682 = vst [vmem:[%s196 + $0x790] sm:$0xff] %v681
                %v683 = vld [vmem:[%s195 + $0x3660] sm:$0xff]
                %684 = vst [vmem:[%s196 + $0x798] sm:$0xff] %v683
                %v685 = vld [vmem:[%s195 + $0x3680] sm:$0xff]
                %686 = vst [vmem:[%s196 + $0x7a0] sm:$0xff] %v685
                %v687 = vld [vmem:[%s195 + $0x36a0] sm:$0xff]
                %688 = vst [vmem:[%s196 + $0x7a8] sm:$0xff] %v687
                %v689 = vld [vmem:[%s195 + $0x36c0] sm:$0xff]
                %690 = vst [vmem:[%s196 + $0x7b0] sm:$0xff] %v689
                %v691 = vld [vmem:[%s195 + $0x36e0] sm:$0xff]
                %692 = vst [vmem:[%s196 + $0x7b8] sm:$0xff] %v691
                %v693 = vld [vmem:[%s195 + $0x3700] sm:$0xff]
                %694 = vst [vmem:[%s196 + $0x7c0] sm:$0xff] %v693
                %v695 = vld [vmem:[%s195 + $0x3720] sm:$0xff]
                %696 = vst [vmem:[%s196 + $0x7c8] sm:$0xff] %v695
                %v697 = vld [vmem:[%s195 + $0x3740] sm:$0xff]
                %698 = vst [vmem:[%s196 + $0x7d0] sm:$0xff] %v697
                %v699 = vld [vmem:[%s195 + $0x3760] sm:$0xff]
                %700 = vst [vmem:[%s196 + $0x7d8] sm:$0xff] %v699
                %v701 = vld [vmem:[%s195 + $0x3780] sm:$0xff]
                %702 = vst [vmem:[%s196 + $0x7e0] sm:$0xff] %v701
                %v703 = vld [vmem:[%s195 + $0x37a0] sm:$0xff]
                %704 = vst [vmem:[%s196 + $0x7e8] sm:$0xff] %v703
                %v705 = vld [vmem:[%s195 + $0x37c0] sm:$0xff]
                %706 = vst [vmem:[%s196 + $0x7f0] sm:$0xff] %v705
                %v707 = vld [vmem:[%s195 + $0x37e0] sm:$0xff]
                %708 = vst [vmem:[%s196 + $0x7f8] sm:$0xff] %v707
                %v709 = vld [vmem:[%s195 + $0x4000] sm:$0xff]
                %710 = vst [vmem:[%s196 + $0x800] sm:$0xff] %v709
                %v711 = vld [vmem:[%s195 + $0x4020] sm:$0xff]
                %712 = vst [vmem:[%s196 + $0x808] sm:$0xff] %v711
                %v713 = vld [vmem:[%s195 + $0x4040] sm:$0xff]
                %714 = vst [vmem:[%s196 + $0x810] sm:$0xff] %v713
                %v715 = vld [vmem:[%s195 + $0x4060] sm:$0xff]
                %716 = vst [vmem:[%s196 + $0x818] sm:$0xff] %v715
                %v717 = vld [vmem:[%s195 + $0x4080] sm:$0xff]
                %718 = vst [vmem:[%s196 + $0x820] sm:$0xff] %v717
                %v719 = vld [vmem:[%s195 + $0x40a0] sm:$0xff]
                %720 = vst [vmem:[%s196 + $0x828] sm:$0xff] %v719
                %v721 = vld [vmem:[%s195 + $0x40c0] sm:$0xff]
                %722 = vst [vmem:[%s196 + $0x830] sm:$0xff] %v721
                %v723 = vld [vmem:[%s195 + $0x40e0] sm:$0xff]
                %724 = vst [vmem:[%s196 + $0x838] sm:$0xff] %v723
                %v725 = vld [vmem:[%s195 + $0x4100] sm:$0xff]
                %726 = vst [vmem:[%s196 + $0x840] sm:$0xff] %v725
                %v727 = vld [vmem:[%s195 + $0x4120] sm:$0xff]
                %728 = vst [vmem:[%s196 + $0x848] sm:$0xff] %v727
                %v729 = vld [vmem:[%s195 + $0x4140] sm:$0xff]
                %730 = vst [vmem:[%s196 + $0x850] sm:$0xff] %v729
                %v731 = vld [vmem:[%s195 + $0x4160] sm:$0xff]
                %732 = vst [vmem:[%s196 + $0x858] sm:$0xff] %v731
                %v733 = vld [vmem:[%s195 + $0x4180] sm:$0xff]
                %734 = vst [vmem:[%s196 + $0x860] sm:$0xff] %v733
                %v735 = vld [vmem:[%s195 + $0x41a0] sm:$0xff]
                %736 = vst [vmem:[%s196 + $0x868] sm:$0xff] %v735
                %v737 = vld [vmem:[%s195 + $0x41c0] sm:$0xff]
                %738 = vst [vmem:[%s196 + $0x870] sm:$0xff] %v737
                %v739 = vld [vmem:[%s195 + $0x41e0] sm:$0xff]
                %740 = vst [vmem:[%s196 + $0x878] sm:$0xff] %v739
                %v741 = vld [vmem:[%s195 + $0x4200] sm:$0xff]
                %742 = vst [vmem:[%s196 + $0x880] sm:$0xff] %v741
                %v743 = vld [vmem:[%s195 + $0x4220] sm:$0xff]
                %744 = vst [vmem:[%s196 + $0x888] sm:$0xff] %v743
                %v745 = vld [vmem:[%s195 + $0x4240] sm:$0xff]
                %746 = vst [vmem:[%s196 + $0x890] sm:$0xff] %v745
                %v747 = vld [vmem:[%s195 + $0x4260] sm:$0xff]
                %748 = vst [vmem:[%s196 + $0x898] sm:$0xff] %v747
                %v749 = vld [vmem:[%s195 + $0x4280] sm:$0xff]
                %750 = vst [vmem:[%s196 + $0x8a0] sm:$0xff] %v749
                %v751 = vld [vmem:[%s195 + $0x42a0] sm:$0xff]
                %752 = vst [vmem:[%s196 + $0x8a8] sm:$0xff] %v751
                %v753 = vld [vmem:[%s195 + $0x42c0] sm:$0xff]
                %754 = vst [vmem:[%s196 + $0x8b0] sm:$0xff] %v753
                %v755 = vld [vmem:[%s195 + $0x42e0] sm:$0xff]
                %756 = vst [vmem:[%s196 + $0x8b8] sm:$0xff] %v755
                %v757 = vld [vmem:[%s195 + $0x4300] sm:$0xff]
                %758 = vst [vmem:[%s196 + $0x8c0] sm:$0xff] %v757
                %v759 = vld [vmem:[%s195 + $0x4320] sm:$0xff]
                %760 = vst [vmem:[%s196 + $0x8c8] sm:$0xff] %v759
                %v761 = vld [vmem:[%s195 + $0x4340] sm:$0xff]
                %762 = vst [vmem:[%s196 + $0x8d0] sm:$0xff] %v761
                %v763 = vld [vmem:[%s195 + $0x4360] sm:$0xff]
                %764 = vst [vmem:[%s196 + $0x8d8] sm:$0xff] %v763
                %v765 = vld [vmem:[%s195 + $0x4380] sm:$0xff]
                %766 = vst [vmem:[%s196 + $0x8e0] sm:$0xff] %v765
                %v767 = vld [vmem:[%s195 + $0x43a0] sm:$0xff]
                %768 = vst [vmem:[%s196 + $0x8e8] sm:$0xff] %v767
                %v769 = vld [vmem:[%s195 + $0x43c0] sm:$0xff]
                %770 = vst [vmem:[%s196 + $0x8f0] sm:$0xff] %v769
                %v771 = vld [vmem:[%s195 + $0x43e0] sm:$0xff]
                %772 = vst [vmem:[%s196 + $0x8f8] sm:$0xff] %v771
                %v773 = vld [vmem:[%s195 + $0x4400] sm:$0xff]
                %774 = vst [vmem:[%s196 + $0x900] sm:$0xff] %v773
                %v775 = vld [vmem:[%s195 + $0x4420] sm:$0xff]
                %776 = vst [vmem:[%s196 + $0x908] sm:$0xff] %v775
                %v777 = vld [vmem:[%s195 + $0x4440] sm:$0xff]
                %778 = vst [vmem:[%s196 + $0x910] sm:$0xff] %v777
                %v779 = vld [vmem:[%s195 + $0x4460] sm:$0xff]
                %780 = vst [vmem:[%s196 + $0x918] sm:$0xff] %v779
                %v781 = vld [vmem:[%s195 + $0x4480] sm:$0xff]
                %782 = vst [vmem:[%s196 + $0x920] sm:$0xff] %v781
                %v783 = vld [vmem:[%s195 + $0x44a0] sm:$0xff]
                %784 = vst [vmem:[%s196 + $0x928] sm:$0xff] %v783
                %v785 = vld [vmem:[%s195 + $0x44c0] sm:$0xff]
                %786 = vst [vmem:[%s196 + $0x930] sm:$0xff] %v785
                %v787 = vld [vmem:[%s195 + $0x44e0] sm:$0xff]
                %788 = vst [vmem:[%s196 + $0x938] sm:$0xff] %v787
                %v789 = vld [vmem:[%s195 + $0x4500] sm:$0xff]
                %790 = vst [vmem:[%s196 + $0x940] sm:$0xff] %v789
                %v791 = vld [vmem:[%s195 + $0x4520] sm:$0xff]
                %792 = vst [vmem:[%s196 + $0x948] sm:$0xff] %v791
                %v793 = vld [vmem:[%s195 + $0x4540] sm:$0xff]
                %794 = vst [vmem:[%s196 + $0x950] sm:$0xff] %v793
                %v795 = vld [vmem:[%s195 + $0x4560] sm:$0xff]
                %796 = vst [vmem:[%s196 + $0x958] sm:$0xff] %v795
                %v797 = vld [vmem:[%s195 + $0x4580] sm:$0xff]
                %798 = vst [vmem:[%s196 + $0x960] sm:$0xff] %v797
                %v799 = vld [vmem:[%s195 + $0x45a0] sm:$0xff]
                %800 = vst [vmem:[%s196 + $0x968] sm:$0xff] %v799
                %v801 = vld [vmem:[%s195 + $0x45c0] sm:$0xff]
                %802 = vst [vmem:[%s196 + $0x970] sm:$0xff] %v801
                %v803 = vld [vmem:[%s195 + $0x45e0] sm:$0xff]
                %804 = vst [vmem:[%s196 + $0x978] sm:$0xff] %v803
                %v805 = vld [vmem:[%s195 + $0x4600] sm:$0xff]
                %806 = vst [vmem:[%s196 + $0x980] sm:$0xff] %v805
                %v807 = vld [vmem:[%s195 + $0x4620] sm:$0xff]
                %808 = vst [vmem:[%s196 + $0x988] sm:$0xff] %v807
                %v809 = vld [vmem:[%s195 + $0x4640] sm:$0xff]
                %810 = vst [vmem:[%s196 + $0x990] sm:$0xff] %v809
                %v811 = vld [vmem:[%s195 + $0x4660] sm:$0xff]
                %812 = vst [vmem:[%s196 + $0x998] sm:$0xff] %v811
                %v813 = vld [vmem:[%s195 + $0x4680] sm:$0xff]
                %814 = vst [vmem:[%s196 + $0x9a0] sm:$0xff] %v813
                %v815 = vld [vmem:[%s195 + $0x46a0] sm:$0xff]
                %816 = vst [vmem:[%s196 + $0x9a8] sm:$0xff] %v815
                %v817 = vld [vmem:[%s195 + $0x46c0] sm:$0xff]
                %818 = vst [vmem:[%s196 + $0x9b0] sm:$0xff] %v817
                %v819 = vld [vmem:[%s195 + $0x46e0] sm:$0xff]
                %820 = vst [vmem:[%s196 + $0x9b8] sm:$0xff] %v819
                %v821 = vld [vmem:[%s195 + $0x4700] sm:$0xff]
                %822 = vst [vmem:[%s196 + $0x9c0] sm:$0xff] %v821
                %v823 = vld [vmem:[%s195 + $0x4720] sm:$0xff]
                %824 = vst [vmem:[%s196 + $0x9c8] sm:$0xff] %v823
                %v825 = vld [vmem:[%s195 + $0x4740] sm:$0xff]
                %826 = vst [vmem:[%s196 + $0x9d0] sm:$0xff] %v825
                %v827 = vld [vmem:[%s195 + $0x4760] sm:$0xff]
                %828 = vst [vmem:[%s196 + $0x9d8] sm:$0xff] %v827
                %v829 = vld [vmem:[%s195 + $0x4780] sm:$0xff]
                %830 = vst [vmem:[%s196 + $0x9e0] sm:$0xff] %v829
                %v831 = vld [vmem:[%s195 + $0x47a0] sm:$0xff]
                %832 = vst [vmem:[%s196 + $0x9e8] sm:$0xff] %v831
                %v833 = vld [vmem:[%s195 + $0x47c0] sm:$0xff]
                %834 = vst [vmem:[%s196 + $0x9f0] sm:$0xff] %v833
                %v835 = vld [vmem:[%s195 + $0x47e0] sm:$0xff]
                %836 = vst [vmem:[%s196 + $0x9f8] sm:$0xff] %v835
              $region41: #{cc_discriminator_p_forward.7} parent=35 // loop_footer
                %s194 = sadd.s32 1, %s190
              $region42: #{cc_discriminator_p_forward.7} parent=35 // loop_footer_branch
                %189 = sbr.rel target = $region38
              $region43: #{cc_discriminator_p_forward.7} parent=35 // loop_exit
                _
            $region36: #{cc_discriminator_p_forward.7} parent=27 // pred_fallthru
              _
          $region28: #{cc_discriminator_p_forward.7} parent=23 // pred_fallthru
            _
          %1489 = vnop
        $region24: #{cc_discriminator_p_forward.7} parent=15 // pred_fallthru
          _
        // Predicated region
        $region59: #{cc_discriminator_p_forward.7} parent=15 // pred_check
          %p1490 = pneg %p104
        $region60: #{cc_discriminator_p_forward.7} parent=15 // pred_check_branch
          %1492 = sbr.rel (%p1490) target = $region62
        $region61: #{cc_discriminator_p_forward.7} parent=15 // pred_region
          %s1493 = smul.u32 2, %s17
          %p1494 = scmp.lt.s32.totalorder %s1493, 7
          %s1495 = scalar_select %p1494, %s1493, 7
          %s1496 = scalar_lea.vmem %s2, %s1495
          %s1497 = smul.u32 2, %s17
        $region62: #{cc_discriminator_p_forward.7} parent=15 // pred_fallthru
          _
      $region16: #{cc_discriminator_p_forward.7} parent=5 // pred_fallthru
        _
      %p1498 = scmp.le.s32.totalorder 1, %s9
      %p1499 = scmp.lt.s32.totalorder %s9, 33
      %p1500 = pnand %p1498, %p1499
      %p1501 = pneg %p1500
      // Predicated region
      $region63: #{cc_discriminator_p_forward.7} parent=5 // pred_check
        _
      $region64: #{cc_discriminator_p_forward.7} parent=5 // pred_check_branch
        %1503 = sbr.rel (%p1500) target = $region66
      $region65: #{cc_discriminator_p_forward.7} parent=5 // pred_region
        %s1504 = ssub.s32 %s9, 1
        %s1505 = sand.u32 %s71, 1
        %s1506 = sand.u32 %s71, 1
        %s1507 = smul.addr %s1506, 2560
        %s1508 = scalar_lea.vmem [#allocation4], %s1507
        // Predicated region
        $region67: #{cc_discriminator_p_forward.7} parent=65 // pred_check
          %p1509 = pneg %p84
        $region68: #{cc_discriminator_p_forward.7} parent=65 // pred_check_branch
          %1511 = sbr.rel (%p1509) target = $region70
        $region69: #{cc_discriminator_p_forward.7} parent=65 // pred_region
          _
        $region70: #{cc_discriminator_p_forward.7} parent=65 // pred_fallthru
          _
        %s1512 = smul.u32 4, %s21
        %p1513 = scmp.lt.s32.totalorder %s19, 3
        %s1514 = scalar_select %p1513, %s19, 3
        %p1515 = scmp.lt.s32.totalorder %s1512, 7
        %s1516 = scalar_select %p1515, %s1512, 7
        %s1517 = smul.addr %s1514, 8
        %s1518 = sadd.s32 %s1516, %s1517
        %s1519 = scalar_lea.vmem %s0, %s1518
        %p1520 = pneg %p56
        %p1521 = pneg %p53
        %s1522 = sand.u32 %s71, 1
        %s1523 = sand.u32 %s71, 1
        %s1524 = smul.addr %s1523, 2560
        %s1525 = scalar_lea.vmem [#allocation4], %s1524
        %p1526 = pneg %p84
        %p1527 = pneg %p81
        %s1528 = smul.u32 2, %s20
        %p1529 = scmp.lt.s32.totalorder %s1528, 7
        %s1530 = scalar_select %p1529, %s1528, 7
        %s1531 = scalar_lea.vmem %s2, %s1530
        %p1532 = pneg %p110
        %p1533 = pneg %p107
        %p1534 = pneg %p138
        %p1535 = pneg %p135
        %s1536 = smul.u32 2, %s20
        %p1537 = scmp.lt.s32.totalorder %s19, 3
        %s1538 = scalar_select %p1537, %s19, 3
        %p1539 = scmp.lt.s32.totalorder %s1536, 7
        %s1540 = scalar_select %p1539, %s1536, 7
        %s1541 = smul.addr %s1538, 8
        %s1542 = sadd.s32 %s1540, %s1541
        %s1543 = scalar_lea.vmem %s3, %s1542
        %s1544 = smul.u32 4, %s21
        %p1545 = scmp.lt.s32.totalorder %s19, 3
        %s1546 = scalar_select %p1545, %s19, 3
        %p1547 = scmp.lt.s32.totalorder %s1544, 7
        %s1548 = scalar_select %p1547, %s1544, 7
        %s1549 = smul.addr %s1546, 8
        %s1550 = sadd.s32 %s1548, %s1549
        %s1551 = scalar_lea.vmem %s0, %s1550
        %s1552 = smul.u32 4, %s21
        %s1553 = smul.u32 64, %s21
        %s1554 = smul.u32 2, %s20
        %s1555 = smul.u32 2, %s20
        %p1556 = scmp.lt.s32.totalorder %s1555, 7
        %s1557 = scalar_select %p1556, %s1555, 7
        %s1558 = scalar_lea.vmem %s2, %s1557
        %s1559 = smul.u32 2, %s20
        %s1560 = smul.u32 2, %s20
        %p1561 = scmp.lt.s32.totalorder %s19, 3
        %s1562 = scalar_select %p1561, %s19, 3
        %p1563 = scmp.lt.s32.totalorder %s1560, 7
        %s1564 = scalar_select %p1563, %s1560, 7
        %s1565 = smul.addr %s1562, 8
        %s1566 = sadd.s32 %s1564, %s1565
        %s1567 = scalar_lea.vmem %s3, %s1566
        %s1568 = smul.u32 2, %s20
        %p1570 = scmp.eq.s32.totalorder %s21, 0
        // Predicated region
        $region71: #{cc_discriminator_p_forward.7} parent=65 // pred_check
          %p1571 = pneg %p1570
        $region72: #{cc_discriminator_p_forward.7} parent=65 // pred_check_branch
          %1573 = sbr.rel (%p1571) target = $region74
        $region73: #{cc_discriminator_p_forward.7} parent=65 // pred_region
          %v1574 = vlaneseq
          %vm1575 = vcmp.ge.s32.totalorder %v1574, 0
          %vm1576 = vcmp.lt.s32.totalorder %v1574, 256
          %vm1577 = vmand %vm1575, %vm1576
          %1578 = vst.msk [vmem:[#allocation2] sm:$0x3] %vm1577, 0.0
        $region74: #{cc_discriminator_p_forward.7} parent=65 // pred_fallthru
          _
        %vm1579 = vcmask 1042432
        %vm1580 = vsmask.f32 2304
        %vm1581 = vmand %vm1579, %vm1580
        %vm1582 = vcmask 1046532
        %vm1583 = vsmask.f32 6400
        %vm1584 = vmand %vm1582, %vm1583
        %vm1585 = vmor %vm1584, %vm1581
        %v1586 = vld [vmem:[#allocation3] sm:$0x77]
        %v1587 = vsel %vm1585, 0, %v1586
        %1588 = vst [vmem:[#allocation3] sm:$0x77] %v1587
        %v1589 = vld [vmem:[#allocation3 + $0x8] sm:$0x77]
        %v1590 = vsel %vm1585, 0, %v1589
        %1591 = vst [vmem:[#allocation3 + $0x8] sm:$0x77] %v1590
        %v1592 = vld [vmem:[%s1551] sm:$0xf]
        %v1595 = vunpack.c.l.s4 1935823168
        %v1596 = vunpack.c.0.s8 %v1595
        %v1597 = vlaneseq
        %v1598 = vshrl.u32 %v1597, 7
        %v1599 = vsub.s32 %v1596, %v1598
        %v1600 = vrot.slane %v1592, %v1599
        %v1601 = vcombine.low %v1600, %v1600
        %v1603 = vunpack.c.l.s4 1935823168
        %v1604 = vunpack.c.0.s8 %v1603
        %v1605 = vlaneseq
        %v1606 = vshrl.u32 %v1605, 7
        %v1607 = vsub.s32 %v1604, %v1606
        %v1608 = vrot.slane %v1601, %v1607
        %v1610 = vunpack.c.l.s4 1935823168
        %v1611 = vunpack.c.0.s8 %v1610
        %v1612 = vlaneseq
        %v1613 = vshrl.u32 %v1612, 7
        %v1614 = vsub.s32 %v1611, %v1613
        %v1615 = vrot.slane %v1600, %v1614
        %vm1618 = vcmask 1041409
        %vm1619 = vsmask.f32 1280
        %vm1620 = vmand %vm1618, %vm1619
        %vm1621 = vcmask 1045509
        %vm1622 = vsmask.f32 5376
        %vm1623 = vmand %vm1621, %vm1622
        %vm1624 = vmor %vm1623, %vm1620
        %v1625 = vld [vmem:[#allocation3] sm:$0x22]
        %v1626 = vsel %vm1624, %v1608, %v1625
        %1627 = vst [vmem:[#allocation3] sm:$0x22] %v1626
        %v1628 = vld [vmem:[#allocation3 + $0x8] sm:$0x22]
        %v1629 = vsel %vm1624, %v1615, %v1628
        %1630 = vst [vmem:[#allocation3 + $0x8] sm:$0x22] %v1629
        %v1631 = vld [vmem:[#allocation2] sm:$0x3]
        %v1632 = vld [vmem:[#allocation3] sm:$0x11]
        %v1633 = vld [vmem:[#allocation3 + $0x8] sm:$0x11]
        %v1634 = vld [vmem:[%s1508] sm:$0xff]
        %v1635 = vld [vmem:[%s1508 + $0x8] sm:$0xff]
        %v1636 = vld [vmem:[%s1508 + $0x10] sm:$0xff]
        %v1637 = vld [vmem:[%s1508 + $0x18] sm:$0xff]
        %v1638 = vld [vmem:[%s1508 + $0x20] sm:$0xff]
        %v1639 = vld [vmem:[%s1508 + $0x28] sm:$0xff]
        %v1640 = vld [vmem:[%s1508 + $0x30] sm:$0xff]
        %v1641 = vld [vmem:[%s1508 + $0x38] sm:$0xff]
        %v1642 = vld [vmem:[%s1508 + $0x40] sm:$0xff]
        %v1643 = vld [vmem:[%s1508 + $0x48] sm:$0xff]
        %v1644 = vld [vmem:[%s1508 + $0x50] sm:$0xff]
        %v1645 = vld [vmem:[%s1508 + $0x58] sm:$0xff]
        %v1646 = vld [vmem:[%s1508 + $0x60] sm:$0xff]
        %v1647 = vld [vmem:[%s1508 + $0x68] sm:$0xff]
        %v1648 = vld [vmem:[%s1508 + $0x70] sm:$0xff]
        %v1649 = vld [vmem:[%s1508 + $0x78] sm:$0xff]
        %v1650 = vld [vmem:[%s1508 + $0x80] sm:$0xff]
        %v1651 = vld [vmem:[%s1508 + $0x88] sm:$0xff]
        %v1652 = vld [vmem:[%s1508 + $0x90] sm:$0xff]
        %v1653 = vld [vmem:[%s1508 + $0x98] sm:$0xff]
        %v1654 = vld [vmem:[%s1508 + $0xa0] sm:$0xff]
        %v1655 = vld [vmem:[%s1508 + $0xa8] sm:$0xff]
        %v1656 = vld [vmem:[%s1508 + $0xb0] sm:$0xff]
        %v1657 = vld [vmem:[%s1508 + $0xb8] sm:$0xff]
        %v1658 = vld [vmem:[%s1508 + $0xc0] sm:$0xff]
        %v1659 = vld [vmem:[%s1508 + $0xc8] sm:$0xff]
        %v1660 = vld [vmem:[%s1508 + $0xd0] sm:$0xff]
        %v1661 = vld [vmem:[%s1508 + $0xd8] sm:$0xff]
        %v1662 = vld [vmem:[%s1508 + $0xe0] sm:$0xff]
        %v1663 = vld [vmem:[%s1508 + $0xe8] sm:$0xff]
        %v1664 = vld [vmem:[%s1508 + $0xf0] sm:$0xff]
        %v1665 = vld [vmem:[%s1508 + $0xf8] sm:$0xff]
        %v1666 = vld [vmem:[%s1508 + $0x100] sm:$0xff]
        %v1667 = vld [vmem:[%s1508 + $0x108] sm:$0xff]
        %v1668 = vld [vmem:[%s1508 + $0x110] sm:$0xff]
        %v1669 = vld [vmem:[%s1508 + $0x118] sm:$0xff]
        %v1670 = vld [vmem:[%s1508 + $0x120] sm:$0xff]
        %v1671 = vld [vmem:[%s1508 + $0x128] sm:$0xff]
        %v1672 = vld [vmem:[%s1508 + $0x130] sm:$0xff]
        %v1673 = vld [vmem:[%s1508 + $0x138] sm:$0xff]
        %v1674 = vld [vmem:[%s1508 + $0x140] sm:$0xff]
        %v1675 = vld [vmem:[%s1508 + $0x148] sm:$0xff]
        %v1676 = vld [vmem:[%s1508 + $0x150] sm:$0xff]
        %v1677 = vld [vmem:[%s1508 + $0x158] sm:$0xff]
        %v1678 = vld [vmem:[%s1508 + $0x160] sm:$0xff]
        %v1679 = vld [vmem:[%s1508 + $0x168] sm:$0xff]
        %v1680 = vld [vmem:[%s1508 + $0x170] sm:$0xff]
        %v1681 = vld [vmem:[%s1508 + $0x178] sm:$0xff]
        %v1682 = vld [vmem:[%s1508 + $0x180] sm:$0xff]
        %v1683 = vld [vmem:[%s1508 + $0x188] sm:$0xff]
        %v1684 = vld [vmem:[%s1508 + $0x190] sm:$0xff]
        %v1685 = vld [vmem:[%s1508 + $0x198] sm:$0xff]
        %v1686 = vld [vmem:[%s1508 + $0x1a0] sm:$0xff]
        %v1687 = vld [vmem:[%s1508 + $0x1a8] sm:$0xff]
        %v1688 = vld [vmem:[%s1508 + $0x1b0] sm:$0xff]
        %v1689 = vld [vmem:[%s1508 + $0x1b8] sm:$0xff]
        %v1690 = vld [vmem:[%s1508 + $0x1c0] sm:$0xff]
        %v1691 = vld [vmem:[%s1508 + $0x1c8] sm:$0xff]
        %v1692 = vld [vmem:[%s1508 + $0x1d0] sm:$0xff]
        %v1693 = vld [vmem:[%s1508 + $0x1d8] sm:$0xff]
        %v1694 = vld [vmem:[%s1508 + $0x1e0] sm:$0xff]
        %v1695 = vld [vmem:[%s1508 + $0x1e8] sm:$0xff]
        %v1696 = vld [vmem:[%s1508 + $0x1f0] sm:$0xff]
        %v1697 = vld [vmem:[%s1508 + $0x1f8] sm:$0xff]
        %v1700 = vunpack.c.l.b16 %v1632
        %v1701 = vunpack.c.h.b16 %v1632
        %v1702 = vunpack.c.l.b16 %v1633
        %v1703 = vunpack.c.h.b16 %v1633
        %v1704 = vpack.c.b16 %v1700, %v1700
        %v1705 = vpack.c.b16 %v1701, %v1701
        %v1706 = vpack.c.b16 %v1702, %v1702
        %v1707 = vpack.c.b16 %v1703, %v1703
        %v1776 = vunpack.c.l.b16 %v1634
        %v1777 = vunpack.c.h.b16 %v1634
        %v1778 = vunpack.c.l.b16 %v1635
        %v1779 = vunpack.c.h.b16 %v1635
        %v1780 = vunpack.c.l.b16 %v1636
        %v1781 = vunpack.c.h.b16 %v1636
        %v1782 = vunpack.c.l.b16 %v1637
        %v1783 = vunpack.c.h.b16 %v1637
        %v1784 = vunpack.c.l.b16 %v1638
        %v1785 = vunpack.c.h.b16 %v1638
        %v1786 = vunpack.c.l.b16 %v1639
        %v1787 = vunpack.c.h.b16 %v1639
        %v1788 = vunpack.c.l.b16 %v1640
        %v1789 = vunpack.c.h.b16 %v1640
        %v1790 = vunpack.c.l.b16 %v1641
        %v1791 = vunpack.c.h.b16 %v1641
        %v1792 = vunpack.c.l.b16 %v1642
        %v1793 = vunpack.c.h.b16 %v1642
        %v1794 = vunpack.c.l.b16 %v1643
        %v1795 = vunpack.c.h.b16 %v1643
        %v1796 = vunpack.c.l.b16 %v1644
        %v1797 = vunpack.c.h.b16 %v1644
        %v1798 = vunpack.c.l.b16 %v1645
        %v1799 = vunpack.c.h.b16 %v1645
        %v1800 = vunpack.c.l.b16 %v1646
        %v1801 = vunpack.c.h.b16 %v1646
        %v1802 = vunpack.c.l.b16 %v1647
        %v1803 = vunpack.c.h.b16 %v1647
        %v1804 = vunpack.c.l.b16 %v1648
        %v1805 = vunpack.c.h.b16 %v1648
        %v1806 = vunpack.c.l.b16 %v1649
        %v1807 = vunpack.c.h.b16 %v1649
        %v1808 = vunpack.c.l.b16 %v1650
        %v1809 = vunpack.c.h.b16 %v1650
        %v1810 = vunpack.c.l.b16 %v1651
        %v1811 = vunpack.c.h.b16 %v1651
        %v1812 = vunpack.c.l.b16 %v1652
        %v1813 = vunpack.c.h.b16 %v1652
        %v1814 = vunpack.c.l.b16 %v1653
        %v1815 = vunpack.c.h.b16 %v1653
        %v1816 = vunpack.c.l.b16 %v1654
        %v1817 = vunpack.c.h.b16 %v1654
        %v1818 = vunpack.c.l.b16 %v1655
        %v1819 = vunpack.c.h.b16 %v1655
        %v1820 = vunpack.c.l.b16 %v1656
        %v1821 = vunpack.c.h.b16 %v1656
        %v1822 = vunpack.c.l.b16 %v1657
        %v1823 = vunpack.c.h.b16 %v1657
        %v1824 = vunpack.c.l.b16 %v1658
        %v1825 = vunpack.c.h.b16 %v1658
        %v1826 = vunpack.c.l.b16 %v1659
        %v1827 = vunpack.c.h.b16 %v1659
        %v1828 = vunpack.c.l.b16 %v1660
        %v1829 = vunpack.c.h.b16 %v1660
        %v1830 = vunpack.c.l.b16 %v1661
        %v1831 = vunpack.c.h.b16 %v1661
        %v1832 = vunpack.c.l.b16 %v1662
        %v1833 = vunpack.c.h.b16 %v1662
        %v1834 = vunpack.c.l.b16 %v1663
        %v1835 = vunpack.c.h.b16 %v1663
        %v1836 = vunpack.c.l.b16 %v1664
        %v1837 = vunpack.c.h.b16 %v1664
        %v1838 = vunpack.c.l.b16 %v1665
        %v1839 = vunpack.c.h.b16 %v1665
        %v1840 = vunpack.c.l.b16 %v1666
        %v1841 = vunpack.c.h.b16 %v1666
        %v1842 = vunpack.c.l.b16 %v1667
        %v1843 = vunpack.c.h.b16 %v1667
        %v1844 = vunpack.c.l.b16 %v1668
        %v1845 = vunpack.c.h.b16 %v1668
        %v1846 = vunpack.c.l.b16 %v1669
        %v1847 = vunpack.c.h.b16 %v1669
        %v1848 = vunpack.c.l.b16 %v1670
        %v1849 = vunpack.c.h.b16 %v1670
        %v1850 = vunpack.c.l.b16 %v1671
        %v1851 = vunpack.c.h.b16 %v1671
        %v1852 = vunpack.c.l.b16 %v1672
        %v1853 = vunpack.c.h.b16 %v1672
        %v1854 = vunpack.c.l.b16 %v1673
        %v1855 = vunpack.c.h.b16 %v1673
        %v1856 = vunpack.c.l.b16 %v1674
        %v1857 = vunpack.c.h.b16 %v1674
        %v1858 = vunpack.c.l.b16 %v1675
        %v1859 = vunpack.c.h.b16 %v1675
        %v1860 = vunpack.c.l.b16 %v1676
        %v1861 = vunpack.c.h.b16 %v1676
        %v1862 = vunpack.c.l.b16 %v1677
        %v1863 = vunpack.c.h.b16 %v1677
        %v1864 = vunpack.c.l.b16 %v1678
        %v1865 = vunpack.c.h.b16 %v1678
        %v1866 = vunpack.c.l.b16 %v1679
        %v1867 = vunpack.c.h.b16 %v1679
        %v1868 = vunpack.c.l.b16 %v1680
        %v1869 = vunpack.c.h.b16 %v1680
        %v1870 = vunpack.c.l.b16 %v1681
        %v1871 = vunpack.c.h.b16 %v1681
        %v1872 = vunpack.c.l.b16 %v1682
        %v1873 = vunpack.c.h.b16 %v1682
        %v1874 = vunpack.c.l.b16 %v1683
        %v1875 = vunpack.c.h.b16 %v1683
        %v1876 = vunpack.c.l.b16 %v1684
        %v1877 = vunpack.c.h.b16 %v1684
        %v1878 = vunpack.c.l.b16 %v1685
        %v1879 = vunpack.c.h.b16 %v1685
        %v1880 = vunpack.c.l.b16 %v1686
        %v1881 = vunpack.c.h.b16 %v1686
        %v1882 = vunpack.c.l.b16 %v1687
        %v1883 = vunpack.c.h.b16 %v1687
        %v1884 = vunpack.c.l.b16 %v1688
        %v1885 = vunpack.c.h.b16 %v1688
        %v1886 = vunpack.c.l.b16 %v1689
        %v1887 = vunpack.c.h.b16 %v1689
        %v1888 = vunpack.c.l.b16 %v1690
        %v1889 = vunpack.c.h.b16 %v1690
        %v1890 = vunpack.c.l.b16 %v1691
        %v1891 = vunpack.c.h.b16 %v1691
        %v1892 = vunpack.c.l.b16 %v1692
        %v1893 = vunpack.c.h.b16 %v1692
        %v1894 = vunpack.c.l.b16 %v1693
        %v1895 = vunpack.c.h.b16 %v1693
        %v1896 = vunpack.c.l.b16 %v1694
        %v1897 = vunpack.c.h.b16 %v1694
        %v1898 = vunpack.c.l.b16 %v1695
        %v1899 = vunpack.c.h.b16 %v1695
        %v1900 = vunpack.c.l.b16 %v1696
        %v1901 = vunpack.c.h.b16 %v1696
        %v1902 = vunpack.c.l.b16 %v1697
        %v1903 = vunpack.c.h.b16 %v1697
        %v1904 = vpack.c.b16 %v1778, %v1776
        %v1905 = vpack.c.b16 %v1779, %v1777
        %v1906 = vpack.c.b16 %v1782, %v1780
        %v1907 = vpack.c.b16 %v1783, %v1781
        %v1908 = vpack.c.b16 %v1786, %v1784
        %v1909 = vpack.c.b16 %v1787, %v1785
        %v1910 = vpack.c.b16 %v1790, %v1788
        %v1911 = vpack.c.b16 %v1791, %v1789
        %v1912 = vpack.c.b16 %v1794, %v1792
        %v1913 = vpack.c.b16 %v1795, %v1793
        %v1914 = vpack.c.b16 %v1798, %v1796
        %v1915 = vpack.c.b16 %v1799, %v1797
        %v1916 = vpack.c.b16 %v1802, %v1800
        %v1917 = vpack.c.b16 %v1803, %v1801
        %v1918 = vpack.c.b16 %v1806, %v1804
        %v1919 = vpack.c.b16 %v1807, %v1805
        %v1920 = vpack.c.b16 %v1810, %v1808
        %v1921 = vpack.c.b16 %v1811, %v1809
        %v1922 = vpack.c.b16 %v1814, %v1812
        %v1923 = vpack.c.b16 %v1815, %v1813
        %v1924 = vpack.c.b16 %v1818, %v1816
        %v1925 = vpack.c.b16 %v1819, %v1817
        %v1926 = vpack.c.b16 %v1822, %v1820
        %v1927 = vpack.c.b16 %v1823, %v1821
        %v1928 = vpack.c.b16 %v1826, %v1824
        %v1929 = vpack.c.b16 %v1827, %v1825
        %v1930 = vpack.c.b16 %v1830, %v1828
        %v1931 = vpack.c.b16 %v1831, %v1829
        %v1932 = vpack.c.b16 %v1834, %v1832
        %v1933 = vpack.c.b16 %v1835, %v1833
        %v1934 = vpack.c.b16 %v1838, %v1836
        %v1935 = vpack.c.b16 %v1839, %v1837
        %v1936 = vpack.c.b16 %v1842, %v1840
        %v1937 = vpack.c.b16 %v1843, %v1841
        %v1938 = vpack.c.b16 %v1846, %v1844
        %v1939 = vpack.c.b16 %v1847, %v1845
        %v1940 = vpack.c.b16 %v1850, %v1848
        %v1941 = vpack.c.b16 %v1851, %v1849
        %v1942 = vpack.c.b16 %v1854, %v1852
        %v1943 = vpack.c.b16 %v1855, %v1853
        %v1944 = vpack.c.b16 %v1858, %v1856
        %v1945 = vpack.c.b16 %v1859, %v1857
        %v1946 = vpack.c.b16 %v1862, %v1860
        %v1947 = vpack.c.b16 %v1863, %v1861
        %v1948 = vpack.c.b16 %v1866, %v1864
        %v1949 = vpack.c.b16 %v1867, %v1865
        %v1950 = vpack.c.b16 %v1870, %v1868
        %v1951 = vpack.c.b16 %v1871, %v1869
        %v1952 = vpack.c.b16 %v1874, %v1872
        %v1953 = vpack.c.b16 %v1875, %v1873
        %v1954 = vpack.c.b16 %v1878, %v1876
        %v1955 = vpack.c.b16 %v1879, %v1877
        %v1956 = vpack.c.b16 %v1882, %v1880
        %v1957 = vpack.c.b16 %v1883, %v1881
        %v1958 = vpack.c.b16 %v1886, %v1884
        %v1959 = vpack.c.b16 %v1887, %v1885
        %v1960 = vpack.c.b16 %v1890, %v1888
        %v1961 = vpack.c.b16 %v1891, %v1889
        %v1962 = vpack.c.b16 %v1894, %v1892
        %v1963 = vpack.c.b16 %v1895, %v1893
        %v1964 = vpack.c.b16 %v1898, %v1896
        %v1965 = vpack.c.b16 %v1899, %v1897
        %v1966 = vpack.c.b16 %v1902, %v1900
        %v1967 = vpack.c.b16 %v1903, %v1901
        %2032 = vmatprep.subr.bf16.mxu0 %v1905
        %2033 = vmatpush1.bf16.msra.mxu0 %v1904
        %2034 = vmatprep.subr.bf16.mxu0 %v1907
        %2035 = vmatpush1.bf16.msra.mxu0 %v1906
        %2036 = vmatprep.subr.bf16.mxu0 %v1909
        %2037 = vmatpush1.bf16.msra.mxu0 %v1908
        %2038 = vmatprep.subr.bf16.mxu0 %v1911
        %2039 = vmatpush1.bf16.msra.mxu0 %v1910
        %2040 = vmatprep.subr.bf16.mxu0 %v1913
        %2041 = vmatpush1.bf16.msra.mxu0 %v1912
        %2042 = vmatprep.subr.bf16.mxu0 %v1915
        %2043 = vmatpush1.bf16.msra.mxu0 %v1914
        %2044 = vmatprep.subr.bf16.mxu0 %v1917
        %2045 = vmatpush1.bf16.msra.mxu0 %v1916
        %2046 = vmatprep.subr.bf16.mxu0 %v1919
        %2047 = vmatpush1.bf16.msra.mxu0 %v1918
        %2048 = vmatprep.subr.bf16.mxu0 %v1921
        %2049 = vmatpush1.bf16.msra.mxu0 %v1920
        %2050 = vmatprep.subr.bf16.mxu0 %v1923
        %2051 = vmatpush1.bf16.msra.mxu0 %v1922
        %2052 = vmatprep.subr.bf16.mxu0 %v1925
        %2053 = vmatpush1.bf16.msra.mxu0 %v1924
        %2054 = vmatprep.subr.bf16.mxu0 %v1927
        %2055 = vmatpush1.bf16.msra.mxu0 %v1926
        %2056 = vmatprep.subr.bf16.mxu0 %v1929
        %2057 = vmatpush1.bf16.msra.mxu0 %v1928
        %2058 = vmatprep.subr.bf16.mxu0 %v1931
        %2059 = vmatpush1.bf16.msra.mxu0 %v1930
        %2060 = vmatprep.subr.bf16.mxu0 %v1933
        %2061 = vmatpush1.bf16.msra.mxu0 %v1932
        %2062 = vmatprep.subr.bf16.mxu0 %v1935
        %2063 = vmatpush1.bf16.msra.mxu0 %v1934
        %2064 = vmatprep.mubr.bf16.mxu0 %v1705
        %2065 = vmatmul.mubr.bf16.gmra.mrb[0].mxu0 %v1704
        %v2066 = vpop.f32.mrb[0].mxu0
        %v2067 = vadd.f32 0.0, %v2066
        %v2068 = vpop.f32.mrb[0].mxu0
        %v2069 = vadd.f32 0.0, %v2068
        %v2070 = vpop.f32.mrb[0].mxu0
        %v2071 = vpop.f32.mrb[0].mxu0
        %2072 = vdwg.mxu0
        %2073 = vmatprep.subr.bf16.mxu0 %v1937
        %2074 = vmatpush1.bf16.msra.mxu0 %v1936
        %2075 = vmatprep.subr.bf16.mxu0 %v1939
        %2076 = vmatpush1.bf16.msra.mxu0 %v1938
        %2077 = vmatprep.subr.bf16.mxu0 %v1941
        %2078 = vmatpush1.bf16.msra.mxu0 %v1940
        %2079 = vmatprep.subr.bf16.mxu0 %v1943
        %2080 = vmatpush1.bf16.msra.mxu0 %v1942
        %2081 = vmatprep.subr.bf16.mxu0 %v1945
        %2082 = vmatpush1.bf16.msra.mxu0 %v1944
        %2083 = vmatprep.subr.bf16.mxu0 %v1947
        %2084 = vmatpush1.bf16.msra.mxu0 %v1946
        %2085 = vmatprep.subr.bf16.mxu0 %v1949
        %2086 = vmatpush1.bf16.msra.mxu0 %v1948
        %2087 = vmatprep.subr.bf16.mxu0 %v1951
        %2088 = vmatpush1.bf16.msra.mxu0 %v1950
        %2089 = vmatprep.subr.bf16.mxu0 %v1953
        %2090 = vmatpush1.bf16.msra.mxu0 %v1952
        %2091 = vmatprep.subr.bf16.mxu0 %v1955
        %2092 = vmatpush1.bf16.msra.mxu0 %v1954
        %2093 = vmatprep.subr.bf16.mxu0 %v1957
        %2094 = vmatpush1.bf16.msra.mxu0 %v1956
        %2095 = vmatprep.subr.bf16.mxu0 %v1959
        %2096 = vmatpush1.bf16.msra.mxu0 %v1958
        %2097 = vmatprep.subr.bf16.mxu0 %v1961
        %2098 = vmatpush1.bf16.msra.mxu0 %v1960
        %2099 = vmatprep.subr.bf16.mxu0 %v1963
        %2100 = vmatpush1.bf16.msra.mxu0 %v1962
        %2101 = vmatprep.subr.bf16.mxu0 %v1965
        %2102 = vmatpush1.bf16.msra.mxu0 %v1964
        %2103 = vmatprep.subr.bf16.mxu0 %v1967
        %2104 = vmatpush1.bf16.msra.mxu0 %v1966
        %2105 = vmatprep.mubr.bf16.mxu0 %v1707
        %2106 = vmatmul.mubr.bf16.gmra.mrb[0].mxu0 %v1706
        %v2107 = vpop.f32.mrb[0].mxu0
        %v2108 = vadd.f32 %v2067, %v2107
        %v2109 = vpop.f32.mrb[0].mxu0
        %v2110 = vadd.f32 %v2069, %v2109
        %v2111 = vpop.f32.mrb[0].mxu0
        %v2112 = vpop.f32.mrb[0].mxu0
        %2113 = vdwg.mxu0
        %v2116 = vcombine.low %v2108, %v2110
        %v2118 = vunpack.c.l.s4 1966171168
        %v2119 = vunpack.c.0.s8 %v2118
        %v2120 = vlaneseq
        %v2121 = vshrl.u32 %v2120, 7
        %v2122 = vsub.s32 %v2119, %v2121
        %v2123 = vrot.slane %v2116, %v2122
        %v2125 = vunpack.c.l.s4 1966171168
        %v2126 = vunpack.c.0.s8 %v2125
        %v2127 = vlaneseq
        %v2128 = vshrl.u32 %v2127, 7
        %v2129 = vsub.s32 %v2126, %v2128
        %v2130 = vrot.slane %v2123, %v2129
        %v2132 = vadd.f32 %v1631, %v2130
        %v2133 = vld [vmem:[#allocation3] sm:$0x11]
        %v2134 = vld [vmem:[#allocation3 + $0x8] sm:$0x11]
        %s2135 = scalar_lea.vmem %s1508, 512 [#allocation4]
        %v2136 = vld [vmem:[%s2135] sm:$0xff]
        %v2137 = vld [vmem:[%s2135 + $0x8] sm:$0xff]
        %v2138 = vld [vmem:[%s2135 + $0x10] sm:$0xff]
        %v2139 = vld [vmem:[%s2135 + $0x18] sm:$0xff]
        %v2140 = vld [vmem:[%s2135 + $0x20] sm:$0xff]
        %v2141 = vld [vmem:[%s2135 + $0x28] sm:$0xff]
        %v2142 = vld [vmem:[%s2135 + $0x30] sm:$0xff]
        %v2143 = vld [vmem:[%s2135 + $0x38] sm:$0xff]
        %v2144 = vld [vmem:[%s2135 + $0x40] sm:$0xff]
        %v2145 = vld [vmem:[%s2135 + $0x48] sm:$0xff]
        %v2146 = vld [vmem:[%s2135 + $0x50] sm:$0xff]
        %v2147 = vld [vmem:[%s2135 + $0x58] sm:$0xff]
        %v2148 = vld [vmem:[%s2135 + $0x60] sm:$0xff]
        %v2149 = vld [vmem:[%s2135 + $0x68] sm:$0xff]
        %v2150 = vld [vmem:[%s2135 + $0x70] sm:$0xff]
        %v2151 = vld [vmem:[%s2135 + $0x78] sm:$0xff]
        %v2152 = vld [vmem:[%s2135 + $0x80] sm:$0xff]
        %v2153 = vld [vmem:[%s2135 + $0x88] sm:$0xff]
        %v2154 = vld [vmem:[%s2135 + $0x90] sm:$0xff]
        %v2155 = vld [vmem:[%s2135 + $0x98] sm:$0xff]
        %v2156 = vld [vmem:[%s2135 + $0xa0] sm:$0xff]
        %v2157 = vld [vmem:[%s2135 + $0xa8] sm:$0xff]
        %v2158 = vld [vmem:[%s2135 + $0xb0] sm:$0xff]
        %v2159 = vld [vmem:[%s2135 + $0xb8] sm:$0xff]
        %v2160 = vld [vmem:[%s2135 + $0xc0] sm:$0xff]
        %v2161 = vld [vmem:[%s2135 + $0xc8] sm:$0xff]
        %v2162 = vld [vmem:[%s2135 + $0xd0] sm:$0xff]
        %v2163 = vld [vmem:[%s2135 + $0xd8] sm:$0xff]
        %v2164 = vld [vmem:[%s2135 + $0xe0] sm:$0xff]
        %v2165 = vld [vmem:[%s2135 + $0xe8] sm:$0xff]
        %v2166 = vld [vmem:[%s2135 + $0xf0] sm:$0xff]
        %v2167 = vld [vmem:[%s2135 + $0xf8] sm:$0xff]
        %v2168 = vld [vmem:[%s2135 + $0x100] sm:$0xff]
        %v2169 = vld [vmem:[%s2135 + $0x108] sm:$0xff]
        %v2170 = vld [vmem:[%s2135 + $0x110] sm:$0xff]
        %v2171 = vld [vmem:[%s2135 + $0x118] sm:$0xff]
        %v2172 = vld [vmem:[%s2135 + $0x120] sm:$0xff]
        %v2173 = vld [vmem:[%s2135 + $0x128] sm:$0xff]
        %v2174 = vld [vmem:[%s2135 + $0x130] sm:$0xff]
        %v2175 = vld [vmem:[%s2135 + $0x138] sm:$0xff]
        %v2176 = vld [vmem:[%s2135 + $0x140] sm:$0xff]
        %v2177 = vld [vmem:[%s2135 + $0x148] sm:$0xff]
        %v2178 = vld [vmem:[%s2135 + $0x150] sm:$0xff]
        %v2179 = vld [vmem:[%s2135 + $0x158] sm:$0xff]
        %v2180 = vld [vmem:[%s2135 + $0x160] sm:$0xff]
        %v2181 = vld [vmem:[%s2135 + $0x168] sm:$0xff]
        %v2182 = vld [vmem:[%s2135 + $0x170] sm:$0xff]
        %v2183 = vld [vmem:[%s2135 + $0x178] sm:$0xff]
        %v2184 = vld [vmem:[%s2135 + $0x180] sm:$0xff]
        %v2185 = vld [vmem:[%s2135 + $0x188] sm:$0xff]
        %v2186 = vld [vmem:[%s2135 + $0x190] sm:$0xff]
        %v2187 = vld [vmem:[%s2135 + $0x198] sm:$0xff]
        %v2188 = vld [vmem:[%s2135 + $0x1a0] sm:$0xff]
        %v2189 = vld [vmem:[%s2135 + $0x1a8] sm:$0xff]
        %v2190 = vld [vmem:[%s2135 + $0x1b0] sm:$0xff]
        %v2191 = vld [vmem:[%s2135 + $0x1b8] sm:$0xff]
        %v2192 = vld [vmem:[%s2135 + $0x1c0] sm:$0xff]
        %v2193 = vld [vmem:[%s2135 + $0x1c8] sm:$0xff]
        %v2194 = vld [vmem:[%s2135 + $0x1d0] sm:$0xff]
        %v2195 = vld [vmem:[%s2135 + $0x1d8] sm:$0xff]
        %v2196 = vld [vmem:[%s2135 + $0x1e0] sm:$0xff]
        %v2197 = vld [vmem:[%s2135 + $0x1e8] sm:$0xff]
        %v2198 = vld [vmem:[%s2135 + $0x1f0] sm:$0xff]
        %v2199 = vld [vmem:[%s2135 + $0x1f8] sm:$0xff]
        %v2202 = vunpack.c.l.b16 %v2133
        %v2203 = vunpack.c.h.b16 %v2133
        %v2204 = vunpack.c.l.b16 %v2134
        %v2205 = vunpack.c.h.b16 %v2134
        %v2206 = vpack.c.b16 %v2202, %v2202
        %v2207 = vpack.c.b16 %v2203, %v2203
        %v2208 = vpack.c.b16 %v2204, %v2204
        %v2209 = vpack.c.b16 %v2205, %v2205
        %v2211 = vshrl.u32 %v2206, 16
        %v2214 = vshrl.u32 %v2207, 16
        %v2217 = vshrl.u32 %v2208, 16
        %v2220 = vshrl.u32 %v2209, 16
        %v2290 = vunpack.c.l.b16 %v2136
        %v2291 = vunpack.c.h.b16 %v2136
        %v2292 = vunpack.c.l.b16 %v2137
        %v2293 = vunpack.c.h.b16 %v2137
        %v2294 = vunpack.c.l.b16 %v2138
        %v2295 = vunpack.c.h.b16 %v2138
        %v2296 = vunpack.c.l.b16 %v2139
        %v2297 = vunpack.c.h.b16 %v2139
        %v2298 = vunpack.c.l.b16 %v2140
        %v2299 = vunpack.c.h.b16 %v2140
        %v2300 = vunpack.c.l.b16 %v2141
        %v2301 = vunpack.c.h.b16 %v2141
        %v2302 = vunpack.c.l.b16 %v2142
        %v2303 = vunpack.c.h.b16 %v2142
        %v2304 = vunpack.c.l.b16 %v2143
        %v2305 = vunpack.c.h.b16 %v2143
        %v2306 = vunpack.c.l.b16 %v2144
        %v2307 = vunpack.c.h.b16 %v2144
        %v2308 = vunpack.c.l.b16 %v2145
        %v2309 = vunpack.c.h.b16 %v2145
        %v2310 = vunpack.c.l.b16 %v2146
        %v2311 = vunpack.c.h.b16 %v2146
        %v2312 = vunpack.c.l.b16 %v2147
        %v2313 = vunpack.c.h.b16 %v2147
        %v2314 = vunpack.c.l.b16 %v2148
        %v2315 = vunpack.c.h.b16 %v2148
        %v2316 = vunpack.c.l.b16 %v2149
        %v2317 = vunpack.c.h.b16 %v2149
        %v2318 = vunpack.c.l.b16 %v2150
        %v2319 = vunpack.c.h.b16 %v2150
        %v2320 = vunpack.c.l.b16 %v2151
        %v2321 = vunpack.c.h.b16 %v2151
        %v2322 = vunpack.c.l.b16 %v2152
        %v2323 = vunpack.c.h.b16 %v2152
        %v2324 = vunpack.c.l.b16 %v2153
        %v2325 = vunpack.c.h.b16 %v2153
        %v2326 = vunpack.c.l.b16 %v2154
        %v2327 = vunpack.c.h.b16 %v2154
        %v2328 = vunpack.c.l.b16 %v2155
        %v2329 = vunpack.c.h.b16 %v2155
        %v2330 = vunpack.c.l.b16 %v2156
        %v2331 = vunpack.c.h.b16 %v2156
        %v2332 = vunpack.c.l.b16 %v2157
        %v2333 = vunpack.c.h.b16 %v2157
        %v2334 = vunpack.c.l.b16 %v2158
        %v2335 = vunpack.c.h.b16 %v2158
        %v2336 = vunpack.c.l.b16 %v2159
        %v2337 = vunpack.c.h.b16 %v2159
        %v2338 = vunpack.c.l.b16 %v2160
        %v2339 = vunpack.c.h.b16 %v2160
        %v2340 = vunpack.c.l.b16 %v2161
        %v2341 = vunpack.c.h.b16 %v2161
        %v2342 = vunpack.c.l.b16 %v2162
        %v2343 = vunpack.c.h.b16 %v2162
        %v2344 = vunpack.c.l.b16 %v2163
        %v2345 = vunpack.c.h.b16 %v2163
        %v2346 = vunpack.c.l.b16 %v2164
        %v2347 = vunpack.c.h.b16 %v2164
        %v2348 = vunpack.c.l.b16 %v2165
        %v2349 = vunpack.c.h.b16 %v2165
        %v2350 = vunpack.c.l.b16 %v2166
        %v2351 = vunpack.c.h.b16 %v2166
        %v2352 = vunpack.c.l.b16 %v2167
        %v2353 = vunpack.c.h.b16 %v2167
        %v2354 = vunpack.c.l.b16 %v2168
        %v2355 = vunpack.c.h.b16 %v2168
        %v2356 = vunpack.c.l.b16 %v2169
        %v2357 = vunpack.c.h.b16 %v2169
        %v2358 = vunpack.c.l.b16 %v2170
        %v2359 = vunpack.c.h.b16 %v2170
        %v2360 = vunpack.c.l.b16 %v2171
        %v2361 = vunpack.c.h.b16 %v2171
        %v2362 = vunpack.c.l.b16 %v2172
        %v2363 = vunpack.c.h.b16 %v2172
        %v2364 = vunpack.c.l.b16 %v2173
        %v2365 = vunpack.c.h.b16 %v2173
        %v2366 = vunpack.c.l.b16 %v2174
        %v2367 = vunpack.c.h.b16 %v2174
        %v2368 = vunpack.c.l.b16 %v2175
        %v2369 = vunpack.c.h.b16 %v2175
        %v2370 = vunpack.c.l.b16 %v2176
        %v2371 = vunpack.c.h.b16 %v2176
        %v2372 = vunpack.c.l.b16 %v2177
        %v2373 = vunpack.c.h.b16 %v2177
        %v2374 = vunpack.c.l.b16 %v2178
        %v2375 = vunpack.c.h.b16 %v2178
        %v2376 = vunpack.c.l.b16 %v2179
        %v2377 = vunpack.c.h.b16 %v2179
        %v2378 = vunpack.c.l.b16 %v2180
        %v2379 = vunpack.c.h.b16 %v2180
        %v2380 = vunpack.c.l.b16 %v2181
        %v2381 = vunpack.c.h.b16 %v2181
        %v2382 = vunpack.c.l.b16 %v2182
        %v2383 = vunpack.c.h.b16 %v2182
        %v2384 = vunpack.c.l.b16 %v2183
        %v2385 = vunpack.c.h.b16 %v2183
        %v2386 = vunpack.c.l.b16 %v2184
        %v2387 = vunpack.c.h.b16 %v2184
        %v2388 = vunpack.c.l.b16 %v2185
        %v2389 = vunpack.c.h.b16 %v2185
        %v2390 = vunpack.c.l.b16 %v2186
        %v2391 = vunpack.c.h.b16 %v2186
        %v2392 = vunpack.c.l.b16 %v2187
        %v2393 = vunpack.c.h.b16 %v2187
        %v2394 = vunpack.c.l.b16 %v2188
        %v2395 = vunpack.c.h.b16 %v2188
        %v2396 = vunpack.c.l.b16 %v2189
        %v2397 = vunpack.c.h.b16 %v2189
        %v2398 = vunpack.c.l.b16 %v2190
        %v2399 = vunpack.c.h.b16 %v2190
        %v2400 = vunpack.c.l.b16 %v2191
        %v2401 = vunpack.c.h.b16 %v2191
        %v2402 = vunpack.c.l.b16 %v2192
        %v2403 = vunpack.c.h.b16 %v2192
        %v2404 = vunpack.c.l.b16 %v2193
        %v2405 = vunpack.c.h.b16 %v2193
        %v2406 = vunpack.c.l.b16 %v2194
        %v2407 = vunpack.c.h.b16 %v2194
        %v2408 = vunpack.c.l.b16 %v2195
        %v2409 = vunpack.c.h.b16 %v2195
        %v2410 = vunpack.c.l.b16 %v2196
        %v2411 = vunpack.c.h.b16 %v2196
        %v2412 = vunpack.c.l.b16 %v2197
        %v2413 = vunpack.c.h.b16 %v2197
        %v2414 = vunpack.c.l.b16 %v2198
        %v2415 = vunpack.c.h.b16 %v2198
        %v2416 = vunpack.c.l.b16 %v2199
        %v2417 = vunpack.c.h.b16 %v2199
        %v2418 = vpack.c.b16 %v2292, %v2290
        %v2419 = vpack.c.b16 %v2293, %v2291
        %v2420 = vpack.c.b16 %v2296, %v2294
        %v2421 = vpack.c.b16 %v2297, %v2295
        %v2422 = vpack.c.b16 %v2300, %v2298
        %v2423 = vpack.c.b16 %v2301, %v2299
        %v2424 = vpack.c.b16 %v2304, %v2302
        %v2425 = vpack.c.b16 %v2305, %v2303
        %v2426 = vpack.c.b16 %v2308, %v2306
        %v2427 = vpack.c.b16 %v2309, %v2307
        %v2428 = vpack.c.b16 %v2312, %v2310
        %v2429 = vpack.c.b16 %v2313, %v2311
        %v2430 = vpack.c.b16 %v2316, %v2314
        %v2431 = vpack.c.b16 %v2317, %v2315
        %v2432 = vpack.c.b16 %v2320, %v2318
        %v2433 = vpack.c.b16 %v2321, %v2319
        %v2434 = vpack.c.b16 %v2324, %v2322
        %v2435 = vpack.c.b16 %v2325, %v2323
        %v2436 = vpack.c.b16 %v2328, %v2326
        %v2437 = vpack.c.b16 %v2329, %v2327
        %v2438 = vpack.c.b16 %v2332, %v2330
        %v2439 = vpack.c.b16 %v2333, %v2331
        %v2440 = vpack.c.b16 %v2336, %v2334
        %v2441 = vpack.c.b16 %v2337, %v2335
        %v2442 = vpack.c.b16 %v2340, %v2338
        %v2443 = vpack.c.b16 %v2341, %v2339
        %v2444 = vpack.c.b16 %v2344, %v2342
        %v2445 = vpack.c.b16 %v2345, %v2343
        %v2446 = vpack.c.b16 %v2348, %v2346
        %v2447 = vpack.c.b16 %v2349, %v2347
        %v2448 = vpack.c.b16 %v2352, %v2350
        %v2449 = vpack.c.b16 %v2353, %v2351
        %v2450 = vpack.c.b16 %v2356, %v2354
        %v2451 = vpack.c.b16 %v2357, %v2355
        %v2452 = vpack.c.b16 %v2360, %v2358
        %v2453 = vpack.c.b16 %v2361, %v2359
        %v2454 = vpack.c.b16 %v2364, %v2362
        %v2455 = vpack.c.b16 %v2365, %v2363
        %v2456 = vpack.c.b16 %v2368, %v2366
        %v2457 = vpack.c.b16 %v2369, %v2367
        %v2458 = vpack.c.b16 %v2372, %v2370
        %v2459 = vpack.c.b16 %v2373, %v2371
        %v2460 = vpack.c.b16 %v2376, %v2374
        %v2461 = vpack.c.b16 %v2377, %v2375
        %v2462 = vpack.c.b16 %v2380, %v2378
        %v2463 = vpack.c.b16 %v2381, %v2379
        %v2464 = vpack.c.b16 %v2384, %v2382
        %v2465 = vpack.c.b16 %v2385, %v2383
        %v2466 = vpack.c.b16 %v2388, %v2386
        %v2467 = vpack.c.b16 %v2389, %v2387
        %v2468 = vpack.c.b16 %v2392, %v2390
        %v2469 = vpack.c.b16 %v2393, %v2391
        %v2470 = vpack.c.b16 %v2396, %v2394
        %v2471 = vpack.c.b16 %v2397, %v2395
        %v2472 = vpack.c.b16 %v2400, %v2398
        %v2473 = vpack.c.b16 %v2401, %v2399
        %v2474 = vpack.c.b16 %v2404, %v2402
        %v2475 = vpack.c.b16 %v2405, %v2403
        %v2476 = vpack.c.b16 %v2408, %v2406
        %v2477 = vpack.c.b16 %v2409, %v2407
        %v2478 = vpack.c.b16 %v2412, %v2410
        %v2479 = vpack.c.b16 %v2413, %v2411
        %v2480 = vpack.c.b16 %v2416, %v2414
        %v2481 = vpack.c.b16 %v2417, %v2415
        %2546 = vmatprep.subr.bf16.mxu0 %v2419
        %2547 = vmatpush1.bf16.msra.mxu0 %v2418
        %2548 = vmatprep.subr.bf16.mxu0 %v2421
        %2549 = vmatpush1.bf16.msra.mxu0 %v2420
        %2550 = vmatprep.subr.bf16.mxu0 %v2423
        %2551 = vmatpush1.bf16.msra.mxu0 %v2422
        %2552 = vmatprep.subr.bf16.mxu0 %v2425
        %2553 = vmatpush1.bf16.msra.mxu0 %v2424
        %2554 = vmatprep.subr.bf16.mxu0 %v2427
        %2555 = vmatpush1.bf16.msra.mxu0 %v2426
        %2556 = vmatprep.subr.bf16.mxu0 %v2429
        %2557 = vmatpush1.bf16.msra.mxu0 %v2428
        %2558 = vmatprep.subr.bf16.mxu0 %v2431
        %2559 = vmatpush1.bf16.msra.mxu0 %v2430
        %2560 = vmatprep.subr.bf16.mxu0 %v2433
        %2561 = vmatpush1.bf16.msra.mxu0 %v2432
        %2562 = vmatprep.subr.bf16.mxu0 %v2435
        %2563 = vmatpush1.bf16.msra.mxu0 %v2434
        %2564 = vmatprep.subr.bf16.mxu0 %v2437
        %2565 = vmatpush1.bf16.msra.mxu0 %v2436
        %2566 = vmatprep.subr.bf16.mxu0 %v2439
        %2567 = vmatpush1.bf16.msra.mxu0 %v2438
        %2568 = vmatprep.subr.bf16.mxu0 %v2441
        %2569 = vmatpush1.bf16.msra.mxu0 %v2440
        %2570 = vmatprep.subr.bf16.mxu0 %v2443
        %2571 = vmatpush1.bf16.msra.mxu0 %v2442
        %2572 = vmatprep.subr.bf16.mxu0 %v2445
        %2573 = vmatpush1.bf16.msra.mxu0 %v2444
        %2574 = vmatprep.subr.bf16.mxu0 %v2447
        %2575 = vmatpush1.bf16.msra.mxu0 %v2446
        %2576 = vmatprep.subr.bf16.mxu0 %v2449
        %2577 = vmatpush1.bf16.msra.mxu0 %v2448
        %2578 = vmatprep.mubr.bf16.mxu0 %v2214
        %2579 = vmatmul.mubr.bf16.gmra.mrb[0].mxu0 %v2211
        %v2580 = vpop.f32.mrb[0].mxu0
        %v2581 = vadd.f32 0.0, %v2580
        %v2582 = vpop.f32.mrb[0].mxu0
        %v2583 = vadd.f32 0.0, %v2582
        %v2584 = vpop.f32.mrb[0].mxu0
        %v2585 = vpop.f32.mrb[0].mxu0
        %2586 = vdwg.mxu0
        %2587 = vmatprep.subr.bf16.mxu0 %v2451
        %2588 = vmatpush1.bf16.msra.mxu0 %v2450
        %2589 = vmatprep.subr.bf16.mxu0 %v2453
        %2590 = vmatpush1.bf16.msra.mxu0 %v2452
        %2591 = vmatprep.subr.bf16.mxu0 %v2455
        %2592 = vmatpush1.bf16.msra.mxu0 %v2454
        %2593 = vmatprep.subr.bf16.mxu0 %v2457
        %2594 = vmatpush1.bf16.msra.mxu0 %v2456
        %2595 = vmatprep.subr.bf16.mxu0 %v2459
        %2596 = vmatpush1.bf16.msra.mxu0 %v2458
        %2597 = vmatprep.subr.bf16.mxu0 %v2461
        %2598 = vmatpush1.bf16.msra.mxu0 %v2460
        %2599 = vmatprep.subr.bf16.mxu0 %v2463
        %2600 = vmatpush1.bf16.msra.mxu0 %v2462
        %2601 = vmatprep.subr.bf16.mxu0 %v2465
        %2602 = vmatpush1.bf16.msra.mxu0 %v2464
        %2603 = vmatprep.subr.bf16.mxu0 %v2467
        %2604 = vmatpush1.bf16.msra.mxu0 %v2466
        %2605 = vmatprep.subr.bf16.mxu0 %v2469
        %2606 = vmatpush1.bf16.msra.mxu0 %v2468
        %2607 = vmatprep.subr.bf16.mxu0 %v2471
        %2608 = vmatpush1.bf16.msra.mxu0 %v2470
        %2609 = vmatprep.subr.bf16.mxu0 %v2473
        %2610 = vmatpush1.bf16.msra.mxu0 %v2472
        %2611 = vmatprep.subr.bf16.mxu0 %v2475
        %2612 = vmatpush1.bf16.msra.mxu0 %v2474
        %2613 = vmatprep.subr.bf16.mxu0 %v2477
        %2614 = vmatpush1.bf16.msra.mxu0 %v2476
        %2615 = vmatprep.subr.bf16.mxu0 %v2479
        %2616 = vmatpush1.bf16.msra.mxu0 %v2478
        %2617 = vmatprep.subr.bf16.mxu0 %v2481
        %2618 = vmatpush1.bf16.msra.mxu0 %v2480
        %2619 = vmatprep.mubr.bf16.mxu0 %v2220
        %2620 = vmatmul.mubr.bf16.gmra.mrb[0].mxu0 %v2217
        %v2621 = vpop.f32.mrb[0].mxu0
        %v2622 = vadd.f32 %v2581, %v2621
        %v2623 = vpop.f32.mrb[0].mxu0
        %v2624 = vadd.f32 %v2583, %v2623
        %v2625 = vpop.f32.mrb[0].mxu0
        %v2626 = vpop.f32.mrb[0].mxu0
        %2627 = vdwg.mxu0
        %v2630 = vcombine.low %v2622, %v2624
        %v2632 = vunpack.c.l.s4 1966171168
        %v2633 = vunpack.c.0.s8 %v2632
        %v2634 = vlaneseq
        %v2635 = vshrl.u32 %v2634, 7
        %v2636 = vsub.s32 %v2633, %v2635
        %v2637 = vrot.slane %v2630, %v2636
        %v2639 = vunpack.c.l.s4 1966171168
        %v2640 = vunpack.c.0.s8 %v2639
        %v2641 = vlaneseq
        %v2642 = vshrl.u32 %v2641, 7
        %v2643 = vsub.s32 %v2640, %v2642
        %v2644 = vrot.slane %v2637, %v2643
        %v2646 = vadd.f32 %v2132, %v2644
        %v2647 = vld [vmem:[#allocation3] sm:$0x22]
        %v2648 = vld [vmem:[#allocation3 + $0x8] sm:$0x22]
        %s2649 = scalar_lea.vmem %s1508, 1024 [#allocation4]
        %v2650 = vld [vmem:[%s2649] sm:$0xff]
        %v2651 = vld [vmem:[%s2649 + $0x8] sm:$0xff]
        %v2652 = vld [vmem:[%s2649 + $0x10] sm:$0xff]
        %v2653 = vld [vmem:[%s2649 + $0x18] sm:$0xff]
        %v2654 = vld [vmem:[%s2649 + $0x20] sm:$0xff]
        %v2655 = vld [vmem:[%s2649 + $0x28] sm:$0xff]
        %v2656 = vld [vmem:[%s2649 + $0x30] sm:$0xff]
        %v2657 = vld [vmem:[%s2649 + $0x38] sm:$0xff]
        %v2658 = vld [vmem:[%s2649 + $0x40] sm:$0xff]
        %v2659 = vld [vmem:[%s2649 + $0x48] sm:$0xff]
        %v2660 = vld [vmem:[%s2649 + $0x50] sm:$0xff]
        %v2661 = vld [vmem:[%s2649 + $0x58] sm:$0xff]
        %v2662 = vld [vmem:[%s2649 + $0x60] sm:$0xff]
        %v2663 = vld [vmem:[%s2649 + $0x68] sm:$0xff]
        %v2664 = vld [vmem:[%s2649 + $0x70] sm:$0xff]
        %v2665 = vld [vmem:[%s2649 + $0x78] sm:$0xff]
        %v2666 = vld [vmem:[%s2649 + $0x80] sm:$0xff]
        %v2667 = vld [vmem:[%s2649 + $0x88] sm:$0xff]
        %v2668 = vld [vmem:[%s2649 + $0x90] sm:$0xff]
        %v2669 = vld [vmem:[%s2649 + $0x98] sm:$0xff]
        %v2670 = vld [vmem:[%s2649 + $0xa0] sm:$0xff]
        %v2671 = vld [vmem:[%s2649 + $0xa8] sm:$0xff]
        %v2672 = vld [vmem:[%s2649 + $0xb0] sm:$0xff]
        %v2673 = vld [vmem:[%s2649 + $0xb8] sm:$0xff]
        %v2674 = vld [vmem:[%s2649 + $0xc0] sm:$0xff]
        %v2675 = vld [vmem:[%s2649 + $0xc8] sm:$0xff]
        %v2676 = vld [vmem:[%s2649 + $0xd0] sm:$0xff]
        %v2677 = vld [vmem:[%s2649 + $0xd8] sm:$0xff]
        %v2678 = vld [vmem:[%s2649 + $0xe0] sm:$0xff]
        %v2679 = vld [vmem:[%s2649 + $0xe8] sm:$0xff]
        %v2680 = vld [vmem:[%s2649 + $0xf0] sm:$0xff]
        %v2681 = vld [vmem:[%s2649 + $0xf8] sm:$0xff]
        %v2682 = vld [vmem:[%s2649 + $0x100] sm:$0xff]
        %v2683 = vld [vmem:[%s2649 + $0x108] sm:$0xff]
        %v2684 = vld [vmem:[%s2649 + $0x110] sm:$0xff]
        %v2685 = vld [vmem:[%s2649 + $0x118] sm:$0xff]
        %v2686 = vld [vmem:[%s2649 + $0x120] sm:$0xff]
        %v2687 = vld [vmem:[%s2649 + $0x128] sm:$0xff]
        %v2688 = vld [vmem:[%s2649 + $0x130] sm:$0xff]
        %v2689 = vld [vmem:[%s2649 + $0x138] sm:$0xff]
        %v2690 = vld [vmem:[%s2649 + $0x140] sm:$0xff]
        %v2691 = vld [vmem:[%s2649 + $0x148] sm:$0xff]
        %v2692 = vld [vmem:[%s2649 + $0x150] sm:$0xff]
        %v2693 = vld [vmem:[%s2649 + $0x158] sm:$0xff]
        %v2694 = vld [vmem:[%s2649 + $0x160] sm:$0xff]
        %v2695 = vld [vmem:[%s2649 + $0x168] sm:$0xff]
        %v2696 = vld [vmem:[%s2649 + $0x170] sm:$0xff]
        %v2697 = vld [vmem:[%s2649 + $0x178] sm:$0xff]
        %v2698 = vld [vmem:[%s2649 + $0x180] sm:$0xff]
        %v2699 = vld [vmem:[%s2649 + $0x188] sm:$0xff]
        %v2700 = vld [vmem:[%s2649 + $0x190] sm:$0xff]
        %v2701 = vld [vmem:[%s2649 + $0x198] sm:$0xff]
        %v2702 = vld [vmem:[%s2649 + $0x1a0] sm:$0xff]
        %v2703 = vld [vmem:[%s2649 + $0x1a8] sm:$0xff]
        %v2704 = vld [vmem:[%s2649 + $0x1b0] sm:$0xff]
        %v2705 = vld [vmem:[%s2649 + $0x1b8] sm:$0xff]
        %v2706 = vld [vmem:[%s2649 + $0x1c0] sm:$0xff]
        %v2707 = vld [vmem:[%s2649 + $0x1c8] sm:$0xff]
        %v2708 = vld [vmem:[%s2649 + $0x1d0] sm:$0xff]
        %v2709 = vld [vmem:[%s2649 + $0x1d8] sm:$0xff]
        %v2710 = vld [vmem:[%s2649 + $0x1e0] sm:$0xff]
        %v2711 = vld [vmem:[%s2649 + $0x1e8] sm:$0xff]
        %v2712 = vld [vmem:[%s2649 + $0x1f0] sm:$0xff]
        %v2713 = vld [vmem:[%s2649 + $0x1f8] sm:$0xff]
        %v2716 = vunpack.c.l.b16 %v2647
        %v2717 = vunpack.c.h.b16 %v2647
        %v2718 = vunpack.c.l.b16 %v2648
        %v2719 = vunpack.c.h.b16 %v2648
        %v2720 = vpack.c.b16 %v2716, %v2716
        %v2721 = vpack.c.b16 %v2717, %v2717
        %v2722 = vpack.c.b16 %v2718, %v2718
        %v2723 = vpack.c.b16 %v2719, %v2719
        %v2724 = vrot.slane %v2720, 1
        %v2725 = vrot.slane %v2721, 1
        %v2726 = vrot.slane %v2722, 1
        %v2727 = vrot.slane %v2723, 1
        %v2796 = vunpack.c.l.b16 %v2650
        %v2797 = vunpack.c.h.b16 %v2650
        %v2798 = vunpack.c.l.b16 %v2651
        %v2799 = vunpack.c.h.b16 %v2651
        %v2800 = vunpack.c.l.b16 %v2652
        %v2801 = vunpack.c.h.b16 %v2652
        %v2802 = vunpack.c.l.b16 %v2653
        %v2803 = vunpack.c.h.b16 %v2653
        %v2804 = vunpack.c.l.b16 %v2654
        %v2805 = vunpack.c.h.b16 %v2654
        %v2806 = vunpack.c.l.b16 %v2655
        %v2807 = vunpack.c.h.b16 %v2655
        %v2808 = vunpack.c.l.b16 %v2656
        %v2809 = vunpack.c.h.b16 %v2656
        %v2810 = vunpack.c.l.b16 %v2657
        %v2811 = vunpack.c.h.b16 %v2657
        %v2812 = vunpack.c.l.b16 %v2658
        %v2813 = vunpack.c.h.b16 %v2658
        %v2814 = vunpack.c.l.b16 %v2659
        %v2815 = vunpack.c.h.b16 %v2659
        %v2816 = vunpack.c.l.b16 %v2660
        %v2817 = vunpack.c.h.b16 %v2660
        %v2818 = vunpack.c.l.b16 %v2661
        %v2819 = vunpack.c.h.b16 %v2661
        %v2820 = vunpack.c.l.b16 %v2662
        %v2821 = vunpack.c.h.b16 %v2662
        %v2822 = vunpack.c.l.b16 %v2663
        %v2823 = vunpack.c.h.b16 %v2663
        %v2824 = vunpack.c.l.b16 %v2664
        %v2825 = vunpack.c.h.b16 %v2664
        %v2826 = vunpack.c.l.b16 %v2665
        %v2827 = vunpack.c.h.b16 %v2665
        %v2828 = vunpack.c.l.b16 %v2666
        %v2829 = vunpack.c.h.b16 %v2666
        %v2830 = vunpack.c.l.b16 %v2667
        %v2831 = vunpack.c.h.b16 %v2667
        %v2832 = vunpack.c.l.b16 %v2668
        %v2833 = vunpack.c.h.b16 %v2668
        %v2834 = vunpack.c.l.b16 %v2669
        %v2835 = vunpack.c.h.b16 %v2669
        %v2836 = vunpack.c.l.b16 %v2670
        %v2837 = vunpack.c.h.b16 %v2670
        %v2838 = vunpack.c.l.b16 %v2671
        %v2839 = vunpack.c.h.b16 %v2671
        %v2840 = vunpack.c.l.b16 %v2672
        %v2841 = vunpack.c.h.b16 %v2672
        %v2842 = vunpack.c.l.b16 %v2673
        %v2843 = vunpack.c.h.b16 %v2673
        %v2844 = vunpack.c.l.b16 %v2674
        %v2845 = vunpack.c.h.b16 %v2674
        %v2846 = vunpack.c.l.b16 %v2675
        %v2847 = vunpack.c.h.b16 %v2675
        %v2848 = vunpack.c.l.b16 %v2676
        %v2849 = vunpack.c.h.b16 %v2676
        %v2850 = vunpack.c.l.b16 %v2677
        %v2851 = vunpack.c.h.b16 %v2677
        %v2852 = vunpack.c.l.b16 %v2678
        %v2853 = vunpack.c.h.b16 %v2678
        %v2854 = vunpack.c.l.b16 %v2679
        %v2855 = vunpack.c.h.b16 %v2679
        %v2856 = vunpack.c.l.b16 %v2680
        %v2857 = vunpack.c.h.b16 %v2680
        %v2858 = vunpack.c.l.b16 %v2681
        %v2859 = vunpack.c.h.b16 %v2681
        %v2860 = vunpack.c.l.b16 %v2682
        %v2861 = vunpack.c.h.b16 %v2682
        %v2862 = vunpack.c.l.b16 %v2683
        %v2863 = vunpack.c.h.b16 %v2683
        %v2864 = vunpack.c.l.b16 %v2684
        %v2865 = vunpack.c.h.b16 %v2684
        %v2866 = vunpack.c.l.b16 %v2685
        %v2867 = vunpack.c.h.b16 %v2685
        %v2868 = vunpack.c.l.b16 %v2686
        %v2869 = vunpack.c.h.b16 %v2686
        %v2870 = vunpack.c.l.b16 %v2687
        %v2871 = vunpack.c.h.b16 %v2687
        %v2872 = vunpack.c.l.b16 %v2688
        %v2873 = vunpack.c.h.b16 %v2688
        %v2874 = vunpack.c.l.b16 %v2689
        %v2875 = vunpack.c.h.b16 %v2689
        %v2876 = vunpack.c.l.b16 %v2690
        %v2877 = vunpack.c.h.b16 %v2690
        %v2878 = vunpack.c.l.b16 %v2691
        %v2879 = vunpack.c.h.b16 %v2691
        %v2880 = vunpack.c.l.b16 %v2692
        %v2881 = vunpack.c.h.b16 %v2692
        %v2882 = vunpack.c.l.b16 %v2693
        %v2883 = vunpack.c.h.b16 %v2693
        %v2884 = vunpack.c.l.b16 %v2694
        %v2885 = vunpack.c.h.b16 %v2694
        %v2886 = vunpack.c.l.b16 %v2695
        %v2887 = vunpack.c.h.b16 %v2695
        %v2888 = vunpack.c.l.b16 %v2696
        %v2889 = vunpack.c.h.b16 %v2696
        %v2890 = vunpack.c.l.b16 %v2697
        %v2891 = vunpack.c.h.b16 %v2697
        %v2892 = vunpack.c.l.b16 %v2698
        %v2893 = vunpack.c.h.b16 %v2698
        %v2894 = vunpack.c.l.b16 %v2699
        %v2895 = vunpack.c.h.b16 %v2699
        %v2896 = vunpack.c.l.b16 %v2700
        %v2897 = vunpack.c.h.b16 %v2700
        %v2898 = vunpack.c.l.b16 %v2701
        %v2899 = vunpack.c.h.b16 %v2701
        %v2900 = vunpack.c.l.b16 %v2702
        %v2901 = vunpack.c.h.b16 %v2702
        %v2902 = vunpack.c.l.b16 %v2703
        %v2903 = vunpack.c.h.b16 %v2703
        %v2904 = vunpack.c.l.b16 %v2704
        %v2905 = vunpack.c.h.b16 %v2704
        %v2906 = vunpack.c.l.b16 %v2705
        %v2907 = vunpack.c.h.b16 %v2705
        %v2908 = vunpack.c.l.b16 %v2706
        %v2909 = vunpack.c.h.b16 %v2706
        %v2910 = vunpack.c.l.b16 %v2707
        %v2911 = vunpack.c.h.b16 %v2707
        %v2912 = vunpack.c.l.b16 %v2708
        %v2913 = vunpack.c.h.b16 %v2708
        %v2914 = vunpack.c.l.b16 %v2709
        %v2915 = vunpack.c.h.b16 %v2709
        %v2916 = vunpack.c.l.b16 %v2710
        %v2917 = vunpack.c.h.b16 %v2710
        %v2918 = vunpack.c.l.b16 %v2711
        %v2919 = vunpack.c.h.b16 %v2711
        %v2920 = vunpack.c.l.b16 %v2712
        %v2921 = vunpack.c.h.b16 %v2712
        %v2922 = vunpack.c.l.b16 %v2713
        %v2923 = vunpack.c.h.b16 %v2713
        %v2924 = vpack.c.b16 %v2798, %v2796
        %v2925 = vpack.c.b16 %v2799, %v2797
        %v2926 = vpack.c.b16 %v2802, %v2800
        %v2927 = vpack.c.b16 %v2803, %v2801
        %v2928 = vpack.c.b16 %v2806, %v2804
        %v2929 = vpack.c.b16 %v2807, %v2805
        %v2930 = vpack.c.b16 %v2810, %v2808
        %v2931 = vpack.c.b16 %v2811, %v2809
        %v2932 = vpack.c.b16 %v2814, %v2812
        %v2933 = vpack.c.b16 %v2815, %v2813
        %v2934 = vpack.c.b16 %v2818, %v2816
        %v2935 = vpack.c.b16 %v2819, %v2817
        %v2936 = vpack.c.b16 %v2822, %v2820
        %v2937 = vpack.c.b16 %v2823, %v2821
        %v2938 = vpack.c.b16 %v2826, %v2824
        %v2939 = vpack.c.b16 %v2827, %v2825
        %v2940 = vpack.c.b16 %v2830, %v2828
        %v2941 = vpack.c.b16 %v2831, %v2829
        %v2942 = vpack.c.b16 %v2834, %v2832
        %v2943 = vpack.c.b16 %v2835, %v2833
        %v2944 = vpack.c.b16 %v2838, %v2836
        %v2945 = vpack.c.b16 %v2839, %v2837
        %v2946 = vpack.c.b16 %v2842, %v2840
        %v2947 = vpack.c.b16 %v2843, %v2841
        %v2948 = vpack.c.b16 %v2846, %v2844
        %v2949 = vpack.c.b16 %v2847, %v2845
        %v2950 = vpack.c.b16 %v2850, %v2848
        %v2951 = vpack.c.b16 %v2851, %v2849
        %v2952 = vpack.c.b16 %v2854, %v2852
        %v2953 = vpack.c.b16 %v2855, %v2853
        %v2954 = vpack.c.b16 %v2858, %v2856
        %v2955 = vpack.c.b16 %v2859, %v2857
        %v2956 = vpack.c.b16 %v2862, %v2860
        %v2957 = vpack.c.b16 %v2863, %v2861
        %v2958 = vpack.c.b16 %v2866, %v2864
        %v2959 = vpack.c.b16 %v2867, %v2865
        %v2960 = vpack.c.b16 %v2870, %v2868
        %v2961 = vpack.c.b16 %v2871, %v2869
        %v2962 = vpack.c.b16 %v2874, %v2872
        %v2963 = vpack.c.b16 %v2875, %v2873
        %v2964 = vpack.c.b16 %v2878, %v2876
        %v2965 = vpack.c.b16 %v2879, %v2877
        %v2966 = vpack.c.b16 %v2882, %v2880
        %v2967 = vpack.c.b16 %v2883, %v2881
        %v2968 = vpack.c.b16 %v2886, %v2884
        %v2969 = vpack.c.b16 %v2887, %v2885
        %v2970 = vpack.c.b16 %v2890, %v2888
        %v2971 = vpack.c.b16 %v2891, %v2889
        %v2972 = vpack.c.b16 %v2894, %v2892
        %v2973 = vpack.c.b16 %v2895, %v2893
        %v2974 = vpack.c.b16 %v2898, %v2896
        %v2975 = vpack.c.b16 %v2899, %v2897
        %v2976 = vpack.c.b16 %v2902, %v2900
        %v2977 = vpack.c.b16 %v2903, %v2901
        %v2978 = vpack.c.b16 %v2906, %v2904
        %v2979 = vpack.c.b16 %v2907, %v2905
        %v2980 = vpack.c.b16 %v2910, %v2908
        %v2981 = vpack.c.b16 %v2911, %v2909
        %v2982 = vpack.c.b16 %v2914, %v2912
        %v2983 = vpack.c.b16 %v2915, %v2913
        %v2984 = vpack.c.b16 %v2918, %v2916
        %v2985 = vpack.c.b16 %v2919, %v2917
        %v2986 = vpack.c.b16 %v2922, %v2920
        %v2987 = vpack.c.b16 %v2923, %v2921
        %3052 = vmatprep.subr.bf16.mxu0 %v2925
        %3053 = vmatpush1.bf16.msra.mxu0 %v2924
        %3054 = vmatprep.subr.bf16.mxu0 %v2927
        %3055 = vmatpush1.bf16.msra.mxu0 %v2926
        %3056 = vmatprep.subr.bf16.mxu0 %v2929
        %3057 = vmatpush1.bf16.msra.mxu0 %v2928
        %3058 = vmatprep.subr.bf16.mxu0 %v2931
        %3059 = vmatpush1.bf16.msra.mxu0 %v2930
        %3060 = vmatprep.subr.bf16.mxu0 %v2933
        %3061 = vmatpush1.bf16.msra.mxu0 %v2932
        %3062 = vmatprep.subr.bf16.mxu0 %v2935
        %3063 = vmatpush1.bf16.msra.mxu0 %v2934
        %3064 = vmatprep.subr.bf16.mxu0 %v2937
        %3065 = vmatpush1.bf16.msra.mxu0 %v2936
        %3066 = vmatprep.subr.bf16.mxu0 %v2939
        %3067 = vmatpush1.bf16.msra.mxu0 %v2938
        %3068 = vmatprep.subr.bf16.mxu0 %v2941
        %3069 = vmatpush1.bf16.msra.mxu0 %v2940
        %3070 = vmatprep.subr.bf16.mxu0 %v2943
        %3071 = vmatpush1.bf16.msra.mxu0 %v2942
        %3072 = vmatprep.subr.bf16.mxu0 %v2945
        %3073 = vmatpush1.bf16.msra.mxu0 %v2944
        %3074 = vmatprep.subr.bf16.mxu0 %v2947
        %3075 = vmatpush1.bf16.msra.mxu0 %v2946
        %3076 = vmatprep.subr.bf16.mxu0 %v2949
        %3077 = vmatpush1.bf16.msra.mxu0 %v2948
        %3078 = vmatprep.subr.bf16.mxu0 %v2951
        %3079 = vmatpush1.bf16.msra.mxu0 %v2950
        %3080 = vmatprep.subr.bf16.mxu0 %v2953
        %3081 = vmatpush1.bf16.msra.mxu0 %v2952
        %3082 = vmatprep.subr.bf16.mxu0 %v2955
        %3083 = vmatpush1.bf16.msra.mxu0 %v2954
        %3084 = vmatprep.mubr.bf16.mxu0 %v2725
        %3085 = vmatmul.mubr.bf16.gmra.mrb[0].mxu0 %v2724
        %v3086 = vpop.f32.mrb[0].mxu0
        %v3087 = vadd.f32 0.0, %v3086
        %v3088 = vpop.f32.mrb[0].mxu0
        %v3089 = vadd.f32 0.0, %v3088
        %v3090 = vpop.f32.mrb[0].mxu0
        %v3091 = vpop.f32.mrb[0].mxu0
        %3092 = vdwg.mxu0
        %3093 = vmatprep.subr.bf16.mxu0 %v2957
        %3094 = vmatpush1.bf16.msra.mxu0 %v2956
        %3095 = vmatprep.subr.bf16.mxu0 %v2959
        %3096 = vmatpush1.bf16.msra.mxu0 %v2958
        %3097 = vmatprep.subr.bf16.mxu0 %v2961
        %3098 = vmatpush1.bf16.msra.mxu0 %v2960
        %3099 = vmatprep.subr.bf16.mxu0 %v2963
        %3100 = vmatpush1.bf16.msra.mxu0 %v2962
        %3101 = vmatprep.subr.bf16.mxu0 %v2965
        %3102 = vmatpush1.bf16.msra.mxu0 %v2964
        %3103 = vmatprep.subr.bf16.mxu0 %v2967
        %3104 = vmatpush1.bf16.msra.mxu0 %v2966
        %3105 = vmatprep.subr.bf16.mxu0 %v2969
        %3106 = vmatpush1.bf16.msra.mxu0 %v2968
        %3107 = vmatprep.subr.bf16.mxu0 %v2971
        %3108 = vmatpush1.bf16.msra.mxu0 %v2970
        %3109 = vmatprep.subr.bf16.mxu0 %v2973
        %3110 = vmatpush1.bf16.msra.mxu0 %v2972
        %3111 = vmatprep.subr.bf16.mxu0 %v2975
        %3112 = vmatpush1.bf16.msra.mxu0 %v2974
        %3113 = vmatprep.subr.bf16.mxu0 %v2977
        %3114 = vmatpush1.bf16.msra.mxu0 %v2976
        %3115 = vmatprep.subr.bf16.mxu0 %v2979
        %3116 = vmatpush1.bf16.msra.mxu0 %v2978
        %3117 = vmatprep.subr.bf16.mxu0 %v2981
        %3118 = vmatpush1.bf16.msra.mxu0 %v2980
        %3119 = vmatprep.subr.bf16.mxu0 %v2983
        %3120 = vmatpush1.bf16.msra.mxu0 %v2982
        %3121 = vmatprep.subr.bf16.mxu0 %v2985
        %3122 = vmatpush1.bf16.msra.mxu0 %v2984
        %3123 = vmatprep.subr.bf16.mxu0 %v2987
        %3124 = vmatpush1.bf16.msra.mxu0 %v2986
        %3125 = vmatprep.mubr.bf16.mxu0 %v2727
        %3126 = vmatmul.mubr.bf16.gmra.mrb[0].mxu0 %v2726
        %v3127 = vpop.f32.mrb[0].mxu0
        %v3128 = vadd.f32 %v3087, %v3127
        %v3129 = vpop.f32.mrb[0].mxu0
        %v3130 = vadd.f32 %v3089, %v3129
        %v3131 = vpop.f32.mrb[0].mxu0
        %v3132 = vpop.f32.mrb[0].mxu0
        %3133 = vdwg.mxu0
        %v3136 = vcombine.low %v3128, %v3130
        %v3138 = vunpack.c.l.s4 1966171168
        %v3139 = vunpack.c.0.s8 %v3138
        %v3140 = vlaneseq
        %v3141 = vshrl.u32 %v3140, 7
        %v3142 = vsub.s32 %v3139, %v3141
        %v3143 = vrot.slane %v3136, %v3142
        %v3145 = vunpack.c.l.s4 1966171168
        %v3146 = vunpack.c.0.s8 %v3145
        %v3147 = vlaneseq
        %v3148 = vshrl.u32 %v3147, 7
        %v3149 = vsub.s32 %v3146, %v3148
        %v3150 = vrot.slane %v3143, %v3149
        %v3152 = vadd.f32 %v2646, %v3150
        %v3153 = vld [vmem:[#allocation3] sm:$0x22]
        %v3154 = vld [vmem:[#allocation3 + $0x8] sm:$0x22]
        %s3155 = scalar_lea.vmem %s1508, 1536 [#allocation4]
        %v3156 = vld [vmem:[%s3155] sm:$0xff]
        %v3157 = vld [vmem:[%s3155 + $0x8] sm:$0xff]
        %v3158 = vld [vmem:[%s3155 + $0x10] sm:$0xff]
        %v3159 = vld [vmem:[%s3155 + $0x18] sm:$0xff]
        %v3160 = vld [vmem:[%s3155 + $0x20] sm:$0xff]
        %v3161 = vld [vmem:[%s3155 + $0x28] sm:$0xff]
        %v3162 = vld [vmem:[%s3155 + $0x30] sm:$0xff]
        %v3163 = vld [vmem:[%s3155 + $0x38] sm:$0xff]
        %v3164 = vld [vmem:[%s3155 + $0x40] sm:$0xff]
        %v3165 = vld [vmem:[%s3155 + $0x48] sm:$0xff]
        %v3166 = vld [vmem:[%s3155 + $0x50] sm:$0xff]
        %v3167 = vld [vmem:[%s3155 + $0x58] sm:$0xff]
        %v3168 = vld [vmem:[%s3155 + $0x60] sm:$0xff]
        %v3169 = vld [vmem:[%s3155 + $0x68] sm:$0xff]
        %v3170 = vld [vmem:[%s3155 + $0x70] sm:$0xff]
        %v3171 = vld [vmem:[%s3155 + $0x78] sm:$0xff]
        %v3172 = vld [vmem:[%s3155 + $0x80] sm:$0xff]
        %v3173 = vld [vmem:[%s3155 + $0x88] sm:$0xff]
        %v3174 = vld [vmem:[%s3155 + $0x90] sm:$0xff]
        %v3175 = vld [vmem:[%s3155 + $0x98] sm:$0xff]
        %v3176 = vld [vmem:[%s3155 + $0xa0] sm:$0xff]
        %v3177 = vld [vmem:[%s3155 + $0xa8] sm:$0xff]
        %v3178 = vld [vmem:[%s3155 + $0xb0] sm:$0xff]
        %v3179 = vld [vmem:[%s3155 + $0xb8] sm:$0xff]
        %v3180 = vld [vmem:[%s3155 + $0xc0] sm:$0xff]
        %v3181 = vld [vmem:[%s3155 + $0xc8] sm:$0xff]
        %v3182 = vld [vmem:[%s3155 + $0xd0] sm:$0xff]
        %v3183 = vld [vmem:[%s3155 + $0xd8] sm:$0xff]
        %v3184 = vld [vmem:[%s3155 + $0xe0] sm:$0xff]
        %v3185 = vld [vmem:[%s3155 + $0xe8] sm:$0xff]
        %v3186 = vld [vmem:[%s3155 + $0xf0] sm:$0xff]
        %v3187 = vld [vmem:[%s3155 + $0xf8] sm:$0xff]
        %v3188 = vld [vmem:[%s3155 + $0x100] sm:$0xff]
        %v3189 = vld [vmem:[%s3155 + $0x108] sm:$0xff]
        %v3190 = vld [vmem:[%s3155 + $0x110] sm:$0xff]
        %v3191 = vld [vmem:[%s3155 + $0x118] sm:$0xff]
        %v3192 = vld [vmem:[%s3155 + $0x120] sm:$0xff]
        %v3193 = vld [vmem:[%s3155 + $0x128] sm:$0xff]
        %v3194 = vld [vmem:[%s3155 + $0x130] sm:$0xff]
        %v3195 = vld [vmem:[%s3155 + $0x138] sm:$0xff]
        %v3196 = vld [vmem:[%s3155 + $0x140] sm:$0xff]
        %v3197 = vld [vmem:[%s3155 + $0x148] sm:$0xff]
        %v3198 = vld [vmem:[%s3155 + $0x150] sm:$0xff]
        %v3199 = vld [vmem:[%s3155 + $0x158] sm:$0xff]
        %v3200 = vld [vmem:[%s3155 + $0x160] sm:$0xff]
        %v3201 = vld [vmem:[%s3155 + $0x168] sm:$0xff]
        %v3202 = vld [vmem:[%s3155 + $0x170] sm:$0xff]
        %v3203 = vld [vmem:[%s3155 + $0x178] sm:$0xff]
        %v3204 = vld [vmem:[%s3155 + $0x180] sm:$0xff]
        %v3205 = vld [vmem:[%s3155 + $0x188] sm:$0xff]
        %v3206 = vld [vmem:[%s3155 + $0x190] sm:$0xff]
        %v3207 = vld [vmem:[%s3155 + $0x198] sm:$0xff]
        %v3208 = vld [vmem:[%s3155 + $0x1a0] sm:$0xff]
        %v3209 = vld [vmem:[%s3155 + $0x1a8] sm:$0xff]
        %v3210 = vld [vmem:[%s3155 + $0x1b0] sm:$0xff]
        %v3211 = vld [vmem:[%s3155 + $0x1b8] sm:$0xff]
        %v3212 = vld [vmem:[%s3155 + $0x1c0] sm:$0xff]
        %v3213 = vld [vmem:[%s3155 + $0x1c8] sm:$0xff]
        %v3214 = vld [vmem:[%s3155 + $0x1d0] sm:$0xff]
        %v3215 = vld [vmem:[%s3155 + $0x1d8] sm:$0xff]
        %v3216 = vld [vmem:[%s3155 + $0x1e0] sm:$0xff]
        %v3217 = vld [vmem:[%s3155 + $0x1e8] sm:$0xff]
        %v3218 = vld [vmem:[%s3155 + $0x1f0] sm:$0xff]
        %v3219 = vld [vmem:[%s3155 + $0x1f8] sm:$0xff]
        %v3222 = vunpack.c.l.b16 %v3153
        %v3223 = vunpack.c.h.b16 %v3153
        %v3224 = vunpack.c.l.b16 %v3154
        %v3225 = vunpack.c.h.b16 %v3154
        %v3226 = vpack.c.b16 %v3222, %v3222
        %v3227 = vpack.c.b16 %v3223, %v3223
        %v3228 = vpack.c.b16 %v3224, %v3224
        %v3229 = vpack.c.b16 %v3225, %v3225
        %v3231 = vshrl.u32 %v3226, 16
        %v3233 = vrot.slane %v3231, 1
        %v3235 = vshrl.u32 %v3227, 16
        %v3237 = vrot.slane %v3235, 1
        %v3239 = vshrl.u32 %v3228, 16
        %v3241 = vrot.slane %v3239, 1
        %v3243 = vshrl.u32 %v3229, 16
        %v3245 = vrot.slane %v3243, 1
        %v3314 = vunpack.c.l.b16 %v3156
        %v3315 = vunpack.c.h.b16 %v3156
        %v3316 = vunpack.c.l.b16 %v3157
        %v3317 = vunpack.c.h.b16 %v3157
        %v3318 = vunpack.c.l.b16 %v3158
        %v3319 = vunpack.c.h.b16 %v3158
        %v3320 = vunpack.c.l.b16 %v3159
        %v3321 = vunpack.c.h.b16 %v3159
        %v3322 = vunpack.c.l.b16 %v3160
        %v3323 = vunpack.c.h.b16 %v3160
        %v3324 = vunpack.c.l.b16 %v3161
        %v3325 = vunpack.c.h.b16 %v3161
        %v3326 = vunpack.c.l.b16 %v3162
        %v3327 = vunpack.c.h.b16 %v3162
        %v3328 = vunpack.c.l.b16 %v3163
        %v3329 = vunpack.c.h.b16 %v3163
        %v3330 = vunpack.c.l.b16 %v3164
        %v3331 = vunpack.c.h.b16 %v3164
        %v3332 = vunpack.c.l.b16 %v3165
        %v3333 = vunpack.c.h.b16 %v3165
        %v3334 = vunpack.c.l.b16 %v3166
        %v3335 = vunpack.c.h.b16 %v3166
        %v3336 = vunpack.c.l.b16 %v3167
        %v3337 = vunpack.c.h.b16 %v3167
        %v3338 = vunpack.c.l.b16 %v3168
        %v3339 = vunpack.c.h.b16 %v3168
        %v3340 = vunpack.c.l.b16 %v3169
        %v3341 = vunpack.c.h.b16 %v3169
        %v3342 = vunpack.c.l.b16 %v3170
        %v3343 = vunpack.c.h.b16 %v3170
        %v3344 = vunpack.c.l.b16 %v3171
        %v3345 = vunpack.c.h.b16 %v3171
        %v3346 = vunpack.c.l.b16 %v3172
        %v3347 = vunpack.c.h.b16 %v3172
        %v3348 = vunpack.c.l.b16 %v3173
        %v3349 = vunpack.c.h.b16 %v3173
        %v3350 = vunpack.c.l.b16 %v3174
        %v3351 = vunpack.c.h.b16 %v3174
        %v3352 = vunpack.c.l.b16 %v3175
        %v3353 = vunpack.c.h.b16 %v3175
        %v3354 = vunpack.c.l.b16 %v3176
        %v3355 = vunpack.c.h.b16 %v3176
        %v3356 = vunpack.c.l.b16 %v3177
        %v3357 = vunpack.c.h.b16 %v3177
        %v3358 = vunpack.c.l.b16 %v3178
        %v3359 = vunpack.c.h.b16 %v3178
        %v3360 = vunpack.c.l.b16 %v3179
        %v3361 = vunpack.c.h.b16 %v3179
        %v3362 = vunpack.c.l.b16 %v3180
        %v3363 = vunpack.c.h.b16 %v3180
        %v3364 = vunpack.c.l.b16 %v3181
        %v3365 = vunpack.c.h.b16 %v3181
        %v3366 = vunpack.c.l.b16 %v3182
        %v3367 = vunpack.c.h.b16 %v3182
        %v3368 = vunpack.c.l.b16 %v3183
        %v3369 = vunpack.c.h.b16 %v3183
        %v3370 = vunpack.c.l.b16 %v3184
        %v3371 = vunpack.c.h.b16 %v3184
        %v3372 = vunpack.c.l.b16 %v3185
        %v3373 = vunpack.c.h.b16 %v3185
        %v3374 = vunpack.c.l.b16 %v3186
        %v3375 = vunpack.c.h.b16 %v3186
        %v3376 = vunpack.c.l.b16 %v3187
        %v3377 = vunpack.c.h.b16 %v3187
        %v3378 = vunpack.c.l.b16 %v3188
        %v3379 = vunpack.c.h.b16 %v3188
        %v3380 = vunpack.c.l.b16 %v3189
        %v3381 = vunpack.c.h.b16 %v3189
        %v3382 = vunpack.c.l.b16 %v3190
        %v3383 = vunpack.c.h.b16 %v3190
        %v3384 = vunpack.c.l.b16 %v3191
        %v3385 = vunpack.c.h.b16 %v3191
        %v3386 = vunpack.c.l.b16 %v3192
        %v3387 = vunpack.c.h.b16 %v3192
        %v3388 = vunpack.c.l.b16 %v3193
        %v3389 = vunpack.c.h.b16 %v3193
        %v3390 = vunpack.c.l.b16 %v3194
        %v3391 = vunpack.c.h.b16 %v3194
        %v3392 = vunpack.c.l.b16 %v3195
        %v3393 = vunpack.c.h.b16 %v3195
        %v3394 = vunpack.c.l.b16 %v3196
        %v3395 = vunpack.c.h.b16 %v3196
        %v3396 = vunpack.c.l.b16 %v3197
        %v3397 = vunpack.c.h.b16 %v3197
        %v3398 = vunpack.c.l.b16 %v3198
        %v3399 = vunpack.c.h.b16 %v3198
        %v3400 = vunpack.c.l.b16 %v3199
        %v3401 = vunpack.c.h.b16 %v3199
        %v3402 = vunpack.c.l.b16 %v3200
        %v3403 = vunpack.c.h.b16 %v3200
        %v3404 = vunpack.c.l.b16 %v3201
        %v3405 = vunpack.c.h.b16 %v3201
        %v3406 = vunpack.c.l.b16 %v3202
        %v3407 = vunpack.c.h.b16 %v3202
        %v3408 = vunpack.c.l.b16 %v3203
        %v3409 = vunpack.c.h.b16 %v3203
        %v3410 = vunpack.c.l.b16 %v3204
        %v3411 = vunpack.c.h.b16 %v3204
        %v3412 = vunpack.c.l.b16 %v3205
        %v3413 = vunpack.c.h.b16 %v3205
        %v3414 = vunpack.c.l.b16 %v3206
        %v3415 = vunpack.c.h.b16 %v3206
        %v3416 = vunpack.c.l.b16 %v3207
        %v3417 = vunpack.c.h.b16 %v3207
        %v3418 = vunpack.c.l.b16 %v3208
        %v3419 = vunpack.c.h.b16 %v3208
        %v3420 = vunpack.c.l.b16 %v3209
        %v3421 = vunpack.c.h.b16 %v3209
        %v3422 = vunpack.c.l.b16 %v3210
        %v3423 = vunpack.c.h.b16 %v3210
        %v3424 = vunpack.c.l.b16 %v3211
        %v3425 = vunpack.c.h.b16 %v3211
        %v3426 = vunpack.c.l.b16 %v3212
        %v3427 = vunpack.c.h.b16 %v3212
        %v3428 = vunpack.c.l.b16 %v3213
        %v3429 = vunpack.c.h.b16 %v3213
        %v3430 = vunpack.c.l.b16 %v3214
        %v3431 = vunpack.c.h.b16 %v3214
        %v3432 = vunpack.c.l.b16 %v3215
        %v3433 = vunpack.c.h.b16 %v3215
        %v3434 = vunpack.c.l.b16 %v3216
        %v3435 = vunpack.c.h.b16 %v3216
        %v3436 = vunpack.c.l.b16 %v3217
        %v3437 = vunpack.c.h.b16 %v3217
        %v3438 = vunpack.c.l.b16 %v3218
        %v3439 = vunpack.c.h.b16 %v3218
        %v3440 = vunpack.c.l.b16 %v3219
        %v3441 = vunpack.c.h.b16 %v3219
        %v3442 = vpack.c.b16 %v3316, %v3314
        %v3443 = vpack.c.b16 %v3317, %v3315
        %v3444 = vpack.c.b16 %v3320, %v3318
        %v3445 = vpack.c.b16 %v3321, %v3319
        %v3446 = vpack.c.b16 %v3324, %v3322
        %v3447 = vpack.c.b16 %v3325, %v3323
        %v3448 = vpack.c.b16 %v3328, %v3326
        %v3449 = vpack.c.b16 %v3329, %v3327
        %v3450 = vpack.c.b16 %v3332, %v3330
        %v3451 = vpack.c.b16 %v3333, %v3331
        %v3452 = vpack.c.b16 %v3336, %v3334
        %v3453 = vpack.c.b16 %v3337, %v3335
        %v3454 = vpack.c.b16 %v3340, %v3338
        %v3455 = vpack.c.b16 %v3341, %v3339
        %v3456 = vpack.c.b16 %v3344, %v3342
        %v3457 = vpack.c.b16 %v3345, %v3343
        %v3458 = vpack.c.b16 %v3348, %v3346
        %v3459 = vpack.c.b16 %v3349, %v3347
        %v3460 = vpack.c.b16 %v3352, %v3350
        %v3461 = vpack.c.b16 %v3353, %v3351
        %v3462 = vpack.c.b16 %v3356, %v3354
        %v3463 = vpack.c.b16 %v3357, %v3355
        %v3464 = vpack.c.b16 %v3360, %v3358
        %v3465 = vpack.c.b16 %v3361, %v3359
        %v3466 = vpack.c.b16 %v3364, %v3362
        %v3467 = vpack.c.b16 %v3365, %v3363
        %v3468 = vpack.c.b16 %v3368, %v3366
        %v3469 = vpack.c.b16 %v3369, %v3367
        %v3470 = vpack.c.b16 %v3372, %v3370
        %v3471 = vpack.c.b16 %v3373, %v3371
        %v3472 = vpack.c.b16 %v3376, %v3374
        %v3473 = vpack.c.b16 %v3377, %v3375
        %v3474 = vpack.c.b16 %v3380, %v3378
        %v3475 = vpack.c.b16 %v3381, %v3379
        %v3476 = vpack.c.b16 %v3384, %v3382
        %v3477 = vpack.c.b16 %v3385, %v3383
        %v3478 = vpack.c.b16 %v3388, %v3386
        %v3479 = vpack.c.b16 %v3389, %v3387
        %v3480 = vpack.c.b16 %v3392, %v3390
        %v3481 = vpack.c.b16 %v3393, %v3391
        %v3482 = vpack.c.b16 %v3396, %v3394
        %v3483 = vpack.c.b16 %v3397, %v3395
        %v3484 = vpack.c.b16 %v3400, %v3398
        %v3485 = vpack.c.b16 %v3401, %v3399
        %v3486 = vpack.c.b16 %v3404, %v3402
        %v3487 = vpack.c.b16 %v3405, %v3403
        %v3488 = vpack.c.b16 %v3408, %v3406
        %v3489 = vpack.c.b16 %v3409, %v3407
        %v3490 = vpack.c.b16 %v3412, %v3410
        %v3491 = vpack.c.b16 %v3413, %v3411
        %v3492 = vpack.c.b16 %v3416, %v3414
        %v3493 = vpack.c.b16 %v3417, %v3415
        %v3494 = vpack.c.b16 %v3420, %v3418
        %v3495 = vpack.c.b16 %v3421, %v3419
        %v3496 = vpack.c.b16 %v3424, %v3422
        %v3497 = vpack.c.b16 %v3425, %v3423
        %v3498 = vpack.c.b16 %v3428, %v3426
        %v3499 = vpack.c.b16 %v3429, %v3427
        %v3500 = vpack.c.b16 %v3432, %v3430
        %v3501 = vpack.c.b16 %v3433, %v3431
        %v3502 = vpack.c.b16 %v3436, %v3434
        %v3503 = vpack.c.b16 %v3437, %v3435
        %v3504 = vpack.c.b16 %v3440, %v3438
        %v3505 = vpack.c.b16 %v3441, %v3439
        %3570 = vmatprep.subr.bf16.mxu0 %v3443
        %3571 = vmatpush1.bf16.msra.mxu0 %v3442
        %3572 = vmatprep.subr.bf16.mxu0 %v3445
        %3573 = vmatpush1.bf16.msra.mxu0 %v3444
        %3574 = vmatprep.subr.bf16.mxu0 %v3447
        %3575 = vmatpush1.bf16.msra.mxu0 %v3446
        %3576 = vmatprep.subr.bf16.mxu0 %v3449
        %3577 = vmatpush1.bf16.msra.mxu0 %v3448
        %3578 = vmatprep.subr.bf16.mxu0 %v3451
        %3579 = vmatpush1.bf16.msra.mxu0 %v3450
        %3580 = vmatprep.subr.bf16.mxu0 %v3453
        %3581 = vmatpush1.bf16.msra.mxu0 %v3452
        %3582 = vmatprep.subr.bf16.mxu0 %v3455
        %3583 = vmatpush1.bf16.msra.mxu0 %v3454
        %3584 = vmatprep.subr.bf16.mxu0 %v3457
        %3585 = vmatpush1.bf16.msra.mxu0 %v3456
        %3586 = vmatprep.subr.bf16.mxu0 %v3459
        %3587 = vmatpush1.bf16.msra.mxu0 %v3458
        %3588 = vmatprep.subr.bf16.mxu0 %v3461
        %3589 = vmatpush1.bf16.msra.mxu0 %v3460
        %3590 = vmatprep.subr.bf16.mxu0 %v3463
        %3591 = vmatpush1.bf16.msra.mxu0 %v3462
        %3592 = vmatprep.subr.bf16.mxu0 %v3465
        %3593 = vmatpush1.bf16.msra.mxu0 %v3464
        %3594 = vmatprep.subr.bf16.mxu0 %v3467
        %3595 = vmatpush1.bf16.msra.mxu0 %v3466
        %3596 = vmatprep.subr.bf16.mxu0 %v3469
        %3597 = vmatpush1.bf16.msra.mxu0 %v3468
        %3598 = vmatprep.subr.bf16.mxu0 %v3471
        %3599 = vmatpush1.bf16.msra.mxu0 %v3470
        %3600 = vmatprep.subr.bf16.mxu0 %v3473
        %3601 = vmatpush1.bf16.msra.mxu0 %v3472
        %3602 = vmatprep.mubr.bf16.mxu0 %v3237
        %3603 = vmatmul.mubr.bf16.gmra.mrb[0].mxu0 %v3233
        %v3604 = vpop.f32.mrb[0].mxu0
        %v3605 = vadd.f32 0.0, %v3604
        %v3606 = vpop.f32.mrb[0].mxu0
        %v3607 = vadd.f32 0.0, %v3606
        %v3608 = vpop.f32.mrb[0].mxu0
        %v3609 = vpop.f32.mrb[0].mxu0
        %3610 = vdwg.mxu0
        %3611 = vmatprep.subr.bf16.mxu0 %v3475
        %3612 = vmatpush1.bf16.msra.mxu0 %v3474
        %3613 = vmatprep.subr.bf16.mxu0 %v3477
        %3614 = vmatpush1.bf16.msra.mxu0 %v3476
        %3615 = vmatprep.subr.bf16.mxu0 %v3479
        %3616 = vmatpush1.bf16.msra.mxu0 %v3478
        %3617 = vmatprep.subr.bf16.mxu0 %v3481
        %3618 = vmatpush1.bf16.msra.mxu0 %v3480
        %3619 = vmatprep.subr.bf16.mxu0 %v3483
        %3620 = vmatpush1.bf16.msra.mxu0 %v3482
        %3621 = vmatprep.subr.bf16.mxu0 %v3485
        %3622 = vmatpush1.bf16.msra.mxu0 %v3484
        %3623 = vmatprep.subr.bf16.mxu0 %v3487
        %3624 = vmatpush1.bf16.msra.mxu0 %v3486
        %3625 = vmatprep.subr.bf16.mxu0 %v3489
        %3626 = vmatpush1.bf16.msra.mxu0 %v3488
        %3627 = vmatprep.subr.bf16.mxu0 %v3491
        %3628 = vmatpush1.bf16.msra.mxu0 %v3490
        %3629 = vmatprep.subr.bf16.mxu0 %v3493
        %3630 = vmatpush1.bf16.msra.mxu0 %v3492
        %3631 = vmatprep.subr.bf16.mxu0 %v3495
        %3632 = vmatpush1.bf16.msra.mxu0 %v3494
        %3633 = vmatprep.subr.bf16.mxu0 %v3497
        %3634 = vmatpush1.bf16.msra.mxu0 %v3496
        %3635 = vmatprep.subr.bf16.mxu0 %v3499
        %3636 = vmatpush1.bf16.msra.mxu0 %v3498
        %3637 = vmatprep.subr.bf16.mxu0 %v3501
        %3638 = vmatpush1.bf16.msra.mxu0 %v3500
        %3639 = vmatprep.subr.bf16.mxu0 %v3503
        %3640 = vmatpush1.bf16.msra.mxu0 %v3502
        %3641 = vmatprep.subr.bf16.mxu0 %v3505
        %3642 = vmatpush1.bf16.msra.mxu0 %v3504
        %3643 = vmatprep.mubr.bf16.mxu0 %v3245
        %3644 = vmatmul.mubr.bf16.gmra.mrb[0].mxu0 %v3241
        %v3645 = vpop.f32.mrb[0].mxu0
        %v3646 = vadd.f32 %v3605, %v3645
        %v3647 = vpop.f32.mrb[0].mxu0
        %v3648 = vadd.f32 %v3607, %v3647
        %v3649 = vpop.f32.mrb[0].mxu0
        %v3650 = vpop.f32.mrb[0].mxu0
        %3651 = vdwg.mxu0
        %v3654 = vcombine.low %v3646, %v3648
        %v3656 = vunpack.c.l.s4 1966171168
        %v3657 = vunpack.c.0.s8 %v3656
        %v3658 = vlaneseq
        %v3659 = vshrl.u32 %v3658, 7
        %v3660 = vsub.s32 %v3657, %v3659
        %v3661 = vrot.slane %v3654, %v3660
        %v3663 = vunpack.c.l.s4 1966171168
        %v3664 = vunpack.c.0.s8 %v3663
        %v3665 = vlaneseq
        %v3666 = vshrl.u32 %v3665, 7
        %v3667 = vsub.s32 %v3664, %v3666
        %v3668 = vrot.slane %v3661, %v3667
        %v3670 = vadd.f32 %v3152, %v3668
        %v3671 = vld [vmem:[#allocation3] sm:$0x44]
        %v3672 = vld [vmem:[#allocation3 + $0x8] sm:$0x44]
        %s3673 = scalar_lea.vmem %s1508, 2048 [#allocation4]
        %v3674 = vld [vmem:[%s3673] sm:$0xff]
        %v3675 = vld [vmem:[%s3673 + $0x8] sm:$0xff]
        %v3676 = vld [vmem:[%s3673 + $0x10] sm:$0xff]
        %v3677 = vld [vmem:[%s3673 + $0x18] sm:$0xff]
        %v3678 = vld [vmem:[%s3673 + $0x20] sm:$0xff]
        %v3679 = vld [vmem:[%s3673 + $0x28] sm:$0xff]
        %v3680 = vld [vmem:[%s3673 + $0x30] sm:$0xff]
        %v3681 = vld [vmem:[%s3673 + $0x38] sm:$0xff]
        %v3682 = vld [vmem:[%s3673 + $0x40] sm:$0xff]
        %v3683 = vld [vmem:[%s3673 + $0x48] sm:$0xff]
        %v3684 = vld [vmem:[%s3673 + $0x50] sm:$0xff]
        %v3685 = vld [vmem:[%s3673 + $0x58] sm:$0xff]
        %v3686 = vld [vmem:[%s3673 + $0x60] sm:$0xff]
        %v3687 = vld [vmem:[%s3673 + $0x68] sm:$0xff]
        %v3688 = vld [vmem:[%s3673 + $0x70] sm:$0xff]
        %v3689 = vld [vmem:[%s3673 + $0x78] sm:$0xff]
        %v3690 = vld [vmem:[%s3673 + $0x80] sm:$0xff]
        %v3691 = vld [vmem:[%s3673 + $0x88] sm:$0xff]
        %v3692 = vld [vmem:[%s3673 + $0x90] sm:$0xff]
        %v3693 = vld [vmem:[%s3673 + $0x98] sm:$0xff]
        %v3694 = vld [vmem:[%s3673 + $0xa0] sm:$0xff]
        %v3695 = vld [vmem:[%s3673 + $0xa8] sm:$0xff]
        %v3696 = vld [vmem:[%s3673 + $0xb0] sm:$0xff]
        %v3697 = vld [vmem:[%s3673 + $0xb8] sm:$0xff]
        %v3698 = vld [vmem:[%s3673 + $0xc0] sm:$0xff]
        %v3699 = vld [vmem:[%s3673 + $0xc8] sm:$0xff]
        %v3700 = vld [vmem:[%s3673 + $0xd0] sm:$0xff]
        %v3701 = vld [vmem:[%s3673 + $0xd8] sm:$0xff]
        %v3702 = vld [vmem:[%s3673 + $0xe0] sm:$0xff]
        %v3703 = vld [vmem:[%s3673 + $0xe8] sm:$0xff]
        %v3704 = vld [vmem:[%s3673 + $0xf0] sm:$0xff]
        %v3705 = vld [vmem:[%s3673 + $0xf8] sm:$0xff]
        %v3706 = vld [vmem:[%s3673 + $0x100] sm:$0xff]
        %v3707 = vld [vmem:[%s3673 + $0x108] sm:$0xff]
        %v3708 = vld [vmem:[%s3673 + $0x110] sm:$0xff]
        %v3709 = vld [vmem:[%s3673 + $0x118] sm:$0xff]
        %v3710 = vld [vmem:[%s3673 + $0x120] sm:$0xff]
        %v3711 = vld [vmem:[%s3673 + $0x128] sm:$0xff]
        %v3712 = vld [vmem:[%s3673 + $0x130] sm:$0xff]
        %v3713 = vld [vmem:[%s3673 + $0x138] sm:$0xff]
        %v3714 = vld [vmem:[%s3673 + $0x140] sm:$0xff]
        %v3715 = vld [vmem:[%s3673 + $0x148] sm:$0xff]
        %v3716 = vld [vmem:[%s3673 + $0x150] sm:$0xff]
        %v3717 = vld [vmem:[%s3673 + $0x158] sm:$0xff]
        %v3718 = vld [vmem:[%s3673 + $0x160] sm:$0xff]
        %v3719 = vld [vmem:[%s3673 + $0x168] sm:$0xff]
        %v3720 = vld [vmem:[%s3673 + $0x170] sm:$0xff]
        %v3721 = vld [vmem:[%s3673 + $0x178] sm:$0xff]
        %v3722 = vld [vmem:[%s3673 + $0x180] sm:$0xff]
        %v3723 = vld [vmem:[%s3673 + $0x188] sm:$0xff]
        %v3724 = vld [vmem:[%s3673 + $0x190] sm:$0xff]
        %v3725 = vld [vmem:[%s3673 + $0x198] sm:$0xff]
        %v3726 = vld [vmem:[%s3673 + $0x1a0] sm:$0xff]
        %v3727 = vld [vmem:[%s3673 + $0x1a8] sm:$0xff]
        %v3728 = vld [vmem:[%s3673 + $0x1b0] sm:$0xff]
        %v3729 = vld [vmem:[%s3673 + $0x1b8] sm:$0xff]
        %v3730 = vld [vmem:[%s3673 + $0x1c0] sm:$0xff]
        %v3731 = vld [vmem:[%s3673 + $0x1c8] sm:$0xff]
        %v3732 = vld [vmem:[%s3673 + $0x1d0] sm:$0xff]
        %v3733 = vld [vmem:[%s3673 + $0x1d8] sm:$0xff]
        %v3734 = vld [vmem:[%s3673 + $0x1e0] sm:$0xff]
        %v3735 = vld [vmem:[%s3673 + $0x1e8] sm:$0xff]
        %v3736 = vld [vmem:[%s3673 + $0x1f0] sm:$0xff]
        %v3737 = vld [vmem:[%s3673 + $0x1f8] sm:$0xff]
        %v3740 = vunpack.c.l.b16 %v3671
        %v3741 = vunpack.c.h.b16 %v3671
        %v3742 = vunpack.c.l.b16 %v3672
        %v3743 = vunpack.c.h.b16 %v3672
        %v3744 = vpack.c.b16 %v3740, %v3740
        %v3745 = vpack.c.b16 %v3741, %v3741
        %v3746 = vpack.c.b16 %v3742, %v3742
        %v3747 = vpack.c.b16 %v3743, %v3743
        %v3748 = vrot.slane %v3744, 2
        %v3749 = vrot.slane %v3745, 2
        %v3750 = vrot.slane %v3746, 2
        %v3751 = vrot.slane %v3747, 2
        %v3820 = vunpack.c.l.b16 %v3674
        %v3821 = vunpack.c.h.b16 %v3674
        %v3822 = vunpack.c.l.b16 %v3675
        %v3823 = vunpack.c.h.b16 %v3675
        %v3824 = vunpack.c.l.b16 %v3676
        %v3825 = vunpack.c.h.b16 %v3676
        %v3826 = vunpack.c.l.b16 %v3677
        %v3827 = vunpack.c.h.b16 %v3677
        %v3828 = vunpack.c.l.b16 %v3678
        %v3829 = vunpack.c.h.b16 %v3678
        %v3830 = vunpack.c.l.b16 %v3679
        %v3831 = vunpack.c.h.b16 %v3679
        %v3832 = vunpack.c.l.b16 %v3680
        %v3833 = vunpack.c.h.b16 %v3680
        %v3834 = vunpack.c.l.b16 %v3681
        %v3835 = vunpack.c.h.b16 %v3681
        %v3836 = vunpack.c.l.b16 %v3682
        %v3837 = vunpack.c.h.b16 %v3682
        %v3838 = vunpack.c.l.b16 %v3683
        %v3839 = vunpack.c.h.b16 %v3683
        %v3840 = vunpack.c.l.b16 %v3684
        %v3841 = vunpack.c.h.b16 %v3684
        %v3842 = vunpack.c.l.b16 %v3685
        %v3843 = vunpack.c.h.b16 %v3685
        %v3844 = vunpack.c.l.b16 %v3686
        %v3845 = vunpack.c.h.b16 %v3686
        %v3846 = vunpack.c.l.b16 %v3687
        %v3847 = vunpack.c.h.b16 %v3687
        %v3848 = vunpack.c.l.b16 %v3688
        %v3849 = vunpack.c.h.b16 %v3688
        %v3850 = vunpack.c.l.b16 %v3689
        %v3851 = vunpack.c.h.b16 %v3689
        %v3852 = vunpack.c.l.b16 %v3690
        %v3853 = vunpack.c.h.b16 %v3690
        %v3854 = vunpack.c.l.b16 %v3691
        %v3855 = vunpack.c.h.b16 %v3691
        %v3856 = vunpack.c.l.b16 %v3692
        %v3857 = vunpack.c.h.b16 %v3692
        %v3858 = vunpack.c.l.b16 %v3693
        %v3859 = vunpack.c.h.b16 %v3693
        %v3860 = vunpack.c.l.b16 %v3694
        %v3861 = vunpack.c.h.b16 %v3694
        %v3862 = vunpack.c.l.b16 %v3695
        %v3863 = vunpack.c.h.b16 %v3695
        %v3864 = vunpack.c.l.b16 %v3696
        %v3865 = vunpack.c.h.b16 %v3696
        %v3866 = vunpack.c.l.b16 %v3697
        %v3867 = vunpack.c.h.b16 %v3697
        %v3868 = vunpack.c.l.b16 %v3698
        %v3869 = vunpack.c.h.b16 %v3698
        %v3870 = vunpack.c.l.b16 %v3699
        %v3871 = vunpack.c.h.b16 %v3699
        %v3872 = vunpack.c.l.b16 %v3700
        %v3873 = vunpack.c.h.b16 %v3700
        %v3874 = vunpack.c.l.b16 %v3701
        %v3875 = vunpack.c.h.b16 %v3701
        %v3876 = vunpack.c.l.b16 %v3702
        %v3877 = vunpack.c.h.b16 %v3702
        %v3878 = vunpack.c.l.b16 %v3703
        %v3879 = vunpack.c.h.b16 %v3703
        %v3880 = vunpack.c.l.b16 %v3704
        %v3881 = vunpack.c.h.b16 %v3704
        %v3882 = vunpack.c.l.b16 %v3705
        %v3883 = vunpack.c.h.b16 %v3705
        %v3884 = vunpack.c.l.b16 %v3706
        %v3885 = vunpack.c.h.b16 %v3706
        %v3886 = vunpack.c.l.b16 %v3707
        %v3887 = vunpack.c.h.b16 %v3707
        %v3888 = vunpack.c.l.b16 %v3708
        %v3889 = vunpack.c.h.b16 %v3708
        %v3890 = vunpack.c.l.b16 %v3709
        %v3891 = vunpack.c.h.b16 %v3709
        %v3892 = vunpack.c.l.b16 %v3710
        %v3893 = vunpack.c.h.b16 %v3710
        %v3894 = vunpack.c.l.b16 %v3711
        %v3895 = vunpack.c.h.b16 %v3711
        %v3896 = vunpack.c.l.b16 %v3712
        %v3897 = vunpack.c.h.b16 %v3712
        %v3898 = vunpack.c.l.b16 %v3713
        %v3899 = vunpack.c.h.b16 %v3713
        %v3900 = vunpack.c.l.b16 %v3714
        %v3901 = vunpack.c.h.b16 %v3714
        %v3902 = vunpack.c.l.b16 %v3715
        %v3903 = vunpack.c.h.b16 %v3715
        %v3904 = vunpack.c.l.b16 %v3716
        %v3905 = vunpack.c.h.b16 %v3716
        %v3906 = vunpack.c.l.b16 %v3717
        %v3907 = vunpack.c.h.b16 %v3717
        %v3908 = vunpack.c.l.b16 %v3718
        %v3909 = vunpack.c.h.b16 %v3718
        %v3910 = vunpack.c.l.b16 %v3719
        %v3911 = vunpack.c.h.b16 %v3719
        %v3912 = vunpack.c.l.b16 %v3720
        %v3913 = vunpack.c.h.b16 %v3720
        %v3914 = vunpack.c.l.b16 %v3721
        %v3915 = vunpack.c.h.b16 %v3721
        %v3916 = vunpack.c.l.b16 %v3722
        %v3917 = vunpack.c.h.b16 %v3722
        %v3918 = vunpack.c.l.b16 %v3723
        %v3919 = vunpack.c.h.b16 %v3723
        %v3920 = vunpack.c.l.b16 %v3724
        %v3921 = vunpack.c.h.b16 %v3724
        %v3922 = vunpack.c.l.b16 %v3725
        %v3923 = vunpack.c.h.b16 %v3725
        %v3924 = vunpack.c.l.b16 %v3726
        %v3925 = vunpack.c.h.b16 %v3726
        %v3926 = vunpack.c.l.b16 %v3727
        %v3927 = vunpack.c.h.b16 %v3727
        %v3928 = vunpack.c.l.b16 %v3728
        %v3929 = vunpack.c.h.b16 %v3728
        %v3930 = vunpack.c.l.b16 %v3729
        %v3931 = vunpack.c.h.b16 %v3729
        %v3932 = vunpack.c.l.b16 %v3730
        %v3933 = vunpack.c.h.b16 %v3730
        %v3934 = vunpack.c.l.b16 %v3731
        %v3935 = vunpack.c.h.b16 %v3731
        %v3936 = vunpack.c.l.b16 %v3732
        %v3937 = vunpack.c.h.b16 %v3732
        %v3938 = vunpack.c.l.b16 %v3733
        %v3939 = vunpack.c.h.b16 %v3733
        %v3940 = vunpack.c.l.b16 %v3734
        %v3941 = vunpack.c.h.b16 %v3734
        %v3942 = vunpack.c.l.b16 %v3735
        %v3943 = vunpack.c.h.b16 %v3735
        %v3944 = vunpack.c.l.b16 %v3736
        %v3945 = vunpack.c.h.b16 %v3736
        %v3946 = vunpack.c.l.b16 %v3737
        %v3947 = vunpack.c.h.b16 %v3737
        %v3948 = vpack.c.b16 %v3822, %v3820
        %v3949 = vpack.c.b16 %v3823, %v3821
        %v3950 = vpack.c.b16 %v3826, %v3824
        %v3951 = vpack.c.b16 %v3827, %v3825
        %v3952 = vpack.c.b16 %v3830, %v3828
        %v3953 = vpack.c.b16 %v3831, %v3829
        %v3954 = vpack.c.b16 %v3834, %v3832
        %v3955 = vpack.c.b16 %v3835, %v3833
        %v3956 = vpack.c.b16 %v3838, %v3836
        %v3957 = vpack.c.b16 %v3839, %v3837
        %v3958 = vpack.c.b16 %v3842, %v3840
        %v3959 = vpack.c.b16 %v3843, %v3841
        %v3960 = vpack.c.b16 %v3846, %v3844
        %v3961 = vpack.c.b16 %v3847, %v3845
        %v3962 = vpack.c.b16 %v3850, %v3848
        %v3963 = vpack.c.b16 %v3851, %v3849
        %v3964 = vpack.c.b16 %v3854, %v3852
        %v3965 = vpack.c.b16 %v3855, %v3853
        %v3966 = vpack.c.b16 %v3858, %v3856
        %v3967 = vpack.c.b16 %v3859, %v3857
        %v3968 = vpack.c.b16 %v3862, %v3860
        %v3969 = vpack.c.b16 %v3863, %v3861
        %v3970 = vpack.c.b16 %v3866, %v3864
        %v3971 = vpack.c.b16 %v3867, %v3865
        %v3972 = vpack.c.b16 %v3870, %v3868
        %v3973 = vpack.c.b16 %v3871, %v3869
        %v3974 = vpack.c.b16 %v3874, %v3872
        %v3975 = vpack.c.b16 %v3875, %v3873
        %v3976 = vpack.c.b16 %v3878, %v3876
        %v3977 = vpack.c.b16 %v3879, %v3877
        %v3978 = vpack.c.b16 %v3882, %v3880
        %v3979 = vpack.c.b16 %v3883, %v3881
        %v3980 = vpack.c.b16 %v3886, %v3884
        %v3981 = vpack.c.b16 %v3887, %v3885
        %v3982 = vpack.c.b16 %v3890, %v3888
        %v3983 = vpack.c.b16 %v3891, %v3889
        %v3984 = vpack.c.b16 %v3894, %v3892
        %v3985 = vpack.c.b16 %v3895, %v3893
        %v3986 = vpack.c.b16 %v3898, %v3896
        %v3987 = vpack.c.b16 %v3899, %v3897
        %v3988 = vpack.c.b16 %v3902, %v3900
        %v3989 = vpack.c.b16 %v3903, %v3901
        %v3990 = vpack.c.b16 %v3906, %v3904
        %v3991 = vpack.c.b16 %v3907, %v3905
        %v3992 = vpack.c.b16 %v3910, %v3908
        %v3993 = vpack.c.b16 %v3911, %v3909
        %v3994 = vpack.c.b16 %v3914, %v3912
        %v3995 = vpack.c.b16 %v3915, %v3913
        %v3996 = vpack.c.b16 %v3918, %v3916
        %v3997 = vpack.c.b16 %v3919, %v3917
        %v3998 = vpack.c.b16 %v3922, %v3920
        %v3999 = vpack.c.b16 %v3923, %v3921
        %v4000 = vpack.c.b16 %v3926, %v3924
        %v4001 = vpack.c.b16 %v3927, %v3925
        %v4002 = vpack.c.b16 %v3930, %v3928
        %v4003 = vpack.c.b16 %v3931, %v3929
        %v4004 = vpack.c.b16 %v3934, %v3932
        %v4005 = vpack.c.b16 %v3935, %v3933
        %v4006 = vpack.c.b16 %v3938, %v3936
        %v4007 = vpack.c.b16 %v3939, %v3937
        %v4008 = vpack.c.b16 %v3942, %v3940
        %v4009 = vpack.c.b16 %v3943, %v3941
        %v4010 = vpack.c.b16 %v3946, %v3944
        %v4011 = vpack.c.b16 %v3947, %v3945
        %4076 = vmatprep.subr.bf16.mxu0 %v3949
        %4077 = vmatpush1.bf16.msra.mxu0 %v3948
        %4078 = vmatprep.subr.bf16.mxu0 %v3951
        %4079 = vmatpush1.bf16.msra.mxu0 %v3950
        %4080 = vmatprep.subr.bf16.mxu0 %v3953
        %4081 = vmatpush1.bf16.msra.mxu0 %v3952
        %4082 = vmatprep.subr.bf16.mxu0 %v3955
        %4083 = vmatpush1.bf16.msra.mxu0 %v3954
        %4084 = vmatprep.subr.bf16.mxu0 %v3957
        %4085 = vmatpush1.bf16.msra.mxu0 %v3956
        %4086 = vmatprep.subr.bf16.mxu0 %v3959
        %4087 = vmatpush1.bf16.msra.mxu0 %v3958
        %4088 = vmatprep.subr.bf16.mxu0 %v3961
        %4089 = vmatpush1.bf16.msra.mxu0 %v3960
        %4090 = vmatprep.subr.bf16.mxu0 %v3963
        %4091 = vmatpush1.bf16.msra.mxu0 %v3962
        %4092 = vmatprep.subr.bf16.mxu0 %v3965
        %4093 = vmatpush1.bf16.msra.mxu0 %v3964
        %4094 = vmatprep.subr.bf16.mxu0 %v3967
        %4095 = vmatpush1.bf16.msra.mxu0 %v3966
        %4096 = vmatprep.subr.bf16.mxu0 %v3969
        %4097 = vmatpush1.bf16.msra.mxu0 %v3968
        %4098 = vmatprep.subr.bf16.mxu0 %v3971
        %4099 = vmatpush1.bf16.msra.mxu0 %v3970
        %4100 = vmatprep.subr.bf16.mxu0 %v3973
        %4101 = vmatpush1.bf16.msra.mxu0 %v3972
        %4102 = vmatprep.subr.bf16.mxu0 %v3975
        %4103 = vmatpush1.bf16.msra.mxu0 %v3974
        %4104 = vmatprep.subr.bf16.mxu0 %v3977
        %4105 = vmatpush1.bf16.msra.mxu0 %v3976
        %4106 = vmatprep.subr.bf16.mxu0 %v3979
        %4107 = vmatpush1.bf16.msra.mxu0 %v3978
        %4108 = vmatprep.mubr.bf16.mxu0 %v3749
        %4109 = vmatmul.mubr.bf16.gmra.mrb[0].mxu0 %v3748
        %v4110 = vpop.f32.mrb[0].mxu0
        %v4111 = vadd.f32 0.0, %v4110
        %v4112 = vpop.f32.mrb[0].mxu0
        %v4113 = vadd.f32 0.0, %v4112
        %v4114 = vpop.f32.mrb[0].mxu0
        %v4115 = vpop.f32.mrb[0].mxu0
        %4116 = vdwg.mxu0
        %4117 = vmatprep.subr.bf16.mxu0 %v3981
        %4118 = vmatpush1.bf16.msra.mxu0 %v3980
        %4119 = vmatprep.subr.bf16.mxu0 %v3983
        %4120 = vmatpush1.bf16.msra.mxu0 %v3982
        %4121 = vmatprep.subr.bf16.mxu0 %v3985
        %4122 = vmatpush1.bf16.msra.mxu0 %v3984
        %4123 = vmatprep.subr.bf16.mxu0 %v3987
        %4124 = vmatpush1.bf16.msra.mxu0 %v3986
        %4125 = vmatprep.subr.bf16.mxu0 %v3989
        %4126 = vmatpush1.bf16.msra.mxu0 %v3988
        %4127 = vmatprep.subr.bf16.mxu0 %v3991
        %4128 = vmatpush1.bf16.msra.mxu0 %v3990
        %4129 = vmatprep.subr.bf16.mxu0 %v3993
        %4130 = vmatpush1.bf16.msra.mxu0 %v3992
        %4131 = vmatprep.subr.bf16.mxu0 %v3995
        %4132 = vmatpush1.bf16.msra.mxu0 %v3994
        %4133 = vmatprep.subr.bf16.mxu0 %v3997
        %4134 = vmatpush1.bf16.msra.mxu0 %v3996
        %4135 = vmatprep.subr.bf16.mxu0 %v3999
        %4136 = vmatpush1.bf16.msra.mxu0 %v3998
        %4137 = vmatprep.subr.bf16.mxu0 %v4001
        %4138 = vmatpush1.bf16.msra.mxu0 %v4000
        %4139 = vmatprep.subr.bf16.mxu0 %v4003
        %4140 = vmatpush1.bf16.msra.mxu0 %v4002
        %4141 = vmatprep.subr.bf16.mxu0 %v4005
        %4142 = vmatpush1.bf16.msra.mxu0 %v4004
        %4143 = vmatprep.subr.bf16.mxu0 %v4007
        %4144 = vmatpush1.bf16.msra.mxu0 %v4006
        %4145 = vmatprep.subr.bf16.mxu0 %v4009
        %4146 = vmatpush1.bf16.msra.mxu0 %v4008
        %4147 = vmatprep.subr.bf16.mxu0 %v4011
        %4148 = vmatpush1.bf16.msra.mxu0 %v4010
        %4149 = vmatprep.mubr.bf16.mxu0 %v3751
        %4150 = vmatmul.mubr.bf16.gmra.mrb[0].mxu0 %v3750
        %v4151 = vpop.f32.mrb[0].mxu0
        %v4152 = vadd.f32 %v4111, %v4151
        %v4153 = vpop.f32.mrb[0].mxu0
        %v4154 = vadd.f32 %v4113, %v4153
        %v4155 = vpop.f32.mrb[0].mxu0
        %v4156 = vpop.f32.mrb[0].mxu0
        %4157 = vdwg.mxu0
        %v4160 = vcombine.low %v4152, %v4154
        %v4162 = vunpack.c.l.s4 1966171168
        %v4163 = vunpack.c.0.s8 %v4162
        %v4164 = vlaneseq
        %v4165 = vshrl.u32 %v4164, 7
        %v4166 = vsub.s32 %v4163, %v4165
        %v4167 = vrot.slane %v4160, %v4166
        %v4169 = vunpack.c.l.s4 1966171168
        %v4170 = vunpack.c.0.s8 %v4169
        %v4171 = vlaneseq
        %v4172 = vshrl.u32 %v4171, 7
        %v4173 = vsub.s32 %v4170, %v4172
        %v4174 = vrot.slane %v4167, %v4173
        %v4176 = vadd.f32 %v3670, %v4174
        %v4177 = vlaneseq
        %vm4178 = vcmp.ge.s32.totalorder %v4177, 0
        %vm4179 = vcmp.lt.s32.totalorder %v4177, 256
        %vm4180 = vmand %vm4178, %vm4179
        %4181 = vst.msk [vmem:[#allocation2] sm:$0x3] %vm4180, %v4176
        %p4182 = scmp.eq.s32.totalorder %s21, 1
        // Predicated region
        $region75: #{cc_discriminator_p_forward.7} parent=65 // pred_check
          %p4183 = pneg %p4182
        $region76: #{cc_discriminator_p_forward.7} parent=65 // pred_check_branch
          %4185 = sbr.rel (%p4183) target = $region78
        $region77: #{cc_discriminator_p_forward.7} parent=65 // pred_region
          %v4186 = vld [vmem:[#allocation2] sm:$0x3]
          %v4187 = vld [vmem:[%s1558] sm:$0x3]
          %v4188 = vadd.f32 %v4186, %v4187
          %vm4189 = vcmp.ge.f32.partialorder %v4188, 0.0
          %v4190 = vmul.f32 %v4188, 0.1
          %v4191 = vsel %vm4189, %v4188, %v4190
          %v4193 = vlaneseq
          %v4194 = vshrl.u32 %v4193, 7
          %v4195 = vsub.s32 0, %v4194
          %v4196 = vrot.slane %v4191, %v4195
          %v4197 = vlaneseq
          %v4198 = vshrl.u32 %v4197, 7
          %v4199 = vsub.s32 1, %v4198
          %v4200 = vrot.slane %v4191, %v4199
          %v4203 = vpack.c.bf16 %v4196, %v4196
          %v4204 = vpack.c.bf16 %v4200, %v4200
          %v4207 = vcombine.low %v4203, %v4204
          %v4209 = vunpack.c.l.s4 1966171168
          %v4210 = vunpack.c.0.s8 %v4209
          %v4211 = vlaneseq
          %v4212 = vshrl.u32 %v4211, 7
          %v4213 = vsub.s32 %v4210, %v4212
          %v4214 = vrot.slane %v4207, %v4213
          %v4216 = vunpack.c.l.s4 1966171168
          %v4217 = vunpack.c.0.s8 %v4216
          %v4218 = vlaneseq
          %v4219 = vshrl.u32 %v4218, 7
          %v4220 = vsub.s32 %v4217, %v4219
          %v4221 = vrot.slane %v4214, %v4220
          %vm4223 = vcmask 1040384
          %vm4224 = vsmask.f32 256
          %vm4225 = vmand %vm4223, %vm4224
          %vm4226 = vmor %vm1620, %vm4225
          %v4227 = vld [vmem:[%s1567] sm:$0x3]
          %v4228 = vsel %vm4226, %v4221, %v4227
          %4229 = vst [vmem:[%s1567] sm:$0x3] %v4228
        $region78: #{cc_discriminator_p_forward.7} parent=65 // pred_fallthru
          _
        %s4230 = smul.u32 2, %s20
        %p4231 = scmp.lt.s32.totalorder %s19, 3
        %s4232 = scalar_select %p4231, %s19, 3
        %p4233 = scmp.lt.s32.totalorder %s4230, 7
        %s4234 = scalar_select %p4233, %s4230, 7
        %s4235 = smul.addr %s4232, 8
        %s4236 = sadd.s32 %s4234, %s4235
        %s4237 = scalar_lea.vmem %s3, %s4236
        // Predicated region
        $region79: #{cc_discriminator_p_forward.7} parent=65 // pred_check
          %p4238 = pneg %p135
        $region80: #{cc_discriminator_p_forward.7} parent=65 // pred_check_branch
          %4240 = sbr.rel (%p4238) target = $region82
        $region81: #{cc_discriminator_p_forward.7} parent=65 // pred_region
          %s4241 = smul.u32 2, %s20
        $region82: #{cc_discriminator_p_forward.7} parent=65 // pred_fallthru
          _
      $region66: #{cc_discriminator_p_forward.7} parent=5 // pred_fallthru
        _
      %p4242 = scmp.le.s32.totalorder 2, %s9
      // Predicated region
      $region83: #{cc_discriminator_p_forward.7} parent=5 // pred_check
        %p4243 = pneg %p4242
      $region84: #{cc_discriminator_p_forward.7} parent=5 // pred_check_branch
        %4245 = sbr.rel (%p4243) target = $region86
      $region85: #{cc_discriminator_p_forward.7} parent=5 // pred_region
        %s4246 = ssub.s32 %s9, 2
        // Predicated region
        $region87: #{cc_discriminator_p_forward.7} parent=85 // pred_check
          %p4247 = pneg %p141
        $region88: #{cc_discriminator_p_forward.7} parent=85 // pred_check_branch
          %4249 = sbr.rel (%p4247) target = $region90
        $region89: #{cc_discriminator_p_forward.7} parent=85 // pred_region
          %s4250 = smul.u32 2, %s23
          %p4251 = scmp.lt.s32.totalorder %s22, 3
          %s4252 = scalar_select %p4251, %s22, 3
          %p4253 = scmp.lt.s32.totalorder %s4250, 7
          %s4254 = scalar_select %p4253, %s4250, 7
          %s4255 = smul.addr %s4252, 8
          %s4256 = sadd.s32 %s4254, %s4255
          %s4257 = scalar_lea.vmem %s3, %s4256
        $region90: #{cc_discriminator_p_forward.7} parent=85 // pred_fallthru
          _
      $region86: #{cc_discriminator_p_forward.7} parent=5 // pred_fallthru
        _
    $region6: #{cc_discriminator_p_forward.7} parent=1 // loop_footer
      %s13 = sadd.s32 1, %s9
    $region7: #{cc_discriminator_p_forward.7} parent=1 // loop_footer_branch
      %8 = sbr.rel target = $region3
    $region8: #{cc_discriminator_p_forward.7} parent=1 // loop_exit
      _

</llo_original>
